<compile_context>
chip_gen: v5e
topology: v5e:2x2
jax: 0.10.0
libtpu: 0.0.40
codegen_flags: <defaults>
</compile_context>

<pallas_src>
import functools

import jax
import jax.numpy as jnp
from jax.experimental import pallas as pl
from jax.experimental.pallas import tpu as pltpu


# ----------------------------- Pallas kernels ------------------------------ #

def _conv1_kernel(w_ref, b_ref, a0_ref, a1_ref, o_ref):
    """conv1: 2 pooling parities (pool 1x2), big M -> two wide dots + max."""
    w = w_ref[...]
    y = jnp.dot(w, a0_ref[...], preferred_element_type=jnp.float32)
    y = jnp.maximum(y, jnp.dot(w, a1_ref[...], preferred_element_type=jnp.float32))
    o_ref[...] = jnp.maximum(y + b_ref[...], 0.0)


def _conv_pool_merged_kernel(n_par, m_out, w_ref, b_ref, a_ref, o_ref):
    """One GEMM over the lane-concatenated parity patches, pool-max over the
    n_par lane chunks (each m_out wide, 128-aligned for conv2), bias + ReLU."""
    y = jnp.dot(w_ref[...], a_ref[...], preferred_element_type=jnp.float32)
    m = y[:, :m_out]
    for p in range(1, n_par):
        m = jnp.maximum(m, y[:, p * m_out:(p + 1) * m_out])
    o_ref[...] = jnp.maximum(m + b_ref[...], 0.0)


def _conv3_linear_kernel(batch, n_par, seg, hw,
                         w_ref, b_ref, wl_ref, bl_ref, a_ref, o_ref):
    """conv3 + pool3 + linear + ReLU fused.

    a_ref : (K3, batch*n_par*seg) bf16, column segment (b, p) is seg=128 wide,
            first `hw` columns valid (rest zero-padded).
    w_ref : (C3, K3) bf16, b_ref: (C3, 1) f32
    wl_ref: (feat, C3, hw) f32  -- linear weight rearranged so it contracts the
            channel-major conv3 features directly (no in-kernel flatten).
    bl_ref: (feat, 1) f32
    o_ref : (feat, batch) f32  (wrapper transposes to [batch, feat])
    """
    y = jnp.dot(w_ref[...], a_ref[...], preferred_element_type=jnp.float32)
    b3 = b_ref[...]
    wl = wl_ref[...]
    bl = bl_ref[...]
    for b in range(batch):                      # B=2, statically unrolled
        base = b * n_par * seg
        m = y[:, base:base + seg]
        for p in range(1, n_par):               # 128-aligned parity slices
            m = jnp.maximum(m, y[:, base + p * seg:base + (p + 1) * seg])
        xb = jnp.maximum(m[:, :hw] + b3, 0.0)   # (C3, hw) conv3 features (f32)
        s = jnp.sum(wl * xb, axis=2)            # (feat, C3)  VPU mul + lane-reduce
        s = jnp.sum(s, axis=1, keepdims=True)   # (feat, 1)
        o_ref[:, b:b + 1] = jnp.maximum(s + bl, 0.0)


def _conv_pool4_kernel(w_ref, b_ref, a0_ref, a1_ref, a2_ref, a3_ref, o_ref):
    """Fallback (include_linear=False path) conv+pool with 4 parity operands."""
    w = w_ref[...]
    y = jnp.dot(w, a0_ref[...], preferred_element_type=jnp.float32)
    for a_ref in (a1_ref, a2_ref, a3_ref):
        y = jnp.maximum(y, jnp.dot(w, a_ref[...], preferred_element_type=jnp.float32))
    o_ref[...] = jnp.maximum(y + b_ref[...], 0.0)


# ----------------------------- layer helpers ------------------------------- #

def _im2col_pooled(x, pool_h, pool_w, ph, pw, fold_batch=True):
    """im2col for conv(k=3, s=2, p=1) restricted to the conv-output positions at
    pooling-window offset (ph, pw) of a (pool_h, pool_w) maxpool.

    x: [C, B, H, W] -> [C*9, B*Hp*Wp] (or [C*9, B, Hp*Wp] if not fold_batch),
    with Hp=H//2//pool_h, Wp=W//2//pool_w.  Column order is (b, hp, wp); row
    order is (c, ky, kx) — matches the reshaped PyTorch OIHW weight.
    """
    C, B, H, W = x.shape
    assert (H // 2) % pool_h == 0 and (W // 2) % pool_w == 0, (H, W, pool_h, pool_w)
    Hp = (H // 2) // pool_h
    Wp = (W // 2) // pool_w
    xp = jnp.pad(x, ((0, 0), (0, 0), (1, 1), (1, 1)))
    sh, sw = 2 * pool_h, 2 * pool_w
    taps = []
    for ky in range(3):
        for kx in range(3):
            y0 = 2 * ph + ky
            x0 = 2 * pw + kx
            taps.append(xp[:, :, y0:y0 + sh * Hp:sh, x0:x0 + sw * Wp:sw])
    p = jnp.stack(taps, axis=1)                 # [C, 9, B, Hp, Wp]
    if fold_batch:
        return p.reshape(C * 9, B * Hp * Wp)
    return p.reshape(C * 9, B, Hp * Wp)


def conv1_pool(x, wm, bm, nblk):
    """Conv2d(1->8, 3, s=2, p=1) + bias + ReLU + MaxPool(1,2). x: [1,B,H,W]."""
    C, B, H, W = x.shape
    Cout, K = wm.shape
    Hp, Wp = H // 2, (W // 2) // 2
    M = B * Hp * Wp
    a0 = _im2col_pooled(x, 1, 2, 0, 0).astype(jnp.bfloat16)
    a1 = _im2col_pooled(x, 1, 2, 0, 1).astype(jnp.bfloat16)
    if nblk < 1 or M % nblk != 0 or (nblk > 1 and (M // nblk) % 128 != 0):
        nblk = 1
    tile = M // nblk
    out = pl.pallas_call(
        _conv1_kernel,
        out_shape=jax.ShapeDtypeStruct((Cout, M), jnp.float32),
        grid=(nblk,),
        in_specs=[pl.BlockSpec((Cout, K), lambda i: (0, 0)),
                  pl.BlockSpec((Cout, 1), lambda i: (0, 0)),
                  pl.BlockSpec((K, tile), lambda i: (0, i)),
                  pl.BlockSpec((K, tile), lambda i: (0, i))],
        out_specs=pl.BlockSpec((Cout, tile), lambda i: (0, i)),
        compiler_params=pltpu.CompilerParams(
            dimension_semantics=("parallel",)),
    )(wm, bm, a0, a1)
    return out.reshape(Cout, B, Hp, Wp)


def conv2_pool(x, wm, bm):
    """Conv2d(8->16, 3, s=2, p=1) + bias + ReLU + MaxPool(2,2) as ONE GEMM."""
    C, B, H, W = x.shape
    Cout, K = wm.shape
    Hp, Wp = (H // 2) // 2, (W // 2) // 2
    M = B * Hp * Wp                            # 640 -> 128-aligned chunks
    a = jnp.concatenate(
        [_im2col_pooled(x, 2, 2, ph, pw) for ph in range(2) for pw in range(2)],
        axis=1).astype(jnp.bfloat16)           # (K, 4*M)
    out = pl.pallas_call(
        functools.partial(_conv_pool_merged_kernel, 4, M),
        out_shape=jax.ShapeDtypeStruct((Cout, M), jnp.float32),
        grid=(1,),
        in_specs=[pl.BlockSpec((Cout, K), lambda i: (0, 0)),
                  pl.BlockSpec((Cout, 1), lambda i: (0, 0)),
                  pl.BlockSpec((K, 4 * M), lambda i: (0, 0))],
        out_specs=pl.BlockSpec((Cout, M), lambda i: (0, 0)),
        compiler_params=pltpu.CompilerParams(
            dimension_semantics=("arbitrary",)),
    )(wm, bm, a)
    return out.reshape(Cout, B, Hp, Wp)


def conv3_pool_linear(x, wm, bm, wl3, bl):
    """Conv2d(16->32) + bias + ReLU + MaxPool(2,2) + Linear(640->feat) + ReLU,
    fused in one pallas_call.  Returns (feat, B)."""
    C, B, H, W = x.shape
    Cout, K = wm.shape
    Hp, Wp = (H // 2) // 2, (W // 2) // 2
    hw = Hp * Wp                               # 20
    feat = wl3.shape[0]
    n_par, seg = 4, 128                        # pad each (b, parity) chunk to 128 lanes
    parts = [_im2col_pooled(x, 2, 2, ph, pw, fold_batch=False)
             for ph in range(2) for pw in range(2)]      # each (K, B, hw)
    a = jnp.stack(parts, axis=2)                          # (K, B, 4, hw)
    a = jnp.pad(a, ((0, 0), (0, 0), (0, 0), (0, seg - hw)))
    a = a.reshape(K, B * n_par * seg).astype(jnp.bfloat16)
    return pl.pallas_call(
        functools.partial(_conv3_linear_kernel, B, n_par, seg, hw),
        out_shape=jax.ShapeDtypeStruct((feat, B), jnp.float32),
        grid=(1,),
        in_specs=[pl.BlockSpec((Cout, K), lambda i: (0, 0)),
                  pl.BlockSpec((Cout, 1), lambda i: (0, 0)),
                  pl.BlockSpec((feat, Cout, hw), lambda i: (0, 0, 0)),
                  pl.BlockSpec((feat, 1), lambda i: (0, 0)),
                  pl.BlockSpec((K, B * n_par * seg), lambda i: (0, 0))],
        out_specs=pl.BlockSpec((feat, B), lambda i: (0, 0)),
        compiler_params=pltpu.CompilerParams(
            dimension_semantics=("arbitrary",)),
    )(wm, bm, wl3, bl, a)


def conv3_pool_nolinear(x, wm, bm):
    """conv3 + pool3 only (include_linear=False path)."""
    C, B, H, W = x.shape
    Cout, K = wm.shape
    Hp, Wp = (H // 2) // 2, (W // 2) // 2
    M = B * Hp * Wp
    patches = [_im2col_pooled(x, 2, 2, ph, pw).astype(jnp.bfloat16)
               for ph in range(2) for pw in range(2)]
    out = pl.pallas_call(
        _conv_pool4_kernel,
        out_shape=jax.ShapeDtypeStruct((Cout, M), jnp.float32),
        grid=(1,),
        in_specs=[pl.BlockSpec((Cout, K), lambda i: (0, 0)),
                  pl.BlockSpec((Cout, 1), lambda i: (0, 0))]
                 + [pl.BlockSpec((K, M), lambda i: (0, 0)) for _ in range(4)],
        out_specs=pl.BlockSpec((Cout, M), lambda i: (0, 0)),
        compiler_params=pltpu.CompilerParams(
            dimension_semantics=("arbitrary",)),
    )(wm, bm, *patches)
    return out.reshape(Cout, B, Hp, Wp)


# ----------------------------- parameters ---------------------------------- #

def init_params(key, feature_size=64):
    ks = jax.random.split(key, 8)

    def conv_w(k, cout, cin):
        fan = cin * 9
        return (jax.random.normal(k, (cout, cin, 3, 3), jnp.float32)
                / jnp.sqrt(jnp.float32(fan)))

    return {
        "w1": conv_w(ks[0], 8, 1),
        "b1": 0.01 * jax.random.normal(ks[1], (8,), jnp.float32),
        "w2": conv_w(ks[2], 16, 8),
        "b2": 0.01 * jax.random.normal(ks[3], (16,), jnp.float32),
        "w3": conv_w(ks[4], 32, 16),
        "b3": 0.01 * jax.random.normal(ks[5], (32,), jnp.float32),
        "wl": (jax.random.normal(ks[6], (feature_size, 640), jnp.float32)
               / jnp.sqrt(jnp.float32(640))),
        "bl": 0.01 * jax.random.normal(ks[7], (feature_size,), jnp.float32),
    }


def prepare_params(params):
    """One-time reshape/transpose/cast of the PyTorch-layout weights."""
    def conv_prep(w, b):
        cout = w.shape[0]
        return (w.reshape(cout, -1).astype(jnp.bfloat16),    # [Cout, C*9]
                b.reshape(cout, 1).astype(jnp.float32))       # [Cout, 1]

    p = {}
    p["w1"], p["b1"] = conv_prep(params["w1"], params["b1"])
    p["w2"], p["b2"] = conv_prep(params["w2"], params["b2"])
    p["w3"], p["b3"] = conv_prep(params["w3"], params["b3"])
    feat = params["wl"].shape[0]
    c3 = params["w3"].shape[0]
    # Linear weight rearranged to [feat, C3, Hp*Wp] so the fused conv3 kernel
    # contracts the channel-major conv3 features without any in-kernel flatten.
    p["wl3"] = params["wl"].reshape(feat, c3, -1).astype(jnp.float32)
    p["bl"] = params["bl"].reshape(feat, 1).astype(jnp.float32)
    return p


def _conv1_num_blocks():
    """2 M-blocks when the chip has 2 TensorCores (v7x), else 1 (v5e/v6e)."""
    try:
        kind = jax.devices()[0].device_kind.lower()
    except Exception:
        return 2
    return 2 if "7" in kind else 1


# ----------------------------- full model ---------------------------------- #

@functools.partial(jax.jit, static_argnames=("include_linear", "conv1_blocks"))
def traj_model_forward(traj, p, include_linear=True, conv1_blocks=1):
    """traj: [B, 1, 128, 320] (NCHW) -> [B, feature_size]."""
    x = jnp.transpose(traj, (1, 0, 2, 3))                 # [1, B, 128, 320] (C=1: free)
    x = conv1_pool(x, p["w1"], p["b1"], conv1_blocks)     # [8,  B, 64, 80]
    x = conv2_pool(x, p["w2"], p["b2"])                   # [16, B, 16, 20]
    if include_linear:
        y = conv3_pool_linear(x, p["w3"], p["b3"], p["wl3"], p["bl"])  # (feat, B)
        return y.T                                        # [B, feat]
    x = conv3_pool_nolinear(x, p["w3"], p["b3"])          # [32, B, 4, 5]
    return jnp.transpose(x, (1, 0, 2, 3))                 # NCHW, like PyTorch


# ----------------------------- reference (pure JAX) ------------------------- #

def _ref_forward(traj, params):
    def conv(x, w, b):
        y = jax.lax.conv_general_dilated(
            x, w, window_strides=(2, 2), padding=((1, 1), (1, 1)),
            dimension_numbers=("NCHW", "OIHW", "NCHW"))
        return jnp.maximum(y + b[None, :, None, None], 0.0)

    def pool(x, kh, kw):
        return jax.lax.reduce_window(
            x, -jnp.inf, jax.lax.max,
            window_dimensions=(1, 1, kh, kw), window_strides=(1, 1, kh, kw),
            padding="VALID")

    x = pool(conv(traj, params["w1"], params["b1"]), 1, 2)
    x = pool(conv(x, params["w2"], params["b2"]), 2, 2)
    x = pool(conv(x, params["w3"], params["b3"]), 2, 2)
    flat = x.reshape(x.shape[0], -1)
    return jnp.maximum(flat @ params["wl"].T + params["bl"], 0.0)


# ----------------------------- main ----------------------------------------- #

if __name__ == "__main__":
    key = jax.random.PRNGKey(0)
    k_in, k_par = jax.random.split(key)

    # B=2; spatial must be 128x320 because the Linear layer expects 640 features.
    traj = jax.random.uniform(k_in, (2, 1, 128, 320), jnp.float32)
    params = init_params(k_par, feature_size=64)
    prepped = prepare_params(params)

    out = traj_model_forward(traj, prepped, conv1_blocks=_conv1_num_blocks())
    out = jax.block_until_ready(out)
    assert out.shape == (2, 64), out.shape

    ref = jax.block_until_ready(_ref_forward(traj, params))
    max_err = float(jnp.max(jnp.abs(out - ref)))
    # bf16 GEMM operands with f32 accumulation -> a few-percent tolerance.
    assert jnp.allclose(out, ref, atol=3e-2, rtol=3e-2), max_err

    print("KERNEL_OK")
</pallas_src>

<mosaic_0001>
module attributes {stable_mosaic.version = 11 : i64} {
  func.func @_conv1_kernel(%arg0: i32, %arg1: memref<8x9xbf16, #tpu.memory_space<vmem>>, %arg2: memref<8x1xf32, #tpu.memory_space<vmem>>, %arg3: memref<9x10240xbf16, #tpu.memory_space<vmem>>, %arg4: memref<9x10240xbf16, #tpu.memory_space<vmem>>, %arg5: memref<8x10240xf32, #tpu.memory_space<vmem>>) attributes {dimension_semantics = [#tpu.dimension_semantics<parallel>], iteration_bounds = array<i64: 1>, scalar_prefetch = 0 : i64, scratch_operands = 0 : i64, tpu.core_type = #tpu.core_type<tc>, window_params = [{pipeline_mode = #tpu.pipeline_mode<synchronous>, transform_indices = @transform_0, window_bounds = array<i64: 8, 9>}, {pipeline_mode = #tpu.pipeline_mode<synchronous>, transform_indices = @transform_1, window_bounds = array<i64: 8, 1>}, {transform_indices = @transform_2, window_bounds = array<i64: 9, 10240>}, {transform_indices = @transform_3, window_bounds = array<i64: 9, 10240>}, {transform_indices = @transform_4, window_bounds = array<i64: 8, 10240>}]} {
    %c0 = arith.constant 0 : index
    %c0_0 = arith.constant 0 : index
    %0 = vector.load %arg1[%c0, %c0_0] : memref<8x9xbf16, #tpu.memory_space<vmem>>, vector<8x9xbf16>
    %c0_1 = arith.constant 0 : index
    %c0_2 = arith.constant 0 : index
    %1 = vector.load %arg3[%c0_1, %c0_2] : memref<9x10240xbf16, #tpu.memory_space<vmem>>, vector<9x10240xbf16>
    %cst = arith.constant dense<0.000000e+00> : vector<8x10240xf32>
    %2 = tpu.matmul %0, %1, %cst {dimension_numbers = #tpu.dot_dimension_numbers<[1], [0], [0], [1], [0, 0, 1, 1], [], []>} : vector<8x9xbf16>, vector<9x10240xbf16>, vector<8x10240xf32> -> vector<8x10240xf32>
    %c0_3 = arith.constant 0 : index
    %c0_4 = arith.constant 0 : index
    %3 = vector.load %arg4[%c0_3, %c0_4] : memref<9x10240xbf16, #tpu.memory_space<vmem>>, vector<9x10240xbf16>
    %cst_5 = arith.constant dense<0.000000e+00> : vector<8x10240xf32>
    %4 = tpu.matmul %0, %3, %cst_5 {dimension_numbers = #tpu.dot_dimension_numbers<[1], [0], [0], [1], [0, 0, 1, 1], [], []>} : vector<8x9xbf16>, vector<9x10240xbf16>, vector<8x10240xf32> -> vector<8x10240xf32>
    %5 = arith.maximumf %2, %4 : vector<8x10240xf32>
    %c0_6 = arith.constant 0 : index
    %c0_7 = arith.constant 0 : index
    %6 = vector.load %arg2[%c0_6, %c0_7] : memref<8x1xf32, #tpu.memory_space<vmem>>, vector<8x1xf32>
    %7 = vector.broadcast %6 : vector<8x1xf32> to vector<8x10240xf32>
    %8 = arith.addf %5, %7 : vector<8x10240xf32>
    %cst_8 = arith.constant 0.000000e+00 : f32
    %9 = vector.broadcast %cst_8 : f32 to vector<8x10240xf32>
    %10 = arith.maximumf %8, %9 : vector<8x10240xf32>
    %c0_9 = arith.constant 0 : index
    %c0_10 = arith.constant 0 : index
    %11 = vector.load %arg5[%c0_9, %c0_10] : memref<8x10240xf32, #tpu.memory_space<vmem>>, vector<8x10240xf32>
    tpu.vector_store %arg5[%c0_9, %c0_10], %10 {strides = array<i32>} : memref<8x10240xf32, #tpu.memory_space<vmem>>, vector<8x10240xf32>,
    return
  }
  func.func @transform_0(%arg0: i32) -> (i32, i32) {
    %c0_i32 = arith.constant 0 : i32
    %c0_i32_0 = arith.constant 0 : i32
    %c0_i32_1 = arith.constant 0 : i32
    return %c0_i32, %c0_i32_0 : i32, i32
  }
  func.func @transform_1(%arg0: i32) -> (i32, i32) {
    %c0_i32 = arith.constant 0 : i32
    %c0_i32_0 = arith.constant 0 : i32
    %c0_i32_1 = arith.constant 0 : i32
    return %c0_i32, %c0_i32_0 : i32, i32
  }
  func.func @transform_2(%arg0: i32) -> (i32, i32) {
    %c0_i32 = arith.constant 0 : i32
    %c0_i32_0 = arith.constant 0 : i32
    return %c0_i32, %arg0 : i32, i32
  }
  func.func @transform_3(%arg0: i32) -> (i32, i32) {
    %c0_i32 = arith.constant 0 : i32
    %c0_i32_0 = arith.constant 0 : i32
    return %c0_i32, %arg0 : i32, i32
  }
  func.func @transform_4(%arg0: i32) -> (i32, i32) {
    %c0_i32 = arith.constant 0 : i32
    %c0_i32_0 = arith.constant 0 : i32
    return %c0_i32, %arg0 : i32, i32
  }
}

module attributes {stable_mosaic.version = 11 : i64} {
  func.func @_conv_pool_merged_kernel(%arg0: i32, %arg1: memref<16x72xbf16, #tpu.memory_space<vmem>>, %arg2: memref<16x1xf32, #tpu.memory_space<vmem>>, %arg3: memref<72x2560xbf16, #tpu.memory_space<vmem>>, %arg4: memref<16x640xf32, #tpu.memory_space<vmem>>) attributes {dimension_semantics = [#tpu.dimension_semantics<arbitrary>], iteration_bounds = array<i64: 1>, scalar_prefetch = 0 : i64, scratch_operands = 0 : i64, tpu.core_type = #tpu.core_type<tc>, window_params = [{pipeline_mode = #tpu.pipeline_mode<synchronous>, transform_indices = @transform_0, window_bounds = array<i64: 16, 72>}, {pipeline_mode = #tpu.pipeline_mode<synchronous>, transform_indices = @transform_1, window_bounds = array<i64: 16, 1>}, {pipeline_mode = #tpu.pipeline_mode<synchronous>, transform_indices = @transform_2, window_bounds = array<i64: 72, 2560>}, {pipeline_mode = #tpu.pipeline_mode<synchronous>, transform_indices = @transform_3, window_bounds = array<i64: 16, 640>}]} {
    %c0 = arith.constant 0 : index
    %c0_0 = arith.constant 0 : index
    %0 = vector.load %arg1[%c0, %c0_0] : memref<16x72xbf16, #tpu.memory_space<vmem>>, vector<16x72xbf16>
    %c0_1 = arith.constant 0 : index
    %c0_2 = arith.constant 0 : index
    %1 = vector.load %arg3[%c0_1, %c0_2] : memref<72x2560xbf16, #tpu.memory_space<vmem>>, vector<72x2560xbf16>
    %cst = arith.constant dense<0.000000e+00> : vector<16x2560xf32>
    %2 = tpu.matmul %0, %1, %cst {dimension_numbers = #tpu.dot_dimension_numbers<[1], [0], [0], [1], [0, 0, 1, 1], [], []>} : vector<16x72xbf16>, vector<72x2560xbf16>, vector<16x2560xf32> -> vector<16x2560xf32>
    %3 = vector.extract_strided_slice %2 {offsets = [0, 0], sizes = [16, 640], strides = [1, 1]} : vector<16x2560xf32> to vector<16x640xf32>
    %4 = vector.extract_strided_slice %2 {offsets = [0, 640], sizes = [16, 640], strides = [1, 1]} : vector<16x2560xf32> to vector<16x640xf32>
    %5 = arith.maximumf %3, %4 : vector<16x640xf32>
    %6 = vector.extract_strided_slice %2 {offsets = [0, 1280], sizes = [16, 640], strides = [1, 1]} : vector<16x2560xf32> to vector<16x640xf32>
    %7 = arith.maximumf %5, %6 : vector<16x640xf32>
    %8 = vector.extract_strided_slice %2 {offsets = [0, 1920], sizes = [16, 640], strides = [1, 1]} : vector<16x2560xf32> to vector<16x640xf32>
    %9 = arith.maximumf %7, %8 : vector<16x640xf32>
    %c0_3 = arith.constant 0 : index
    %c0_4 = arith.constant 0 : index
    %10 = vector.load %arg2[%c0_3, %c0_4] : memref<16x1xf32, #tpu.memory_space<vmem>>, vector<16x1xf32>
    %11 = vector.broadcast %10 : vector<16x1xf32> to vector<16x640xf32>
    %12 = arith.addf %9, %11 : vector<16x640xf32>
    %cst_5 = arith.constant 0.000000e+00 : f32
    %13 = vector.broadcast %cst_5 : f32 to vector<16x640xf32>
    %14 = arith.maximumf %12, %13 : vector<16x640xf32>
    %c0_6 = arith.constant 0 : index
    %c0_7 = arith.constant 0 : index
    %15 = vector.load %arg4[%c0_6, %c0_7] : memref<16x640xf32, #tpu.memory_space<vmem>>, vector<16x640xf32>
    tpu.vector_store %arg4[%c0_6, %c0_7], %14 {strides = array<i32>} : memref<16x640xf32, #tpu.memory_space<vmem>>, vector<16x640xf32>,
    return
  }
  func.func @transform_0(%arg0: i32) -> (i32, i32) {
    %c0_i32 = arith.constant 0 : i32
    %c0_i32_0 = arith.constant 0 : i32
    %c0_i32_1 = arith.constant 0 : i32
    return %c0_i32, %c0_i32_0 : i32, i32
  }
  func.func @transform_1(%arg0: i32) -> (i32, i32) {
    %c0_i32 = arith.constant 0 : i32
    %c0_i32_0 = arith.constant 0 : i32
    %c0_i32_1 = arith.constant 0 : i32
    return %c0_i32, %c0_i32_0 : i32, i32
  }
  func.func @transform_2(%arg0: i32) -> (i32, i32) {
    %c0_i32 = arith.constant 0 : i32
    %c0_i32_0 = arith.constant 0 : i32
    %c0_i32_1 = arith.constant 0 : i32
    return %c0_i32, %c0_i32_0 : i32, i32
  }
  func.func @transform_3(%arg0: i32) -> (i32, i32) {
    %c0_i32 = arith.constant 0 : i32
    %c0_i32_0 = arith.constant 0 : i32
    %c0_i32_1 = arith.constant 0 : i32
    return %c0_i32, %c0_i32_0 : i32, i32
  }
}

module attributes {stable_mosaic.version = 11 : i64} {
  func.func @_conv3_linear_kernel(%arg0: i32, %arg1: memref<32x144xbf16, #tpu.memory_space<vmem>>, %arg2: memref<32x1xf32, #tpu.memory_space<vmem>>, %arg3: memref<64x32x20xf32, #tpu.memory_space<vmem>>, %arg4: memref<64x1xf32, #tpu.memory_space<vmem>>, %arg5: memref<144x1024xbf16, #tpu.memory_space<vmem>>, %arg6: memref<64x2xf32, #tpu.memory_space<vmem>>) attributes {dimension_semantics = [#tpu.dimension_semantics<arbitrary>], iteration_bounds = array<i64: 1>, scalar_prefetch = 0 : i64, scratch_operands = 0 : i64, tpu.core_type = #tpu.core_type<tc>, window_params = [{pipeline_mode = #tpu.pipeline_mode<synchronous>, transform_indices = @transform_0, window_bounds = array<i64: 32, 144>}, {pipeline_mode = #tpu.pipeline_mode<synchronous>, transform_indices = @transform_1, window_bounds = array<i64: 32, 1>}, {pipeline_mode = #tpu.pipeline_mode<synchronous>, transform_indices = @transform_2, window_bounds = array<i64: 64, 32, 20>}, {pipeline_mode = #tpu.pipeline_mode<synchronous>, transform_indices = @transform_3, window_bounds = array<i64: 64, 1>}, {pipeline_mode = #tpu.pipeline_mode<synchronous>, transform_indices = @transform_4, window_bounds = array<i64: 144, 1024>}, {pipeline_mode = #tpu.pipeline_mode<synchronous>, transform_indices = @transform_5, window_bounds = array<i64: 64, 2>}]} {
    %c0 = arith.constant 0 : index
    %c0_0 = arith.constant 0 : index
    %0 = vector.load %arg1[%c0, %c0_0] : memref<32x144xbf16, #tpu.memory_space<vmem>>, vector<32x144xbf16>
    %c0_1 = arith.constant 0 : index
    %c0_2 = arith.constant 0 : index
    %1 = vector.load %arg5[%c0_1, %c0_2] : memref<144x1024xbf16, #tpu.memory_space<vmem>>, vector<144x1024xbf16>
    %cst = arith.constant dense<0.000000e+00> : vector<32x1024xf32>
    %2 = tpu.matmul %0, %1, %cst {dimension_numbers = #tpu.dot_dimension_numbers<[1], [0], [0], [1], [0, 0, 1, 1], [], []>} : vector<32x144xbf16>, vector<144x1024xbf16>, vector<32x1024xf32> -> vector<32x1024xf32>
    %c0_3 = arith.constant 0 : index
    %c0_4 = arith.constant 0 : index
    %3 = vector.load %arg2[%c0_3, %c0_4] : memref<32x1xf32, #tpu.memory_space<vmem>>, vector<32x1xf32>
    %c0_5 = arith.constant 0 : index
    %c0_6 = arith.constant 0 : index
    %c0_7 = arith.constant 0 : index
    %4 = vector.load %arg3[%c0_5, %c0_6, %c0_7] : memref<64x32x20xf32, #tpu.memory_space<vmem>>, vector<64x32x20xf32>
    %c0_8 = arith.constant 0 : index
    %c0_9 = arith.constant 0 : index
    %5 = vector.load %arg4[%c0_8, %c0_9] : memref<64x1xf32, #tpu.memory_space<vmem>>, vector<64x1xf32>
    %6 = vector.extract_strided_slice %2 {offsets = [0, 0], sizes = [32, 128], strides = [1, 1]} : vector<32x1024xf32> to vector<32x128xf32>
    %7 = vector.extract_strided_slice %2 {offsets = [0, 128], sizes = [32, 128], strides = [1, 1]} : vector<32x1024xf32> to vector<32x128xf32>
    %8 = arith.maximumf %6, %7 : vector<32x128xf32>
    %9 = vector.extract_strided_slice %2 {offsets = [0, 256], sizes = [32, 128], strides = [1, 1]} : vector<32x1024xf32> to vector<32x128xf32>
    %10 = arith.maximumf %8, %9 : vector<32x128xf32>
    %11 = vector.extract_strided_slice %2 {offsets = [0, 384], sizes = [32, 128], strides = [1, 1]} : vector<32x1024xf32> to vector<32x128xf32>
    %12 = arith.maximumf %10, %11 : vector<32x128xf32>
    %13 = vector.extract_strided_slice %12 {offsets = [0, 0], sizes = [32, 20], strides = [1, 1]} : vector<32x128xf32> to vector<32x20xf32>
    %14 = vector.broadcast %3 : vector<32x1xf32> to vector<32x20xf32>
    %15 = arith.addf %13, %14 : vector<32x20xf32>
    %cst_10 = arith.constant 0.000000e+00 : f32
    %16 = vector.broadcast %cst_10 : f32 to vector<32x20xf32>
    %17 = arith.maximumf %15, %16 : vector<32x20xf32>
    %18 = vector.shape_cast %17 : vector<32x20xf32> to vector<1x32x20xf32>
    %19 = vector.broadcast %18 : vector<1x32x20xf32> to vector<64x32x20xf32>
    %20 = arith.mulf %4, %19 : vector<64x32x20xf32>
    %cst_11 = arith.constant dense<0.000000e+00> : vector<64x32xf32>
    %21 = vector.multi_reduction <add>, %20, %cst_11 [2] : vector<64x32x20xf32> to vector<64x32xf32>
    %cst_12 = arith.constant dense<0.000000e+00> : vector<64xf32>
    %22 = vector.multi_reduction <add>, %21, %cst_12 [1] : vector<64x32xf32> to vector<64xf32>
    %23 = vector.shape_cast %22 : vector<64xf32> to vector<64x1xf32>
    %24 = arith.addf %23, %5 : vector<64x1xf32>
    %cst_13 = arith.constant 0.000000e+00 : f32
    %25 = vector.broadcast %cst_13 : f32 to vector<64x1xf32>
    %26 = arith.maximumf %24, %25 : vector<64x1xf32>
    %c0_14 = arith.constant 0 : index
    %c0_15 = arith.constant 0 : index
    %27 = vector.load %arg6[%c0_14, %c0_15] : memref<64x2xf32, #tpu.memory_space<vmem>>, vector<64x1xf32>
    tpu.vector_store %arg6[%c0_14, %c0_15], %26 {strides = array<i32>} : memref<64x2xf32, #tpu.memory_space<vmem>>, vector<64x1xf32>,
    %28 = vector.extract_strided_slice %2 {offsets = [0, 512], sizes = [32, 128], strides = [1, 1]} : vector<32x1024xf32> to vector<32x128xf32>
    %29 = vector.extract_strided_slice %2 {offsets = [0, 640], sizes = [32, 128], strides = [1, 1]} : vector<32x1024xf32> to vector<32x128xf32>
    %30 = arith.maximumf %28, %29 : vector<32x128xf32>
    %31 = vector.extract_strided_slice %2 {offsets = [0, 768], sizes = [32, 128], strides = [1, 1]} : vector<32x1024xf32> to vector<32x128xf32>
    %32 = arith.maximumf %30, %31 : vector<32x128xf32>
    %33 = vector.extract_strided_slice %2 {offsets = [0, 896], sizes = [32, 128], strides = [1, 1]} : vector<32x1024xf32> to vector<32x128xf32>
    %34 = arith.maximumf %32, %33 : vector<32x128xf32>
    %35 = vector.extract_strided_slice %34 {offsets = [0, 0], sizes = [32, 20], strides = [1, 1]} : vector<32x128xf32> to vector<32x20xf32>
    %36 = vector.broadcast %3 : vector<32x1xf32> to vector<32x20xf32>
    %37 = arith.addf %35, %36 : vector<32x20xf32>
    %cst_16 = arith.constant 0.000000e+00 : f32
    %38 = vector.broadcast %cst_16 : f32 to vector<32x20xf32>
    %39 = arith.maximumf %37, %38 : vector<32x20xf32>
    %40 = vector.shape_cast %39 : vector<32x20xf32> to vector<1x32x20xf32>
    %41 = vector.broadcast %40 : vector<1x32x20xf32> to vector<64x32x20xf32>
    %42 = arith.mulf %4, %41 : vector<64x32x20xf32>
    %cst_17 = arith.constant dense<0.000000e+00> : vector<64x32xf32>
    %43 = vector.multi_reduction <add>, %42, %cst_17 [2] : vector<64x32x20xf32> to vector<64x32xf32>
    %cst_18 = arith.constant dense<0.000000e+00> : vector<64xf32>
    %44 = vector.multi_reduction <add>, %43, %cst_18 [1] : vector<64x32xf32> to vector<64xf32>
    %45 = vector.shape_cast %44 : vector<64xf32> to vector<64x1xf32>
    %46 = arith.addf %45, %5 : vector<64x1xf32>
    %cst_19 = arith.constant 0.000000e+00 : f32
    %47 = vector.broadcast %cst_19 : f32 to vector<64x1xf32>
    %48 = arith.maximumf %46, %47 : vector<64x1xf32>
    %c0_20 = arith.constant 0 : index
    %c1 = arith.constant 1 : index
    %49 = vector.load %arg6[%c0_20, %c1] : memref<64x2xf32, #tpu.memory_space<vmem>>, vector<64x1xf32>
    tpu.vector_store %arg6[%c0_20, %c1], %48 {strides = array<i32>} : memref<64x2xf32, #tpu.memory_space<vmem>>, vector<64x1xf32>,
    return
  }
  func.func @transform_0(%arg0: i32) -> (i32, i32) {
    %c0_i32 = arith.constant 0 : i32
    %c0_i32_0 = arith.constant 0 : i32
    %c0_i32_1 = arith.constant 0 : i32
    return %c0_i32, %c0_i32_0 : i32, i32
  }
  func.func @transform_1(%arg0: i32) -> (i32, i32) {
    %c0_i32 = arith.constant 0 : i32
    %c0_i32_0 = arith.constant 0 : i32
    %c0_i32_1 = arith.constant 0 : i32
    return %c0_i32, %c0_i32_0 : i32, i32
  }
  func.func @transform_2(%arg0: i32) -> (i32, i32, i32) {
    %c0_i32 = arith.constant 0 : i32
    %c0_i32_0 = arith.constant 0 : i32
    %c0_i32_1 = arith.constant 0 : i32
    %c0_i32_2 = arith.constant 0 : i32
    return %c0_i32, %c0_i32_0, %c0_i32_1 : i32, i32, i32
  }
  func.func @transform_3(%arg0: i32) -> (i32, i32) {
    %c0_i32 = arith.constant 0 : i32
    %c0_i32_0 = arith.constant 0 : i32
    %c0_i32_1 = arith.constant 0 : i32
    return %c0_i32, %c0_i32_0 : i32, i32
  }
  func.func @transform_4(%arg0: i32) -> (i32, i32) {
    %c0_i32 = arith.constant 0 : i32
    %c0_i32_0 = arith.constant 0 : i32
    %c0_i32_1 = arith.constant 0 : i32
    return %c0_i32, %c0_i32_0 : i32, i32
  }
  func.func @transform_5(%arg0: i32) -> (i32, i32) {
    %c0_i32 = arith.constant 0 : i32
    %c0_i32_0 = arith.constant 0 : i32
    %c0_i32_1 = arith.constant 0 : i32
    return %c0_i32, %c0_i32_0 : i32, i32
  }
}

</mosaic_0001>

<llo_original>
// kernel: traj_model_forward.3
$region0: #{traj_model_forward.3}
  #allocation0 [shape = 'u32[]', space=smem, size = 0x4, offset = 0x4, fixed_abs, tag = 'smem constant byte address 0x4 - core index']
  #allocation1 [shape = 'u32[72,128]{1,0:T(1,128)}', space=vmem, size = 0x9000, scoped, tag = 'internal scratch']
  %s0 = inlined_call_operand.vmem [shape: bf16[8,9], index: 0, kind: input, shape index: {}]
  %s1 = inlined_call_operand.vmem [shape: f32[8,1], index: 1, kind: input, shape index: {}]
  %s2 = inlined_call_operand.vmem [shape: bf16[9,10240], index: 2, kind: input, shape index: {}]
  %s3 = inlined_call_operand.vmem [shape: bf16[9,10240], index: 3, kind: input, shape index: {}]
  %s4 = inlined_call_operand.vmem [shape: f32[8,10240], index: 4, kind: output, shape index: {}]
  %s5 = sld [smem:[#allocation0]]
  $region26: #{traj_model_forward.3} parent=0
    _
  %s7 = ssub.s32 1, %s5
  %s8 = scalar_select 0, %s7, %s5
  // Predicated region
  $region2: #{traj_model_forward.3} parent=0 // pred_check
    _
  $region3: #{traj_model_forward.3} parent=0 // pred_check_branch
    %10 = sbr.rel (0) target = $region5
  $region4: #{traj_model_forward.3} parent=0 // pred_region
    _
  $region5: #{traj_model_forward.3} parent=0 // pred_fallthru
    _
  // Predicated region
  $region6: #{traj_model_forward.3} parent=0 // pred_check
    _
  $region7: #{traj_model_forward.3} parent=0 // pred_check_branch
    %12 = sbr.rel (0) target = $region9
  $region8: #{traj_model_forward.3} parent=0 // pred_region
    _
  $region9: #{traj_model_forward.3} parent=0 // pred_fallthru
    _
  // Predicated region
  $region10: #{traj_model_forward.3} parent=0 // pred_check
    _
  $region11: #{traj_model_forward.3} parent=0 // pred_check_branch
    %14 = sbr.rel (0) target = $region13
  $region12: #{traj_model_forward.3} parent=0 // pred_region
    _
  $region13: #{traj_model_forward.3} parent=0 // pred_fallthru
    _
  // Predicated region
  $region14: #{traj_model_forward.3} parent=0 // pred_check
    _
  $region15: #{traj_model_forward.3} parent=0 // pred_check_branch
    %16 = sbr.rel (0) target = $region17
  $region16: #{traj_model_forward.3} parent=0 // pred_region
    _
  $region17: #{traj_model_forward.3} parent=0 // pred_fallthru
    _
  %v18 = vld [vmem:[%s0] sm:$0xf]
  %v19 = vld [vmem:[%s2] sm:$0xff]
  %v20 = vld [vmem:[%s2 + $0x8] sm:$0xff]
  %v21 = vld [vmem:[%s2 + $0x10] sm:$0xff]
  %v22 = vld [vmem:[%s2 + $0x18] sm:$0xff]
  %v23 = vld [vmem:[%s2 + $0x20] sm:$0xff]
  %v24 = vld [vmem:[%s2 + $0x28] sm:$0xff]
  %v25 = vld [vmem:[%s2 + $0x30] sm:$0xff]
  %v26 = vld [vmem:[%s2 + $0x38] sm:$0xff]
  %v27 = vld [vmem:[%s2 + $0x40] sm:$0xff]
  %v28 = vld [vmem:[%s2 + $0x48] sm:$0xff]
  %v29 = vld [vmem:[%s2 + $0x50] sm:$0xff]
  %v30 = vld [vmem:[%s2 + $0x58] sm:$0xff]
  %v31 = vld [vmem:[%s2 + $0x60] sm:$0xff]
  %v32 = vld [vmem:[%s2 + $0x68] sm:$0xff]
  %v33 = vld [vmem:[%s2 + $0x70] sm:$0xff]
  %v34 = vld [vmem:[%s2 + $0x78] sm:$0xff]
  %v35 = vld [vmem:[%s2 + $0x80] sm:$0xff]
  %v36 = vld [vmem:[%s2 + $0x88] sm:$0xff]
  %v37 = vld [vmem:[%s2 + $0x90] sm:$0xff]
  %v38 = vld [vmem:[%s2 + $0x98] sm:$0xff]
  %v39 = vld [vmem:[%s2 + $0xa0] sm:$0xff]
  %v40 = vld [vmem:[%s2 + $0xa8] sm:$0xff]
  %v41 = vld [vmem:[%s2 + $0xb0] sm:$0xff]
  %v42 = vld [vmem:[%s2 + $0xb8] sm:$0xff]
  %v43 = vld [vmem:[%s2 + $0xc0] sm:$0xff]
  %v44 = vld [vmem:[%s2 + $0xc8] sm:$0xff]
  %v45 = vld [vmem:[%s2 + $0xd0] sm:$0xff]
  %v46 = vld [vmem:[%s2 + $0xd8] sm:$0xff]
  %v47 = vld [vmem:[%s2 + $0xe0] sm:$0xff]
  %v48 = vld [vmem:[%s2 + $0xe8] sm:$0xff]
  %v49 = vld [vmem:[%s2 + $0xf0] sm:$0xff]
  %v50 = vld [vmem:[%s2 + $0xf8] sm:$0xff]
  %v51 = vld [vmem:[%s2 + $0x100] sm:$0xff]
  %v52 = vld [vmem:[%s2 + $0x108] sm:$0xff]
  %v53 = vld [vmem:[%s2 + $0x110] sm:$0xff]
  %v54 = vld [vmem:[%s2 + $0x118] sm:$0xff]
  %v55 = vld [vmem:[%s2 + $0x120] sm:$0xff]
  %v56 = vld [vmem:[%s2 + $0x128] sm:$0xff]
  %v57 = vld [vmem:[%s2 + $0x130] sm:$0xff]
  %v58 = vld [vmem:[%s2 + $0x138] sm:$0xff]
  %v59 = vld [vmem:[%s2 + $0x140] sm:$0x11]
  %v60 = vld [vmem:[%s2 + $0x148] sm:$0x11]
  %v61 = vld [vmem:[%s2 + $0x150] sm:$0x11]
  %v62 = vld [vmem:[%s2 + $0x158] sm:$0x11]
  %v63 = vld [vmem:[%s2 + $0x160] sm:$0x11]
  %v64 = vld [vmem:[%s2 + $0x168] sm:$0x11]
  %v65 = vld [vmem:[%s2 + $0x170] sm:$0x11]
  %v66 = vld [vmem:[%s2 + $0x178] sm:$0x11]
  %v67 = vld [vmem:[%s2 + $0x180] sm:$0x11]
  %v68 = vld [vmem:[%s2 + $0x188] sm:$0x11]
  %v69 = vld [vmem:[%s2 + $0x190] sm:$0x11]
  %v70 = vld [vmem:[%s2 + $0x198] sm:$0x11]
  %v71 = vld [vmem:[%s2 + $0x1a0] sm:$0x11]
  %v72 = vld [vmem:[%s2 + $0x1a8] sm:$0x11]
  %v73 = vld [vmem:[%s2 + $0x1b0] sm:$0x11]
  %v74 = vld [vmem:[%s2 + $0x1b8] sm:$0x11]
  %v75 = vld [vmem:[%s2 + $0x1c0] sm:$0x11]
  %v76 = vld [vmem:[%s2 + $0x1c8] sm:$0x11]
  %v77 = vld [vmem:[%s2 + $0x1d0] sm:$0x11]
  %v78 = vld [vmem:[%s2 + $0x1d8] sm:$0x11]
  %v79 = vld [vmem:[%s2 + $0x1e0] sm:$0x11]
  %v80 = vld [vmem:[%s2 + $0x1e8] sm:$0x11]
  %v81 = vld [vmem:[%s2 + $0x1f0] sm:$0x11]
  %v82 = vld [vmem:[%s2 + $0x1f8] sm:$0x11]
  %v83 = vld [vmem:[%s2 + $0x200] sm:$0x11]
  %v84 = vld [vmem:[%s2 + $0x208] sm:$0x11]
  %v85 = vld [vmem:[%s2 + $0x210] sm:$0x11]
  %v86 = vld [vmem:[%s2 + $0x218] sm:$0x11]
  %v87 = vld [vmem:[%s2 + $0x220] sm:$0x11]
  %v88 = vld [vmem:[%s2 + $0x228] sm:$0x11]
  %v89 = vld [vmem:[%s2 + $0x230] sm:$0x11]
  %v90 = vld [vmem:[%s2 + $0x238] sm:$0x11]
  %v91 = vld [vmem:[%s2 + $0x240] sm:$0x11]
  %v92 = vld [vmem:[%s2 + $0x248] sm:$0x11]
  %v93 = vld [vmem:[%s2 + $0x250] sm:$0x11]
  %v94 = vld [vmem:[%s2 + $0x258] sm:$0x11]
  %v95 = vld [vmem:[%s2 + $0x260] sm:$0x11]
  %v96 = vld [vmem:[%s2 + $0x268] sm:$0x11]
  %v97 = vld [vmem:[%s2 + $0x270] sm:$0x11]
  %v98 = vld [vmem:[%s2 + $0x278] sm:$0x11]
  %v179 = vunpack.c.l.b16 %v19
  %v180 = vunpack.c.h.b16 %v19
  %v181 = vunpack.c.l.b16 %v20
  %v182 = vunpack.c.h.b16 %v20
  %v183 = vunpack.c.l.b16 %v21
  %v184 = vunpack.c.h.b16 %v21
  %v185 = vunpack.c.l.b16 %v22
  %v186 = vunpack.c.h.b16 %v22
  %v187 = vunpack.c.l.b16 %v23
  %v188 = vunpack.c.h.b16 %v23
  %v189 = vunpack.c.l.b16 %v24
  %v190 = vunpack.c.h.b16 %v24
  %v191 = vunpack.c.l.b16 %v25
  %v192 = vunpack.c.h.b16 %v25
  %v193 = vunpack.c.l.b16 %v26
  %v194 = vunpack.c.h.b16 %v26
  %v195 = vunpack.c.l.b16 %v27
  %v196 = vunpack.c.h.b16 %v27
  %v197 = vunpack.c.l.b16 %v28
  %v198 = vunpack.c.h.b16 %v28
  %v199 = vunpack.c.l.b16 %v29
  %v200 = vunpack.c.h.b16 %v29
  %v201 = vunpack.c.l.b16 %v30
  %v202 = vunpack.c.h.b16 %v30
  %v203 = vunpack.c.l.b16 %v31
  %v204 = vunpack.c.h.b16 %v31
  %v205 = vunpack.c.l.b16 %v32
  %v206 = vunpack.c.h.b16 %v32
  %v207 = vunpack.c.l.b16 %v33
  %v208 = vunpack.c.h.b16 %v33
  %v209 = vunpack.c.l.b16 %v34
  %v210 = vunpack.c.h.b16 %v34
  %v211 = vunpack.c.l.b16 %v35
  %v212 = vunpack.c.h.b16 %v35
  %v213 = vunpack.c.l.b16 %v36
  %v214 = vunpack.c.h.b16 %v36
  %v215 = vunpack.c.l.b16 %v37
  %v216 = vunpack.c.h.b16 %v37
  %v217 = vunpack.c.l.b16 %v38
  %v218 = vunpack.c.h.b16 %v38
  %v219 = vunpack.c.l.b16 %v39
  %v220 = vunpack.c.h.b16 %v39
  %v221 = vunpack.c.l.b16 %v40
  %v222 = vunpack.c.h.b16 %v40
  %v223 = vunpack.c.l.b16 %v41
  %v224 = vunpack.c.h.b16 %v41
  %v225 = vunpack.c.l.b16 %v42
  %v226 = vunpack.c.h.b16 %v42
  %v227 = vunpack.c.l.b16 %v43
  %v228 = vunpack.c.h.b16 %v43
  %v229 = vunpack.c.l.b16 %v44
  %v230 = vunpack.c.h.b16 %v44
  %v231 = vunpack.c.l.b16 %v45
  %v232 = vunpack.c.h.b16 %v45
  %v233 = vunpack.c.l.b16 %v46
  %v234 = vunpack.c.h.b16 %v46
  %v235 = vunpack.c.l.b16 %v47
  %v236 = vunpack.c.h.b16 %v47
  %v237 = vunpack.c.l.b16 %v48
  %v238 = vunpack.c.h.b16 %v48
  %v239 = vunpack.c.l.b16 %v49
  %v240 = vunpack.c.h.b16 %v49
  %v241 = vunpack.c.l.b16 %v50
  %v242 = vunpack.c.h.b16 %v50
  %v243 = vunpack.c.l.b16 %v51
  %v244 = vunpack.c.h.b16 %v51
  %v245 = vunpack.c.l.b16 %v52
  %v246 = vunpack.c.h.b16 %v52
  %v247 = vunpack.c.l.b16 %v53
  %v248 = vunpack.c.h.b16 %v53
  %v249 = vunpack.c.l.b16 %v54
  %v250 = vunpack.c.h.b16 %v54
  %v251 = vunpack.c.l.b16 %v55
  %v252 = vunpack.c.h.b16 %v55
  %v253 = vunpack.c.l.b16 %v56
  %v254 = vunpack.c.h.b16 %v56
  %v255 = vunpack.c.l.b16 %v57
  %v256 = vunpack.c.h.b16 %v57
  %v257 = vunpack.c.l.b16 %v58
  %v258 = vunpack.c.h.b16 %v58
  %v259 = vunpack.c.l.b16 %v59
  %v260 = vunpack.c.h.b16 %v59
  %v261 = vunpack.c.l.b16 %v60
  %v262 = vunpack.c.h.b16 %v60
  %v263 = vunpack.c.l.b16 %v61
  %v264 = vunpack.c.h.b16 %v61
  %v265 = vunpack.c.l.b16 %v62
  %v266 = vunpack.c.h.b16 %v62
  %v267 = vunpack.c.l.b16 %v63
  %v268 = vunpack.c.h.b16 %v63
  %v269 = vunpack.c.l.b16 %v64
  %v270 = vunpack.c.h.b16 %v64
  %v271 = vunpack.c.l.b16 %v65
  %v272 = vunpack.c.h.b16 %v65
  %v273 = vunpack.c.l.b16 %v66
  %v274 = vunpack.c.h.b16 %v66
  %v275 = vunpack.c.l.b16 %v67
  %v276 = vunpack.c.h.b16 %v67
  %v277 = vunpack.c.l.b16 %v68
  %v278 = vunpack.c.h.b16 %v68
  %v279 = vunpack.c.l.b16 %v69
  %v280 = vunpack.c.h.b16 %v69
  %v281 = vunpack.c.l.b16 %v70
  %v282 = vunpack.c.h.b16 %v70
  %v283 = vunpack.c.l.b16 %v71
  %v284 = vunpack.c.h.b16 %v71
  %v285 = vunpack.c.l.b16 %v72
  %v286 = vunpack.c.h.b16 %v72
  %v287 = vunpack.c.l.b16 %v73
  %v288 = vunpack.c.h.b16 %v73
  %v289 = vunpack.c.l.b16 %v74
  %v290 = vunpack.c.h.b16 %v74
  %v291 = vunpack.c.l.b16 %v75
  %v292 = vunpack.c.h.b16 %v75
  %v293 = vunpack.c.l.b16 %v76
  %v294 = vunpack.c.h.b16 %v76
  %v295 = vunpack.c.l.b16 %v77
  %v296 = vunpack.c.h.b16 %v77
  %v297 = vunpack.c.l.b16 %v78
  %v298 = vunpack.c.h.b16 %v78
  %v299 = vunpack.c.l.b16 %v79
  %v300 = vunpack.c.h.b16 %v79
  %v301 = vunpack.c.l.b16 %v80
  %v302 = vunpack.c.h.b16 %v80
  %v303 = vunpack.c.l.b16 %v81
  %v304 = vunpack.c.h.b16 %v81
  %v305 = vunpack.c.l.b16 %v82
  %v306 = vunpack.c.h.b16 %v82
  %v307 = vunpack.c.l.b16 %v83
  %v308 = vunpack.c.h.b16 %v83
  %v309 = vunpack.c.l.b16 %v84
  %v310 = vunpack.c.h.b16 %v84
  %v311 = vunpack.c.l.b16 %v85
  %v312 = vunpack.c.h.b16 %v85
  %v313 = vunpack.c.l.b16 %v86
  %v314 = vunpack.c.h.b16 %v86
  %v315 = vunpack.c.l.b16 %v87
  %v316 = vunpack.c.h.b16 %v87
  %v317 = vunpack.c.l.b16 %v88
  %v318 = vunpack.c.h.b16 %v88
  %v319 = vunpack.c.l.b16 %v89
  %v320 = vunpack.c.h.b16 %v89
  %v321 = vunpack.c.l.b16 %v90
  %v322 = vunpack.c.h.b16 %v90
  %v323 = vunpack.c.l.b16 %v91
  %v324 = vunpack.c.h.b16 %v91
  %v325 = vunpack.c.l.b16 %v92
  %v326 = vunpack.c.h.b16 %v92
  %v327 = vunpack.c.l.b16 %v93
  %v328 = vunpack.c.h.b16 %v93
  %v329 = vunpack.c.l.b16 %v94
  %v330 = vunpack.c.h.b16 %v94
  %v331 = vunpack.c.l.b16 %v95
  %v332 = vunpack.c.h.b16 %v95
  %v333 = vunpack.c.l.b16 %v96
  %v334 = vunpack.c.h.b16 %v96
  %v335 = vunpack.c.l.b16 %v97
  %v336 = vunpack.c.h.b16 %v97
  %v337 = vunpack.c.l.b16 %v98
  %v338 = vunpack.c.h.b16 %v98
  %v339 = vpack.c.b16 %v259, %v179
  %v340 = vpack.c.b16 %v260, %v180
  %v341 = vpack.c.b16 %v261, %v181
  %v342 = vpack.c.b16 %v262, %v182
  %v343 = vpack.c.b16 %v263, %v183
  %v344 = vpack.c.b16 %v264, %v184
  %v345 = vpack.c.b16 %v265, %v185
  %v346 = vpack.c.b16 %v266, %v186
  %v347 = vpack.c.b16 %v267, %v187
  %v348 = vpack.c.b16 %v268, %v188
  %v349 = vpack.c.b16 %v269, %v189
  %v350 = vpack.c.b16 %v270, %v190
  %v351 = vpack.c.b16 %v271, %v191
  %v352 = vpack.c.b16 %v272, %v192
  %v353 = vpack.c.b16 %v273, %v193
  %v354 = vpack.c.b16 %v274, %v194
  %v355 = vpack.c.b16 %v275, %v195
  %v356 = vpack.c.b16 %v276, %v196
  %v357 = vpack.c.b16 %v277, %v197
  %v358 = vpack.c.b16 %v278, %v198
  %v359 = vpack.c.b16 %v279, %v199
  %v360 = vpack.c.b16 %v280, %v200
  %v361 = vpack.c.b16 %v281, %v201
  %v362 = vpack.c.b16 %v282, %v202
  %v363 = vpack.c.b16 %v283, %v203
  %v364 = vpack.c.b16 %v284, %v204
  %v365 = vpack.c.b16 %v285, %v205
  %v366 = vpack.c.b16 %v286, %v206
  %v367 = vpack.c.b16 %v287, %v207
  %v368 = vpack.c.b16 %v288, %v208
  %v369 = vpack.c.b16 %v289, %v209
  %v370 = vpack.c.b16 %v290, %v210
  %v371 = vpack.c.b16 %v291, %v211
  %v372 = vpack.c.b16 %v292, %v212
  %v373 = vpack.c.b16 %v293, %v213
  %v374 = vpack.c.b16 %v294, %v214
  %v375 = vpack.c.b16 %v295, %v215
  %v376 = vpack.c.b16 %v296, %v216
  %v377 = vpack.c.b16 %v297, %v217
  %v378 = vpack.c.b16 %v298, %v218
  %v379 = vpack.c.b16 %v299, %v219
  %v380 = vpack.c.b16 %v300, %v220
  %v381 = vpack.c.b16 %v301, %v221
  %v382 = vpack.c.b16 %v302, %v222
  %v383 = vpack.c.b16 %v303, %v223
  %v384 = vpack.c.b16 %v304, %v224
  %v385 = vpack.c.b16 %v305, %v225
  %v386 = vpack.c.b16 %v306, %v226
  %v387 = vpack.c.b16 %v307, %v227
  %v388 = vpack.c.b16 %v308, %v228
  %v389 = vpack.c.b16 %v309, %v229
  %v390 = vpack.c.b16 %v310, %v230
  %v391 = vpack.c.b16 %v311, %v231
  %v392 = vpack.c.b16 %v312, %v232
  %v393 = vpack.c.b16 %v313, %v233
  %v394 = vpack.c.b16 %v314, %v234
  %v395 = vpack.c.b16 %v315, %v235
  %v396 = vpack.c.b16 %v316, %v236
  %v397 = vpack.c.b16 %v317, %v237
  %v398 = vpack.c.b16 %v318, %v238
  %v399 = vpack.c.b16 %v319, %v239
  %v400 = vpack.c.b16 %v320, %v240
  %v401 = vpack.c.b16 %v321, %v241
  %v402 = vpack.c.b16 %v322, %v242
  %v403 = vpack.c.b16 %v323, %v243
  %v404 = vpack.c.b16 %v324, %v244
  %v405 = vpack.c.b16 %v325, %v245
  %v406 = vpack.c.b16 %v326, %v246
  %v407 = vpack.c.b16 %v327, %v247
  %v408 = vpack.c.b16 %v328, %v248
  %v409 = vpack.c.b16 %v329, %v249
  %v410 = vpack.c.b16 %v330, %v250
  %v411 = vpack.c.b16 %v331, %v251
  %v412 = vpack.c.b16 %v332, %v252
  %v413 = vpack.c.b16 %v333, %v253
  %v414 = vpack.c.b16 %v334, %v254
  %v415 = vpack.c.b16 %v335, %v255
  %v416 = vpack.c.b16 %v336, %v256
  %v417 = vpack.c.b16 %v337, %v257
  %v418 = vpack.c.b16 %v338, %v258
  %vm419 = vcmask 72704
  %v421 = vsel %vm419, %v18, 0
  %vm423 = vcmask 1043456
  %vm424 = vcmask 1044480
  %v425 = vsel %vm423, 4294967295, 65535
  %v426 = vsel %vm424, %v425, 0
  %v428 = vand.u32 %v339, %v426
  %v431 = vand.u32 %v340, %v426
  %v434 = vand.u32 %v341, %v426
  %v437 = vand.u32 %v342, %v426
  %v440 = vand.u32 %v343, %v426
  %v443 = vand.u32 %v344, %v426
  %v446 = vand.u32 %v345, %v426
  %v449 = vand.u32 %v346, %v426
  %v452 = vand.u32 %v347, %v426
  %v455 = vand.u32 %v348, %v426
  %v458 = vand.u32 %v349, %v426
  %v461 = vand.u32 %v350, %v426
  %v464 = vand.u32 %v351, %v426
  %v467 = vand.u32 %v352, %v426
  %v470 = vand.u32 %v353, %v426
  %v473 = vand.u32 %v354, %v426
  %v476 = vand.u32 %v355, %v426
  %v479 = vand.u32 %v356, %v426
  %v482 = vand.u32 %v357, %v426
  %v485 = vand.u32 %v358, %v426
  %v488 = vand.u32 %v359, %v426
  %v491 = vand.u32 %v360, %v426
  %v494 = vand.u32 %v361, %v426
  %v497 = vand.u32 %v362, %v426
  %v500 = vand.u32 %v363, %v426
  %v503 = vand.u32 %v364, %v426
  %v506 = vand.u32 %v365, %v426
  %v509 = vand.u32 %v366, %v426
  %v512 = vand.u32 %v367, %v426
  %v515 = vand.u32 %v368, %v426
  %v518 = vand.u32 %v369, %v426
  %v521 = vand.u32 %v370, %v426
  %v524 = vand.u32 %v371, %v426
  %v527 = vand.u32 %v372, %v426
  %v530 = vand.u32 %v373, %v426
  %v533 = vand.u32 %v374, %v426
  %v536 = vand.u32 %v375, %v426
  %v539 = vand.u32 %v376, %v426
  %v542 = vand.u32 %v377, %v426
  %v545 = vand.u32 %v378, %v426
  %v548 = vand.u32 %v379, %v426
  %v551 = vand.u32 %v380, %v426
  %v554 = vand.u32 %v381, %v426
  %v557 = vand.u32 %v382, %v426
  %v560 = vand.u32 %v383, %v426
  %v563 = vand.u32 %v384, %v426
  %v566 = vand.u32 %v385, %v426
  %v569 = vand.u32 %v386, %v426
  %v572 = vand.u32 %v387, %v426
  %v575 = vand.u32 %v388, %v426
  %v578 = vand.u32 %v389, %v426
  %v581 = vand.u32 %v390, %v426
  %v584 = vand.u32 %v391, %v426
  %v587 = vand.u32 %v392, %v426
  %v590 = vand.u32 %v393, %v426
  %v593 = vand.u32 %v394, %v426
  %v596 = vand.u32 %v395, %v426
  %v599 = vand.u32 %v396, %v426
  %v602 = vand.u32 %v397, %v426
  %v605 = vand.u32 %v398, %v426
  %v608 = vand.u32 %v399, %v426
  %v611 = vand.u32 %v400, %v426
  %v614 = vand.u32 %v401, %v426
  %v617 = vand.u32 %v402, %v426
  %v620 = vand.u32 %v403, %v426
  %v623 = vand.u32 %v404, %v426
  %v626 = vand.u32 %v405, %v426
  %v629 = vand.u32 %v406, %v426
  %v632 = vand.u32 %v407, %v426
  %v635 = vand.u32 %v408, %v426
  %v638 = vand.u32 %v409, %v426
  %v641 = vand.u32 %v410, %v426
  %v644 = vand.u32 %v411, %v426
  %v647 = vand.u32 %v412, %v426
  %v650 = vand.u32 %v413, %v426
  %v653 = vand.u32 %v414, %v426
  %v656 = vand.u32 %v415, %v426
  %v659 = vand.u32 %v416, %v426
  %v662 = vand.u32 %v417, %v426
  %v665 = vand.u32 %v418, %v426
  %667 = vmatpush.bf16.msra.mxu0 0
  %668 = vmatpush.bf16.msra.mxu0 0
  %669 = vmatpush.bf16.msra.mxu0 0
  %670 = vmatpush.bf16.msra.mxu0 0
  %671 = vmatpush.bf16.msra.mxu0 0
  %672 = vmatpush.bf16.msra.mxu0 0
  %673 = vmatpush.bf16.msra.mxu0 0
  %674 = vmatpush.bf16.msra.mxu0 %v428
  %675 = vmatmul.bf16.gmra.mxu0 %v421
  %v676 = vpop.f32.mrf.mxu0
  %v677 = vadd.f32 0.0, %v676
  %v678 = vpop.f32.mrf.mxu0
  %679 = vdwg.mxu0
  %680 = vmatpush.bf16.msra.mxu0 0
  %681 = vmatpush.bf16.msra.mxu0 0
  %682 = vmatpush.bf16.msra.mxu0 0
  %683 = vmatpush.bf16.msra.mxu0 0
  %684 = vmatpush.bf16.msra.mxu0 0
  %685 = vmatpush.bf16.msra.mxu0 0
  %686 = vmatpush.bf16.msra.mxu0 0
  %687 = vmatpush.bf16.msra.mxu0 %v431
  %688 = vmatmul.bf16.gmra.mxu0 %v421
  %v689 = vpop.f32.mrf.mxu0
  %v690 = vadd.f32 0.0, %v689
  %v691 = vpop.f32.mrf.mxu0
  %692 = vdwg.mxu0
  %693 = vmatpush.bf16.msra.mxu0 0
  %694 = vmatpush.bf16.msra.mxu0 0
  %695 = vmatpush.bf16.msra.mxu0 0
  %696 = vmatpush.bf16.msra.mxu0 0
  %697 = vmatpush.bf16.msra.mxu0 0
  %698 = vmatpush.bf16.msra.mxu0 0
  %699 = vmatpush.bf16.msra.mxu0 0
  %700 = vmatpush.bf16.msra.mxu0 %v434
  %701 = vmatmul.bf16.gmra.mxu0 %v421
  %v702 = vpop.f32.mrf.mxu0
  %v703 = vadd.f32 0.0, %v702
  %v704 = vpop.f32.mrf.mxu0
  %705 = vdwg.mxu0
  %706 = vmatpush.bf16.msra.mxu0 0
  %707 = vmatpush.bf16.msra.mxu0 0
  %708 = vmatpush.bf16.msra.mxu0 0
  %709 = vmatpush.bf16.msra.mxu0 0
  %710 = vmatpush.bf16.msra.mxu0 0
  %711 = vmatpush.bf16.msra.mxu0 0
  %712 = vmatpush.bf16.msra.mxu0 0
  %713 = vmatpush.bf16.msra.mxu0 %v437
  %714 = vmatmul.bf16.gmra.mxu0 %v421
  %v715 = vpop.f32.mrf.mxu0
  %v716 = vadd.f32 0.0, %v715
  %v717 = vpop.f32.mrf.mxu0
  %718 = vdwg.mxu0
  %719 = vmatpush.bf16.msra.mxu0 0
  %720 = vmatpush.bf16.msra.mxu0 0
  %721 = vmatpush.bf16.msra.mxu0 0
  %722 = vmatpush.bf16.msra.mxu0 0
  %723 = vmatpush.bf16.msra.mxu0 0
  %724 = vmatpush.bf16.msra.mxu0 0
  %725 = vmatpush.bf16.msra.mxu0 0
  %726 = vmatpush.bf16.msra.mxu0 %v440
  %727 = vmatmul.bf16.gmra.mxu0 %v421
  %v728 = vpop.f32.mrf.mxu0
  %v729 = vadd.f32 0.0, %v728
  %v730 = vpop.f32.mrf.mxu0
  %731 = vdwg.mxu0
  %732 = vmatpush.bf16.msra.mxu0 0
  %733 = vmatpush.bf16.msra.mxu0 0
  %734 = vmatpush.bf16.msra.mxu0 0
  %735 = vmatpush.bf16.msra.mxu0 0
  %736 = vmatpush.bf16.msra.mxu0 0
  %737 = vmatpush.bf16.msra.mxu0 0
  %738 = vmatpush.bf16.msra.mxu0 0
  %739 = vmatpush.bf16.msra.mxu0 %v443
  %740 = vmatmul.bf16.gmra.mxu0 %v421
  %v741 = vpop.f32.mrf.mxu0
  %v742 = vadd.f32 0.0, %v741
  %v743 = vpop.f32.mrf.mxu0
  %744 = vdwg.mxu0
  %745 = vmatpush.bf16.msra.mxu0 0
  %746 = vmatpush.bf16.msra.mxu0 0
  %747 = vmatpush.bf16.msra.mxu0 0
  %748 = vmatpush.bf16.msra.mxu0 0
  %749 = vmatpush.bf16.msra.mxu0 0
  %750 = vmatpush.bf16.msra.mxu0 0
  %751 = vmatpush.bf16.msra.mxu0 0
  %752 = vmatpush.bf16.msra.mxu0 %v446
  %753 = vmatmul.bf16.gmra.mxu0 %v421
  %v754 = vpop.f32.mrf.mxu0
  %v755 = vadd.f32 0.0, %v754
  %v756 = vpop.f32.mrf.mxu0
  %757 = vdwg.mxu0
  %758 = vmatpush.bf16.msra.mxu0 0
  %759 = vmatpush.bf16.msra.mxu0 0
  %760 = vmatpush.bf16.msra.mxu0 0
  %761 = vmatpush.bf16.msra.mxu0 0
  %762 = vmatpush.bf16.msra.mxu0 0
  %763 = vmatpush.bf16.msra.mxu0 0
  %764 = vmatpush.bf16.msra.mxu0 0
  %765 = vmatpush.bf16.msra.mxu0 %v449
  %766 = vmatmul.bf16.gmra.mxu0 %v421
  %v767 = vpop.f32.mrf.mxu0
  %v768 = vadd.f32 0.0, %v767
  %v769 = vpop.f32.mrf.mxu0
  %770 = vdwg.mxu0
  %771 = vmatpush.bf16.msra.mxu0 0
  %772 = vmatpush.bf16.msra.mxu0 0
  %773 = vmatpush.bf16.msra.mxu0 0
  %774 = vmatpush.bf16.msra.mxu0 0
  %775 = vmatpush.bf16.msra.mxu0 0
  %776 = vmatpush.bf16.msra.mxu0 0
  %777 = vmatpush.bf16.msra.mxu0 0
  %778 = vmatpush.bf16.msra.mxu0 %v452
  %779 = vmatmul.bf16.gmra.mxu0 %v421
  %v780 = vpop.f32.mrf.mxu0
  %v781 = vadd.f32 0.0, %v780
  %v782 = vpop.f32.mrf.mxu0
  %783 = vdwg.mxu0
  %784 = vmatpush.bf16.msra.mxu0 0
  %785 = vmatpush.bf16.msra.mxu0 0
  %786 = vmatpush.bf16.msra.mxu0 0
  %787 = vmatpush.bf16.msra.mxu0 0
  %788 = vmatpush.bf16.msra.mxu0 0
  %789 = vmatpush.bf16.msra.mxu0 0
  %790 = vmatpush.bf16.msra.mxu0 0
  %791 = vmatpush.bf16.msra.mxu0 %v455
  %792 = vmatmul.bf16.gmra.mxu0 %v421
  %v793 = vpop.f32.mrf.mxu0
  %v794 = vadd.f32 0.0, %v793
  %v795 = vpop.f32.mrf.mxu0
  %796 = vdwg.mxu0
  %797 = vmatpush.bf16.msra.mxu0 0
  %798 = vmatpush.bf16.msra.mxu0 0
  %799 = vmatpush.bf16.msra.mxu0 0
  %800 = vmatpush.bf16.msra.mxu0 0
  %801 = vmatpush.bf16.msra.mxu0 0
  %802 = vmatpush.bf16.msra.mxu0 0
  %803 = vmatpush.bf16.msra.mxu0 0
  %804 = vmatpush.bf16.msra.mxu0 %v458
  %805 = vmatmul.bf16.gmra.mxu0 %v421
  %v806 = vpop.f32.mrf.mxu0
  %v807 = vadd.f32 0.0, %v806
  %v808 = vpop.f32.mrf.mxu0
  %809 = vdwg.mxu0
  %810 = vmatpush.bf16.msra.mxu0 0
  %811 = vmatpush.bf16.msra.mxu0 0
  %812 = vmatpush.bf16.msra.mxu0 0
  %813 = vmatpush.bf16.msra.mxu0 0
  %814 = vmatpush.bf16.msra.mxu0 0
  %815 = vmatpush.bf16.msra.mxu0 0
  %816 = vmatpush.bf16.msra.mxu0 0
  %817 = vmatpush.bf16.msra.mxu0 %v461
  %818 = vmatmul.bf16.gmra.mxu0 %v421
  %v819 = vpop.f32.mrf.mxu0
  %v820 = vadd.f32 0.0, %v819
  %v821 = vpop.f32.mrf.mxu0
  %822 = vdwg.mxu0
  %823 = vmatpush.bf16.msra.mxu0 0
  %824 = vmatpush.bf16.msra.mxu0 0
  %825 = vmatpush.bf16.msra.mxu0 0
  %826 = vmatpush.bf16.msra.mxu0 0
  %827 = vmatpush.bf16.msra.mxu0 0
  %828 = vmatpush.bf16.msra.mxu0 0
  %829 = vmatpush.bf16.msra.mxu0 0
  %830 = vmatpush.bf16.msra.mxu0 %v464
  %831 = vmatmul.bf16.gmra.mxu0 %v421
  %v832 = vpop.f32.mrf.mxu0
  %v833 = vadd.f32 0.0, %v832
  %v834 = vpop.f32.mrf.mxu0
  %835 = vdwg.mxu0
  %836 = vmatpush.bf16.msra.mxu0 0
  %837 = vmatpush.bf16.msra.mxu0 0
  %838 = vmatpush.bf16.msra.mxu0 0
  %839 = vmatpush.bf16.msra.mxu0 0
  %840 = vmatpush.bf16.msra.mxu0 0
  %841 = vmatpush.bf16.msra.mxu0 0
  %842 = vmatpush.bf16.msra.mxu0 0
  %843 = vmatpush.bf16.msra.mxu0 %v467
  %844 = vmatmul.bf16.gmra.mxu0 %v421
  %v845 = vpop.f32.mrf.mxu0
  %v846 = vadd.f32 0.0, %v845
  %v847 = vpop.f32.mrf.mxu0
  %848 = vdwg.mxu0
  %849 = vmatpush.bf16.msra.mxu0 0
  %850 = vmatpush.bf16.msra.mxu0 0
  %851 = vmatpush.bf16.msra.mxu0 0
  %852 = vmatpush.bf16.msra.mxu0 0
  %853 = vmatpush.bf16.msra.mxu0 0
  %854 = vmatpush.bf16.msra.mxu0 0
  %855 = vmatpush.bf16.msra.mxu0 0
  %856 = vmatpush.bf16.msra.mxu0 %v470
  %857 = vmatmul.bf16.gmra.mxu0 %v421
  %v858 = vpop.f32.mrf.mxu0
  %v859 = vadd.f32 0.0, %v858
  %v860 = vpop.f32.mrf.mxu0
  %861 = vdwg.mxu0
  %862 = vmatpush.bf16.msra.mxu0 0
  %863 = vmatpush.bf16.msra.mxu0 0
  %864 = vmatpush.bf16.msra.mxu0 0
  %865 = vmatpush.bf16.msra.mxu0 0
  %866 = vmatpush.bf16.msra.mxu0 0
  %867 = vmatpush.bf16.msra.mxu0 0
  %868 = vmatpush.bf16.msra.mxu0 0
  %869 = vmatpush.bf16.msra.mxu0 %v473
  %870 = vmatmul.bf16.gmra.mxu0 %v421
  %v871 = vpop.f32.mrf.mxu0
  %v872 = vadd.f32 0.0, %v871
  %v873 = vpop.f32.mrf.mxu0
  %874 = vdwg.mxu0
  %875 = vmatpush.bf16.msra.mxu0 0
  %876 = vmatpush.bf16.msra.mxu0 0
  %877 = vmatpush.bf16.msra.mxu0 0
  %878 = vmatpush.bf16.msra.mxu0 0
  %879 = vmatpush.bf16.msra.mxu0 0
  %880 = vmatpush.bf16.msra.mxu0 0
  %881 = vmatpush.bf16.msra.mxu0 0
  %882 = vmatpush.bf16.msra.mxu0 %v476
  %883 = vmatmul.bf16.gmra.mxu0 %v421
  %v884 = vpop.f32.mrf.mxu0
  %v885 = vadd.f32 0.0, %v884
  %v886 = vpop.f32.mrf.mxu0
  %887 = vdwg.mxu0
  %888 = vmatpush.bf16.msra.mxu0 0
  %889 = vmatpush.bf16.msra.mxu0 0
  %890 = vmatpush.bf16.msra.mxu0 0
  %891 = vmatpush.bf16.msra.mxu0 0
  %892 = vmatpush.bf16.msra.mxu0 0
  %893 = vmatpush.bf16.msra.mxu0 0
  %894 = vmatpush.bf16.msra.mxu0 0
  %895 = vmatpush.bf16.msra.mxu0 %v479
  %896 = vmatmul.bf16.gmra.mxu0 %v421
  %v897 = vpop.f32.mrf.mxu0
  %v898 = vadd.f32 0.0, %v897
  %v899 = vpop.f32.mrf.mxu0
  %900 = vdwg.mxu0
  %901 = vmatpush.bf16.msra.mxu0 0
  %902 = vmatpush.bf16.msra.mxu0 0
  %903 = vmatpush.bf16.msra.mxu0 0
  %904 = vmatpush.bf16.msra.mxu0 0
  %905 = vmatpush.bf16.msra.mxu0 0
  %906 = vmatpush.bf16.msra.mxu0 0
  %907 = vmatpush.bf16.msra.mxu0 0
  %908 = vmatpush.bf16.msra.mxu0 %v482
  %909 = vmatmul.bf16.gmra.mxu0 %v421
  %v910 = vpop.f32.mrf.mxu0
  %v911 = vadd.f32 0.0, %v910
  %v912 = vpop.f32.mrf.mxu0
  %913 = vdwg.mxu0
  %914 = vmatpush.bf16.msra.mxu0 0
  %915 = vmatpush.bf16.msra.mxu0 0
  %916 = vmatpush.bf16.msra.mxu0 0
  %917 = vmatpush.bf16.msra.mxu0 0
  %918 = vmatpush.bf16.msra.mxu0 0
  %919 = vmatpush.bf16.msra.mxu0 0
  %920 = vmatpush.bf16.msra.mxu0 0
  %921 = vmatpush.bf16.msra.mxu0 %v485
  %922 = vmatmul.bf16.gmra.mxu0 %v421
  %v923 = vpop.f32.mrf.mxu0
  %v924 = vadd.f32 0.0, %v923
  %v925 = vpop.f32.mrf.mxu0
  %926 = vdwg.mxu0
  %927 = vmatpush.bf16.msra.mxu0 0
  %928 = vmatpush.bf16.msra.mxu0 0
  %929 = vmatpush.bf16.msra.mxu0 0
  %930 = vmatpush.bf16.msra.mxu0 0
  %931 = vmatpush.bf16.msra.mxu0 0
  %932 = vmatpush.bf16.msra.mxu0 0
  %933 = vmatpush.bf16.msra.mxu0 0
  %934 = vmatpush.bf16.msra.mxu0 %v488
  %935 = vmatmul.bf16.gmra.mxu0 %v421
  %v936 = vpop.f32.mrf.mxu0
  %v937 = vadd.f32 0.0, %v936
  %v938 = vpop.f32.mrf.mxu0
  %939 = vdwg.mxu0
  %940 = vmatpush.bf16.msra.mxu0 0
  %941 = vmatpush.bf16.msra.mxu0 0
  %942 = vmatpush.bf16.msra.mxu0 0
  %943 = vmatpush.bf16.msra.mxu0 0
  %944 = vmatpush.bf16.msra.mxu0 0
  %945 = vmatpush.bf16.msra.mxu0 0
  %946 = vmatpush.bf16.msra.mxu0 0
  %947 = vmatpush.bf16.msra.mxu0 %v491
  %948 = vmatmul.bf16.gmra.mxu0 %v421
  %v949 = vpop.f32.mrf.mxu0
  %v950 = vadd.f32 0.0, %v949
  %v951 = vpop.f32.mrf.mxu0
  %952 = vdwg.mxu0
  %953 = vmatpush.bf16.msra.mxu0 0
  %954 = vmatpush.bf16.msra.mxu0 0
  %955 = vmatpush.bf16.msra.mxu0 0
  %956 = vmatpush.bf16.msra.mxu0 0
  %957 = vmatpush.bf16.msra.mxu0 0
  %958 = vmatpush.bf16.msra.mxu0 0
  %959 = vmatpush.bf16.msra.mxu0 0
  %960 = vmatpush.bf16.msra.mxu0 %v494
  %961 = vmatmul.bf16.gmra.mxu0 %v421
  %v962 = vpop.f32.mrf.mxu0
  %v963 = vadd.f32 0.0, %v962
  %v964 = vpop.f32.mrf.mxu0
  %965 = vdwg.mxu0
  %966 = vmatpush.bf16.msra.mxu0 0
  %967 = vmatpush.bf16.msra.mxu0 0
  %968 = vmatpush.bf16.msra.mxu0 0
  %969 = vmatpush.bf16.msra.mxu0 0
  %970 = vmatpush.bf16.msra.mxu0 0
  %971 = vmatpush.bf16.msra.mxu0 0
  %972 = vmatpush.bf16.msra.mxu0 0
  %973 = vmatpush.bf16.msra.mxu0 %v497
  %974 = vmatmul.bf16.gmra.mxu0 %v421
  %v975 = vpop.f32.mrf.mxu0
  %v976 = vadd.f32 0.0, %v975
  %v977 = vpop.f32.mrf.mxu0
  %978 = vdwg.mxu0
  %979 = vmatpush.bf16.msra.mxu0 0
  %980 = vmatpush.bf16.msra.mxu0 0
  %981 = vmatpush.bf16.msra.mxu0 0
  %982 = vmatpush.bf16.msra.mxu0 0
  %983 = vmatpush.bf16.msra.mxu0 0
  %984 = vmatpush.bf16.msra.mxu0 0
  %985 = vmatpush.bf16.msra.mxu0 0
  %986 = vmatpush.bf16.msra.mxu0 %v500
  %987 = vmatmul.bf16.gmra.mxu0 %v421
  %v988 = vpop.f32.mrf.mxu0
  %v989 = vadd.f32 0.0, %v988
  %v990 = vpop.f32.mrf.mxu0
  %991 = vdwg.mxu0
  %992 = vmatpush.bf16.msra.mxu0 0
  %993 = vmatpush.bf16.msra.mxu0 0
  %994 = vmatpush.bf16.msra.mxu0 0
  %995 = vmatpush.bf16.msra.mxu0 0
  %996 = vmatpush.bf16.msra.mxu0 0
  %997 = vmatpush.bf16.msra.mxu0 0
  %998 = vmatpush.bf16.msra.mxu0 0
  %999 = vmatpush.bf16.msra.mxu0 %v503
  %1000 = vmatmul.bf16.gmra.mxu0 %v421
  %v1001 = vpop.f32.mrf.mxu0
  %v1002 = vadd.f32 0.0, %v1001
  %v1003 = vpop.f32.mrf.mxu0
  %1004 = vdwg.mxu0
  %1005 = vmatpush.bf16.msra.mxu0 0
  %1006 = vmatpush.bf16.msra.mxu0 0
  %1007 = vmatpush.bf16.msra.mxu0 0
  %1008 = vmatpush.bf16.msra.mxu0 0
  %1009 = vmatpush.bf16.msra.mxu0 0
  %1010 = vmatpush.bf16.msra.mxu0 0
  %1011 = vmatpush.bf16.msra.mxu0 0
  %1012 = vmatpush.bf16.msra.mxu0 %v506
  %1013 = vmatmul.bf16.gmra.mxu0 %v421
  %v1014 = vpop.f32.mrf.mxu0
  %v1015 = vadd.f32 0.0, %v1014
  %v1016 = vpop.f32.mrf.mxu0
  %1017 = vdwg.mxu0
  %1018 = vmatpush.bf16.msra.mxu0 0
  %1019 = vmatpush.bf16.msra.mxu0 0
  %1020 = vmatpush.bf16.msra.mxu0 0
  %1021 = vmatpush.bf16.msra.mxu0 0
  %1022 = vmatpush.bf16.msra.mxu0 0
  %1023 = vmatpush.bf16.msra.mxu0 0
  %1024 = vmatpush.bf16.msra.mxu0 0
  %1025 = vmatpush.bf16.msra.mxu0 %v509
  %1026 = vmatmul.bf16.gmra.mxu0 %v421
  %v1027 = vpop.f32.mrf.mxu0
  %v1028 = vadd.f32 0.0, %v1027
  %v1029 = vpop.f32.mrf.mxu0
  %1030 = vdwg.mxu0
  %1031 = vmatpush.bf16.msra.mxu0 0
  %1032 = vmatpush.bf16.msra.mxu0 0
  %1033 = vmatpush.bf16.msra.mxu0 0
  %1034 = vmatpush.bf16.msra.mxu0 0
  %1035 = vmatpush.bf16.msra.mxu0 0
  %1036 = vmatpush.bf16.msra.mxu0 0
  %1037 = vmatpush.bf16.msra.mxu0 0
  %1038 = vmatpush.bf16.msra.mxu0 %v512
  %1039 = vmatmul.bf16.gmra.mxu0 %v421
  %v1040 = vpop.f32.mrf.mxu0
  %v1041 = vadd.f32 0.0, %v1040
  %v1042 = vpop.f32.mrf.mxu0
  %1043 = vdwg.mxu0
  %1044 = vmatpush.bf16.msra.mxu0 0
  %1045 = vmatpush.bf16.msra.mxu0 0
  %1046 = vmatpush.bf16.msra.mxu0 0
  %1047 = vmatpush.bf16.msra.mxu0 0
  %1048 = vmatpush.bf16.msra.mxu0 0
  %1049 = vmatpush.bf16.msra.mxu0 0
  %1050 = vmatpush.bf16.msra.mxu0 0
  %1051 = vmatpush.bf16.msra.mxu0 %v515
  %1052 = vmatmul.bf16.gmra.mxu0 %v421
  %v1053 = vpop.f32.mrf.mxu0
  %v1054 = vadd.f32 0.0, %v1053
  %v1055 = vpop.f32.mrf.mxu0
  %1056 = vdwg.mxu0
  %1057 = vmatpush.bf16.msra.mxu0 0
  %1058 = vmatpush.bf16.msra.mxu0 0
  %1059 = vmatpush.bf16.msra.mxu0 0
  %1060 = vmatpush.bf16.msra.mxu0 0
  %1061 = vmatpush.bf16.msra.mxu0 0
  %1062 = vmatpush.bf16.msra.mxu0 0
  %1063 = vmatpush.bf16.msra.mxu0 0
  %1064 = vmatpush.bf16.msra.mxu0 %v518
  %1065 = vmatmul.bf16.gmra.mxu0 %v421
  %v1066 = vpop.f32.mrf.mxu0
  %v1067 = vadd.f32 0.0, %v1066
  %v1068 = vpop.f32.mrf.mxu0
  %1069 = vdwg.mxu0
  %1070 = vmatpush.bf16.msra.mxu0 0
  %1071 = vmatpush.bf16.msra.mxu0 0
  %1072 = vmatpush.bf16.msra.mxu0 0
  %1073 = vmatpush.bf16.msra.mxu0 0
  %1074 = vmatpush.bf16.msra.mxu0 0
  %1075 = vmatpush.bf16.msra.mxu0 0
  %1076 = vmatpush.bf16.msra.mxu0 0
  %1077 = vmatpush.bf16.msra.mxu0 %v521
  %1078 = vmatmul.bf16.gmra.mxu0 %v421
  %v1079 = vpop.f32.mrf.mxu0
  %v1080 = vadd.f32 0.0, %v1079
  %v1081 = vpop.f32.mrf.mxu0
  %1082 = vdwg.mxu0
  %1083 = vmatpush.bf16.msra.mxu0 0
  %1084 = vmatpush.bf16.msra.mxu0 0
  %1085 = vmatpush.bf16.msra.mxu0 0
  %1086 = vmatpush.bf16.msra.mxu0 0
  %1087 = vmatpush.bf16.msra.mxu0 0
  %1088 = vmatpush.bf16.msra.mxu0 0
  %1089 = vmatpush.bf16.msra.mxu0 0
  %1090 = vmatpush.bf16.msra.mxu0 %v524
  %1091 = vmatmul.bf16.gmra.mxu0 %v421
  %v1092 = vpop.f32.mrf.mxu0
  %v1093 = vadd.f32 0.0, %v1092
  %v1094 = vpop.f32.mrf.mxu0
  %1095 = vdwg.mxu0
  %1096 = vmatpush.bf16.msra.mxu0 0
  %1097 = vmatpush.bf16.msra.mxu0 0
  %1098 = vmatpush.bf16.msra.mxu0 0
  %1099 = vmatpush.bf16.msra.mxu0 0
  %1100 = vmatpush.bf16.msra.mxu0 0
  %1101 = vmatpush.bf16.msra.mxu0 0
  %1102 = vmatpush.bf16.msra.mxu0 0
  %1103 = vmatpush.bf16.msra.mxu0 %v527
  %1104 = vmatmul.bf16.gmra.mxu0 %v421
  %v1105 = vpop.f32.mrf.mxu0
  %v1106 = vadd.f32 0.0, %v1105
  %v1107 = vpop.f32.mrf.mxu0
  %1108 = vdwg.mxu0
  %1109 = vmatpush.bf16.msra.mxu0 0
  %1110 = vmatpush.bf16.msra.mxu0 0
  %1111 = vmatpush.bf16.msra.mxu0 0
  %1112 = vmatpush.bf16.msra.mxu0 0
  %1113 = vmatpush.bf16.msra.mxu0 0
  %1114 = vmatpush.bf16.msra.mxu0 0
  %1115 = vmatpush.bf16.msra.mxu0 0
  %1116 = vmatpush.bf16.msra.mxu0 %v530
  %1117 = vmatmul.bf16.gmra.mxu0 %v421
  %v1118 = vpop.f32.mrf.mxu0
  %v1119 = vadd.f32 0.0, %v1118
  %v1120 = vpop.f32.mrf.mxu0
  %1121 = vdwg.mxu0
  %1122 = vmatpush.bf16.msra.mxu0 0
  %1123 = vmatpush.bf16.msra.mxu0 0
  %1124 = vmatpush.bf16.msra.mxu0 0
  %1125 = vmatpush.bf16.msra.mxu0 0
  %1126 = vmatpush.bf16.msra.mxu0 0
  %1127 = vmatpush.bf16.msra.mxu0 0
  %1128 = vmatpush.bf16.msra.mxu0 0
  %1129 = vmatpush.bf16.msra.mxu0 %v533
  %1130 = vmatmul.bf16.gmra.mxu0 %v421
  %v1131 = vpop.f32.mrf.mxu0
  %v1132 = vadd.f32 0.0, %v1131
  %v1133 = vpop.f32.mrf.mxu0
  %1134 = vdwg.mxu0
  %1135 = vmatpush.bf16.msra.mxu0 0
  %1136 = vmatpush.bf16.msra.mxu0 0
  %1137 = vmatpush.bf16.msra.mxu0 0
  %1138 = vmatpush.bf16.msra.mxu0 0
  %1139 = vmatpush.bf16.msra.mxu0 0
  %1140 = vmatpush.bf16.msra.mxu0 0
  %1141 = vmatpush.bf16.msra.mxu0 0
  %1142 = vmatpush.bf16.msra.mxu0 %v536
  %1143 = vmatmul.bf16.gmra.mxu0 %v421
  %v1144 = vpop.f32.mrf.mxu0
  %v1145 = vadd.f32 0.0, %v1144
  %v1146 = vpop.f32.mrf.mxu0
  %1147 = vdwg.mxu0
  %1148 = vmatpush.bf16.msra.mxu0 0
  %1149 = vmatpush.bf16.msra.mxu0 0
  %1150 = vmatpush.bf16.msra.mxu0 0
  %1151 = vmatpush.bf16.msra.mxu0 0
  %1152 = vmatpush.bf16.msra.mxu0 0
  %1153 = vmatpush.bf16.msra.mxu0 0
  %1154 = vmatpush.bf16.msra.mxu0 0
  %1155 = vmatpush.bf16.msra.mxu0 %v539
  %1156 = vmatmul.bf16.gmra.mxu0 %v421
  %v1157 = vpop.f32.mrf.mxu0
  %v1158 = vadd.f32 0.0, %v1157
  %v1159 = vpop.f32.mrf.mxu0
  %1160 = vdwg.mxu0
  %1161 = vmatpush.bf16.msra.mxu0 0
  %1162 = vmatpush.bf16.msra.mxu0 0
  %1163 = vmatpush.bf16.msra.mxu0 0
  %1164 = vmatpush.bf16.msra.mxu0 0
  %1165 = vmatpush.bf16.msra.mxu0 0
  %1166 = vmatpush.bf16.msra.mxu0 0
  %1167 = vmatpush.bf16.msra.mxu0 0
  %1168 = vmatpush.bf16.msra.mxu0 %v542
  %1169 = vmatmul.bf16.gmra.mxu0 %v421
  %v1170 = vpop.f32.mrf.mxu0
  %v1171 = vadd.f32 0.0, %v1170
  %v1172 = vpop.f32.mrf.mxu0
  %1173 = vdwg.mxu0
  %1174 = vmatpush.bf16.msra.mxu0 0
  %1175 = vmatpush.bf16.msra.mxu0 0
  %1176 = vmatpush.bf16.msra.mxu0 0
  %1177 = vmatpush.bf16.msra.mxu0 0
  %1178 = vmatpush.bf16.msra.mxu0 0
  %1179 = vmatpush.bf16.msra.mxu0 0
  %1180 = vmatpush.bf16.msra.mxu0 0
  %1181 = vmatpush.bf16.msra.mxu0 %v545
  %1182 = vmatmul.bf16.gmra.mxu0 %v421
  %v1183 = vpop.f32.mrf.mxu0
  %v1184 = vadd.f32 0.0, %v1183
  %v1185 = vpop.f32.mrf.mxu0
  %1186 = vdwg.mxu0
  %1187 = vmatpush.bf16.msra.mxu0 0
  %1188 = vmatpush.bf16.msra.mxu0 0
  %1189 = vmatpush.bf16.msra.mxu0 0
  %1190 = vmatpush.bf16.msra.mxu0 0
  %1191 = vmatpush.bf16.msra.mxu0 0
  %1192 = vmatpush.bf16.msra.mxu0 0
  %1193 = vmatpush.bf16.msra.mxu0 0
  %1194 = vmatpush.bf16.msra.mxu0 %v548
  %1195 = vmatmul.bf16.gmra.mxu0 %v421
  %v1196 = vpop.f32.mrf.mxu0
  %v1197 = vadd.f32 0.0, %v1196
  %v1198 = vpop.f32.mrf.mxu0
  %1199 = vdwg.mxu0
  %1200 = vmatpush.bf16.msra.mxu0 0
  %1201 = vmatpush.bf16.msra.mxu0 0
  %1202 = vmatpush.bf16.msra.mxu0 0
  %1203 = vmatpush.bf16.msra.mxu0 0
  %1204 = vmatpush.bf16.msra.mxu0 0
  %1205 = vmatpush.bf16.msra.mxu0 0
  %1206 = vmatpush.bf16.msra.mxu0 0
  %1207 = vmatpush.bf16.msra.mxu0 %v551
  %1208 = vmatmul.bf16.gmra.mxu0 %v421
  %v1209 = vpop.f32.mrf.mxu0
  %v1210 = vadd.f32 0.0, %v1209
  %v1211 = vpop.f32.mrf.mxu0
  %1212 = vdwg.mxu0
  %1213 = vmatpush.bf16.msra.mxu0 0
  %1214 = vmatpush.bf16.msra.mxu0 0
  %1215 = vmatpush.bf16.msra.mxu0 0
  %1216 = vmatpush.bf16.msra.mxu0 0
  %1217 = vmatpush.bf16.msra.mxu0 0
  %1218 = vmatpush.bf16.msra.mxu0 0
  %1219 = vmatpush.bf16.msra.mxu0 0
  %1220 = vmatpush.bf16.msra.mxu0 %v554
  %1221 = vmatmul.bf16.gmra.mxu0 %v421
  %v1222 = vpop.f32.mrf.mxu0
  %v1223 = vadd.f32 0.0, %v1222
  %v1224 = vpop.f32.mrf.mxu0
  %1225 = vdwg.mxu0
  %1226 = vmatpush.bf16.msra.mxu0 0
  %1227 = vmatpush.bf16.msra.mxu0 0
  %1228 = vmatpush.bf16.msra.mxu0 0
  %1229 = vmatpush.bf16.msra.mxu0 0
  %1230 = vmatpush.bf16.msra.mxu0 0
  %1231 = vmatpush.bf16.msra.mxu0 0
  %1232 = vmatpush.bf16.msra.mxu0 0
  %1233 = vmatpush.bf16.msra.mxu0 %v557
  %1234 = vmatmul.bf16.gmra.mxu0 %v421
  %v1235 = vpop.f32.mrf.mxu0
  %v1236 = vadd.f32 0.0, %v1235
  %v1237 = vpop.f32.mrf.mxu0
  %1238 = vdwg.mxu0
  %1239 = vmatpush.bf16.msra.mxu0 0
  %1240 = vmatpush.bf16.msra.mxu0 0
  %1241 = vmatpush.bf16.msra.mxu0 0
  %1242 = vmatpush.bf16.msra.mxu0 0
  %1243 = vmatpush.bf16.msra.mxu0 0
  %1244 = vmatpush.bf16.msra.mxu0 0
  %1245 = vmatpush.bf16.msra.mxu0 0
  %1246 = vmatpush.bf16.msra.mxu0 %v560
  %1247 = vmatmul.bf16.gmra.mxu0 %v421
  %v1248 = vpop.f32.mrf.mxu0
  %v1249 = vadd.f32 0.0, %v1248
  %v1250 = vpop.f32.mrf.mxu0
  %1251 = vdwg.mxu0
  %1252 = vmatpush.bf16.msra.mxu0 0
  %1253 = vmatpush.bf16.msra.mxu0 0
  %1254 = vmatpush.bf16.msra.mxu0 0
  %1255 = vmatpush.bf16.msra.mxu0 0
  %1256 = vmatpush.bf16.msra.mxu0 0
  %1257 = vmatpush.bf16.msra.mxu0 0
  %1258 = vmatpush.bf16.msra.mxu0 0
  %1259 = vmatpush.bf16.msra.mxu0 %v563
  %1260 = vmatmul.bf16.gmra.mxu0 %v421
  %v1261 = vpop.f32.mrf.mxu0
  %v1262 = vadd.f32 0.0, %v1261
  %v1263 = vpop.f32.mrf.mxu0
  %1264 = vdwg.mxu0
  %1265 = vmatpush.bf16.msra.mxu0 0
  %1266 = vmatpush.bf16.msra.mxu0 0
  %1267 = vmatpush.bf16.msra.mxu0 0
  %1268 = vmatpush.bf16.msra.mxu0 0
  %1269 = vmatpush.bf16.msra.mxu0 0
  %1270 = vmatpush.bf16.msra.mxu0 0
  %1271 = vmatpush.bf16.msra.mxu0 0
  %1272 = vmatpush.bf16.msra.mxu0 %v566
  %1273 = vmatmul.bf16.gmra.mxu0 %v421
  %v1274 = vpop.f32.mrf.mxu0
  %v1275 = vadd.f32 0.0, %v1274
  %v1276 = vpop.f32.mrf.mxu0
  %1277 = vdwg.mxu0
  %1278 = vmatpush.bf16.msra.mxu0 0
  %1279 = vmatpush.bf16.msra.mxu0 0
  %1280 = vmatpush.bf16.msra.mxu0 0
  %1281 = vmatpush.bf16.msra.mxu0 0
  %1282 = vmatpush.bf16.msra.mxu0 0
  %1283 = vmatpush.bf16.msra.mxu0 0
  %1284 = vmatpush.bf16.msra.mxu0 0
  %1285 = vmatpush.bf16.msra.mxu0 %v569
  %1286 = vmatmul.bf16.gmra.mxu0 %v421
  %v1287 = vpop.f32.mrf.mxu0
  %v1288 = vadd.f32 0.0, %v1287
  %v1289 = vpop.f32.mrf.mxu0
  %1290 = vdwg.mxu0
  %1291 = vmatpush.bf16.msra.mxu0 0
  %1292 = vmatpush.bf16.msra.mxu0 0
  %1293 = vmatpush.bf16.msra.mxu0 0
  %1294 = vmatpush.bf16.msra.mxu0 0
  %1295 = vmatpush.bf16.msra.mxu0 0
  %1296 = vmatpush.bf16.msra.mxu0 0
  %1297 = vmatpush.bf16.msra.mxu0 0
  %1298 = vmatpush.bf16.msra.mxu0 %v572
  %1299 = vmatmul.bf16.gmra.mxu0 %v421
  %v1300 = vpop.f32.mrf.mxu0
  %v1301 = vadd.f32 0.0, %v1300
  %v1302 = vpop.f32.mrf.mxu0
  %1303 = vdwg.mxu0
  %1304 = vmatpush.bf16.msra.mxu0 0
  %1305 = vmatpush.bf16.msra.mxu0 0
  %1306 = vmatpush.bf16.msra.mxu0 0
  %1307 = vmatpush.bf16.msra.mxu0 0
  %1308 = vmatpush.bf16.msra.mxu0 0
  %1309 = vmatpush.bf16.msra.mxu0 0
  %1310 = vmatpush.bf16.msra.mxu0 0
  %1311 = vmatpush.bf16.msra.mxu0 %v575
  %1312 = vmatmul.bf16.gmra.mxu0 %v421
  %v1313 = vpop.f32.mrf.mxu0
  %v1314 = vadd.f32 0.0, %v1313
  %v1315 = vpop.f32.mrf.mxu0
  %1316 = vdwg.mxu0
  %1317 = vmatpush.bf16.msra.mxu0 0
  %1318 = vmatpush.bf16.msra.mxu0 0
  %1319 = vmatpush.bf16.msra.mxu0 0
  %1320 = vmatpush.bf16.msra.mxu0 0
  %1321 = vmatpush.bf16.msra.mxu0 0
  %1322 = vmatpush.bf16.msra.mxu0 0
  %1323 = vmatpush.bf16.msra.mxu0 0
  %1324 = vmatpush.bf16.msra.mxu0 %v578
  %1325 = vmatmul.bf16.gmra.mxu0 %v421
  %v1326 = vpop.f32.mrf.mxu0
  %v1327 = vadd.f32 0.0, %v1326
  %v1328 = vpop.f32.mrf.mxu0
  %1329 = vdwg.mxu0
  %1330 = vmatpush.bf16.msra.mxu0 0
  %1331 = vmatpush.bf16.msra.mxu0 0
  %1332 = vmatpush.bf16.msra.mxu0 0
  %1333 = vmatpush.bf16.msra.mxu0 0
  %1334 = vmatpush.bf16.msra.mxu0 0
  %1335 = vmatpush.bf16.msra.mxu0 0
  %1336 = vmatpush.bf16.msra.mxu0 0
  %1337 = vmatpush.bf16.msra.mxu0 %v581
  %1338 = vmatmul.bf16.gmra.mxu0 %v421
  %v1339 = vpop.f32.mrf.mxu0
  %v1340 = vadd.f32 0.0, %v1339
  %v1341 = vpop.f32.mrf.mxu0
  %1342 = vdwg.mxu0
  %1343 = vmatpush.bf16.msra.mxu0 0
  %1344 = vmatpush.bf16.msra.mxu0 0
  %1345 = vmatpush.bf16.msra.mxu0 0
  %1346 = vmatpush.bf16.msra.mxu0 0
  %1347 = vmatpush.bf16.msra.mxu0 0
  %1348 = vmatpush.bf16.msra.mxu0 0
  %1349 = vmatpush.bf16.msra.mxu0 0
  %1350 = vmatpush.bf16.msra.mxu0 %v584
  %1351 = vmatmul.bf16.gmra.mxu0 %v421
  %v1352 = vpop.f32.mrf.mxu0
  %v1353 = vadd.f32 0.0, %v1352
  %v1354 = vpop.f32.mrf.mxu0
  %1355 = vdwg.mxu0
  %1356 = vmatpush.bf16.msra.mxu0 0
  %1357 = vmatpush.bf16.msra.mxu0 0
  %1358 = vmatpush.bf16.msra.mxu0 0
  %1359 = vmatpush.bf16.msra.mxu0 0
  %1360 = vmatpush.bf16.msra.mxu0 0
  %1361 = vmatpush.bf16.msra.mxu0 0
  %1362 = vmatpush.bf16.msra.mxu0 0
  %1363 = vmatpush.bf16.msra.mxu0 %v587
  %1364 = vmatmul.bf16.gmra.mxu0 %v421
  %v1365 = vpop.f32.mrf.mxu0
  %v1366 = vadd.f32 0.0, %v1365
  %v1367 = vpop.f32.mrf.mxu0
  %1368 = vdwg.mxu0
  %1369 = vmatpush.bf16.msra.mxu0 0
  %1370 = vmatpush.bf16.msra.mxu0 0
  %1371 = vmatpush.bf16.msra.mxu0 0
  %1372 = vmatpush.bf16.msra.mxu0 0
  %1373 = vmatpush.bf16.msra.mxu0 0
  %1374 = vmatpush.bf16.msra.mxu0 0
  %1375 = vmatpush.bf16.msra.mxu0 0
  %1376 = vmatpush.bf16.msra.mxu0 %v590
  %1377 = vmatmul.bf16.gmra.mxu0 %v421
  %v1378 = vpop.f32.mrf.mxu0
  %v1379 = vadd.f32 0.0, %v1378
  %v1380 = vpop.f32.mrf.mxu0
  %1381 = vdwg.mxu0
  %1382 = vmatpush.bf16.msra.mxu0 0
  %1383 = vmatpush.bf16.msra.mxu0 0
  %1384 = vmatpush.bf16.msra.mxu0 0
  %1385 = vmatpush.bf16.msra.mxu0 0
  %1386 = vmatpush.bf16.msra.mxu0 0
  %1387 = vmatpush.bf16.msra.mxu0 0
  %1388 = vmatpush.bf16.msra.mxu0 0
  %1389 = vmatpush.bf16.msra.mxu0 %v593
  %1390 = vmatmul.bf16.gmra.mxu0 %v421
  %v1391 = vpop.f32.mrf.mxu0
  %v1392 = vadd.f32 0.0, %v1391
  %v1393 = vpop.f32.mrf.mxu0
  %1394 = vdwg.mxu0
  %1395 = vmatpush.bf16.msra.mxu0 0
  %1396 = vmatpush.bf16.msra.mxu0 0
  %1397 = vmatpush.bf16.msra.mxu0 0
  %1398 = vmatpush.bf16.msra.mxu0 0
  %1399 = vmatpush.bf16.msra.mxu0 0
  %1400 = vmatpush.bf16.msra.mxu0 0
  %1401 = vmatpush.bf16.msra.mxu0 0
  %1402 = vmatpush.bf16.msra.mxu0 %v596
  %1403 = vmatmul.bf16.gmra.mxu0 %v421
  %v1404 = vpop.f32.mrf.mxu0
  %v1405 = vadd.f32 0.0, %v1404
  %v1406 = vpop.f32.mrf.mxu0
  %1407 = vdwg.mxu0
  %1408 = vmatpush.bf16.msra.mxu0 0
  %1409 = vmatpush.bf16.msra.mxu0 0
  %1410 = vmatpush.bf16.msra.mxu0 0
  %1411 = vmatpush.bf16.msra.mxu0 0
  %1412 = vmatpush.bf16.msra.mxu0 0
  %1413 = vmatpush.bf16.msra.mxu0 0
  %1414 = vmatpush.bf16.msra.mxu0 0
  %1415 = vmatpush.bf16.msra.mxu0 %v599
  %1416 = vmatmul.bf16.gmra.mxu0 %v421
  %v1417 = vpop.f32.mrf.mxu0
  %v1418 = vadd.f32 0.0, %v1417
  %v1419 = vpop.f32.mrf.mxu0
  %1420 = vdwg.mxu0
  %1421 = vmatpush.bf16.msra.mxu0 0
  %1422 = vmatpush.bf16.msra.mxu0 0
  %1423 = vmatpush.bf16.msra.mxu0 0
  %1424 = vmatpush.bf16.msra.mxu0 0
  %1425 = vmatpush.bf16.msra.mxu0 0
  %1426 = vmatpush.bf16.msra.mxu0 0
  %1427 = vmatpush.bf16.msra.mxu0 0
  %1428 = vmatpush.bf16.msra.mxu0 %v602
  %1429 = vmatmul.bf16.gmra.mxu0 %v421
  %v1430 = vpop.f32.mrf.mxu0
  %v1431 = vadd.f32 0.0, %v1430
  %v1432 = vpop.f32.mrf.mxu0
  %1433 = vdwg.mxu0
  %1434 = vmatpush.bf16.msra.mxu0 0
  %1435 = vmatpush.bf16.msra.mxu0 0
  %1436 = vmatpush.bf16.msra.mxu0 0
  %1437 = vmatpush.bf16.msra.mxu0 0
  %1438 = vmatpush.bf16.msra.mxu0 0
  %1439 = vmatpush.bf16.msra.mxu0 0
  %1440 = vmatpush.bf16.msra.mxu0 0
  %1441 = vmatpush.bf16.msra.mxu0 %v605
  %1442 = vmatmul.bf16.gmra.mxu0 %v421
  %v1443 = vpop.f32.mrf.mxu0
  %v1444 = vadd.f32 0.0, %v1443
  %v1445 = vpop.f32.mrf.mxu0
  %1446 = vdwg.mxu0
  %1447 = vmatpush.bf16.msra.mxu0 0
  %1448 = vmatpush.bf16.msra.mxu0 0
  %1449 = vmatpush.bf16.msra.mxu0 0
  %1450 = vmatpush.bf16.msra.mxu0 0
  %1451 = vmatpush.bf16.msra.mxu0 0
  %1452 = vmatpush.bf16.msra.mxu0 0
  %1453 = vmatpush.bf16.msra.mxu0 0
  %1454 = vmatpush.bf16.msra.mxu0 %v608
  %1455 = vmatmul.bf16.gmra.mxu0 %v421
  %v1456 = vpop.f32.mrf.mxu0
  %v1457 = vadd.f32 0.0, %v1456
  %v1458 = vpop.f32.mrf.mxu0
  %1459 = vdwg.mxu0
  %1460 = vmatpush.bf16.msra.mxu0 0
  %1461 = vmatpush.bf16.msra.mxu0 0
  %1462 = vmatpush.bf16.msra.mxu0 0
  %1463 = vmatpush.bf16.msra.mxu0 0
  %1464 = vmatpush.bf16.msra.mxu0 0
  %1465 = vmatpush.bf16.msra.mxu0 0
  %1466 = vmatpush.bf16.msra.mxu0 0
  %1467 = vmatpush.bf16.msra.mxu0 %v611
  %1468 = vmatmul.bf16.gmra.mxu0 %v421
  %v1469 = vpop.f32.mrf.mxu0
  %v1470 = vadd.f32 0.0, %v1469
  %v1471 = vpop.f32.mrf.mxu0
  %1472 = vdwg.mxu0
  %1473 = vmatpush.bf16.msra.mxu0 0
  %1474 = vmatpush.bf16.msra.mxu0 0
  %1475 = vmatpush.bf16.msra.mxu0 0
  %1476 = vmatpush.bf16.msra.mxu0 0
  %1477 = vmatpush.bf16.msra.mxu0 0
  %1478 = vmatpush.bf16.msra.mxu0 0
  %1479 = vmatpush.bf16.msra.mxu0 0
  %1480 = vmatpush.bf16.msra.mxu0 %v614
  %1481 = vmatmul.bf16.gmra.mxu0 %v421
  %v1482 = vpop.f32.mrf.mxu0
  %v1483 = vadd.f32 0.0, %v1482
  %v1484 = vpop.f32.mrf.mxu0
  %1485 = vdwg.mxu0
  %1486 = vmatpush.bf16.msra.mxu0 0
  %1487 = vmatpush.bf16.msra.mxu0 0
  %1488 = vmatpush.bf16.msra.mxu0 0
  %1489 = vmatpush.bf16.msra.mxu0 0
  %1490 = vmatpush.bf16.msra.mxu0 0
  %1491 = vmatpush.bf16.msra.mxu0 0
  %1492 = vmatpush.bf16.msra.mxu0 0
  %1493 = vmatpush.bf16.msra.mxu0 %v617
  %1494 = vmatmul.bf16.gmra.mxu0 %v421
  %v1495 = vpop.f32.mrf.mxu0
  %v1496 = vadd.f32 0.0, %v1495
  %v1497 = vpop.f32.mrf.mxu0
  %1498 = vdwg.mxu0
  %1499 = vmatpush.bf16.msra.mxu0 0
  %1500 = vmatpush.bf16.msra.mxu0 0
  %1501 = vmatpush.bf16.msra.mxu0 0
  %1502 = vmatpush.bf16.msra.mxu0 0
  %1503 = vmatpush.bf16.msra.mxu0 0
  %1504 = vmatpush.bf16.msra.mxu0 0
  %1505 = vmatpush.bf16.msra.mxu0 0
  %1506 = vmatpush.bf16.msra.mxu0 %v620
  %1507 = vmatmul.bf16.gmra.mxu0 %v421
  %v1508 = vpop.f32.mrf.mxu0
  %v1509 = vadd.f32 0.0, %v1508
  %v1510 = vpop.f32.mrf.mxu0
  %1511 = vdwg.mxu0
  %1512 = vmatpush.bf16.msra.mxu0 0
  %1513 = vmatpush.bf16.msra.mxu0 0
  %1514 = vmatpush.bf16.msra.mxu0 0
  %1515 = vmatpush.bf16.msra.mxu0 0
  %1516 = vmatpush.bf16.msra.mxu0 0
  %1517 = vmatpush.bf16.msra.mxu0 0
  %1518 = vmatpush.bf16.msra.mxu0 0
  %1519 = vmatpush.bf16.msra.mxu0 %v623
  %1520 = vmatmul.bf16.gmra.mxu0 %v421
  %v1521 = vpop.f32.mrf.mxu0
  %v1522 = vadd.f32 0.0, %v1521
  %v1523 = vpop.f32.mrf.mxu0
  %1524 = vdwg.mxu0
  %1525 = vmatpush.bf16.msra.mxu0 0
  %1526 = vmatpush.bf16.msra.mxu0 0
  %1527 = vmatpush.bf16.msra.mxu0 0
  %1528 = vmatpush.bf16.msra.mxu0 0
  %1529 = vmatpush.bf16.msra.mxu0 0
  %1530 = vmatpush.bf16.msra.mxu0 0
  %1531 = vmatpush.bf16.msra.mxu0 0
  %1532 = vmatpush.bf16.msra.mxu0 %v626
  %1533 = vmatmul.bf16.gmra.mxu0 %v421
  %v1534 = vpop.f32.mrf.mxu0
  %v1535 = vadd.f32 0.0, %v1534
  %v1536 = vpop.f32.mrf.mxu0
  %1537 = vdwg.mxu0
  %1538 = vmatpush.bf16.msra.mxu0 0
  %1539 = vmatpush.bf16.msra.mxu0 0
  %1540 = vmatpush.bf16.msra.mxu0 0
  %1541 = vmatpush.bf16.msra.mxu0 0
  %1542 = vmatpush.bf16.msra.mxu0 0
  %1543 = vmatpush.bf16.msra.mxu0 0
  %1544 = vmatpush.bf16.msra.mxu0 0
  %1545 = vmatpush.bf16.msra.mxu0 %v629
  %1546 = vmatmul.bf16.gmra.mxu0 %v421
  %v1547 = vpop.f32.mrf.mxu0
  %v1548 = vadd.f32 0.0, %v1547
  %v1549 = vpop.f32.mrf.mxu0
  %1550 = vdwg.mxu0
  %1551 = vmatpush.bf16.msra.mxu0 0
  %1552 = vmatpush.bf16.msra.mxu0 0
  %1553 = vmatpush.bf16.msra.mxu0 0
  %1554 = vmatpush.bf16.msra.mxu0 0
  %1555 = vmatpush.bf16.msra.mxu0 0
  %1556 = vmatpush.bf16.msra.mxu0 0
  %1557 = vmatpush.bf16.msra.mxu0 0
  %1558 = vmatpush.bf16.msra.mxu0 %v632
  %1559 = vmatmul.bf16.gmra.mxu0 %v421
  %v1560 = vpop.f32.mrf.mxu0
  %v1561 = vadd.f32 0.0, %v1560
  %v1562 = vpop.f32.mrf.mxu0
  %1563 = vdwg.mxu0
  %1564 = vmatpush.bf16.msra.mxu0 0
  %1565 = vmatpush.bf16.msra.mxu0 0
  %1566 = vmatpush.bf16.msra.mxu0 0
  %1567 = vmatpush.bf16.msra.mxu0 0
  %1568 = vmatpush.bf16.msra.mxu0 0
  %1569 = vmatpush.bf16.msra.mxu0 0
  %1570 = vmatpush.bf16.msra.mxu0 0
  %1571 = vmatpush.bf16.msra.mxu0 %v635
  %1572 = vmatmul.bf16.gmra.mxu0 %v421
  %v1573 = vpop.f32.mrf.mxu0
  %v1574 = vadd.f32 0.0, %v1573
  %v1575 = vpop.f32.mrf.mxu0
  %1576 = vdwg.mxu0
  %1577 = vmatpush.bf16.msra.mxu0 0
  %1578 = vmatpush.bf16.msra.mxu0 0
  %1579 = vmatpush.bf16.msra.mxu0 0
  %1580 = vmatpush.bf16.msra.mxu0 0
  %1581 = vmatpush.bf16.msra.mxu0 0
  %1582 = vmatpush.bf16.msra.mxu0 0
  %1583 = vmatpush.bf16.msra.mxu0 0
  %1584 = vmatpush.bf16.msra.mxu0 %v638
  %1585 = vmatmul.bf16.gmra.mxu0 %v421
  %v1586 = vpop.f32.mrf.mxu0
  %v1587 = vadd.f32 0.0, %v1586
  %v1588 = vpop.f32.mrf.mxu0
  %1589 = vdwg.mxu0
  %1590 = vmatpush.bf16.msra.mxu0 0
  %1591 = vmatpush.bf16.msra.mxu0 0
  %1592 = vmatpush.bf16.msra.mxu0 0
  %1593 = vmatpush.bf16.msra.mxu0 0
  %1594 = vmatpush.bf16.msra.mxu0 0
  %1595 = vmatpush.bf16.msra.mxu0 0
  %1596 = vmatpush.bf16.msra.mxu0 0
  %1597 = vmatpush.bf16.msra.mxu0 %v641
  %1598 = vmatmul.bf16.gmra.mxu0 %v421
  %v1599 = vpop.f32.mrf.mxu0
  %v1600 = vadd.f32 0.0, %v1599
  %v1601 = vpop.f32.mrf.mxu0
  %1602 = vdwg.mxu0
  %1603 = vmatpush.bf16.msra.mxu0 0
  %1604 = vmatpush.bf16.msra.mxu0 0
  %1605 = vmatpush.bf16.msra.mxu0 0
  %1606 = vmatpush.bf16.msra.mxu0 0
  %1607 = vmatpush.bf16.msra.mxu0 0
  %1608 = vmatpush.bf16.msra.mxu0 0
  %1609 = vmatpush.bf16.msra.mxu0 0
  %1610 = vmatpush.bf16.msra.mxu0 %v644
  %1611 = vmatmul.bf16.gmra.mxu0 %v421
  %v1612 = vpop.f32.mrf.mxu0
  %v1613 = vadd.f32 0.0, %v1612
  %v1614 = vpop.f32.mrf.mxu0
  %1615 = vdwg.mxu0
  %1616 = vmatpush.bf16.msra.mxu0 0
  %1617 = vmatpush.bf16.msra.mxu0 0
  %1618 = vmatpush.bf16.msra.mxu0 0
  %1619 = vmatpush.bf16.msra.mxu0 0
  %1620 = vmatpush.bf16.msra.mxu0 0
  %1621 = vmatpush.bf16.msra.mxu0 0
  %1622 = vmatpush.bf16.msra.mxu0 0
  %1623 = vmatpush.bf16.msra.mxu0 %v647
  %1624 = vmatmul.bf16.gmra.mxu0 %v421
  %v1625 = vpop.f32.mrf.mxu0
  %v1626 = vadd.f32 0.0, %v1625
  %v1627 = vpop.f32.mrf.mxu0
  %1628 = vdwg.mxu0
  %1629 = vmatpush.bf16.msra.mxu0 0
  %1630 = vmatpush.bf16.msra.mxu0 0
  %1631 = vmatpush.bf16.msra.mxu0 0
  %1632 = vmatpush.bf16.msra.mxu0 0
  %1633 = vmatpush.bf16.msra.mxu0 0
  %1634 = vmatpush.bf16.msra.mxu0 0
  %1635 = vmatpush.bf16.msra.mxu0 0
  %1636 = vmatpush.bf16.msra.mxu0 %v650
  %1637 = vmatmul.bf16.gmra.mxu0 %v421
  %v1638 = vpop.f32.mrf.mxu0
  %v1639 = vadd.f32 0.0, %v1638
  %v1640 = vpop.f32.mrf.mxu0
  %1641 = vdwg.mxu0
  %1642 = vmatpush.bf16.msra.mxu0 0
  %1643 = vmatpush.bf16.msra.mxu0 0
  %1644 = vmatpush.bf16.msra.mxu0 0
  %1645 = vmatpush.bf16.msra.mxu0 0
  %1646 = vmatpush.bf16.msra.mxu0 0
  %1647 = vmatpush.bf16.msra.mxu0 0
  %1648 = vmatpush.bf16.msra.mxu0 0
  %1649 = vmatpush.bf16.msra.mxu0 %v653
  %1650 = vmatmul.bf16.gmra.mxu0 %v421
  %v1651 = vpop.f32.mrf.mxu0
  %v1652 = vadd.f32 0.0, %v1651
  %v1653 = vpop.f32.mrf.mxu0
  %1654 = vdwg.mxu0
  %1655 = vmatpush.bf16.msra.mxu0 0
  %1656 = vmatpush.bf16.msra.mxu0 0
  %1657 = vmatpush.bf16.msra.mxu0 0
  %1658 = vmatpush.bf16.msra.mxu0 0
  %1659 = vmatpush.bf16.msra.mxu0 0
  %1660 = vmatpush.bf16.msra.mxu0 0
  %1661 = vmatpush.bf16.msra.mxu0 0
  %1662 = vmatpush.bf16.msra.mxu0 %v656
  %1663 = vmatmul.bf16.gmra.mxu0 %v421
  %v1664 = vpop.f32.mrf.mxu0
  %v1665 = vadd.f32 0.0, %v1664
  %v1666 = vpop.f32.mrf.mxu0
  %1667 = vdwg.mxu0
  %1668 = vmatpush.bf16.msra.mxu0 0
  %1669 = vmatpush.bf16.msra.mxu0 0
  %1670 = vmatpush.bf16.msra.mxu0 0
  %1671 = vmatpush.bf16.msra.mxu0 0
  %1672 = vmatpush.bf16.msra.mxu0 0
  %1673 = vmatpush.bf16.msra.mxu0 0
  %1674 = vmatpush.bf16.msra.mxu0 0
  %1675 = vmatpush.bf16.msra.mxu0 %v659
  %1676 = vmatmul.bf16.gmra.mxu0 %v421
  %v1677 = vpop.f32.mrf.mxu0
  %v1678 = vadd.f32 0.0, %v1677
  %v1679 = vpop.f32.mrf.mxu0
  %1680 = vdwg.mxu0
  %1681 = vmatpush.bf16.msra.mxu0 0
  %1682 = vmatpush.bf16.msra.mxu0 0
  %1683 = vmatpush.bf16.msra.mxu0 0
  %1684 = vmatpush.bf16.msra.mxu0 0
  %1685 = vmatpush.bf16.msra.mxu0 0
  %1686 = vmatpush.bf16.msra.mxu0 0
  %1687 = vmatpush.bf16.msra.mxu0 0
  %1688 = vmatpush.bf16.msra.mxu0 %v662
  %1689 = vmatmul.bf16.gmra.mxu0 %v421
  %v1690 = vpop.f32.mrf.mxu0
  %v1691 = vadd.f32 0.0, %v1690
  %v1692 = vpop.f32.mrf.mxu0
  %1693 = vdwg.mxu0
  %1694 = vmatpush.bf16.msra.mxu0 0
  %1695 = vmatpush.bf16.msra.mxu0 0
  %1696 = vmatpush.bf16.msra.mxu0 0
  %1697 = vmatpush.bf16.msra.mxu0 0
  %1698 = vmatpush.bf16.msra.mxu0 0
  %1699 = vmatpush.bf16.msra.mxu0 0
  %1700 = vmatpush.bf16.msra.mxu0 0
  %1701 = vmatpush.bf16.msra.mxu0 %v665
  %1702 = vmatmul.bf16.gmra.mxu0 %v421
  %v1703 = vpop.f32.mrf.mxu0
  %v1704 = vadd.f32 0.0, %v1703
  %v1705 = vpop.f32.mrf.mxu0
  %1706 = vdwg.mxu0
  %v1707 = vld [vmem:[%s3] sm:$0xff]
  %v1708 = vld [vmem:[%s3 + $0x8] sm:$0xff]
  %v1709 = vld [vmem:[%s3 + $0x10] sm:$0xff]
  %v1710 = vld [vmem:[%s3 + $0x18] sm:$0xff]
  %v1711 = vld [vmem:[%s3 + $0x20] sm:$0xff]
  %v1712 = vld [vmem:[%s3 + $0x28] sm:$0xff]
  %v1713 = vld [vmem:[%s3 + $0x30] sm:$0xff]
  %v1714 = vld [vmem:[%s3 + $0x38] sm:$0xff]
  %v1715 = vld [vmem:[%s3 + $0x40] sm:$0xff]
  %v1716 = vld [vmem:[%s3 + $0x48] sm:$0xff]
  %v1717 = vld [vmem:[%s3 + $0x50] sm:$0xff]
  %v1718 = vld [vmem:[%s3 + $0x58] sm:$0xff]
  %v1719 = vld [vmem:[%s3 + $0x60] sm:$0xff]
  %v1720 = vld [vmem:[%s3 + $0x68] sm:$0xff]
  %v1721 = vld [vmem:[%s3 + $0x70] sm:$0xff]
  %v1722 = vld [vmem:[%s3 + $0x78] sm:$0xff]
  %v1723 = vld [vmem:[%s3 + $0x80] sm:$0xff]
  %v1724 = vld [vmem:[%s3 + $0x88] sm:$0xff]
  %v1725 = vld [vmem:[%s3 + $0x90] sm:$0xff]
  %v1726 = vld [vmem:[%s3 + $0x98] sm:$0xff]
  %v1727 = vld [vmem:[%s3 + $0xa0] sm:$0xff]
  %v1728 = vld [vmem:[%s3 + $0xa8] sm:$0xff]
  %v1729 = vld [vmem:[%s3 + $0xb0] sm:$0xff]
  %v1730 = vld [vmem:[%s3 + $0xb8] sm:$0xff]
  %v1731 = vld [vmem:[%s3 + $0xc0] sm:$0xff]
  %v1732 = vld [vmem:[%s3 + $0xc8] sm:$0xff]
  %v1733 = vld [vmem:[%s3 + $0xd0] sm:$0xff]
  %v1734 = vld [vmem:[%s3 + $0xd8] sm:$0xff]
  %v1735 = vld [vmem:[%s3 + $0xe0] sm:$0xff]
  %v1736 = vld [vmem:[%s3 + $0xe8] sm:$0xff]
  %v1737 = vld [vmem:[%s3 + $0xf0] sm:$0xff]
  %v1738 = vld [vmem:[%s3 + $0xf8] sm:$0xff]
  %v1739 = vld [vmem:[%s3 + $0x100] sm:$0xff]
  %v1740 = vld [vmem:[%s3 + $0x108] sm:$0xff]
  %v1741 = vld [vmem:[%s3 + $0x110] sm:$0xff]
  %v1742 = vld [vmem:[%s3 + $0x118] sm:$0xff]
  %v1743 = vld [vmem:[%s3 + $0x120] sm:$0xff]
  %v1744 = vld [vmem:[%s3 + $0x128] sm:$0xff]
  %v1745 = vld [vmem:[%s3 + $0x130] sm:$0xff]
  %v1746 = vld [vmem:[%s3 + $0x138] sm:$0xff]
  %v1747 = vld [vmem:[%s3 + $0x140] sm:$0x11]
  %v1748 = vld [vmem:[%s3 + $0x148] sm:$0x11]
  %v1749 = vld [vmem:[%s3 + $0x150] sm:$0x11]
  %v1750 = vld [vmem:[%s3 + $0x158] sm:$0x11]
  %v1751 = vld [vmem:[%s3 + $0x160] sm:$0x11]
  %v1752 = vld [vmem:[%s3 + $0x168] sm:$0x11]
  %v1753 = vld [vmem:[%s3 + $0x170] sm:$0x11]
  %v1754 = vld [vmem:[%s3 + $0x178] sm:$0x11]
  %v1755 = vld [vmem:[%s3 + $0x180] sm:$0x11]
  %v1756 = vld [vmem:[%s3 + $0x188] sm:$0x11]
  %v1757 = vld [vmem:[%s3 + $0x190] sm:$0x11]
  %v1758 = vld [vmem:[%s3 + $0x198] sm:$0x11]
  %v1759 = vld [vmem:[%s3 + $0x1a0] sm:$0x11]
  %v1760 = vld [vmem:[%s3 + $0x1a8] sm:$0x11]
  %v1761 = vld [vmem:[%s3 + $0x1b0] sm:$0x11]
  %v1762 = vld [vmem:[%s3 + $0x1b8] sm:$0x11]
  %v1763 = vld [vmem:[%s3 + $0x1c0] sm:$0x11]
  %v1764 = vld [vmem:[%s3 + $0x1c8] sm:$0x11]
  %v1765 = vld [vmem:[%s3 + $0x1d0] sm:$0x11]
  %v1766 = vld [vmem:[%s3 + $0x1d8] sm:$0x11]
  %v1767 = vld [vmem:[%s3 + $0x1e0] sm:$0x11]
  %v1768 = vld [vmem:[%s3 + $0x1e8] sm:$0x11]
  %v1769 = vld [vmem:[%s3 + $0x1f0] sm:$0x11]
  %v1770 = vld [vmem:[%s3 + $0x1f8] sm:$0x11]
  %v1771 = vld [vmem:[%s3 + $0x200] sm:$0x11]
  %v1772 = vld [vmem:[%s3 + $0x208] sm:$0x11]
  %v1773 = vld [vmem:[%s3 + $0x210] sm:$0x11]
  %v1774 = vld [vmem:[%s3 + $0x218] sm:$0x11]
  %v1775 = vld [vmem:[%s3 + $0x220] sm:$0x11]
  %v1776 = vld [vmem:[%s3 + $0x228] sm:$0x11]
  %v1777 = vld [vmem:[%s3 + $0x230] sm:$0x11]
  %v1778 = vld [vmem:[%s3 + $0x238] sm:$0x11]
  %v1779 = vld [vmem:[%s3 + $0x240] sm:$0x11]
  %v1780 = vld [vmem:[%s3 + $0x248] sm:$0x11]
  %v1781 = vld [vmem:[%s3 + $0x250] sm:$0x11]
  %v1782 = vld [vmem:[%s3 + $0x258] sm:$0x11]
  %v1783 = vld [vmem:[%s3 + $0x260] sm:$0x11]
  %v1784 = vld [vmem:[%s3 + $0x268] sm:$0x11]
  %v1785 = vld [vmem:[%s3 + $0x270] sm:$0x11]
  %v1786 = vld [vmem:[%s3 + $0x278] sm:$0x11]
  %v1867 = vunpack.c.l.b16 %v1707
  %v1868 = vunpack.c.h.b16 %v1707
  %v1869 = vunpack.c.l.b16 %v1708
  %v1870 = vunpack.c.h.b16 %v1708
  %v1871 = vunpack.c.l.b16 %v1709
  %v1872 = vunpack.c.h.b16 %v1709
  %v1873 = vunpack.c.l.b16 %v1710
  %v1874 = vunpack.c.h.b16 %v1710
  %v1875 = vunpack.c.l.b16 %v1711
  %v1876 = vunpack.c.h.b16 %v1711
  %v1877 = vunpack.c.l.b16 %v1712
  %v1878 = vunpack.c.h.b16 %v1712
  %v1879 = vunpack.c.l.b16 %v1713
  %v1880 = vunpack.c.h.b16 %v1713
  %v1881 = vunpack.c.l.b16 %v1714
  %v1882 = vunpack.c.h.b16 %v1714
  %v1883 = vunpack.c.l.b16 %v1715
  %v1884 = vunpack.c.h.b16 %v1715
  %v1885 = vunpack.c.l.b16 %v1716
  %v1886 = vunpack.c.h.b16 %v1716
  %v1887 = vunpack.c.l.b16 %v1717
  %v1888 = vunpack.c.h.b16 %v1717
  %v1889 = vunpack.c.l.b16 %v1718
  %v1890 = vunpack.c.h.b16 %v1718
  %v1891 = vunpack.c.l.b16 %v1719
  %v1892 = vunpack.c.h.b16 %v1719
  %v1893 = vunpack.c.l.b16 %v1720
  %v1894 = vunpack.c.h.b16 %v1720
  %v1895 = vunpack.c.l.b16 %v1721
  %v1896 = vunpack.c.h.b16 %v1721
  %v1897 = vunpack.c.l.b16 %v1722
  %v1898 = vunpack.c.h.b16 %v1722
  %v1899 = vunpack.c.l.b16 %v1723
  %v1900 = vunpack.c.h.b16 %v1723
  %v1901 = vunpack.c.l.b16 %v1724
  %v1902 = vunpack.c.h.b16 %v1724
  %v1903 = vunpack.c.l.b16 %v1725
  %v1904 = vunpack.c.h.b16 %v1725
  %v1905 = vunpack.c.l.b16 %v1726
  %v1906 = vunpack.c.h.b16 %v1726
  %v1907 = vunpack.c.l.b16 %v1727
  %v1908 = vunpack.c.h.b16 %v1727
  %v1909 = vunpack.c.l.b16 %v1728
  %v1910 = vunpack.c.h.b16 %v1728
  %v1911 = vunpack.c.l.b16 %v1729
  %v1912 = vunpack.c.h.b16 %v1729
  %v1913 = vunpack.c.l.b16 %v1730
  %v1914 = vunpack.c.h.b16 %v1730
  %v1915 = vunpack.c.l.b16 %v1731
  %v1916 = vunpack.c.h.b16 %v1731
  %v1917 = vunpack.c.l.b16 %v1732
  %v1918 = vunpack.c.h.b16 %v1732
  %v1919 = vunpack.c.l.b16 %v1733
  %v1920 = vunpack.c.h.b16 %v1733
  %v1921 = vunpack.c.l.b16 %v1734
  %v1922 = vunpack.c.h.b16 %v1734
  %v1923 = vunpack.c.l.b16 %v1735
  %v1924 = vunpack.c.h.b16 %v1735
  %v1925 = vunpack.c.l.b16 %v1736
  %v1926 = vunpack.c.h.b16 %v1736
  %v1927 = vunpack.c.l.b16 %v1737
  %v1928 = vunpack.c.h.b16 %v1737
  %v1929 = vunpack.c.l.b16 %v1738
  %v1930 = vunpack.c.h.b16 %v1738
  %v1931 = vunpack.c.l.b16 %v1739
  %v1932 = vunpack.c.h.b16 %v1739
  %v1933 = vunpack.c.l.b16 %v1740
  %v1934 = vunpack.c.h.b16 %v1740
  %v1935 = vunpack.c.l.b16 %v1741
  %v1936 = vunpack.c.h.b16 %v1741
  %v1937 = vunpack.c.l.b16 %v1742
  %v1938 = vunpack.c.h.b16 %v1742
  %v1939 = vunpack.c.l.b16 %v1743
  %v1940 = vunpack.c.h.b16 %v1743
  %v1941 = vunpack.c.l.b16 %v1744
  %v1942 = vunpack.c.h.b16 %v1744
  %v1943 = vunpack.c.l.b16 %v1745
  %v1944 = vunpack.c.h.b16 %v1745
  %v1945 = vunpack.c.l.b16 %v1746
  %v1946 = vunpack.c.h.b16 %v1746
  %v1947 = vunpack.c.l.b16 %v1747
  %v1948 = vunpack.c.h.b16 %v1747
  %v1949 = vunpack.c.l.b16 %v1748
  %v1950 = vunpack.c.h.b16 %v1748
  %v1951 = vunpack.c.l.b16 %v1749
  %v1952 = vunpack.c.h.b16 %v1749
  %v1953 = vunpack.c.l.b16 %v1750
  %v1954 = vunpack.c.h.b16 %v1750
  %v1955 = vunpack.c.l.b16 %v1751
  %v1956 = vunpack.c.h.b16 %v1751
  %v1957 = vunpack.c.l.b16 %v1752
  %v1958 = vunpack.c.h.b16 %v1752
  %v1959 = vunpack.c.l.b16 %v1753
  %v1960 = vunpack.c.h.b16 %v1753
  %v1961 = vunpack.c.l.b16 %v1754
  %v1962 = vunpack.c.h.b16 %v1754
  %v1963 = vunpack.c.l.b16 %v1755
  %v1964 = vunpack.c.h.b16 %v1755
  %v1965 = vunpack.c.l.b16 %v1756
  %v1966 = vunpack.c.h.b16 %v1756
  %v1967 = vunpack.c.l.b16 %v1757
  %v1968 = vunpack.c.h.b16 %v1757
  %v1969 = vunpack.c.l.b16 %v1758
  %v1970 = vunpack.c.h.b16 %v1758
  %v1971 = vunpack.c.l.b16 %v1759
  %v1972 = vunpack.c.h.b16 %v1759
  %v1973 = vunpack.c.l.b16 %v1760
  %v1974 = vunpack.c.h.b16 %v1760
  %v1975 = vunpack.c.l.b16 %v1761
  %v1976 = vunpack.c.h.b16 %v1761
  %v1977 = vunpack.c.l.b16 %v1762
  %v1978 = vunpack.c.h.b16 %v1762
  %v1979 = vunpack.c.l.b16 %v1763
  %v1980 = vunpack.c.h.b16 %v1763
  %v1981 = vunpack.c.l.b16 %v1764
  %v1982 = vunpack.c.h.b16 %v1764
  %v1983 = vunpack.c.l.b16 %v1765
  %v1984 = vunpack.c.h.b16 %v1765
  %v1985 = vunpack.c.l.b16 %v1766
  %v1986 = vunpack.c.h.b16 %v1766
  %v1987 = vunpack.c.l.b16 %v1767
  %v1988 = vunpack.c.h.b16 %v1767
  %v1989 = vunpack.c.l.b16 %v1768
  %v1990 = vunpack.c.h.b16 %v1768
  %v1991 = vunpack.c.l.b16 %v1769
  %v1992 = vunpack.c.h.b16 %v1769
  %v1993 = vunpack.c.l.b16 %v1770
  %v1994 = vunpack.c.h.b16 %v1770
  %v1995 = vunpack.c.l.b16 %v1771
  %v1996 = vunpack.c.h.b16 %v1771
  %v1997 = vunpack.c.l.b16 %v1772
  %v1998 = vunpack.c.h.b16 %v1772
  %v1999 = vunpack.c.l.b16 %v1773
  %v2000 = vunpack.c.h.b16 %v1773
  %v2001 = vunpack.c.l.b16 %v1774
  %v2002 = vunpack.c.h.b16 %v1774
  %v2003 = vunpack.c.l.b16 %v1775
  %v2004 = vunpack.c.h.b16 %v1775
  %v2005 = vunpack.c.l.b16 %v1776
  %v2006 = vunpack.c.h.b16 %v1776
  %v2007 = vunpack.c.l.b16 %v1777
  %v2008 = vunpack.c.h.b16 %v1777
  %v2009 = vunpack.c.l.b16 %v1778
  %v2010 = vunpack.c.h.b16 %v1778
  %v2011 = vunpack.c.l.b16 %v1779
  %v2012 = vunpack.c.h.b16 %v1779
  %v2013 = vunpack.c.l.b16 %v1780
  %v2014 = vunpack.c.h.b16 %v1780
  %v2015 = vunpack.c.l.b16 %v1781
  %v2016 = vunpack.c.h.b16 %v1781
  %v2017 = vunpack.c.l.b16 %v1782
  %v2018 = vunpack.c.h.b16 %v1782
  %v2019 = vunpack.c.l.b16 %v1783
  %v2020 = vunpack.c.h.b16 %v1783
  %v2021 = vunpack.c.l.b16 %v1784
  %v2022 = vunpack.c.h.b16 %v1784
  %v2023 = vunpack.c.l.b16 %v1785
  %v2024 = vunpack.c.h.b16 %v1785
  %v2025 = vunpack.c.l.b16 %v1786
  %v2026 = vunpack.c.h.b16 %v1786
  %v2027 = vpack.c.b16 %v1947, %v1867
  %v2028 = vpack.c.b16 %v1948, %v1868
  %v2029 = vpack.c.b16 %v1949, %v1869
  %v2030 = vpack.c.b16 %v1950, %v1870
  %v2031 = vpack.c.b16 %v1951, %v1871
  %v2032 = vpack.c.b16 %v1952, %v1872
  %v2033 = vpack.c.b16 %v1953, %v1873
  %v2034 = vpack.c.b16 %v1954, %v1874
  %v2035 = vpack.c.b16 %v1955, %v1875
  %v2036 = vpack.c.b16 %v1956, %v1876
  %v2037 = vpack.c.b16 %v1957, %v1877
  %v2038 = vpack.c.b16 %v1958, %v1878
  %v2039 = vpack.c.b16 %v1959, %v1879
  %v2040 = vpack.c.b16 %v1960, %v1880
  %v2041 = vpack.c.b16 %v1961, %v1881
  %v2042 = vpack.c.b16 %v1962, %v1882
  %v2043 = vpack.c.b16 %v1963, %v1883
  %v2044 = vpack.c.b16 %v1964, %v1884
  %v2045 = vpack.c.b16 %v1965, %v1885
  %v2046 = vpack.c.b16 %v1966, %v1886
  %v2047 = vpack.c.b16 %v1967, %v1887
  %v2048 = vpack.c.b16 %v1968, %v1888
  %v2049 = vpack.c.b16 %v1969, %v1889
  %v2050 = vpack.c.b16 %v1970, %v1890
  %v2051 = vpack.c.b16 %v1971, %v1891
  %v2052 = vpack.c.b16 %v1972, %v1892
  %v2053 = vpack.c.b16 %v1973, %v1893
  %v2054 = vpack.c.b16 %v1974, %v1894
  %v2055 = vpack.c.b16 %v1975, %v1895
  %v2056 = vpack.c.b16 %v1976, %v1896
  %v2057 = vpack.c.b16 %v1977, %v1897
  %v2058 = vpack.c.b16 %v1978, %v1898
  %v2059 = vpack.c.b16 %v1979, %v1899
  %v2060 = vpack.c.b16 %v1980, %v1900
  %v2061 = vpack.c.b16 %v1981, %v1901
  %v2062 = vpack.c.b16 %v1982, %v1902
  %v2063 = vpack.c.b16 %v1983, %v1903
  %v2064 = vpack.c.b16 %v1984, %v1904
  %v2065 = vpack.c.b16 %v1985, %v1905
  %v2066 = vpack.c.b16 %v1986, %v1906
  %v2067 = vpack.c.b16 %v1987, %v1907
  %v2068 = vpack.c.b16 %v1988, %v1908
  %v2069 = vpack.c.b16 %v1989, %v1909
  %v2070 = vpack.c.b16 %v1990, %v1910
  %v2071 = vpack.c.b16 %v1991, %v1911
  %v2072 = vpack.c.b16 %v1992, %v1912
  %v2073 = vpack.c.b16 %v1993, %v1913
  %v2074 = vpack.c.b16 %v1994, %v1914
  %v2075 = vpack.c.b16 %v1995, %v1915
  %v2076 = vpack.c.b16 %v1996, %v1916
  %v2077 = vpack.c.b16 %v1997, %v1917
  %v2078 = vpack.c.b16 %v1998, %v1918
  %v2079 = vpack.c.b16 %v1999, %v1919
  %v2080 = vpack.c.b16 %v2000, %v1920
  %v2081 = vpack.c.b16 %v2001, %v1921
  %v2082 = vpack.c.b16 %v2002, %v1922
  %v2083 = vpack.c.b16 %v2003, %v1923
  %v2084 = vpack.c.b16 %v2004, %v1924
  %v2085 = vpack.c.b16 %v2005, %v1925
  %v2086 = vpack.c.b16 %v2006, %v1926
  %v2087 = vpack.c.b16 %v2007, %v1927
  %v2088 = vpack.c.b16 %v2008, %v1928
  %v2089 = vpack.c.b16 %v2009, %v1929
  %v2090 = vpack.c.b16 %v2010, %v1930
  %v2091 = vpack.c.b16 %v2011, %v1931
  %v2092 = vpack.c.b16 %v2012, %v1932
  %v2093 = vpack.c.b16 %v2013, %v1933
  %v2094 = vpack.c.b16 %v2014, %v1934
  %v2095 = vpack.c.b16 %v2015, %v1935
  %v2096 = vpack.c.b16 %v2016, %v1936
  %v2097 = vpack.c.b16 %v2017, %v1937
  %v2098 = vpack.c.b16 %v2018, %v1938
  %v2099 = vpack.c.b16 %v2019, %v1939
  %v2100 = vpack.c.b16 %v2020, %v1940
  %v2101 = vpack.c.b16 %v2021, %v1941
  %v2102 = vpack.c.b16 %v2022, %v1942
  %v2103 = vpack.c.b16 %v2023, %v1943
  %v2104 = vpack.c.b16 %v2024, %v1944
  %v2105 = vpack.c.b16 %v2025, %v1945
  %v2106 = vpack.c.b16 %v2026, %v1946
  %v2108 = vand.u32 %v2027, %v426
  %v2111 = vand.u32 %v2028, %v426
  %v2114 = vand.u32 %v2029, %v426
  %v2117 = vand.u32 %v2030, %v426
  %v2120 = vand.u32 %v2031, %v426
  %v2123 = vand.u32 %v2032, %v426
  %v2126 = vand.u32 %v2033, %v426
  %v2129 = vand.u32 %v2034, %v426
  %v2132 = vand.u32 %v2035, %v426
  %v2135 = vand.u32 %v2036, %v426
  %v2138 = vand.u32 %v2037, %v426
  %v2141 = vand.u32 %v2038, %v426
  %v2144 = vand.u32 %v2039, %v426
  %v2147 = vand.u32 %v2040, %v426
  %v2150 = vand.u32 %v2041, %v426
  %v2153 = vand.u32 %v2042, %v426
  %v2156 = vand.u32 %v2043, %v426
  %v2159 = vand.u32 %v2044, %v426
  %v2162 = vand.u32 %v2045, %v426
  %v2165 = vand.u32 %v2046, %v426
  %v2168 = vand.u32 %v2047, %v426
  %v2171 = vand.u32 %v2048, %v426
  %v2174 = vand.u32 %v2049, %v426
  %v2177 = vand.u32 %v2050, %v426
  %v2180 = vand.u32 %v2051, %v426
  %v2183 = vand.u32 %v2052, %v426
  %v2186 = vand.u32 %v2053, %v426
  %v2189 = vand.u32 %v2054, %v426
  %v2192 = vand.u32 %v2055, %v426
  %v2195 = vand.u32 %v2056, %v426
  %v2198 = vand.u32 %v2057, %v426
  %v2201 = vand.u32 %v2058, %v426
  %v2204 = vand.u32 %v2059, %v426
  %v2207 = vand.u32 %v2060, %v426
  %v2210 = vand.u32 %v2061, %v426
  %v2213 = vand.u32 %v2062, %v426
  %v2216 = vand.u32 %v2063, %v426
  %v2219 = vand.u32 %v2064, %v426
  %v2222 = vand.u32 %v2065, %v426
  %v2225 = vand.u32 %v2066, %v426
  %v2228 = vand.u32 %v2067, %v426
  %v2231 = vand.u32 %v2068, %v426
  %v2234 = vand.u32 %v2069, %v426
  %v2237 = vand.u32 %v2070, %v426
  %v2240 = vand.u32 %v2071, %v426
  %v2243 = vand.u32 %v2072, %v426
  %v2246 = vand.u32 %v2073, %v426
  %v2249 = vand.u32 %v2074, %v426
  %v2252 = vand.u32 %v2075, %v426
  %v2255 = vand.u32 %v2076, %v426
  %v2258 = vand.u32 %v2077, %v426
  %v2261 = vand.u32 %v2078, %v426
  %v2264 = vand.u32 %v2079, %v426
  %v2267 = vand.u32 %v2080, %v426
  %v2270 = vand.u32 %v2081, %v426
  %v2273 = vand.u32 %v2082, %v426
  %v2276 = vand.u32 %v2083, %v426
  %v2279 = vand.u32 %v2084, %v426
  %v2282 = vand.u32 %v2085, %v426
  %v2285 = vand.u32 %v2086, %v426
  %v2288 = vand.u32 %v2087, %v426
  %v2291 = vand.u32 %v2088, %v426
  %v2294 = vand.u32 %v2089, %v426
  %v2297 = vand.u32 %v2090, %v426
  %v2300 = vand.u32 %v2091, %v426
  %v2303 = vand.u32 %v2092, %v426
  %v2306 = vand.u32 %v2093, %v426
  %v2309 = vand.u32 %v2094, %v426
  %v2312 = vand.u32 %v2095, %v426
  %v2315 = vand.u32 %v2096, %v426
  %v2318 = vand.u32 %v2097, %v426
  %v2321 = vand.u32 %v2098, %v426
  %v2324 = vand.u32 %v2099, %v426
  %v2327 = vand.u32 %v2100, %v426
  %v2330 = vand.u32 %v2101, %v426
  %v2333 = vand.u32 %v2102, %v426
  %v2336 = vand.u32 %v2103, %v426
  %v2339 = vand.u32 %v2104, %v426
  %v2342 = vand.u32 %v2105, %v426
  %v2345 = vand.u32 %v2106, %v426
  %2347 = vmatpush.bf16.msra.mxu0 0
  %2348 = vmatpush.bf16.msra.mxu0 0
  %2349 = vmatpush.bf16.msra.mxu0 0
  %2350 = vmatpush.bf16.msra.mxu0 0
  %2351 = vmatpush.bf16.msra.mxu0 0
  %2352 = vmatpush.bf16.msra.mxu0 0
  %2353 = vmatpush.bf16.msra.mxu0 0
  %2354 = vmatpush.bf16.msra.mxu0 %v2108
  %2355 = vmatmul.bf16.gmra.mxu0 %v421
  %v2356 = vpop.f32.mrf.mxu0
  %v2357 = vadd.f32 0.0, %v2356
  %v2358 = vpop.f32.mrf.mxu0
  %2359 = vdwg.mxu0
  %2360 = vmatpush.bf16.msra.mxu0 0
  %2361 = vmatpush.bf16.msra.mxu0 0
  %2362 = vmatpush.bf16.msra.mxu0 0
  %2363 = vmatpush.bf16.msra.mxu0 0
  %2364 = vmatpush.bf16.msra.mxu0 0
  %2365 = vmatpush.bf16.msra.mxu0 0
  %2366 = vmatpush.bf16.msra.mxu0 0
  %2367 = vmatpush.bf16.msra.mxu0 %v2111
  %2368 = vmatmul.bf16.gmra.mxu0 %v421
  %v2369 = vpop.f32.mrf.mxu0
  %v2370 = vadd.f32 0.0, %v2369
  %v2371 = vpop.f32.mrf.mxu0
  %2372 = vdwg.mxu0
  %2373 = vmatpush.bf16.msra.mxu0 0
  %2374 = vmatpush.bf16.msra.mxu0 0
  %2375 = vmatpush.bf16.msra.mxu0 0
  %2376 = vmatpush.bf16.msra.mxu0 0
  %2377 = vmatpush.bf16.msra.mxu0 0
  %2378 = vmatpush.bf16.msra.mxu0 0
  %2379 = vmatpush.bf16.msra.mxu0 0
  %2380 = vmatpush.bf16.msra.mxu0 %v2114
  %2381 = vmatmul.bf16.gmra.mxu0 %v421
  %v2382 = vpop.f32.mrf.mxu0
  %v2383 = vadd.f32 0.0, %v2382
  %v2384 = vpop.f32.mrf.mxu0
  %2385 = vdwg.mxu0
  %2386 = vmatpush.bf16.msra.mxu0 0
  %2387 = vmatpush.bf16.msra.mxu0 0
  %2388 = vmatpush.bf16.msra.mxu0 0
  %2389 = vmatpush.bf16.msra.mxu0 0
  %2390 = vmatpush.bf16.msra.mxu0 0
  %2391 = vmatpush.bf16.msra.mxu0 0
  %2392 = vmatpush.bf16.msra.mxu0 0
  %2393 = vmatpush.bf16.msra.mxu0 %v2117
  %2394 = vmatmul.bf16.gmra.mxu0 %v421
  %v2395 = vpop.f32.mrf.mxu0
  %v2396 = vadd.f32 0.0, %v2395
  %v2397 = vpop.f32.mrf.mxu0
  %2398 = vdwg.mxu0
  %2399 = vmatpush.bf16.msra.mxu0 0
  %2400 = vmatpush.bf16.msra.mxu0 0
  %2401 = vmatpush.bf16.msra.mxu0 0
  %2402 = vmatpush.bf16.msra.mxu0 0
  %2403 = vmatpush.bf16.msra.mxu0 0
  %2404 = vmatpush.bf16.msra.mxu0 0
  %2405 = vmatpush.bf16.msra.mxu0 0
  %2406 = vmatpush.bf16.msra.mxu0 %v2120
  %2407 = vmatmul.bf16.gmra.mxu0 %v421
  %v2408 = vpop.f32.mrf.mxu0
  %v2409 = vadd.f32 0.0, %v2408
  %v2410 = vpop.f32.mrf.mxu0
  %2411 = vdwg.mxu0
  %2412 = vmatpush.bf16.msra.mxu0 0
  %2413 = vmatpush.bf16.msra.mxu0 0
  %2414 = vmatpush.bf16.msra.mxu0 0
  %2415 = vmatpush.bf16.msra.mxu0 0
  %2416 = vmatpush.bf16.msra.mxu0 0
  %2417 = vmatpush.bf16.msra.mxu0 0
  %2418 = vmatpush.bf16.msra.mxu0 0
  %2419 = vmatpush.bf16.msra.mxu0 %v2123
  %2420 = vmatmul.bf16.gmra.mxu0 %v421
  %v2421 = vpop.f32.mrf.mxu0
  %v2422 = vadd.f32 0.0, %v2421
  %v2423 = vpop.f32.mrf.mxu0
  %2424 = vdwg.mxu0
  %2425 = vmatpush.bf16.msra.mxu0 0
  %2426 = vmatpush.bf16.msra.mxu0 0
  %2427 = vmatpush.bf16.msra.mxu0 0
  %2428 = vmatpush.bf16.msra.mxu0 0
  %2429 = vmatpush.bf16.msra.mxu0 0
  %2430 = vmatpush.bf16.msra.mxu0 0
  %2431 = vmatpush.bf16.msra.mxu0 0
  %2432 = vmatpush.bf16.msra.mxu0 %v2126
  %2433 = vmatmul.bf16.gmra.mxu0 %v421
  %v2434 = vpop.f32.mrf.mxu0
  %v2435 = vadd.f32 0.0, %v2434
  %v2436 = vpop.f32.mrf.mxu0
  %2437 = vdwg.mxu0
  %2438 = vmatpush.bf16.msra.mxu0 0
  %2439 = vmatpush.bf16.msra.mxu0 0
  %2440 = vmatpush.bf16.msra.mxu0 0
  %2441 = vmatpush.bf16.msra.mxu0 0
  %2442 = vmatpush.bf16.msra.mxu0 0
  %2443 = vmatpush.bf16.msra.mxu0 0
  %2444 = vmatpush.bf16.msra.mxu0 0
  %2445 = vmatpush.bf16.msra.mxu0 %v2129
  %2446 = vmatmul.bf16.gmra.mxu0 %v421
  %v2447 = vpop.f32.mrf.mxu0
  %v2448 = vadd.f32 0.0, %v2447
  %v2449 = vpop.f32.mrf.mxu0
  %2450 = vdwg.mxu0
  %2451 = vmatpush.bf16.msra.mxu0 0
  %2452 = vmatpush.bf16.msra.mxu0 0
  %2453 = vmatpush.bf16.msra.mxu0 0
  %2454 = vmatpush.bf16.msra.mxu0 0
  %2455 = vmatpush.bf16.msra.mxu0 0
  %2456 = vmatpush.bf16.msra.mxu0 0
  %2457 = vmatpush.bf16.msra.mxu0 0
  %2458 = vmatpush.bf16.msra.mxu0 %v2132
  %2459 = vmatmul.bf16.gmra.mxu0 %v421
  %v2460 = vpop.f32.mrf.mxu0
  %v2461 = vadd.f32 0.0, %v2460
  %v2462 = vpop.f32.mrf.mxu0
  %2463 = vdwg.mxu0
  %2464 = vmatpush.bf16.msra.mxu0 0
  %2465 = vmatpush.bf16.msra.mxu0 0
  %2466 = vmatpush.bf16.msra.mxu0 0
  %2467 = vmatpush.bf16.msra.mxu0 0
  %2468 = vmatpush.bf16.msra.mxu0 0
  %2469 = vmatpush.bf16.msra.mxu0 0
  %2470 = vmatpush.bf16.msra.mxu0 0
  %2471 = vmatpush.bf16.msra.mxu0 %v2135
  %2472 = vmatmul.bf16.gmra.mxu0 %v421
  %v2473 = vpop.f32.mrf.mxu0
  %v2474 = vadd.f32 0.0, %v2473
  %v2475 = vpop.f32.mrf.mxu0
  %2476 = vdwg.mxu0
  %2477 = vmatpush.bf16.msra.mxu0 0
  %2478 = vmatpush.bf16.msra.mxu0 0
  %2479 = vmatpush.bf16.msra.mxu0 0
  %2480 = vmatpush.bf16.msra.mxu0 0
  %2481 = vmatpush.bf16.msra.mxu0 0
  %2482 = vmatpush.bf16.msra.mxu0 0
  %2483 = vmatpush.bf16.msra.mxu0 0
  %2484 = vmatpush.bf16.msra.mxu0 %v2138
  %2485 = vmatmul.bf16.gmra.mxu0 %v421
  %v2486 = vpop.f32.mrf.mxu0
  %v2487 = vadd.f32 0.0, %v2486
  %v2488 = vpop.f32.mrf.mxu0
  %2489 = vdwg.mxu0
  %2490 = vmatpush.bf16.msra.mxu0 0
  %2491 = vmatpush.bf16.msra.mxu0 0
  %2492 = vmatpush.bf16.msra.mxu0 0
  %2493 = vmatpush.bf16.msra.mxu0 0
  %2494 = vmatpush.bf16.msra.mxu0 0
  %2495 = vmatpush.bf16.msra.mxu0 0
  %2496 = vmatpush.bf16.msra.mxu0 0
  %2497 = vmatpush.bf16.msra.mxu0 %v2141
  %2498 = vmatmul.bf16.gmra.mxu0 %v421
  %v2499 = vpop.f32.mrf.mxu0
  %v2500 = vadd.f32 0.0, %v2499
  %v2501 = vpop.f32.mrf.mxu0
  %2502 = vdwg.mxu0
  %2503 = vmatpush.bf16.msra.mxu0 0
  %2504 = vmatpush.bf16.msra.mxu0 0
  %2505 = vmatpush.bf16.msra.mxu0 0
  %2506 = vmatpush.bf16.msra.mxu0 0
  %2507 = vmatpush.bf16.msra.mxu0 0
  %2508 = vmatpush.bf16.msra.mxu0 0
  %2509 = vmatpush.bf16.msra.mxu0 0
  %2510 = vmatpush.bf16.msra.mxu0 %v2144
  %2511 = vmatmul.bf16.gmra.mxu0 %v421
  %v2512 = vpop.f32.mrf.mxu0
  %v2513 = vadd.f32 0.0, %v2512
  %v2514 = vpop.f32.mrf.mxu0
  %2515 = vdwg.mxu0
  %2516 = vmatpush.bf16.msra.mxu0 0
  %2517 = vmatpush.bf16.msra.mxu0 0
  %2518 = vmatpush.bf16.msra.mxu0 0
  %2519 = vmatpush.bf16.msra.mxu0 0
  %2520 = vmatpush.bf16.msra.mxu0 0
  %2521 = vmatpush.bf16.msra.mxu0 0
  %2522 = vmatpush.bf16.msra.mxu0 0
  %2523 = vmatpush.bf16.msra.mxu0 %v2147
  %2524 = vmatmul.bf16.gmra.mxu0 %v421
  %v2525 = vpop.f32.mrf.mxu0
  %v2526 = vadd.f32 0.0, %v2525
  %v2527 = vpop.f32.mrf.mxu0
  %2528 = vdwg.mxu0
  %2529 = vmatpush.bf16.msra.mxu0 0
  %2530 = vmatpush.bf16.msra.mxu0 0
  %2531 = vmatpush.bf16.msra.mxu0 0
  %2532 = vmatpush.bf16.msra.mxu0 0
  %2533 = vmatpush.bf16.msra.mxu0 0
  %2534 = vmatpush.bf16.msra.mxu0 0
  %2535 = vmatpush.bf16.msra.mxu0 0
  %2536 = vmatpush.bf16.msra.mxu0 %v2150
  %2537 = vmatmul.bf16.gmra.mxu0 %v421
  %v2538 = vpop.f32.mrf.mxu0
  %v2539 = vadd.f32 0.0, %v2538
  %v2540 = vpop.f32.mrf.mxu0
  %2541 = vdwg.mxu0
  %2542 = vmatpush.bf16.msra.mxu0 0
  %2543 = vmatpush.bf16.msra.mxu0 0
  %2544 = vmatpush.bf16.msra.mxu0 0
  %2545 = vmatpush.bf16.msra.mxu0 0
  %2546 = vmatpush.bf16.msra.mxu0 0
  %2547 = vmatpush.bf16.msra.mxu0 0
  %2548 = vmatpush.bf16.msra.mxu0 0
  %2549 = vmatpush.bf16.msra.mxu0 %v2153
  %2550 = vmatmul.bf16.gmra.mxu0 %v421
  %v2551 = vpop.f32.mrf.mxu0
  %v2552 = vadd.f32 0.0, %v2551
  %v2553 = vpop.f32.mrf.mxu0
  %2554 = vdwg.mxu0
  %2555 = vmatpush.bf16.msra.mxu0 0
  %2556 = vmatpush.bf16.msra.mxu0 0
  %2557 = vmatpush.bf16.msra.mxu0 0
  %2558 = vmatpush.bf16.msra.mxu0 0
  %2559 = vmatpush.bf16.msra.mxu0 0
  %2560 = vmatpush.bf16.msra.mxu0 0
  %2561 = vmatpush.bf16.msra.mxu0 0
  %2562 = vmatpush.bf16.msra.mxu0 %v2156
  %2563 = vmatmul.bf16.gmra.mxu0 %v421
  %v2564 = vpop.f32.mrf.mxu0
  %v2565 = vadd.f32 0.0, %v2564
  %v2566 = vpop.f32.mrf.mxu0
  %2567 = vdwg.mxu0
  %2568 = vmatpush.bf16.msra.mxu0 0
  %2569 = vmatpush.bf16.msra.mxu0 0
  %2570 = vmatpush.bf16.msra.mxu0 0
  %2571 = vmatpush.bf16.msra.mxu0 0
  %2572 = vmatpush.bf16.msra.mxu0 0
  %2573 = vmatpush.bf16.msra.mxu0 0
  %2574 = vmatpush.bf16.msra.mxu0 0
  %2575 = vmatpush.bf16.msra.mxu0 %v2159
  %2576 = vmatmul.bf16.gmra.mxu0 %v421
  %v2577 = vpop.f32.mrf.mxu0
  %v2578 = vadd.f32 0.0, %v2577
  %v2579 = vpop.f32.mrf.mxu0
  %2580 = vdwg.mxu0
  %2581 = vmatpush.bf16.msra.mxu0 0
  %2582 = vmatpush.bf16.msra.mxu0 0
  %2583 = vmatpush.bf16.msra.mxu0 0
  %2584 = vmatpush.bf16.msra.mxu0 0
  %2585 = vmatpush.bf16.msra.mxu0 0
  %2586 = vmatpush.bf16.msra.mxu0 0
  %2587 = vmatpush.bf16.msra.mxu0 0
  %2588 = vmatpush.bf16.msra.mxu0 %v2162
  %2589 = vmatmul.bf16.gmra.mxu0 %v421
  %v2590 = vpop.f32.mrf.mxu0
  %v2591 = vadd.f32 0.0, %v2590
  %v2592 = vpop.f32.mrf.mxu0
  %2593 = vdwg.mxu0
  %2594 = vmatpush.bf16.msra.mxu0 0
  %2595 = vmatpush.bf16.msra.mxu0 0
  %2596 = vmatpush.bf16.msra.mxu0 0
  %2597 = vmatpush.bf16.msra.mxu0 0
  %2598 = vmatpush.bf16.msra.mxu0 0
  %2599 = vmatpush.bf16.msra.mxu0 0
  %2600 = vmatpush.bf16.msra.mxu0 0
  %2601 = vmatpush.bf16.msra.mxu0 %v2165
  %2602 = vmatmul.bf16.gmra.mxu0 %v421
  %v2603 = vpop.f32.mrf.mxu0
  %v2604 = vadd.f32 0.0, %v2603
  %v2605 = vpop.f32.mrf.mxu0
  %2606 = vdwg.mxu0
  %2607 = vmatpush.bf16.msra.mxu0 0
  %2608 = vmatpush.bf16.msra.mxu0 0
  %2609 = vmatpush.bf16.msra.mxu0 0
  %2610 = vmatpush.bf16.msra.mxu0 0
  %2611 = vmatpush.bf16.msra.mxu0 0
  %2612 = vmatpush.bf16.msra.mxu0 0
  %2613 = vmatpush.bf16.msra.mxu0 0
  %2614 = vmatpush.bf16.msra.mxu0 %v2168
  %2615 = vmatmul.bf16.gmra.mxu0 %v421
  %v2616 = vpop.f32.mrf.mxu0
  %v2617 = vadd.f32 0.0, %v2616
  %v2618 = vpop.f32.mrf.mxu0
  %2619 = vdwg.mxu0
  %2620 = vmatpush.bf16.msra.mxu0 0
  %2621 = vmatpush.bf16.msra.mxu0 0
  %2622 = vmatpush.bf16.msra.mxu0 0
  %2623 = vmatpush.bf16.msra.mxu0 0
  %2624 = vmatpush.bf16.msra.mxu0 0
  %2625 = vmatpush.bf16.msra.mxu0 0
  %2626 = vmatpush.bf16.msra.mxu0 0
  %2627 = vmatpush.bf16.msra.mxu0 %v2171
  %2628 = vmatmul.bf16.gmra.mxu0 %v421
  %v2629 = vpop.f32.mrf.mxu0
  %v2630 = vadd.f32 0.0, %v2629
  %v2631 = vpop.f32.mrf.mxu0
  %2632 = vdwg.mxu0
  %2633 = vmatpush.bf16.msra.mxu0 0
  %2634 = vmatpush.bf16.msra.mxu0 0
  %2635 = vmatpush.bf16.msra.mxu0 0
  %2636 = vmatpush.bf16.msra.mxu0 0
  %2637 = vmatpush.bf16.msra.mxu0 0
  %2638 = vmatpush.bf16.msra.mxu0 0
  %2639 = vmatpush.bf16.msra.mxu0 0
  %2640 = vmatpush.bf16.msra.mxu0 %v2174
  %2641 = vmatmul.bf16.gmra.mxu0 %v421
  %v2642 = vpop.f32.mrf.mxu0
  %v2643 = vadd.f32 0.0, %v2642
  %v2644 = vpop.f32.mrf.mxu0
  %2645 = vdwg.mxu0
  %2646 = vmatpush.bf16.msra.mxu0 0
  %2647 = vmatpush.bf16.msra.mxu0 0
  %2648 = vmatpush.bf16.msra.mxu0 0
  %2649 = vmatpush.bf16.msra.mxu0 0
  %2650 = vmatpush.bf16.msra.mxu0 0
  %2651 = vmatpush.bf16.msra.mxu0 0
  %2652 = vmatpush.bf16.msra.mxu0 0
  %2653 = vmatpush.bf16.msra.mxu0 %v2177
  %2654 = vmatmul.bf16.gmra.mxu0 %v421
  %v2655 = vpop.f32.mrf.mxu0
  %v2656 = vadd.f32 0.0, %v2655
  %v2657 = vpop.f32.mrf.mxu0
  %2658 = vdwg.mxu0
  %2659 = vmatpush.bf16.msra.mxu0 0
  %2660 = vmatpush.bf16.msra.mxu0 0
  %2661 = vmatpush.bf16.msra.mxu0 0
  %2662 = vmatpush.bf16.msra.mxu0 0
  %2663 = vmatpush.bf16.msra.mxu0 0
  %2664 = vmatpush.bf16.msra.mxu0 0
  %2665 = vmatpush.bf16.msra.mxu0 0
  %2666 = vmatpush.bf16.msra.mxu0 %v2180
  %2667 = vmatmul.bf16.gmra.mxu0 %v421
  %v2668 = vpop.f32.mrf.mxu0
  %v2669 = vadd.f32 0.0, %v2668
  %v2670 = vpop.f32.mrf.mxu0
  %2671 = vdwg.mxu0
  %2672 = vmatpush.bf16.msra.mxu0 0
  %2673 = vmatpush.bf16.msra.mxu0 0
  %2674 = vmatpush.bf16.msra.mxu0 0
  %2675 = vmatpush.bf16.msra.mxu0 0
  %2676 = vmatpush.bf16.msra.mxu0 0
  %2677 = vmatpush.bf16.msra.mxu0 0
  %2678 = vmatpush.bf16.msra.mxu0 0
  %2679 = vmatpush.bf16.msra.mxu0 %v2183
  %2680 = vmatmul.bf16.gmra.mxu0 %v421
  %v2681 = vpop.f32.mrf.mxu0
  %v2682 = vadd.f32 0.0, %v2681
  %v2683 = vpop.f32.mrf.mxu0
  %2684 = vdwg.mxu0
  %2685 = vmatpush.bf16.msra.mxu0 0
  %2686 = vmatpush.bf16.msra.mxu0 0
  %2687 = vmatpush.bf16.msra.mxu0 0
  %2688 = vmatpush.bf16.msra.mxu0 0
  %2689 = vmatpush.bf16.msra.mxu0 0
  %2690 = vmatpush.bf16.msra.mxu0 0
  %2691 = vmatpush.bf16.msra.mxu0 0
  %2692 = vmatpush.bf16.msra.mxu0 %v2186
  %2693 = vmatmul.bf16.gmra.mxu0 %v421
  %v2694 = vpop.f32.mrf.mxu0
  %v2695 = vadd.f32 0.0, %v2694
  %v2696 = vpop.f32.mrf.mxu0
  %2697 = vdwg.mxu0
  %2698 = vmatpush.bf16.msra.mxu0 0
  %2699 = vmatpush.bf16.msra.mxu0 0
  %2700 = vmatpush.bf16.msra.mxu0 0
  %2701 = vmatpush.bf16.msra.mxu0 0
  %2702 = vmatpush.bf16.msra.mxu0 0
  %2703 = vmatpush.bf16.msra.mxu0 0
  %2704 = vmatpush.bf16.msra.mxu0 0
  %2705 = vmatpush.bf16.msra.mxu0 %v2189
  %2706 = vmatmul.bf16.gmra.mxu0 %v421
  %v2707 = vpop.f32.mrf.mxu0
  %v2708 = vadd.f32 0.0, %v2707
  %v2709 = vpop.f32.mrf.mxu0
  %2710 = vdwg.mxu0
  %2711 = vmatpush.bf16.msra.mxu0 0
  %2712 = vmatpush.bf16.msra.mxu0 0
  %2713 = vmatpush.bf16.msra.mxu0 0
  %2714 = vmatpush.bf16.msra.mxu0 0
  %2715 = vmatpush.bf16.msra.mxu0 0
  %2716 = vmatpush.bf16.msra.mxu0 0
  %2717 = vmatpush.bf16.msra.mxu0 0
  %2718 = vmatpush.bf16.msra.mxu0 %v2192
  %2719 = vmatmul.bf16.gmra.mxu0 %v421
  %v2720 = vpop.f32.mrf.mxu0
  %v2721 = vadd.f32 0.0, %v2720
  %v2722 = vpop.f32.mrf.mxu0
  %2723 = vdwg.mxu0
  %2724 = vmatpush.bf16.msra.mxu0 0
  %2725 = vmatpush.bf16.msra.mxu0 0
  %2726 = vmatpush.bf16.msra.mxu0 0
  %2727 = vmatpush.bf16.msra.mxu0 0
  %2728 = vmatpush.bf16.msra.mxu0 0
  %2729 = vmatpush.bf16.msra.mxu0 0
  %2730 = vmatpush.bf16.msra.mxu0 0
  %2731 = vmatpush.bf16.msra.mxu0 %v2195
  %2732 = vmatmul.bf16.gmra.mxu0 %v421
  %v2733 = vpop.f32.mrf.mxu0
  %v2734 = vadd.f32 0.0, %v2733
  %v2735 = vpop.f32.mrf.mxu0
  %2736 = vdwg.mxu0
  %2737 = vmatpush.bf16.msra.mxu0 0
  %2738 = vmatpush.bf16.msra.mxu0 0
  %2739 = vmatpush.bf16.msra.mxu0 0
  %2740 = vmatpush.bf16.msra.mxu0 0
  %2741 = vmatpush.bf16.msra.mxu0 0
  %2742 = vmatpush.bf16.msra.mxu0 0
  %2743 = vmatpush.bf16.msra.mxu0 0
  %2744 = vmatpush.bf16.msra.mxu0 %v2198
  %2745 = vmatmul.bf16.gmra.mxu0 %v421
  %v2746 = vpop.f32.mrf.mxu0
  %v2747 = vadd.f32 0.0, %v2746
  %v2748 = vpop.f32.mrf.mxu0
  %2749 = vdwg.mxu0
  %2750 = vmatpush.bf16.msra.mxu0 0
  %2751 = vmatpush.bf16.msra.mxu0 0
  %2752 = vmatpush.bf16.msra.mxu0 0
  %2753 = vmatpush.bf16.msra.mxu0 0
  %2754 = vmatpush.bf16.msra.mxu0 0
  %2755 = vmatpush.bf16.msra.mxu0 0
  %2756 = vmatpush.bf16.msra.mxu0 0
  %2757 = vmatpush.bf16.msra.mxu0 %v2201
  %2758 = vmatmul.bf16.gmra.mxu0 %v421
  %v2759 = vpop.f32.mrf.mxu0
  %v2760 = vadd.f32 0.0, %v2759
  %v2761 = vpop.f32.mrf.mxu0
  %2762 = vdwg.mxu0
  %2763 = vmatpush.bf16.msra.mxu0 0
  %2764 = vmatpush.bf16.msra.mxu0 0
  %2765 = vmatpush.bf16.msra.mxu0 0
  %2766 = vmatpush.bf16.msra.mxu0 0
  %2767 = vmatpush.bf16.msra.mxu0 0
  %2768 = vmatpush.bf16.msra.mxu0 0
  %2769 = vmatpush.bf16.msra.mxu0 0
  %2770 = vmatpush.bf16.msra.mxu0 %v2204
  %2771 = vmatmul.bf16.gmra.mxu0 %v421
  %v2772 = vpop.f32.mrf.mxu0
  %v2773 = vadd.f32 0.0, %v2772
  %v2774 = vpop.f32.mrf.mxu0
  %2775 = vdwg.mxu0
  %2776 = vmatpush.bf16.msra.mxu0 0
  %2777 = vmatpush.bf16.msra.mxu0 0
  %2778 = vmatpush.bf16.msra.mxu0 0
  %2779 = vmatpush.bf16.msra.mxu0 0
  %2780 = vmatpush.bf16.msra.mxu0 0
  %2781 = vmatpush.bf16.msra.mxu0 0
  %2782 = vmatpush.bf16.msra.mxu0 0
  %2783 = vmatpush.bf16.msra.mxu0 %v2207
  %2784 = vmatmul.bf16.gmra.mxu0 %v421
  %v2785 = vpop.f32.mrf.mxu0
  %v2786 = vadd.f32 0.0, %v2785
  %v2787 = vpop.f32.mrf.mxu0
  %2788 = vdwg.mxu0
  %2789 = vmatpush.bf16.msra.mxu0 0
  %2790 = vmatpush.bf16.msra.mxu0 0
  %2791 = vmatpush.bf16.msra.mxu0 0
  %2792 = vmatpush.bf16.msra.mxu0 0
  %2793 = vmatpush.bf16.msra.mxu0 0
  %2794 = vmatpush.bf16.msra.mxu0 0
  %2795 = vmatpush.bf16.msra.mxu0 0
  %2796 = vmatpush.bf16.msra.mxu0 %v2210
  %2797 = vmatmul.bf16.gmra.mxu0 %v421
  %v2798 = vpop.f32.mrf.mxu0
  %v2799 = vadd.f32 0.0, %v2798
  %v2800 = vpop.f32.mrf.mxu0
  %2801 = vdwg.mxu0
  %2802 = vmatpush.bf16.msra.mxu0 0
  %2803 = vmatpush.bf16.msra.mxu0 0
  %2804 = vmatpush.bf16.msra.mxu0 0
  %2805 = vmatpush.bf16.msra.mxu0 0
  %2806 = vmatpush.bf16.msra.mxu0 0
  %2807 = vmatpush.bf16.msra.mxu0 0
  %2808 = vmatpush.bf16.msra.mxu0 0
  %2809 = vmatpush.bf16.msra.mxu0 %v2213
  %2810 = vmatmul.bf16.gmra.mxu0 %v421
  %v2811 = vpop.f32.mrf.mxu0
  %v2812 = vadd.f32 0.0, %v2811
  %v2813 = vpop.f32.mrf.mxu0
  %2814 = vdwg.mxu0
  %2815 = vmatpush.bf16.msra.mxu0 0
  %2816 = vmatpush.bf16.msra.mxu0 0
  %2817 = vmatpush.bf16.msra.mxu0 0
  %2818 = vmatpush.bf16.msra.mxu0 0
  %2819 = vmatpush.bf16.msra.mxu0 0
  %2820 = vmatpush.bf16.msra.mxu0 0
  %2821 = vmatpush.bf16.msra.mxu0 0
  %2822 = vmatpush.bf16.msra.mxu0 %v2216
  %2823 = vmatmul.bf16.gmra.mxu0 %v421
  %v2824 = vpop.f32.mrf.mxu0
  %v2825 = vadd.f32 0.0, %v2824
  %v2826 = vpop.f32.mrf.mxu0
  %2827 = vdwg.mxu0
  %2828 = vmatpush.bf16.msra.mxu0 0
  %2829 = vmatpush.bf16.msra.mxu0 0
  %2830 = vmatpush.bf16.msra.mxu0 0
  %2831 = vmatpush.bf16.msra.mxu0 0
  %2832 = vmatpush.bf16.msra.mxu0 0
  %2833 = vmatpush.bf16.msra.mxu0 0
  %2834 = vmatpush.bf16.msra.mxu0 0
  %2835 = vmatpush.bf16.msra.mxu0 %v2219
  %2836 = vmatmul.bf16.gmra.mxu0 %v421
  %v2837 = vpop.f32.mrf.mxu0
  %v2838 = vadd.f32 0.0, %v2837
  %v2839 = vpop.f32.mrf.mxu0
  %2840 = vdwg.mxu0
  %2841 = vmatpush.bf16.msra.mxu0 0
  %2842 = vmatpush.bf16.msra.mxu0 0
  %2843 = vmatpush.bf16.msra.mxu0 0
  %2844 = vmatpush.bf16.msra.mxu0 0
  %2845 = vmatpush.bf16.msra.mxu0 0
  %2846 = vmatpush.bf16.msra.mxu0 0
  %2847 = vmatpush.bf16.msra.mxu0 0
  %2848 = vmatpush.bf16.msra.mxu0 %v2222
  %2849 = vmatmul.bf16.gmra.mxu0 %v421
  %v2850 = vpop.f32.mrf.mxu0
  %v2851 = vadd.f32 0.0, %v2850
  %v2852 = vpop.f32.mrf.mxu0
  %2853 = vdwg.mxu0
  %2854 = vmatpush.bf16.msra.mxu0 0
  %2855 = vmatpush.bf16.msra.mxu0 0
  %2856 = vmatpush.bf16.msra.mxu0 0
  %2857 = vmatpush.bf16.msra.mxu0 0
  %2858 = vmatpush.bf16.msra.mxu0 0
  %2859 = vmatpush.bf16.msra.mxu0 0
  %2860 = vmatpush.bf16.msra.mxu0 0
  %2861 = vmatpush.bf16.msra.mxu0 %v2225
  %2862 = vmatmul.bf16.gmra.mxu0 %v421
  %v2863 = vpop.f32.mrf.mxu0
  %v2864 = vadd.f32 0.0, %v2863
  %v2865 = vpop.f32.mrf.mxu0
  %2866 = vdwg.mxu0
  %2867 = vmatpush.bf16.msra.mxu0 0
  %2868 = vmatpush.bf16.msra.mxu0 0
  %2869 = vmatpush.bf16.msra.mxu0 0
  %2870 = vmatpush.bf16.msra.mxu0 0
  %2871 = vmatpush.bf16.msra.mxu0 0
  %2872 = vmatpush.bf16.msra.mxu0 0
  %2873 = vmatpush.bf16.msra.mxu0 0
  %2874 = vmatpush.bf16.msra.mxu0 %v2228
  %2875 = vmatmul.bf16.gmra.mxu0 %v421
  %v2876 = vpop.f32.mrf.mxu0
  %v2877 = vadd.f32 0.0, %v2876
  %v2878 = vpop.f32.mrf.mxu0
  %2879 = vdwg.mxu0
  %2880 = vmatpush.bf16.msra.mxu0 0
  %2881 = vmatpush.bf16.msra.mxu0 0
  %2882 = vmatpush.bf16.msra.mxu0 0
  %2883 = vmatpush.bf16.msra.mxu0 0
  %2884 = vmatpush.bf16.msra.mxu0 0
  %2885 = vmatpush.bf16.msra.mxu0 0
  %2886 = vmatpush.bf16.msra.mxu0 0
  %2887 = vmatpush.bf16.msra.mxu0 %v2231
  %2888 = vmatmul.bf16.gmra.mxu0 %v421
  %v2889 = vpop.f32.mrf.mxu0
  %v2890 = vadd.f32 0.0, %v2889
  %v2891 = vpop.f32.mrf.mxu0
  %2892 = vdwg.mxu0
  %2893 = vmatpush.bf16.msra.mxu0 0
  %2894 = vmatpush.bf16.msra.mxu0 0
  %2895 = vmatpush.bf16.msra.mxu0 0
  %2896 = vmatpush.bf16.msra.mxu0 0
  %2897 = vmatpush.bf16.msra.mxu0 0
  %2898 = vmatpush.bf16.msra.mxu0 0
  %2899 = vmatpush.bf16.msra.mxu0 0
  %2900 = vmatpush.bf16.msra.mxu0 %v2234
  %2901 = vmatmul.bf16.gmra.mxu0 %v421
  %v2902 = vpop.f32.mrf.mxu0
  %v2903 = vadd.f32 0.0, %v2902
  %v2904 = vpop.f32.mrf.mxu0
  %2905 = vdwg.mxu0
  %2906 = vmatpush.bf16.msra.mxu0 0
  %2907 = vmatpush.bf16.msra.mxu0 0
  %2908 = vmatpush.bf16.msra.mxu0 0
  %2909 = vmatpush.bf16.msra.mxu0 0
  %2910 = vmatpush.bf16.msra.mxu0 0
  %2911 = vmatpush.bf16.msra.mxu0 0
  %2912 = vmatpush.bf16.msra.mxu0 0
  %2913 = vmatpush.bf16.msra.mxu0 %v2237
  %2914 = vmatmul.bf16.gmra.mxu0 %v421
  %v2915 = vpop.f32.mrf.mxu0
  %v2916 = vadd.f32 0.0, %v2915
  %v2917 = vpop.f32.mrf.mxu0
  %2918 = vdwg.mxu0
  %2919 = vmatpush.bf16.msra.mxu0 0
  %2920 = vmatpush.bf16.msra.mxu0 0
  %2921 = vmatpush.bf16.msra.mxu0 0
  %2922 = vmatpush.bf16.msra.mxu0 0
  %2923 = vmatpush.bf16.msra.mxu0 0
  %2924 = vmatpush.bf16.msra.mxu0 0
  %2925 = vmatpush.bf16.msra.mxu0 0
  %2926 = vmatpush.bf16.msra.mxu0 %v2240
  %2927 = vmatmul.bf16.gmra.mxu0 %v421
  %v2928 = vpop.f32.mrf.mxu0
  %v2929 = vadd.f32 0.0, %v2928
  %v2930 = vpop.f32.mrf.mxu0
  %2931 = vdwg.mxu0
  %2932 = vmatpush.bf16.msra.mxu0 0
  %2933 = vmatpush.bf16.msra.mxu0 0
  %2934 = vmatpush.bf16.msra.mxu0 0
  %2935 = vmatpush.bf16.msra.mxu0 0
  %2936 = vmatpush.bf16.msra.mxu0 0
  %2937 = vmatpush.bf16.msra.mxu0 0
  %2938 = vmatpush.bf16.msra.mxu0 0
  %2939 = vmatpush.bf16.msra.mxu0 %v2243
  %2940 = vmatmul.bf16.gmra.mxu0 %v421
  %v2941 = vpop.f32.mrf.mxu0
  %v2942 = vadd.f32 0.0, %v2941
  %v2943 = vpop.f32.mrf.mxu0
  %2944 = vdwg.mxu0
  %2945 = vmatpush.bf16.msra.mxu0 0
  %2946 = vmatpush.bf16.msra.mxu0 0
  %2947 = vmatpush.bf16.msra.mxu0 0
  %2948 = vmatpush.bf16.msra.mxu0 0
  %2949 = vmatpush.bf16.msra.mxu0 0
  %2950 = vmatpush.bf16.msra.mxu0 0
  %2951 = vmatpush.bf16.msra.mxu0 0
  %2952 = vmatpush.bf16.msra.mxu0 %v2246
  %2953 = vmatmul.bf16.gmra.mxu0 %v421
  %v2954 = vpop.f32.mrf.mxu0
  %v2955 = vadd.f32 0.0, %v2954
  %v2956 = vpop.f32.mrf.mxu0
  %2957 = vdwg.mxu0
  %2958 = vmatpush.bf16.msra.mxu0 0
  %2959 = vmatpush.bf16.msra.mxu0 0
  %2960 = vmatpush.bf16.msra.mxu0 0
  %2961 = vmatpush.bf16.msra.mxu0 0
  %2962 = vmatpush.bf16.msra.mxu0 0
  %2963 = vmatpush.bf16.msra.mxu0 0
  %2964 = vmatpush.bf16.msra.mxu0 0
  %2965 = vmatpush.bf16.msra.mxu0 %v2249
  %2966 = vmatmul.bf16.gmra.mxu0 %v421
  %v2967 = vpop.f32.mrf.mxu0
  %v2968 = vadd.f32 0.0, %v2967
  %v2969 = vpop.f32.mrf.mxu0
  %2970 = vdwg.mxu0
  %2971 = vmatpush.bf16.msra.mxu0 0
  %2972 = vmatpush.bf16.msra.mxu0 0
  %2973 = vmatpush.bf16.msra.mxu0 0
  %2974 = vmatpush.bf16.msra.mxu0 0
  %2975 = vmatpush.bf16.msra.mxu0 0
  %2976 = vmatpush.bf16.msra.mxu0 0
  %2977 = vmatpush.bf16.msra.mxu0 0
  %2978 = vmatpush.bf16.msra.mxu0 %v2252
  %2979 = vmatmul.bf16.gmra.mxu0 %v421
  %v2980 = vpop.f32.mrf.mxu0
  %v2981 = vadd.f32 0.0, %v2980
  %v2982 = vpop.f32.mrf.mxu0
  %2983 = vdwg.mxu0
  %2984 = vmatpush.bf16.msra.mxu0 0
  %2985 = vmatpush.bf16.msra.mxu0 0
  %2986 = vmatpush.bf16.msra.mxu0 0
  %2987 = vmatpush.bf16.msra.mxu0 0
  %2988 = vmatpush.bf16.msra.mxu0 0
  %2989 = vmatpush.bf16.msra.mxu0 0
  %2990 = vmatpush.bf16.msra.mxu0 0
  %2991 = vmatpush.bf16.msra.mxu0 %v2255
  %2992 = vmatmul.bf16.gmra.mxu0 %v421
  %v2993 = vpop.f32.mrf.mxu0
  %v2994 = vadd.f32 0.0, %v2993
  %v2995 = vpop.f32.mrf.mxu0
  %2996 = vdwg.mxu0
  %2997 = vmatpush.bf16.msra.mxu0 0
  %2998 = vmatpush.bf16.msra.mxu0 0
  %2999 = vmatpush.bf16.msra.mxu0 0
  %3000 = vmatpush.bf16.msra.mxu0 0
  %3001 = vmatpush.bf16.msra.mxu0 0
  %3002 = vmatpush.bf16.msra.mxu0 0
  %3003 = vmatpush.bf16.msra.mxu0 0
  %3004 = vmatpush.bf16.msra.mxu0 %v2258
  %3005 = vmatmul.bf16.gmra.mxu0 %v421
  %v3006 = vpop.f32.mrf.mxu0
  %v3007 = vadd.f32 0.0, %v3006
  %v3008 = vpop.f32.mrf.mxu0
  %3009 = vdwg.mxu0
  %3010 = vmatpush.bf16.msra.mxu0 0
  %3011 = vmatpush.bf16.msra.mxu0 0
  %3012 = vmatpush.bf16.msra.mxu0 0
  %3013 = vmatpush.bf16.msra.mxu0 0
  %3014 = vmatpush.bf16.msra.mxu0 0
  %3015 = vmatpush.bf16.msra.mxu0 0
  %3016 = vmatpush.bf16.msra.mxu0 0
  %3017 = vmatpush.bf16.msra.mxu0 %v2261
  %3018 = vmatmul.bf16.gmra.mxu0 %v421
  %v3019 = vpop.f32.mrf.mxu0
  %v3020 = vadd.f32 0.0, %v3019
  %v3021 = vpop.f32.mrf.mxu0
  %3022 = vdwg.mxu0
  %3023 = vmatpush.bf16.msra.mxu0 0
  %3024 = vmatpush.bf16.msra.mxu0 0
  %3025 = vmatpush.bf16.msra.mxu0 0
  %3026 = vmatpush.bf16.msra.mxu0 0
  %3027 = vmatpush.bf16.msra.mxu0 0
  %3028 = vmatpush.bf16.msra.mxu0 0
  %3029 = vmatpush.bf16.msra.mxu0 0
  %3030 = vmatpush.bf16.msra.mxu0 %v2264
  %3031 = vmatmul.bf16.gmra.mxu0 %v421
  %v3032 = vpop.f32.mrf.mxu0
  %v3033 = vadd.f32 0.0, %v3032
  %v3034 = vpop.f32.mrf.mxu0
  %3035 = vdwg.mxu0
  %3036 = vmatpush.bf16.msra.mxu0 0
  %3037 = vmatpush.bf16.msra.mxu0 0
  %3038 = vmatpush.bf16.msra.mxu0 0
  %3039 = vmatpush.bf16.msra.mxu0 0
  %3040 = vmatpush.bf16.msra.mxu0 0
  %3041 = vmatpush.bf16.msra.mxu0 0
  %3042 = vmatpush.bf16.msra.mxu0 0
  %3043 = vmatpush.bf16.msra.mxu0 %v2267
  %3044 = vmatmul.bf16.gmra.mxu0 %v421
  %v3045 = vpop.f32.mrf.mxu0
  %v3046 = vadd.f32 0.0, %v3045
  %v3047 = vpop.f32.mrf.mxu0
  %3048 = vdwg.mxu0
  %3049 = vmatpush.bf16.msra.mxu0 0
  %3050 = vmatpush.bf16.msra.mxu0 0
  %3051 = vmatpush.bf16.msra.mxu0 0
  %3052 = vmatpush.bf16.msra.mxu0 0
  %3053 = vmatpush.bf16.msra.mxu0 0
  %3054 = vmatpush.bf16.msra.mxu0 0
  %3055 = vmatpush.bf16.msra.mxu0 0
  %3056 = vmatpush.bf16.msra.mxu0 %v2270
  %3057 = vmatmul.bf16.gmra.mxu0 %v421
  %v3058 = vpop.f32.mrf.mxu0
  %v3059 = vadd.f32 0.0, %v3058
  %v3060 = vpop.f32.mrf.mxu0
  %3061 = vdwg.mxu0
  %3062 = vmatpush.bf16.msra.mxu0 0
  %3063 = vmatpush.bf16.msra.mxu0 0
  %3064 = vmatpush.bf16.msra.mxu0 0
  %3065 = vmatpush.bf16.msra.mxu0 0
  %3066 = vmatpush.bf16.msra.mxu0 0
  %3067 = vmatpush.bf16.msra.mxu0 0
  %3068 = vmatpush.bf16.msra.mxu0 0
  %3069 = vmatpush.bf16.msra.mxu0 %v2273
  %3070 = vmatmul.bf16.gmra.mxu0 %v421
  %v3071 = vpop.f32.mrf.mxu0
  %v3072 = vadd.f32 0.0, %v3071
  %v3073 = vpop.f32.mrf.mxu0
  %3074 = vdwg.mxu0
  %3075 = vmatpush.bf16.msra.mxu0 0
  %3076 = vmatpush.bf16.msra.mxu0 0
  %3077 = vmatpush.bf16.msra.mxu0 0
  %3078 = vmatpush.bf16.msra.mxu0 0
  %3079 = vmatpush.bf16.msra.mxu0 0
  %3080 = vmatpush.bf16.msra.mxu0 0
  %3081 = vmatpush.bf16.msra.mxu0 0
  %3082 = vmatpush.bf16.msra.mxu0 %v2276
  %3083 = vmatmul.bf16.gmra.mxu0 %v421
  %v3084 = vpop.f32.mrf.mxu0
  %v3085 = vadd.f32 0.0, %v3084
  %v3086 = vpop.f32.mrf.mxu0
  %3087 = vdwg.mxu0
  %3088 = vmatpush.bf16.msra.mxu0 0
  %3089 = vmatpush.bf16.msra.mxu0 0
  %3090 = vmatpush.bf16.msra.mxu0 0
  %3091 = vmatpush.bf16.msra.mxu0 0
  %3092 = vmatpush.bf16.msra.mxu0 0
  %3093 = vmatpush.bf16.msra.mxu0 0
  %3094 = vmatpush.bf16.msra.mxu0 0
  %3095 = vmatpush.bf16.msra.mxu0 %v2279
  %3096 = vmatmul.bf16.gmra.mxu0 %v421
  %v3097 = vpop.f32.mrf.mxu0
  %v3098 = vadd.f32 0.0, %v3097
  %v3099 = vpop.f32.mrf.mxu0
  %3100 = vdwg.mxu0
  %3101 = vmatpush.bf16.msra.mxu0 0
  %3102 = vmatpush.bf16.msra.mxu0 0
  %3103 = vmatpush.bf16.msra.mxu0 0
  %3104 = vmatpush.bf16.msra.mxu0 0
  %3105 = vmatpush.bf16.msra.mxu0 0
  %3106 = vmatpush.bf16.msra.mxu0 0
  %3107 = vmatpush.bf16.msra.mxu0 0
  %3108 = vmatpush.bf16.msra.mxu0 %v2282
  %3109 = vmatmul.bf16.gmra.mxu0 %v421
  %v3110 = vpop.f32.mrf.mxu0
  %v3111 = vadd.f32 0.0, %v3110
  %v3112 = vpop.f32.mrf.mxu0
  %3113 = vdwg.mxu0
  %3114 = vmatpush.bf16.msra.mxu0 0
  %3115 = vmatpush.bf16.msra.mxu0 0
  %3116 = vmatpush.bf16.msra.mxu0 0
  %3117 = vmatpush.bf16.msra.mxu0 0
  %3118 = vmatpush.bf16.msra.mxu0 0
  %3119 = vmatpush.bf16.msra.mxu0 0
  %3120 = vmatpush.bf16.msra.mxu0 0
  %3121 = vmatpush.bf16.msra.mxu0 %v2285
  %3122 = vmatmul.bf16.gmra.mxu0 %v421
  %v3123 = vpop.f32.mrf.mxu0
  %v3124 = vadd.f32 0.0, %v3123
  %v3125 = vpop.f32.mrf.mxu0
  %3126 = vdwg.mxu0
  %3127 = vmatpush.bf16.msra.mxu0 0
  %3128 = vmatpush.bf16.msra.mxu0 0
  %3129 = vmatpush.bf16.msra.mxu0 0
  %3130 = vmatpush.bf16.msra.mxu0 0
  %3131 = vmatpush.bf16.msra.mxu0 0
  %3132 = vmatpush.bf16.msra.mxu0 0
  %3133 = vmatpush.bf16.msra.mxu0 0
  %3134 = vmatpush.bf16.msra.mxu0 %v2288
  %3135 = vmatmul.bf16.gmra.mxu0 %v421
  %v3136 = vpop.f32.mrf.mxu0
  %v3137 = vadd.f32 0.0, %v3136
  %v3138 = vpop.f32.mrf.mxu0
  %3139 = vdwg.mxu0
  %3140 = vmatpush.bf16.msra.mxu0 0
  %3141 = vmatpush.bf16.msra.mxu0 0
  %3142 = vmatpush.bf16.msra.mxu0 0
  %3143 = vmatpush.bf16.msra.mxu0 0
  %3144 = vmatpush.bf16.msra.mxu0 0
  %3145 = vmatpush.bf16.msra.mxu0 0
  %3146 = vmatpush.bf16.msra.mxu0 0
  %3147 = vmatpush.bf16.msra.mxu0 %v2291
  %3148 = vmatmul.bf16.gmra.mxu0 %v421
  %v3149 = vpop.f32.mrf.mxu0
  %v3150 = vadd.f32 0.0, %v3149
  %v3151 = vpop.f32.mrf.mxu0
  %3152 = vdwg.mxu0
  %3153 = vmatpush.bf16.msra.mxu0 0
  %3154 = vmatpush.bf16.msra.mxu0 0
  %3155 = vmatpush.bf16.msra.mxu0 0
  %3156 = vmatpush.bf16.msra.mxu0 0
  %3157 = vmatpush.bf16.msra.mxu0 0
  %3158 = vmatpush.bf16.msra.mxu0 0
  %3159 = vmatpush.bf16.msra.mxu0 0
  %3160 = vmatpush.bf16.msra.mxu0 %v2294
  %3161 = vmatmul.bf16.gmra.mxu0 %v421
  %v3162 = vpop.f32.mrf.mxu0
  %v3163 = vadd.f32 0.0, %v3162
  %v3164 = vpop.f32.mrf.mxu0
  %3165 = vdwg.mxu0
  %3166 = vmatpush.bf16.msra.mxu0 0
  %3167 = vmatpush.bf16.msra.mxu0 0
  %3168 = vmatpush.bf16.msra.mxu0 0
  %3169 = vmatpush.bf16.msra.mxu0 0
  %3170 = vmatpush.bf16.msra.mxu0 0
  %3171 = vmatpush.bf16.msra.mxu0 0
  %3172 = vmatpush.bf16.msra.mxu0 0
  %3173 = vmatpush.bf16.msra.mxu0 %v2297
  %3174 = vmatmul.bf16.gmra.mxu0 %v421
  %v3175 = vpop.f32.mrf.mxu0
  %v3176 = vadd.f32 0.0, %v3175
  %v3177 = vpop.f32.mrf.mxu0
  %3178 = vdwg.mxu0
  %3179 = vmatpush.bf16.msra.mxu0 0
  %3180 = vmatpush.bf16.msra.mxu0 0
  %3181 = vmatpush.bf16.msra.mxu0 0
  %3182 = vmatpush.bf16.msra.mxu0 0
  %3183 = vmatpush.bf16.msra.mxu0 0
  %3184 = vmatpush.bf16.msra.mxu0 0
  %3185 = vmatpush.bf16.msra.mxu0 0
  %3186 = vmatpush.bf16.msra.mxu0 %v2300
  %3187 = vmatmul.bf16.gmra.mxu0 %v421
  %v3188 = vpop.f32.mrf.mxu0
  %v3189 = vadd.f32 0.0, %v3188
  %v3190 = vpop.f32.mrf.mxu0
  %3191 = vdwg.mxu0
  %3192 = vmatpush.bf16.msra.mxu0 0
  %3193 = vmatpush.bf16.msra.mxu0 0
  %3194 = vmatpush.bf16.msra.mxu0 0
  %3195 = vmatpush.bf16.msra.mxu0 0
  %3196 = vmatpush.bf16.msra.mxu0 0
  %3197 = vmatpush.bf16.msra.mxu0 0
  %3198 = vmatpush.bf16.msra.mxu0 0
  %3199 = vmatpush.bf16.msra.mxu0 %v2303
  %3200 = vmatmul.bf16.gmra.mxu0 %v421
  %v3201 = vpop.f32.mrf.mxu0
  %v3202 = vadd.f32 0.0, %v3201
  %v3203 = vpop.f32.mrf.mxu0
  %3204 = vdwg.mxu0
  %3205 = vmatpush.bf16.msra.mxu0 0
  %3206 = vmatpush.bf16.msra.mxu0 0
  %3207 = vmatpush.bf16.msra.mxu0 0
  %3208 = vmatpush.bf16.msra.mxu0 0
  %3209 = vmatpush.bf16.msra.mxu0 0
  %3210 = vmatpush.bf16.msra.mxu0 0
  %3211 = vmatpush.bf16.msra.mxu0 0
  %3212 = vmatpush.bf16.msra.mxu0 %v2306
  %3213 = vmatmul.bf16.gmra.mxu0 %v421
  %v3214 = vpop.f32.mrf.mxu0
  %v3215 = vadd.f32 0.0, %v3214
  %v3216 = vpop.f32.mrf.mxu0
  %3217 = vdwg.mxu0
  %3218 = vmatpush.bf16.msra.mxu0 0
  %3219 = vmatpush.bf16.msra.mxu0 0
  %3220 = vmatpush.bf16.msra.mxu0 0
  %3221 = vmatpush.bf16.msra.mxu0 0
  %3222 = vmatpush.bf16.msra.mxu0 0
  %3223 = vmatpush.bf16.msra.mxu0 0
  %3224 = vmatpush.bf16.msra.mxu0 0
  %3225 = vmatpush.bf16.msra.mxu0 %v2309
  %3226 = vmatmul.bf16.gmra.mxu0 %v421
  %v3227 = vpop.f32.mrf.mxu0
  %v3228 = vadd.f32 0.0, %v3227
  %v3229 = vpop.f32.mrf.mxu0
  %3230 = vdwg.mxu0
  %3231 = vmatpush.bf16.msra.mxu0 0
  %3232 = vmatpush.bf16.msra.mxu0 0
  %3233 = vmatpush.bf16.msra.mxu0 0
  %3234 = vmatpush.bf16.msra.mxu0 0
  %3235 = vmatpush.bf16.msra.mxu0 0
  %3236 = vmatpush.bf16.msra.mxu0 0
  %3237 = vmatpush.bf16.msra.mxu0 0
  %3238 = vmatpush.bf16.msra.mxu0 %v2312
  %3239 = vmatmul.bf16.gmra.mxu0 %v421
  %v3240 = vpop.f32.mrf.mxu0
  %v3241 = vadd.f32 0.0, %v3240
  %v3242 = vpop.f32.mrf.mxu0
  %3243 = vdwg.mxu0
  %3244 = vmatpush.bf16.msra.mxu0 0
  %3245 = vmatpush.bf16.msra.mxu0 0
  %3246 = vmatpush.bf16.msra.mxu0 0
  %3247 = vmatpush.bf16.msra.mxu0 0
  %3248 = vmatpush.bf16.msra.mxu0 0
  %3249 = vmatpush.bf16.msra.mxu0 0
  %3250 = vmatpush.bf16.msra.mxu0 0
  %3251 = vmatpush.bf16.msra.mxu0 %v2315
  %3252 = vmatmul.bf16.gmra.mxu0 %v421
  %v3253 = vpop.f32.mrf.mxu0
  %v3254 = vadd.f32 0.0, %v3253
  %v3255 = vpop.f32.mrf.mxu0
  %3256 = vdwg.mxu0
  %3257 = vmatpush.bf16.msra.mxu0 0
  %3258 = vmatpush.bf16.msra.mxu0 0
  %3259 = vmatpush.bf16.msra.mxu0 0
  %3260 = vmatpush.bf16.msra.mxu0 0
  %3261 = vmatpush.bf16.msra.mxu0 0
  %3262 = vmatpush.bf16.msra.mxu0 0
  %3263 = vmatpush.bf16.msra.mxu0 0
  %3264 = vmatpush.bf16.msra.mxu0 %v2318
  %3265 = vmatmul.bf16.gmra.mxu0 %v421
  %v3266 = vpop.f32.mrf.mxu0
  %v3267 = vadd.f32 0.0, %v3266
  %v3268 = vpop.f32.mrf.mxu0
  %3269 = vdwg.mxu0
  %3270 = vmatpush.bf16.msra.mxu0 0
  %3271 = vmatpush.bf16.msra.mxu0 0
  %3272 = vmatpush.bf16.msra.mxu0 0
  %3273 = vmatpush.bf16.msra.mxu0 0
  %3274 = vmatpush.bf16.msra.mxu0 0
  %3275 = vmatpush.bf16.msra.mxu0 0
  %3276 = vmatpush.bf16.msra.mxu0 0
  %3277 = vmatpush.bf16.msra.mxu0 %v2321
  %3278 = vmatmul.bf16.gmra.mxu0 %v421
  %v3279 = vpop.f32.mrf.mxu0
  %v3280 = vadd.f32 0.0, %v3279
  %v3281 = vpop.f32.mrf.mxu0
  %3282 = vdwg.mxu0
  %3283 = vmatpush.bf16.msra.mxu0 0
  %3284 = vmatpush.bf16.msra.mxu0 0
  %3285 = vmatpush.bf16.msra.mxu0 0
  %3286 = vmatpush.bf16.msra.mxu0 0
  %3287 = vmatpush.bf16.msra.mxu0 0
  %3288 = vmatpush.bf16.msra.mxu0 0
  %3289 = vmatpush.bf16.msra.mxu0 0
  %3290 = vmatpush.bf16.msra.mxu0 %v2324
  %3291 = vmatmul.bf16.gmra.mxu0 %v421
  %v3292 = vpop.f32.mrf.mxu0
  %v3293 = vadd.f32 0.0, %v3292
  %v3294 = vpop.f32.mrf.mxu0
  %3295 = vdwg.mxu0
  %3296 = vmatpush.bf16.msra.mxu0 0
  %3297 = vmatpush.bf16.msra.mxu0 0
  %3298 = vmatpush.bf16.msra.mxu0 0
  %3299 = vmatpush.bf16.msra.mxu0 0
  %3300 = vmatpush.bf16.msra.mxu0 0
  %3301 = vmatpush.bf16.msra.mxu0 0
  %3302 = vmatpush.bf16.msra.mxu0 0
  %3303 = vmatpush.bf16.msra.mxu0 %v2327
  %3304 = vmatmul.bf16.gmra.mxu0 %v421
  %v3305 = vpop.f32.mrf.mxu0
  %v3306 = vadd.f32 0.0, %v3305
  %v3307 = vpop.f32.mrf.mxu0
  %3308 = vdwg.mxu0
  %3309 = vmatpush.bf16.msra.mxu0 0
  %3310 = vmatpush.bf16.msra.mxu0 0
  %3311 = vmatpush.bf16.msra.mxu0 0
  %3312 = vmatpush.bf16.msra.mxu0 0
  %3313 = vmatpush.bf16.msra.mxu0 0
  %3314 = vmatpush.bf16.msra.mxu0 0
  %3315 = vmatpush.bf16.msra.mxu0 0
  %3316 = vmatpush.bf16.msra.mxu0 %v2330
  %3317 = vmatmul.bf16.gmra.mxu0 %v421
  %v3318 = vpop.f32.mrf.mxu0
  %v3319 = vadd.f32 0.0, %v3318
  %v3320 = vpop.f32.mrf.mxu0
  %3321 = vdwg.mxu0
  %3322 = vmatpush.bf16.msra.mxu0 0
  %3323 = vmatpush.bf16.msra.mxu0 0
  %3324 = vmatpush.bf16.msra.mxu0 0
  %3325 = vmatpush.bf16.msra.mxu0 0
  %3326 = vmatpush.bf16.msra.mxu0 0
  %3327 = vmatpush.bf16.msra.mxu0 0
  %3328 = vmatpush.bf16.msra.mxu0 0
  %3329 = vmatpush.bf16.msra.mxu0 %v2333
  %3330 = vmatmul.bf16.gmra.mxu0 %v421
  %v3331 = vpop.f32.mrf.mxu0
  %v3332 = vadd.f32 0.0, %v3331
  %v3333 = vpop.f32.mrf.mxu0
  %3334 = vdwg.mxu0
  %3335 = vmatpush.bf16.msra.mxu0 0
  %3336 = vmatpush.bf16.msra.mxu0 0
  %3337 = vmatpush.bf16.msra.mxu0 0
  %3338 = vmatpush.bf16.msra.mxu0 0
  %3339 = vmatpush.bf16.msra.mxu0 0
  %3340 = vmatpush.bf16.msra.mxu0 0
  %3341 = vmatpush.bf16.msra.mxu0 0
  %3342 = vmatpush.bf16.msra.mxu0 %v2336
  %3343 = vmatmul.bf16.gmra.mxu0 %v421
  %v3344 = vpop.f32.mrf.mxu0
  %v3345 = vadd.f32 0.0, %v3344
  %v3346 = vpop.f32.mrf.mxu0
  %3347 = vdwg.mxu0
  %3348 = vmatpush.bf16.msra.mxu0 0
  %3349 = vmatpush.bf16.msra.mxu0 0
  %3350 = vmatpush.bf16.msra.mxu0 0
  %3351 = vmatpush.bf16.msra.mxu0 0
  %3352 = vmatpush.bf16.msra.mxu0 0
  %3353 = vmatpush.bf16.msra.mxu0 0
  %3354 = vmatpush.bf16.msra.mxu0 0
  %3355 = vmatpush.bf16.msra.mxu0 %v2339
  %3356 = vmatmul.bf16.gmra.mxu0 %v421
  %v3357 = vpop.f32.mrf.mxu0
  %v3358 = vadd.f32 0.0, %v3357
  %v3359 = vpop.f32.mrf.mxu0
  %3360 = vdwg.mxu0
  %3361 = vmatpush.bf16.msra.mxu0 0
  %3362 = vmatpush.bf16.msra.mxu0 0
  %3363 = vmatpush.bf16.msra.mxu0 0
  %3364 = vmatpush.bf16.msra.mxu0 0
  %3365 = vmatpush.bf16.msra.mxu0 0
  %3366 = vmatpush.bf16.msra.mxu0 0
  %3367 = vmatpush.bf16.msra.mxu0 0
  %3368 = vmatpush.bf16.msra.mxu0 %v2342
  %3369 = vmatmul.bf16.gmra.mxu0 %v421
  %v3370 = vpop.f32.mrf.mxu0
  %v3371 = vadd.f32 0.0, %v3370
  %v3372 = vpop.f32.mrf.mxu0
  %3373 = vdwg.mxu0
  %3374 = vmatpush.bf16.msra.mxu0 0
  %3375 = vmatpush.bf16.msra.mxu0 0
  %3376 = vmatpush.bf16.msra.mxu0 0
  %3377 = vmatpush.bf16.msra.mxu0 0
  %3378 = vmatpush.bf16.msra.mxu0 0
  %3379 = vmatpush.bf16.msra.mxu0 0
  %3380 = vmatpush.bf16.msra.mxu0 0
  %3381 = vmatpush.bf16.msra.mxu0 %v2345
  %3382 = vmatmul.bf16.gmra.mxu0 %v421
  %v3383 = vpop.f32.mrf.mxu0
  %v3384 = vadd.f32 0.0, %v3383
  %v3385 = vpop.f32.mrf.mxu0
  %3386 = vdwg.mxu0
  %v3387 = vmax.f32 %v677, %v2357
  %v3388 = vmax.f32 %v690, %v2370
  %v3389 = vmax.f32 %v703, %v2383
  %v3390 = vmax.f32 %v716, %v2396
  %v3391 = vmax.f32 %v729, %v2409
  %v3392 = vmax.f32 %v742, %v2422
  %v3393 = vmax.f32 %v755, %v2435
  %v3394 = vmax.f32 %v768, %v2448
  %v3395 = vmax.f32 %v781, %v2461
  %v3396 = vmax.f32 %v794, %v2474
  %v3397 = vmax.f32 %v807, %v2487
  %v3398 = vmax.f32 %v820, %v2500
  %v3399 = vmax.f32 %v833, %v2513
  %v3400 = vmax.f32 %v846, %v2526
  %v3401 = vmax.f32 %v859, %v2539
  %v3402 = vmax.f32 %v872, %v2552
  %v3403 = vmax.f32 %v885, %v2565
  %v3404 = vmax.f32 %v898, %v2578
  %v3405 = vmax.f32 %v911, %v2591
  %v3406 = vmax.f32 %v924, %v2604
  %v3407 = vmax.f32 %v937, %v2617
  %v3408 = vmax.f32 %v950, %v2630
  %v3409 = vmax.f32 %v963, %v2643
  %v3410 = vmax.f32 %v976, %v2656
  %v3411 = vmax.f32 %v989, %v2669
  %v3412 = vmax.f32 %v1002, %v2682
  %v3413 = vmax.f32 %v1015, %v2695
  %v3414 = vmax.f32 %v1028, %v2708
  %v3415 = vmax.f32 %v1041, %v2721
  %v3416 = vmax.f32 %v1054, %v2734
  %v3417 = vmax.f32 %v1067, %v2747
  %v3418 = vmax.f32 %v1080, %v2760
  %v3419 = vmax.f32 %v1093, %v2773
  %v3420 = vmax.f32 %v1106, %v2786
  %v3421 = vmax.f32 %v1119, %v2799
  %v3422 = vmax.f32 %v1132, %v2812
  %v3423 = vmax.f32 %v1145, %v2825
  %v3424 = vmax.f32 %v1158, %v2838
  %v3425 = vmax.f32 %v1171, %v2851
  %v3426 = vmax.f32 %v1184, %v2864
  %v3427 = vmax.f32 %v1197, %v2877
  %v3428 = vmax.f32 %v1210, %v2890
  %v3429 = vmax.f32 %v1223, %v2903
  %v3430 = vmax.f32 %v1236, %v2916
  %v3431 = vmax.f32 %v1249, %v2929
  %v3432 = vmax.f32 %v1262, %v2942
  %v3433 = vmax.f32 %v1275, %v2955
  %v3434 = vmax.f32 %v1288, %v2968
  %v3435 = vmax.f32 %v1301, %v2981
  %v3436 = vmax.f32 %v1314, %v2994
  %v3437 = vmax.f32 %v1327, %v3007
  %v3438 = vmax.f32 %v1340, %v3020
  %v3439 = vmax.f32 %v1353, %v3033
  %v3440 = vmax.f32 %v1366, %v3046
  %v3441 = vmax.f32 %v1379, %v3059
  %v3442 = vmax.f32 %v1392, %v3072
  %v3443 = vmax.f32 %v1405, %v3085
  %v3444 = vmax.f32 %v1418, %v3098
  %v3445 = vmax.f32 %v1431, %v3111
  %v3446 = vmax.f32 %v1444, %v3124
  %v3447 = vmax.f32 %v1457, %v3137
  %v3448 = vmax.f32 %v1470, %v3150
  %v3449 = vmax.f32 %v1483, %v3163
  %v3450 = vmax.f32 %v1496, %v3176
  %v3451 = vmax.f32 %v1509, %v3189
  %v3452 = vmax.f32 %v1522, %v3202
  %v3453 = vmax.f32 %v1535, %v3215
  %v3454 = vmax.f32 %v1548, %v3228
  %v3455 = vmax.f32 %v1561, %v3241
  %v3456 = vmax.f32 %v1574, %v3254
  %v3457 = vmax.f32 %v1587, %v3267
  %v3458 = vmax.f32 %v1600, %v3280
  %v3459 = vmax.f32 %v1613, %v3293
  %v3460 = vmax.f32 %v1626, %v3306
  %v3461 = vmax.f32 %v1639, %v3319
  %v3462 = vmax.f32 %v1652, %v3332
  %v3463 = vmax.f32 %v1665, %v3345
  %v3464 = vmax.f32 %v1678, %v3358
  %v3465 = vmax.f32 %v1691, %v3371
  %v3466 = vmax.f32 %v1704, %v3384
  %v3467 = vld [vmem:[%s1] sm:$0xff]
  %3469 = vset.pattern.permute.xlu0 0
  %3470 = vperm.xlu0 %3469, %v3467
  %v3471 = vpop.permute.xlu0 %3470
  %v3473 = vadd.f32 %v3387, %v3471
  %v3474 = vadd.f32 %v3388, %v3471
  %v3475 = vadd.f32 %v3389, %v3471
  %v3476 = vadd.f32 %v3390, %v3471
  %v3477 = vadd.f32 %v3391, %v3471
  %v3478 = vadd.f32 %v3392, %v3471
  %v3479 = vadd.f32 %v3393, %v3471
  %v3480 = vadd.f32 %v3394, %v3471
  %v3481 = vadd.f32 %v3395, %v3471
  %v3482 = vadd.f32 %v3396, %v3471
  %v3483 = vadd.f32 %v3397, %v3471
  %v3484 = vadd.f32 %v3398, %v3471
  %v3485 = vadd.f32 %v3399, %v3471
  %v3486 = vadd.f32 %v3400, %v3471
  %v3487 = vadd.f32 %v3401, %v3471
  %v3488 = vadd.f32 %v3402, %v3471
  %v3489 = vadd.f32 %v3403, %v3471
  %v3490 = vadd.f32 %v3404, %v3471
  %v3491 = vadd.f32 %v3405, %v3471
  %v3492 = vadd.f32 %v3406, %v3471
  %v3493 = vadd.f32 %v3407, %v3471
  %v3494 = vadd.f32 %v3408, %v3471
  %v3495 = vadd.f32 %v3409, %v3471
  %v3496 = vadd.f32 %v3410, %v3471
  %v3497 = vadd.f32 %v3411, %v3471
  %v3498 = vadd.f32 %v3412, %v3471
  %v3499 = vadd.f32 %v3413, %v3471
  %v3500 = vadd.f32 %v3414, %v3471
  %v3501 = vadd.f32 %v3415, %v3471
  %v3502 = vadd.f32 %v3416, %v3471
  %v3503 = vadd.f32 %v3417, %v3471
  %v3504 = vadd.f32 %v3418, %v3471
  %v3505 = vadd.f32 %v3419, %v3471
  %v3506 = vadd.f32 %v3420, %v3471
  %v3507 = vadd.f32 %v3421, %v3471
  %v3508 = vadd.f32 %v3422, %v3471
  %v3509 = vadd.f32 %v3423, %v3471
  %v3510 = vadd.f32 %v3424, %v3471
  %v3511 = vadd.f32 %v3425, %v3471
  %v3512 = vadd.f32 %v3426, %v3471
  %v3513 = vadd.f32 %v3427, %v3471
  %v3514 = vadd.f32 %v3428, %v3471
  %v3515 = vadd.f32 %v3429, %v3471
  %v3516 = vadd.f32 %v3430, %v3471
  %v3517 = vadd.f32 %v3431, %v3471
  %v3518 = vadd.f32 %v3432, %v3471
  %v3519 = vadd.f32 %v3433, %v3471
  %v3520 = vadd.f32 %v3434, %v3471
  %v3521 = vadd.f32 %v3435, %v3471
  %v3522 = vadd.f32 %v3436, %v3471
  %v3523 = vadd.f32 %v3437, %v3471
  %v3524 = vadd.f32 %v3438, %v3471
  %v3525 = vadd.f32 %v3439, %v3471
  %v3526 = vadd.f32 %v3440, %v3471
  %v3527 = vadd.f32 %v3441, %v3471
  %v3528 = vadd.f32 %v3442, %v3471
  %v3529 = vadd.f32 %v3443, %v3471
  %v3530 = vadd.f32 %v3444, %v3471
  %v3531 = vadd.f32 %v3445, %v3471
  %v3532 = vadd.f32 %v3446, %v3471
  %v3533 = vadd.f32 %v3447, %v3471
  %v3534 = vadd.f32 %v3448, %v3471
  %v3535 = vadd.f32 %v3449, %v3471
  %v3536 = vadd.f32 %v3450, %v3471
  %v3537 = vadd.f32 %v3451, %v3471
  %v3538 = vadd.f32 %v3452, %v3471
  %v3539 = vadd.f32 %v3453, %v3471
  %v3540 = vadd.f32 %v3454, %v3471
  %v3541 = vadd.f32 %v3455, %v3471
  %v3542 = vadd.f32 %v3456, %v3471
  %v3543 = vadd.f32 %v3457, %v3471
  %v3544 = vadd.f32 %v3458, %v3471
  %v3545 = vadd.f32 %v3459, %v3471
  %v3546 = vadd.f32 %v3460, %v3471
  %v3547 = vadd.f32 %v3461, %v3471
  %v3548 = vadd.f32 %v3462, %v3471
  %v3549 = vadd.f32 %v3463, %v3471
  %v3550 = vadd.f32 %v3464, %v3471
  %v3551 = vadd.f32 %v3465, %v3471
  %v3552 = vadd.f32 %v3466, %v3471
  %v3553 = vmax.f32 %v3473, 0.0
  %v3554 = vmax.f32 %v3474, 0.0
  %v3555 = vmax.f32 %v3475, 0.0
  %v3556 = vmax.f32 %v3476, 0.0
  %v3557 = vmax.f32 %v3477, 0.0
  %v3558 = vmax.f32 %v3478, 0.0
  %v3559 = vmax.f32 %v3479, 0.0
  %v3560 = vmax.f32 %v3480, 0.0
  %v3561 = vmax.f32 %v3481, 0.0
  %v3562 = vmax.f32 %v3482, 0.0
  %v3563 = vmax.f32 %v3483, 0.0
  %v3564 = vmax.f32 %v3484, 0.0
  %v3565 = vmax.f32 %v3485, 0.0
  %v3566 = vmax.f32 %v3486, 0.0
  %v3567 = vmax.f32 %v3487, 0.0
  %v3568 = vmax.f32 %v3488, 0.0
  %v3569 = vmax.f32 %v3489, 0.0
  %v3570 = vmax.f32 %v3490, 0.0
  %v3571 = vmax.f32 %v3491, 0.0
  %v3572 = vmax.f32 %v3492, 0.0
  %v3573 = vmax.f32 %v3493, 0.0
  %v3574 = vmax.f32 %v3494, 0.0
  %v3575 = vmax.f32 %v3495, 0.0
  %v3576 = vmax.f32 %v3496, 0.0
  %v3577 = vmax.f32 %v3497, 0.0
  %v3578 = vmax.f32 %v3498, 0.0
  %v3579 = vmax.f32 %v3499, 0.0
  %v3580 = vmax.f32 %v3500, 0.0
  %v3581 = vmax.f32 %v3501, 0.0
  %v3582 = vmax.f32 %v3502, 0.0
  %v3583 = vmax.f32 %v3503, 0.0
  %v3584 = vmax.f32 %v3504, 0.0
  %v3585 = vmax.f32 %v3505, 0.0
  %v3586 = vmax.f32 %v3506, 0.0
  %v3587 = vmax.f32 %v3507, 0.0
  %v3588 = vmax.f32 %v3508, 0.0
  %v3589 = vmax.f32 %v3509, 0.0
  %v3590 = vmax.f32 %v3510, 0.0
  %v3591 = vmax.f32 %v3511, 0.0
  %v3592 = vmax.f32 %v3512, 0.0
  %v3593 = vmax.f32 %v3513, 0.0
  %v3594 = vmax.f32 %v3514, 0.0
  %v3595 = vmax.f32 %v3515, 0.0
  %v3596 = vmax.f32 %v3516, 0.0
  %v3597 = vmax.f32 %v3517, 0.0
  %v3598 = vmax.f32 %v3518, 0.0
  %v3599 = vmax.f32 %v3519, 0.0
  %v3600 = vmax.f32 %v3520, 0.0
  %v3601 = vmax.f32 %v3521, 0.0
  %v3602 = vmax.f32 %v3522, 0.0
  %v3603 = vmax.f32 %v3523, 0.0
  %v3604 = vmax.f32 %v3524, 0.0
  %v3605 = vmax.f32 %v3525, 0.0
  %v3606 = vmax.f32 %v3526, 0.0
  %v3607 = vmax.f32 %v3527, 0.0
  %v3608 = vmax.f32 %v3528, 0.0
  %v3609 = vmax.f32 %v3529, 0.0
  %v3610 = vmax.f32 %v3530, 0.0
  %v3611 = vmax.f32 %v3531, 0.0
  %v3612 = vmax.f32 %v3532, 0.0
  %v3613 = vmax.f32 %v3533, 0.0
  %v3614 = vmax.f32 %v3534, 0.0
  %v3615 = vmax.f32 %v3535, 0.0
  %v3616 = vmax.f32 %v3536, 0.0
  %v3617 = vmax.f32 %v3537, 0.0
  %v3618 = vmax.f32 %v3538, 0.0
  %v3619 = vmax.f32 %v3539, 0.0
  %v3620 = vmax.f32 %v3540, 0.0
  %v3621 = vmax.f32 %v3541, 0.0
  %v3622 = vmax.f32 %v3542, 0.0
  %v3623 = vmax.f32 %v3543, 0.0
  %v3624 = vmax.f32 %v3544, 0.0
  %v3625 = vmax.f32 %v3545, 0.0
  %v3626 = vmax.f32 %v3546, 0.0
  %v3627 = vmax.f32 %v3547, 0.0
  %v3628 = vmax.f32 %v3548, 0.0
  %v3629 = vmax.f32 %v3549, 0.0
  %v3630 = vmax.f32 %v3550, 0.0
  %v3631 = vmax.f32 %v3551, 0.0
  %v3632 = vmax.f32 %v3552, 0.0
  %3633 = vst [vmem:[%s4] sm:$0xff] %v3553
  %3634 = vst [vmem:[%s4 + $0x8] sm:$0xff] %v3554
  %3635 = vst [vmem:[%s4 + $0x10] sm:$0xff] %v3555
  %3636 = vst [vmem:[%s4 + $0x18] sm:$0xff] %v3556
  %3637 = vst [vmem:[%s4 + $0x20] sm:$0xff] %v3557
  %3638 = vst [vmem:[%s4 + $0x28] sm:$0xff] %v3558
  %3639 = vst [vmem:[%s4 + $0x30] sm:$0xff] %v3559
  %3640 = vst [vmem:[%s4 + $0x38] sm:$0xff] %v3560
  %3641 = vst [vmem:[%s4 + $0x40] sm:$0xff] %v3561
  %3642 = vst [vmem:[%s4 + $0x48] sm:$0xff] %v3562
  %3643 = vst [vmem:[%s4 + $0x50] sm:$0xff] %v3563
  %3644 = vst [vmem:[%s4 + $0x58] sm:$0xff] %v3564
  %3645 = vst [vmem:[%s4 + $0x60] sm:$0xff] %v3565
  %3646 = vst [vmem:[%s4 + $0x68] sm:$0xff] %v3566
  %3647 = vst [vmem:[%s4 + $0x70] sm:$0xff] %v3567
  %3648 = vst [vmem:[%s4 + $0x78] sm:$0xff] %v3568
  %3649 = vst [vmem:[%s4 + $0x80] sm:$0xff] %v3569
  %3650 = vst [vmem:[%s4 + $0x88] sm:$0xff] %v3570
  %3651 = vst [vmem:[%s4 + $0x90] sm:$0xff] %v3571
  %3652 = vst [vmem:[%s4 + $0x98] sm:$0xff] %v3572
  %3653 = vst [vmem:[%s4 + $0xa0] sm:$0xff] %v3573
  %3654 = vst [vmem:[%s4 + $0xa8] sm:$0xff] %v3574
  %3655 = vst [vmem:[%s4 + $0xb0] sm:$0xff] %v3575
  %3656 = vst [vmem:[%s4 + $0xb8] sm:$0xff] %v3576
  %3657 = vst [vmem:[%s4 + $0xc0] sm:$0xff] %v3577
  %3658 = vst [vmem:[%s4 + $0xc8] sm:$0xff] %v3578
  %3659 = vst [vmem:[%s4 + $0xd0] sm:$0xff] %v3579
  %3660 = vst [vmem:[%s4 + $0xd8] sm:$0xff] %v3580
  %3661 = vst [vmem:[%s4 + $0xe0] sm:$0xff] %v3581
  %3662 = vst [vmem:[%s4 + $0xe8] sm:$0xff] %v3582
  %3663 = vst [vmem:[%s4 + $0xf0] sm:$0xff] %v3583
  %3664 = vst [vmem:[%s4 + $0xf8] sm:$0xff] %v3584
  %3665 = vst [vmem:[%s4 + $0x100] sm:$0xff] %v3585
  %3666 = vst [vmem:[%s4 + $0x108] sm:$0xff] %v3586
  %3667 = vst [vmem:[%s4 + $0x110] sm:$0xff] %v3587
  %3668 = vst [vmem:[%s4 + $0x118] sm:$0xff] %v3588
  %3669 = vst [vmem:[%s4 + $0x120] sm:$0xff] %v3589
  %3670 = vst [vmem:[%s4 + $0x128] sm:$0xff] %v3590
  %3671 = vst [vmem:[%s4 + $0x130] sm:$0xff] %v3591
  %3672 = vst [vmem:[%s4 + $0x138] sm:$0xff] %v3592
  %3673 = vst [vmem:[%s4 + $0x140] sm:$0xff] %v3593
  %3674 = vst [vmem:[%s4 + $0x148] sm:$0xff] %v3594
  %3675 = vst [vmem:[%s4 + $0x150] sm:$0xff] %v3595
  %3676 = vst [vmem:[%s4 + $0x158] sm:$0xff] %v3596
  %3677 = vst [vmem:[%s4 + $0x160] sm:$0xff] %v3597
  %3678 = vst [vmem:[%s4 + $0x168] sm:$0xff] %v3598
  %3679 = vst [vmem:[%s4 + $0x170] sm:$0xff] %v3599
  %3680 = vst [vmem:[%s4 + $0x178] sm:$0xff] %v3600
  %3681 = vst [vmem:[%s4 + $0x180] sm:$0xff] %v3601
  %3682 = vst [vmem:[%s4 + $0x188] sm:$0xff] %v3602
  %3683 = vst [vmem:[%s4 + $0x190] sm:$0xff] %v3603
  %3684 = vst [vmem:[%s4 + $0x198] sm:$0xff] %v3604
  %3685 = vst [vmem:[%s4 + $0x1a0] sm:$0xff] %v3605
  %3686 = vst [vmem:[%s4 + $0x1a8] sm:$0xff] %v3606
  %3687 = vst [vmem:[%s4 + $0x1b0] sm:$0xff] %v3607
  %3688 = vst [vmem:[%s4 + $0x1b8] sm:$0xff] %v3608
  %3689 = vst [vmem:[%s4 + $0x1c0] sm:$0xff] %v3609
  %3690 = vst [vmem:[%s4 + $0x1c8] sm:$0xff] %v3610
  %3691 = vst [vmem:[%s4 + $0x1d0] sm:$0xff] %v3611
  %3692 = vst [vmem:[%s4 + $0x1d8] sm:$0xff] %v3612
  %3693 = vst [vmem:[%s4 + $0x1e0] sm:$0xff] %v3613
  %3694 = vst [vmem:[%s4 + $0x1e8] sm:$0xff] %v3614
  %3695 = vst [vmem:[%s4 + $0x1f0] sm:$0xff] %v3615
  %3696 = vst [vmem:[%s4 + $0x1f8] sm:$0xff] %v3616
  %3697 = vst [vmem:[%s4 + $0x200] sm:$0xff] %v3617
  %3698 = vst [vmem:[%s4 + $0x208] sm:$0xff] %v3618
  %3699 = vst [vmem:[%s4 + $0x210] sm:$0xff] %v3619
  %3700 = vst [vmem:[%s4 + $0x218] sm:$0xff] %v3620
  %3701 = vst [vmem:[%s4 + $0x220] sm:$0xff] %v3621
  %3702 = vst [vmem:[%s4 + $0x228] sm:$0xff] %v3622
  %3703 = vst [vmem:[%s4 + $0x230] sm:$0xff] %v3623
  %3704 = vst [vmem:[%s4 + $0x238] sm:$0xff] %v3624
  %3705 = vst [vmem:[%s4 + $0x240] sm:$0xff] %v3625
  %3706 = vst [vmem:[%s4 + $0x248] sm:$0xff] %v3626
  %3707 = vst [vmem:[%s4 + $0x250] sm:$0xff] %v3627
  %3708 = vst [vmem:[%s4 + $0x258] sm:$0xff] %v3628
  %3709 = vst [vmem:[%s4 + $0x260] sm:$0xff] %v3629
  %3710 = vst [vmem:[%s4 + $0x268] sm:$0xff] %v3630
  %3711 = vst [vmem:[%s4 + $0x270] sm:$0xff] %v3631
  %3712 = vst [vmem:[%s4 + $0x278] sm:$0xff] %v3632
  // Predicated region
  $region18: #{traj_model_forward.3} parent=0 // pred_check
    _
  $region19: #{traj_model_forward.3} parent=0 // pred_check_branch
    %3714 = sbr.rel (0) target = $region21
  $region20: #{traj_model_forward.3} parent=0 // pred_region
    _
  $region21: #{traj_model_forward.3} parent=0 // pred_fallthru
    _
  // Predicated region
  $region22: #{traj_model_forward.3} parent=0 // pred_check
    _
  $region23: #{traj_model_forward.3} parent=0 // pred_check_branch
    %3716 = sbr.rel (0) target = $region25
  $region24: #{traj_model_forward.3} parent=0 // pred_region
    _
  $region25: #{traj_model_forward.3} parent=0 // pred_fallthru
    _

// kernel: traj_model_forward.4
$region0: #{traj_model_forward.4}
  #allocation0 [shape = 'u32[]', space=smem, size = 0x4, offset = 0x4, fixed_abs, tag = 'smem constant byte address 0x4 - core index']
  #allocation1 [shape = 'u32[72,128]{1,0:T(1,128)}', space=vmem, size = 0x9000, scoped, tag = 'internal scratch']
  %s0 = inlined_call_operand.vmem [shape: bf16[16,72], index: 0, kind: input, shape index: {}]
  %s1 = inlined_call_operand.vmem [shape: f32[16,1], index: 1, kind: input, shape index: {}]
  %s2 = inlined_call_operand.vmem [shape: bf16[72,2560], index: 2, kind: input, shape index: {}]
  %s3 = inlined_call_operand.vmem [shape: f32[16,640], index: 3, kind: output, shape index: {}]
  %s4 = sld [smem:[#allocation0]]
  $region22: #{traj_model_forward.4} parent=0
    _
  %s6 = ssub.s32 1, %s4
  %s7 = scalar_select 0, %s6, %s4
  // Predicated region
  $region2: #{traj_model_forward.4} parent=0 // pred_check
    _
  $region3: #{traj_model_forward.4} parent=0 // pred_check_branch
    %9 = sbr.rel (0) target = $region5
  $region4: #{traj_model_forward.4} parent=0 // pred_region
    _
  $region5: #{traj_model_forward.4} parent=0 // pred_fallthru
    _
  // Predicated region
  $region6: #{traj_model_forward.4} parent=0 // pred_check
    _
  $region7: #{traj_model_forward.4} parent=0 // pred_check_branch
    %11 = sbr.rel (0) target = $region9
  $region8: #{traj_model_forward.4} parent=0 // pred_region
    _
  $region9: #{traj_model_forward.4} parent=0 // pred_fallthru
    _
  // Predicated region
  $region10: #{traj_model_forward.4} parent=0 // pred_check
    _
  $region11: #{traj_model_forward.4} parent=0 // pred_check_branch
    %13 = sbr.rel (0) target = $region13
  $region12: #{traj_model_forward.4} parent=0 // pred_region
    _
  $region13: #{traj_model_forward.4} parent=0 // pred_fallthru
    _
  %v15 = vld [vmem:[%s0] sm:$0xf]
  %v16 = vld [vmem:[%s0 + $0x4] sm:$0xf]
  %v17 = vld [vmem:[%s2] sm:$0xff]
  %v18 = vld [vmem:[%s2 + $0x8] sm:$0xff]
  %v19 = vld [vmem:[%s2 + $0x10] sm:$0xff]
  %v20 = vld [vmem:[%s2 + $0x18] sm:$0xff]
  %v21 = vld [vmem:[%s2 + $0x20] sm:$0xff]
  %v22 = vld [vmem:[%s2 + $0x28] sm:$0xff]
  %v23 = vld [vmem:[%s2 + $0x30] sm:$0xff]
  %v24 = vld [vmem:[%s2 + $0x38] sm:$0xff]
  %v25 = vld [vmem:[%s2 + $0x40] sm:$0xff]
  %v26 = vld [vmem:[%s2 + $0x48] sm:$0xff]
  %v27 = vld [vmem:[%s2 + $0x50] sm:$0xff]
  %v28 = vld [vmem:[%s2 + $0x58] sm:$0xff]
  %v29 = vld [vmem:[%s2 + $0x60] sm:$0xff]
  %v30 = vld [vmem:[%s2 + $0x68] sm:$0xff]
  %v31 = vld [vmem:[%s2 + $0x70] sm:$0xff]
  %v32 = vld [vmem:[%s2 + $0x78] sm:$0xff]
  %v33 = vld [vmem:[%s2 + $0x80] sm:$0xff]
  %v34 = vld [vmem:[%s2 + $0x88] sm:$0xff]
  %v35 = vld [vmem:[%s2 + $0x90] sm:$0xff]
  %v36 = vld [vmem:[%s2 + $0x98] sm:$0xff]
  %v37 = vld [vmem:[%s2 + $0xa0] sm:$0xff]
  %v38 = vld [vmem:[%s2 + $0xa8] sm:$0xff]
  %v39 = vld [vmem:[%s2 + $0xb0] sm:$0xff]
  %v40 = vld [vmem:[%s2 + $0xb8] sm:$0xff]
  %v41 = vld [vmem:[%s2 + $0xc0] sm:$0xff]
  %v42 = vld [vmem:[%s2 + $0xc8] sm:$0xff]
  %v43 = vld [vmem:[%s2 + $0xd0] sm:$0xff]
  %v44 = vld [vmem:[%s2 + $0xd8] sm:$0xff]
  %v45 = vld [vmem:[%s2 + $0xe0] sm:$0xff]
  %v46 = vld [vmem:[%s2 + $0xe8] sm:$0xff]
  %v47 = vld [vmem:[%s2 + $0xf0] sm:$0xff]
  %v48 = vld [vmem:[%s2 + $0xf8] sm:$0xff]
  %v49 = vld [vmem:[%s2 + $0x100] sm:$0xff]
  %v50 = vld [vmem:[%s2 + $0x108] sm:$0xff]
  %v51 = vld [vmem:[%s2 + $0x110] sm:$0xff]
  %v52 = vld [vmem:[%s2 + $0x118] sm:$0xff]
  %v53 = vld [vmem:[%s2 + $0x120] sm:$0xff]
  %v54 = vld [vmem:[%s2 + $0x128] sm:$0xff]
  %v55 = vld [vmem:[%s2 + $0x130] sm:$0xff]
  %v56 = vld [vmem:[%s2 + $0x138] sm:$0xff]
  %v57 = vld [vmem:[%s2 + $0x140] sm:$0xff]
  %v58 = vld [vmem:[%s2 + $0x148] sm:$0xff]
  %v59 = vld [vmem:[%s2 + $0x150] sm:$0xff]
  %v60 = vld [vmem:[%s2 + $0x158] sm:$0xff]
  %v61 = vld [vmem:[%s2 + $0x160] sm:$0xff]
  %v62 = vld [vmem:[%s2 + $0x168] sm:$0xff]
  %v63 = vld [vmem:[%s2 + $0x170] sm:$0xff]
  %v64 = vld [vmem:[%s2 + $0x178] sm:$0xff]
  %v65 = vld [vmem:[%s2 + $0x180] sm:$0xff]
  %v66 = vld [vmem:[%s2 + $0x188] sm:$0xff]
  %v67 = vld [vmem:[%s2 + $0x190] sm:$0xff]
  %v68 = vld [vmem:[%s2 + $0x198] sm:$0xff]
  %v69 = vld [vmem:[%s2 + $0x1a0] sm:$0xff]
  %v70 = vld [vmem:[%s2 + $0x1a8] sm:$0xff]
  %v71 = vld [vmem:[%s2 + $0x1b0] sm:$0xff]
  %v72 = vld [vmem:[%s2 + $0x1b8] sm:$0xff]
  %v73 = vld [vmem:[%s2 + $0x1c0] sm:$0xff]
  %v74 = vld [vmem:[%s2 + $0x1c8] sm:$0xff]
  %v75 = vld [vmem:[%s2 + $0x1d0] sm:$0xff]
  %v76 = vld [vmem:[%s2 + $0x1d8] sm:$0xff]
  %v77 = vld [vmem:[%s2 + $0x1e0] sm:$0xff]
  %v78 = vld [vmem:[%s2 + $0x1e8] sm:$0xff]
  %v79 = vld [vmem:[%s2 + $0x1f0] sm:$0xff]
  %v80 = vld [vmem:[%s2 + $0x1f8] sm:$0xff]
  %v81 = vld [vmem:[%s2 + $0x200] sm:$0xff]
  %v82 = vld [vmem:[%s2 + $0x208] sm:$0xff]
  %v83 = vld [vmem:[%s2 + $0x210] sm:$0xff]
  %v84 = vld [vmem:[%s2 + $0x218] sm:$0xff]
  %v85 = vld [vmem:[%s2 + $0x220] sm:$0xff]
  %v86 = vld [vmem:[%s2 + $0x228] sm:$0xff]
  %v87 = vld [vmem:[%s2 + $0x230] sm:$0xff]
  %v88 = vld [vmem:[%s2 + $0x238] sm:$0xff]
  %v89 = vld [vmem:[%s2 + $0x240] sm:$0xff]
  %v90 = vld [vmem:[%s2 + $0x248] sm:$0xff]
  %v91 = vld [vmem:[%s2 + $0x250] sm:$0xff]
  %v92 = vld [vmem:[%s2 + $0x258] sm:$0xff]
  %v93 = vld [vmem:[%s2 + $0x260] sm:$0xff]
  %v94 = vld [vmem:[%s2 + $0x268] sm:$0xff]
  %v95 = vld [vmem:[%s2 + $0x270] sm:$0xff]
  %v96 = vld [vmem:[%s2 + $0x278] sm:$0xff]
  %v97 = vld [vmem:[%s2 + $0x280] sm:$0xff]
  %v98 = vld [vmem:[%s2 + $0x288] sm:$0xff]
  %v99 = vld [vmem:[%s2 + $0x290] sm:$0xff]
  %v100 = vld [vmem:[%s2 + $0x298] sm:$0xff]
  %v101 = vld [vmem:[%s2 + $0x2a0] sm:$0xff]
  %v102 = vld [vmem:[%s2 + $0x2a8] sm:$0xff]
  %v103 = vld [vmem:[%s2 + $0x2b0] sm:$0xff]
  %v104 = vld [vmem:[%s2 + $0x2b8] sm:$0xff]
  %v105 = vld [vmem:[%s2 + $0x2c0] sm:$0xff]
  %v106 = vld [vmem:[%s2 + $0x2c8] sm:$0xff]
  %v109 = vunpack.c.l.b16 %v15
  %v110 = vunpack.c.l.b16 %v16
  %v111 = vpack.c.b16 %v110, %v109
  %v202 = vunpack.c.l.b16 %v17
  %v203 = vunpack.c.h.b16 %v17
  %v204 = vunpack.c.l.b16 %v18
  %v205 = vunpack.c.h.b16 %v18
  %v206 = vunpack.c.l.b16 %v19
  %v207 = vunpack.c.h.b16 %v19
  %v208 = vunpack.c.l.b16 %v20
  %v209 = vunpack.c.h.b16 %v20
  %v210 = vunpack.c.l.b16 %v21
  %v211 = vunpack.c.h.b16 %v21
  %v212 = vunpack.c.l.b16 %v22
  %v213 = vunpack.c.h.b16 %v22
  %v214 = vunpack.c.l.b16 %v23
  %v215 = vunpack.c.h.b16 %v23
  %v216 = vunpack.c.l.b16 %v24
  %v217 = vunpack.c.h.b16 %v24
  %v218 = vunpack.c.l.b16 %v25
  %v219 = vunpack.c.h.b16 %v25
  %v220 = vunpack.c.l.b16 %v26
  %v221 = vunpack.c.h.b16 %v26
  %v222 = vunpack.c.l.b16 %v27
  %v223 = vunpack.c.h.b16 %v27
  %v224 = vunpack.c.l.b16 %v28
  %v225 = vunpack.c.h.b16 %v28
  %v226 = vunpack.c.l.b16 %v29
  %v227 = vunpack.c.h.b16 %v29
  %v228 = vunpack.c.l.b16 %v30
  %v229 = vunpack.c.h.b16 %v30
  %v230 = vunpack.c.l.b16 %v31
  %v231 = vunpack.c.h.b16 %v31
  %v232 = vunpack.c.l.b16 %v32
  %v233 = vunpack.c.h.b16 %v32
  %v234 = vunpack.c.l.b16 %v33
  %v235 = vunpack.c.h.b16 %v33
  %v236 = vunpack.c.l.b16 %v34
  %v237 = vunpack.c.h.b16 %v34
  %v238 = vunpack.c.l.b16 %v35
  %v239 = vunpack.c.h.b16 %v35
  %v240 = vunpack.c.l.b16 %v36
  %v241 = vunpack.c.h.b16 %v36
  %v242 = vunpack.c.l.b16 %v37
  %v243 = vunpack.c.h.b16 %v37
  %v244 = vunpack.c.l.b16 %v38
  %v245 = vunpack.c.h.b16 %v38
  %v246 = vunpack.c.l.b16 %v39
  %v247 = vunpack.c.h.b16 %v39
  %v248 = vunpack.c.l.b16 %v40
  %v249 = vunpack.c.h.b16 %v40
  %v250 = vunpack.c.l.b16 %v41
  %v251 = vunpack.c.h.b16 %v41
  %v252 = vunpack.c.l.b16 %v42
  %v253 = vunpack.c.h.b16 %v42
  %v254 = vunpack.c.l.b16 %v43
  %v255 = vunpack.c.h.b16 %v43
  %v256 = vunpack.c.l.b16 %v44
  %v257 = vunpack.c.h.b16 %v44
  %v258 = vunpack.c.l.b16 %v45
  %v259 = vunpack.c.h.b16 %v45
  %v260 = vunpack.c.l.b16 %v46
  %v261 = vunpack.c.h.b16 %v46
  %v262 = vunpack.c.l.b16 %v47
  %v263 = vunpack.c.h.b16 %v47
  %v264 = vunpack.c.l.b16 %v48
  %v265 = vunpack.c.h.b16 %v48
  %v266 = vunpack.c.l.b16 %v49
  %v267 = vunpack.c.h.b16 %v49
  %v268 = vunpack.c.l.b16 %v50
  %v269 = vunpack.c.h.b16 %v50
  %v270 = vunpack.c.l.b16 %v51
  %v271 = vunpack.c.h.b16 %v51
  %v272 = vunpack.c.l.b16 %v52
  %v273 = vunpack.c.h.b16 %v52
  %v274 = vunpack.c.l.b16 %v53
  %v275 = vunpack.c.h.b16 %v53
  %v276 = vunpack.c.l.b16 %v54
  %v277 = vunpack.c.h.b16 %v54
  %v278 = vunpack.c.l.b16 %v55
  %v279 = vunpack.c.h.b16 %v55
  %v280 = vunpack.c.l.b16 %v56
  %v281 = vunpack.c.h.b16 %v56
  %v282 = vunpack.c.l.b16 %v57
  %v283 = vunpack.c.h.b16 %v57
  %v284 = vunpack.c.l.b16 %v58
  %v285 = vunpack.c.h.b16 %v58
  %v286 = vunpack.c.l.b16 %v59
  %v287 = vunpack.c.h.b16 %v59
  %v288 = vunpack.c.l.b16 %v60
  %v289 = vunpack.c.h.b16 %v60
  %v290 = vunpack.c.l.b16 %v61
  %v291 = vunpack.c.h.b16 %v61
  %v292 = vunpack.c.l.b16 %v62
  %v293 = vunpack.c.h.b16 %v62
  %v294 = vunpack.c.l.b16 %v63
  %v295 = vunpack.c.h.b16 %v63
  %v296 = vunpack.c.l.b16 %v64
  %v297 = vunpack.c.h.b16 %v64
  %v298 = vunpack.c.l.b16 %v65
  %v299 = vunpack.c.h.b16 %v65
  %v300 = vunpack.c.l.b16 %v66
  %v301 = vunpack.c.h.b16 %v66
  %v302 = vunpack.c.l.b16 %v67
  %v303 = vunpack.c.h.b16 %v67
  %v304 = vunpack.c.l.b16 %v68
  %v305 = vunpack.c.h.b16 %v68
  %v306 = vunpack.c.l.b16 %v69
  %v307 = vunpack.c.h.b16 %v69
  %v308 = vunpack.c.l.b16 %v70
  %v309 = vunpack.c.h.b16 %v70
  %v310 = vunpack.c.l.b16 %v71
  %v311 = vunpack.c.h.b16 %v71
  %v312 = vunpack.c.l.b16 %v72
  %v313 = vunpack.c.h.b16 %v72
  %v314 = vunpack.c.l.b16 %v73
  %v315 = vunpack.c.h.b16 %v73
  %v316 = vunpack.c.l.b16 %v74
  %v317 = vunpack.c.h.b16 %v74
  %v318 = vunpack.c.l.b16 %v75
  %v319 = vunpack.c.h.b16 %v75
  %v320 = vunpack.c.l.b16 %v76
  %v321 = vunpack.c.h.b16 %v76
  %v322 = vunpack.c.l.b16 %v77
  %v323 = vunpack.c.h.b16 %v77
  %v324 = vunpack.c.l.b16 %v78
  %v325 = vunpack.c.h.b16 %v78
  %v326 = vunpack.c.l.b16 %v79
  %v327 = vunpack.c.h.b16 %v79
  %v328 = vunpack.c.l.b16 %v80
  %v329 = vunpack.c.h.b16 %v80
  %v330 = vunpack.c.l.b16 %v81
  %v331 = vunpack.c.h.b16 %v81
  %v332 = vunpack.c.l.b16 %v82
  %v333 = vunpack.c.h.b16 %v82
  %v334 = vunpack.c.l.b16 %v83
  %v335 = vunpack.c.h.b16 %v83
  %v336 = vunpack.c.l.b16 %v84
  %v337 = vunpack.c.h.b16 %v84
  %v338 = vunpack.c.l.b16 %v85
  %v339 = vunpack.c.h.b16 %v85
  %v340 = vunpack.c.l.b16 %v86
  %v341 = vunpack.c.h.b16 %v86
  %v342 = vunpack.c.l.b16 %v87
  %v343 = vunpack.c.h.b16 %v87
  %v344 = vunpack.c.l.b16 %v88
  %v345 = vunpack.c.h.b16 %v88
  %v346 = vunpack.c.l.b16 %v89
  %v347 = vunpack.c.h.b16 %v89
  %v348 = vunpack.c.l.b16 %v90
  %v349 = vunpack.c.h.b16 %v90
  %v350 = vunpack.c.l.b16 %v91
  %v351 = vunpack.c.h.b16 %v91
  %v352 = vunpack.c.l.b16 %v92
  %v353 = vunpack.c.h.b16 %v92
  %v354 = vunpack.c.l.b16 %v93
  %v355 = vunpack.c.h.b16 %v93
  %v356 = vunpack.c.l.b16 %v94
  %v357 = vunpack.c.h.b16 %v94
  %v358 = vunpack.c.l.b16 %v95
  %v359 = vunpack.c.h.b16 %v95
  %v360 = vunpack.c.l.b16 %v96
  %v361 = vunpack.c.h.b16 %v96
  %v362 = vunpack.c.l.b16 %v97
  %v363 = vunpack.c.h.b16 %v97
  %v364 = vunpack.c.l.b16 %v98
  %v365 = vunpack.c.h.b16 %v98
  %v366 = vunpack.c.l.b16 %v99
  %v367 = vunpack.c.h.b16 %v99
  %v368 = vunpack.c.l.b16 %v100
  %v369 = vunpack.c.h.b16 %v100
  %v370 = vunpack.c.l.b16 %v101
  %v371 = vunpack.c.h.b16 %v101
  %v372 = vunpack.c.l.b16 %v102
  %v373 = vunpack.c.h.b16 %v102
  %v374 = vunpack.c.l.b16 %v103
  %v375 = vunpack.c.h.b16 %v103
  %v376 = vunpack.c.l.b16 %v104
  %v377 = vunpack.c.h.b16 %v104
  %v378 = vunpack.c.l.b16 %v105
  %v379 = vunpack.c.h.b16 %v105
  %v380 = vunpack.c.l.b16 %v106
  %v381 = vunpack.c.h.b16 %v106
  %v382 = vpack.c.b16 %v222, %v202
  %v383 = vpack.c.b16 %v223, %v203
  %v384 = vpack.c.b16 %v224, %v204
  %v385 = vpack.c.b16 %v225, %v205
  %v386 = vpack.c.b16 %v226, %v206
  %v387 = vpack.c.b16 %v227, %v207
  %v388 = vpack.c.b16 %v228, %v208
  %v389 = vpack.c.b16 %v229, %v209
  %v390 = vpack.c.b16 %v230, %v210
  %v391 = vpack.c.b16 %v231, %v211
  %v392 = vpack.c.b16 %v232, %v212
  %v393 = vpack.c.b16 %v233, %v213
  %v394 = vpack.c.b16 %v234, %v214
  %v395 = vpack.c.b16 %v235, %v215
  %v396 = vpack.c.b16 %v236, %v216
  %v397 = vpack.c.b16 %v237, %v217
  %v398 = vpack.c.b16 %v238, %v218
  %v399 = vpack.c.b16 %v239, %v219
  %v400 = vpack.c.b16 %v240, %v220
  %v401 = vpack.c.b16 %v241, %v221
  %v402 = vpack.c.b16 %v262, %v242
  %v403 = vpack.c.b16 %v263, %v243
  %v404 = vpack.c.b16 %v264, %v244
  %v405 = vpack.c.b16 %v265, %v245
  %v406 = vpack.c.b16 %v266, %v246
  %v407 = vpack.c.b16 %v267, %v247
  %v408 = vpack.c.b16 %v268, %v248
  %v409 = vpack.c.b16 %v269, %v249
  %v410 = vpack.c.b16 %v270, %v250
  %v411 = vpack.c.b16 %v271, %v251
  %v412 = vpack.c.b16 %v272, %v252
  %v413 = vpack.c.b16 %v273, %v253
  %v414 = vpack.c.b16 %v274, %v254
  %v415 = vpack.c.b16 %v275, %v255
  %v416 = vpack.c.b16 %v276, %v256
  %v417 = vpack.c.b16 %v277, %v257
  %v418 = vpack.c.b16 %v278, %v258
  %v419 = vpack.c.b16 %v279, %v259
  %v420 = vpack.c.b16 %v280, %v260
  %v421 = vpack.c.b16 %v281, %v261
  %v422 = vpack.c.b16 %v302, %v282
  %v423 = vpack.c.b16 %v303, %v283
  %v424 = vpack.c.b16 %v304, %v284
  %v425 = vpack.c.b16 %v305, %v285
  %v426 = vpack.c.b16 %v306, %v286
  %v427 = vpack.c.b16 %v307, %v287
  %v428 = vpack.c.b16 %v308, %v288
  %v429 = vpack.c.b16 %v309, %v289
  %v430 = vpack.c.b16 %v310, %v290
  %v431 = vpack.c.b16 %v311, %v291
  %v432 = vpack.c.b16 %v312, %v292
  %v433 = vpack.c.b16 %v313, %v293
  %v434 = vpack.c.b16 %v314, %v294
  %v435 = vpack.c.b16 %v315, %v295
  %v436 = vpack.c.b16 %v316, %v296
  %v437 = vpack.c.b16 %v317, %v297
  %v438 = vpack.c.b16 %v318, %v298
  %v439 = vpack.c.b16 %v319, %v299
  %v440 = vpack.c.b16 %v320, %v300
  %v441 = vpack.c.b16 %v321, %v301
  %v442 = vpack.c.b16 %v342, %v322
  %v443 = vpack.c.b16 %v343, %v323
  %v444 = vpack.c.b16 %v344, %v324
  %v445 = vpack.c.b16 %v345, %v325
  %v446 = vpack.c.b16 %v346, %v326
  %v447 = vpack.c.b16 %v347, %v327
  %v448 = vpack.c.b16 %v348, %v328
  %v449 = vpack.c.b16 %v349, %v329
  %v450 = vpack.c.b16 %v350, %v330
  %v451 = vpack.c.b16 %v351, %v331
  %v452 = vpack.c.b16 %v352, %v332
  %v453 = vpack.c.b16 %v353, %v333
  %v454 = vpack.c.b16 %v354, %v334
  %v455 = vpack.c.b16 %v355, %v335
  %v456 = vpack.c.b16 %v356, %v336
  %v457 = vpack.c.b16 %v357, %v337
  %v458 = vpack.c.b16 %v358, %v338
  %v459 = vpack.c.b16 %v359, %v339
  %v460 = vpack.c.b16 %v360, %v340
  %v461 = vpack.c.b16 %v361, %v341
  %v462 = vpack.c.b16 %v362, %v362
  %v463 = vpack.c.b16 %v363, %v363
  %v464 = vpack.c.b16 %v364, %v364
  %v465 = vpack.c.b16 %v365, %v365
  %v466 = vpack.c.b16 %v366, %v366
  %v467 = vpack.c.b16 %v367, %v367
  %v468 = vpack.c.b16 %v368, %v368
  %v469 = vpack.c.b16 %v369, %v369
  %v470 = vpack.c.b16 %v370, %v370
  %v471 = vpack.c.b16 %v371, %v371
  %v472 = vpack.c.b16 %v372, %v372
  %v473 = vpack.c.b16 %v373, %v373
  %v474 = vpack.c.b16 %v374, %v374
  %v475 = vpack.c.b16 %v375, %v375
  %v476 = vpack.c.b16 %v376, %v376
  %v477 = vpack.c.b16 %v377, %v377
  %v478 = vpack.c.b16 %v378, %v378
  %v479 = vpack.c.b16 %v379, %v379
  %v480 = vpack.c.b16 %v380, %v380
  %v481 = vpack.c.b16 %v381, %v381
  %vm562 = vcmask 588800
  %v564 = vsel %vm562, %v111, 0
  %vm566 = vcmask 1043456
  %v568 = vsel %vm566, %v462, 0
  %v571 = vsel %vm566, %v463, 0
  %v574 = vsel %vm566, %v464, 0
  %v577 = vsel %vm566, %v465, 0
  %v580 = vsel %vm566, %v466, 0
  %v583 = vsel %vm566, %v467, 0
  %v586 = vsel %vm566, %v468, 0
  %v589 = vsel %vm566, %v469, 0
  %v592 = vsel %vm566, %v470, 0
  %v595 = vsel %vm566, %v471, 0
  %v598 = vsel %vm566, %v472, 0
  %v601 = vsel %vm566, %v473, 0
  %v604 = vsel %vm566, %v474, 0
  %v607 = vsel %vm566, %v475, 0
  %v610 = vsel %vm566, %v476, 0
  %v613 = vsel %vm566, %v477, 0
  %v616 = vsel %vm566, %v478, 0
  %v619 = vsel %vm566, %v479, 0
  %v622 = vsel %vm566, %v480, 0
  %v625 = vsel %vm566, %v481, 0
  %627 = vmatpush.bf16.msra.mxu0 0
  %628 = vmatpush.bf16.msra.mxu0 0
  %629 = vmatpush.bf16.msra.mxu0 0
  %630 = vmatpush.bf16.msra.mxu0 %v568
  %631 = vmatpush.bf16.msra.mxu0 %v442
  %632 = vmatpush.bf16.msra.mxu0 %v422
  %633 = vmatpush.bf16.msra.mxu0 %v402
  %634 = vmatpush.bf16.msra.mxu0 %v382
  %635 = vmatmul.bf16.gmra.mxu0 %v564
  %v636 = vpop.f32.mrf.mxu0
  %v637 = vadd.f32 0.0, %v636
  %v638 = vpop.f32.mrf.mxu0
  %v639 = vadd.f32 0.0, %v638
  %640 = vdwg.mxu0
  %641 = vmatpush.bf16.msra.mxu0 0
  %642 = vmatpush.bf16.msra.mxu0 0
  %643 = vmatpush.bf16.msra.mxu0 0
  %644 = vmatpush.bf16.msra.mxu0 %v571
  %645 = vmatpush.bf16.msra.mxu0 %v443
  %646 = vmatpush.bf16.msra.mxu0 %v423
  %647 = vmatpush.bf16.msra.mxu0 %v403
  %648 = vmatpush.bf16.msra.mxu0 %v383
  %649 = vmatmul.bf16.gmra.mxu0 %v564
  %v650 = vpop.f32.mrf.mxu0
  %v651 = vadd.f32 0.0, %v650
  %v652 = vpop.f32.mrf.mxu0
  %v653 = vadd.f32 0.0, %v652
  %654 = vdwg.mxu0
  %655 = vmatpush.bf16.msra.mxu0 0
  %656 = vmatpush.bf16.msra.mxu0 0
  %657 = vmatpush.bf16.msra.mxu0 0
  %658 = vmatpush.bf16.msra.mxu0 %v574
  %659 = vmatpush.bf16.msra.mxu0 %v444
  %660 = vmatpush.bf16.msra.mxu0 %v424
  %661 = vmatpush.bf16.msra.mxu0 %v404
  %662 = vmatpush.bf16.msra.mxu0 %v384
  %663 = vmatmul.bf16.gmra.mxu0 %v564
  %v664 = vpop.f32.mrf.mxu0
  %v665 = vadd.f32 0.0, %v664
  %v666 = vpop.f32.mrf.mxu0
  %v667 = vadd.f32 0.0, %v666
  %668 = vdwg.mxu0
  %669 = vmatpush.bf16.msra.mxu0 0
  %670 = vmatpush.bf16.msra.mxu0 0
  %671 = vmatpush.bf16.msra.mxu0 0
  %672 = vmatpush.bf16.msra.mxu0 %v577
  %673 = vmatpush.bf16.msra.mxu0 %v445
  %674 = vmatpush.bf16.msra.mxu0 %v425
  %675 = vmatpush.bf16.msra.mxu0 %v405
  %676 = vmatpush.bf16.msra.mxu0 %v385
  %677 = vmatmul.bf16.gmra.mxu0 %v564
  %v678 = vpop.f32.mrf.mxu0
  %v679 = vadd.f32 0.0, %v678
  %v680 = vpop.f32.mrf.mxu0
  %v681 = vadd.f32 0.0, %v680
  %682 = vdwg.mxu0
  %683 = vmatpush.bf16.msra.mxu0 0
  %684 = vmatpush.bf16.msra.mxu0 0
  %685 = vmatpush.bf16.msra.mxu0 0
  %686 = vmatpush.bf16.msra.mxu0 %v580
  %687 = vmatpush.bf16.msra.mxu0 %v446
  %688 = vmatpush.bf16.msra.mxu0 %v426
  %689 = vmatpush.bf16.msra.mxu0 %v406
  %690 = vmatpush.bf16.msra.mxu0 %v386
  %691 = vmatmul.bf16.gmra.mxu0 %v564
  %v692 = vpop.f32.mrf.mxu0
  %v693 = vadd.f32 0.0, %v692
  %v694 = vpop.f32.mrf.mxu0
  %v695 = vadd.f32 0.0, %v694
  %696 = vdwg.mxu0
  %697 = vmatpush.bf16.msra.mxu0 0
  %698 = vmatpush.bf16.msra.mxu0 0
  %699 = vmatpush.bf16.msra.mxu0 0
  %700 = vmatpush.bf16.msra.mxu0 %v583
  %701 = vmatpush.bf16.msra.mxu0 %v447
  %702 = vmatpush.bf16.msra.mxu0 %v427
  %703 = vmatpush.bf16.msra.mxu0 %v407
  %704 = vmatpush.bf16.msra.mxu0 %v387
  %705 = vmatmul.bf16.gmra.mxu0 %v564
  %v706 = vpop.f32.mrf.mxu0
  %v707 = vadd.f32 0.0, %v706
  %v708 = vpop.f32.mrf.mxu0
  %v709 = vadd.f32 0.0, %v708
  %710 = vdwg.mxu0
  %711 = vmatpush.bf16.msra.mxu0 0
  %712 = vmatpush.bf16.msra.mxu0 0
  %713 = vmatpush.bf16.msra.mxu0 0
  %714 = vmatpush.bf16.msra.mxu0 %v586
  %715 = vmatpush.bf16.msra.mxu0 %v448
  %716 = vmatpush.bf16.msra.mxu0 %v428
  %717 = vmatpush.bf16.msra.mxu0 %v408
  %718 = vmatpush.bf16.msra.mxu0 %v388
  %719 = vmatmul.bf16.gmra.mxu0 %v564
  %v720 = vpop.f32.mrf.mxu0
  %v721 = vadd.f32 0.0, %v720
  %v722 = vpop.f32.mrf.mxu0
  %v723 = vadd.f32 0.0, %v722
  %724 = vdwg.mxu0
  %725 = vmatpush.bf16.msra.mxu0 0
  %726 = vmatpush.bf16.msra.mxu0 0
  %727 = vmatpush.bf16.msra.mxu0 0
  %728 = vmatpush.bf16.msra.mxu0 %v589
  %729 = vmatpush.bf16.msra.mxu0 %v449
  %730 = vmatpush.bf16.msra.mxu0 %v429
  %731 = vmatpush.bf16.msra.mxu0 %v409
  %732 = vmatpush.bf16.msra.mxu0 %v389
  %733 = vmatmul.bf16.gmra.mxu0 %v564
  %v734 = vpop.f32.mrf.mxu0
  %v735 = vadd.f32 0.0, %v734
  %v736 = vpop.f32.mrf.mxu0
  %v737 = vadd.f32 0.0, %v736
  %738 = vdwg.mxu0
  %739 = vmatpush.bf16.msra.mxu0 0
  %740 = vmatpush.bf16.msra.mxu0 0
  %741 = vmatpush.bf16.msra.mxu0 0
  %742 = vmatpush.bf16.msra.mxu0 %v592
  %743 = vmatpush.bf16.msra.mxu0 %v450
  %744 = vmatpush.bf16.msra.mxu0 %v430
  %745 = vmatpush.bf16.msra.mxu0 %v410
  %746 = vmatpush.bf16.msra.mxu0 %v390
  %747 = vmatmul.bf16.gmra.mxu0 %v564
  %v748 = vpop.f32.mrf.mxu0
  %v749 = vadd.f32 0.0, %v748
  %v750 = vpop.f32.mrf.mxu0
  %v751 = vadd.f32 0.0, %v750
  %752 = vdwg.mxu0
  %753 = vmatpush.bf16.msra.mxu0 0
  %754 = vmatpush.bf16.msra.mxu0 0
  %755 = vmatpush.bf16.msra.mxu0 0
  %756 = vmatpush.bf16.msra.mxu0 %v595
  %757 = vmatpush.bf16.msra.mxu0 %v451
  %758 = vmatpush.bf16.msra.mxu0 %v431
  %759 = vmatpush.bf16.msra.mxu0 %v411
  %760 = vmatpush.bf16.msra.mxu0 %v391
  %761 = vmatmul.bf16.gmra.mxu0 %v564
  %v762 = vpop.f32.mrf.mxu0
  %v763 = vadd.f32 0.0, %v762
  %v764 = vpop.f32.mrf.mxu0
  %v765 = vadd.f32 0.0, %v764
  %766 = vdwg.mxu0
  %767 = vmatpush.bf16.msra.mxu0 0
  %768 = vmatpush.bf16.msra.mxu0 0
  %769 = vmatpush.bf16.msra.mxu0 0
  %770 = vmatpush.bf16.msra.mxu0 %v598
  %771 = vmatpush.bf16.msra.mxu0 %v452
  %772 = vmatpush.bf16.msra.mxu0 %v432
  %773 = vmatpush.bf16.msra.mxu0 %v412
  %774 = vmatpush.bf16.msra.mxu0 %v392
  %775 = vmatmul.bf16.gmra.mxu0 %v564
  %v776 = vpop.f32.mrf.mxu0
  %v777 = vadd.f32 0.0, %v776
  %v778 = vpop.f32.mrf.mxu0
  %v779 = vadd.f32 0.0, %v778
  %780 = vdwg.mxu0
  %781 = vmatpush.bf16.msra.mxu0 0
  %782 = vmatpush.bf16.msra.mxu0 0
  %783 = vmatpush.bf16.msra.mxu0 0
  %784 = vmatpush.bf16.msra.mxu0 %v601
  %785 = vmatpush.bf16.msra.mxu0 %v453
  %786 = vmatpush.bf16.msra.mxu0 %v433
  %787 = vmatpush.bf16.msra.mxu0 %v413
  %788 = vmatpush.bf16.msra.mxu0 %v393
  %789 = vmatmul.bf16.gmra.mxu0 %v564
  %v790 = vpop.f32.mrf.mxu0
  %v791 = vadd.f32 0.0, %v790
  %v792 = vpop.f32.mrf.mxu0
  %v793 = vadd.f32 0.0, %v792
  %794 = vdwg.mxu0
  %795 = vmatpush.bf16.msra.mxu0 0
  %796 = vmatpush.bf16.msra.mxu0 0
  %797 = vmatpush.bf16.msra.mxu0 0
  %798 = vmatpush.bf16.msra.mxu0 %v604
  %799 = vmatpush.bf16.msra.mxu0 %v454
  %800 = vmatpush.bf16.msra.mxu0 %v434
  %801 = vmatpush.bf16.msra.mxu0 %v414
  %802 = vmatpush.bf16.msra.mxu0 %v394
  %803 = vmatmul.bf16.gmra.mxu0 %v564
  %v804 = vpop.f32.mrf.mxu0
  %v805 = vadd.f32 0.0, %v804
  %v806 = vpop.f32.mrf.mxu0
  %v807 = vadd.f32 0.0, %v806
  %808 = vdwg.mxu0
  %809 = vmatpush.bf16.msra.mxu0 0
  %810 = vmatpush.bf16.msra.mxu0 0
  %811 = vmatpush.bf16.msra.mxu0 0
  %812 = vmatpush.bf16.msra.mxu0 %v607
  %813 = vmatpush.bf16.msra.mxu0 %v455
  %814 = vmatpush.bf16.msra.mxu0 %v435
  %815 = vmatpush.bf16.msra.mxu0 %v415
  %816 = vmatpush.bf16.msra.mxu0 %v395
  %817 = vmatmul.bf16.gmra.mxu0 %v564
  %v818 = vpop.f32.mrf.mxu0
  %v819 = vadd.f32 0.0, %v818
  %v820 = vpop.f32.mrf.mxu0
  %v821 = vadd.f32 0.0, %v820
  %822 = vdwg.mxu0
  %823 = vmatpush.bf16.msra.mxu0 0
  %824 = vmatpush.bf16.msra.mxu0 0
  %825 = vmatpush.bf16.msra.mxu0 0
  %826 = vmatpush.bf16.msra.mxu0 %v610
  %827 = vmatpush.bf16.msra.mxu0 %v456
  %828 = vmatpush.bf16.msra.mxu0 %v436
  %829 = vmatpush.bf16.msra.mxu0 %v416
  %830 = vmatpush.bf16.msra.mxu0 %v396
  %831 = vmatmul.bf16.gmra.mxu0 %v564
  %v832 = vpop.f32.mrf.mxu0
  %v833 = vadd.f32 0.0, %v832
  %v834 = vpop.f32.mrf.mxu0
  %v835 = vadd.f32 0.0, %v834
  %836 = vdwg.mxu0
  %837 = vmatpush.bf16.msra.mxu0 0
  %838 = vmatpush.bf16.msra.mxu0 0
  %839 = vmatpush.bf16.msra.mxu0 0
  %840 = vmatpush.bf16.msra.mxu0 %v613
  %841 = vmatpush.bf16.msra.mxu0 %v457
  %842 = vmatpush.bf16.msra.mxu0 %v437
  %843 = vmatpush.bf16.msra.mxu0 %v417
  %844 = vmatpush.bf16.msra.mxu0 %v397
  %845 = vmatmul.bf16.gmra.mxu0 %v564
  %v846 = vpop.f32.mrf.mxu0
  %v847 = vadd.f32 0.0, %v846
  %v848 = vpop.f32.mrf.mxu0
  %v849 = vadd.f32 0.0, %v848
  %850 = vdwg.mxu0
  %851 = vmatpush.bf16.msra.mxu0 0
  %852 = vmatpush.bf16.msra.mxu0 0
  %853 = vmatpush.bf16.msra.mxu0 0
  %854 = vmatpush.bf16.msra.mxu0 %v616
  %855 = vmatpush.bf16.msra.mxu0 %v458
  %856 = vmatpush.bf16.msra.mxu0 %v438
  %857 = vmatpush.bf16.msra.mxu0 %v418
  %858 = vmatpush.bf16.msra.mxu0 %v398
  %859 = vmatmul.bf16.gmra.mxu0 %v564
  %v860 = vpop.f32.mrf.mxu0
  %v861 = vadd.f32 0.0, %v860
  %v862 = vpop.f32.mrf.mxu0
  %v863 = vadd.f32 0.0, %v862
  %864 = vdwg.mxu0
  %865 = vmatpush.bf16.msra.mxu0 0
  %866 = vmatpush.bf16.msra.mxu0 0
  %867 = vmatpush.bf16.msra.mxu0 0
  %868 = vmatpush.bf16.msra.mxu0 %v619
  %869 = vmatpush.bf16.msra.mxu0 %v459
  %870 = vmatpush.bf16.msra.mxu0 %v439
  %871 = vmatpush.bf16.msra.mxu0 %v419
  %872 = vmatpush.bf16.msra.mxu0 %v399
  %873 = vmatmul.bf16.gmra.mxu0 %v564
  %v874 = vpop.f32.mrf.mxu0
  %v875 = vadd.f32 0.0, %v874
  %v876 = vpop.f32.mrf.mxu0
  %v877 = vadd.f32 0.0, %v876
  %878 = vdwg.mxu0
  %879 = vmatpush.bf16.msra.mxu0 0
  %880 = vmatpush.bf16.msra.mxu0 0
  %881 = vmatpush.bf16.msra.mxu0 0
  %882 = vmatpush.bf16.msra.mxu0 %v622
  %883 = vmatpush.bf16.msra.mxu0 %v460
  %884 = vmatpush.bf16.msra.mxu0 %v440
  %885 = vmatpush.bf16.msra.mxu0 %v420
  %886 = vmatpush.bf16.msra.mxu0 %v400
  %887 = vmatmul.bf16.gmra.mxu0 %v564
  %v888 = vpop.f32.mrf.mxu0
  %v889 = vadd.f32 0.0, %v888
  %v890 = vpop.f32.mrf.mxu0
  %v891 = vadd.f32 0.0, %v890
  %892 = vdwg.mxu0
  %893 = vmatpush.bf16.msra.mxu0 0
  %894 = vmatpush.bf16.msra.mxu0 0
  %895 = vmatpush.bf16.msra.mxu0 0
  %896 = vmatpush.bf16.msra.mxu0 %v625
  %897 = vmatpush.bf16.msra.mxu0 %v461
  %898 = vmatpush.bf16.msra.mxu0 %v441
  %899 = vmatpush.bf16.msra.mxu0 %v421
  %900 = vmatpush.bf16.msra.mxu0 %v401
  %901 = vmatmul.bf16.gmra.mxu0 %v564
  %v902 = vpop.f32.mrf.mxu0
  %v903 = vadd.f32 0.0, %v902
  %v904 = vpop.f32.mrf.mxu0
  %v905 = vadd.f32 0.0, %v904
  %906 = vdwg.mxu0
  %v907 = vmax.f32 %v637, %v707
  %v908 = vmax.f32 %v651, %v721
  %v909 = vmax.f32 %v665, %v735
  %v910 = vmax.f32 %v679, %v749
  %v911 = vmax.f32 %v693, %v763
  %v912 = vmax.f32 %v639, %v709
  %v913 = vmax.f32 %v653, %v723
  %v914 = vmax.f32 %v667, %v737
  %v915 = vmax.f32 %v681, %v751
  %v916 = vmax.f32 %v695, %v765
  %v917 = vmax.f32 %v907, %v777
  %v918 = vmax.f32 %v908, %v791
  %v919 = vmax.f32 %v909, %v805
  %v920 = vmax.f32 %v910, %v819
  %v921 = vmax.f32 %v911, %v833
  %v922 = vmax.f32 %v912, %v779
  %v923 = vmax.f32 %v913, %v793
  %v924 = vmax.f32 %v914, %v807
  %v925 = vmax.f32 %v915, %v821
  %v926 = vmax.f32 %v916, %v835
  %v927 = vmax.f32 %v917, %v847
  %v928 = vmax.f32 %v918, %v861
  %v929 = vmax.f32 %v919, %v875
  %v930 = vmax.f32 %v920, %v889
  %v931 = vmax.f32 %v921, %v903
  %v932 = vmax.f32 %v922, %v849
  %v933 = vmax.f32 %v923, %v863
  %v934 = vmax.f32 %v924, %v877
  %v935 = vmax.f32 %v925, %v891
  %v936 = vmax.f32 %v926, %v905
  %v937 = vld [vmem:[%s1] sm:$0xff]
  %v938 = vld [vmem:[%s1 + $0x8] sm:$0xff]
  %940 = vset.pattern.permute.xlu0 0
  %941 = vperm.xlu0 %940, %v937
  %v942 = vpop.permute.xlu0 %941
  %945 = vset.pattern.permute.xlu0 0
  %946 = vperm.xlu0 %945, %v938
  %v947 = vpop.permute.xlu0 %946
  %v949 = vadd.f32 %v927, %v942
  %v950 = vadd.f32 %v928, %v942
  %v951 = vadd.f32 %v929, %v942
  %v952 = vadd.f32 %v930, %v942
  %v953 = vadd.f32 %v931, %v942
  %v954 = vadd.f32 %v932, %v947
  %v955 = vadd.f32 %v933, %v947
  %v956 = vadd.f32 %v934, %v947
  %v957 = vadd.f32 %v935, %v947
  %v958 = vadd.f32 %v936, %v947
  %v959 = vmax.f32 %v949, 0.0
  %v960 = vmax.f32 %v950, 0.0
  %v961 = vmax.f32 %v951, 0.0
  %v962 = vmax.f32 %v952, 0.0
  %v963 = vmax.f32 %v953, 0.0
  %v964 = vmax.f32 %v954, 0.0
  %v965 = vmax.f32 %v955, 0.0
  %v966 = vmax.f32 %v956, 0.0
  %v967 = vmax.f32 %v957, 0.0
  %v968 = vmax.f32 %v958, 0.0
  %969 = vst [vmem:[%s3] sm:$0xff] %v959
  %970 = vst [vmem:[%s3 + $0x8] sm:$0xff] %v960
  %971 = vst [vmem:[%s3 + $0x10] sm:$0xff] %v961
  %972 = vst [vmem:[%s3 + $0x18] sm:$0xff] %v962
  %973 = vst [vmem:[%s3 + $0x20] sm:$0xff] %v963
  %974 = vst [vmem:[%s3 + $0x28] sm:$0xff] %v964
  %975 = vst [vmem:[%s3 + $0x30] sm:$0xff] %v965
  %976 = vst [vmem:[%s3 + $0x38] sm:$0xff] %v966
  %977 = vst [vmem:[%s3 + $0x40] sm:$0xff] %v967
  %978 = vst [vmem:[%s3 + $0x48] sm:$0xff] %v968
  // Predicated region
  $region14: #{traj_model_forward.4} parent=0 // pred_check
    _
  $region15: #{traj_model_forward.4} parent=0 // pred_check_branch
    %980 = sbr.rel (0) target = $region17
  $region16: #{traj_model_forward.4} parent=0 // pred_region
    _
  $region17: #{traj_model_forward.4} parent=0 // pred_fallthru
    _
  // Predicated region
  $region18: #{traj_model_forward.4} parent=0 // pred_check
    _
  $region19: #{traj_model_forward.4} parent=0 // pred_check_branch
    %982 = sbr.rel (0) target = $region21
  $region20: #{traj_model_forward.4} parent=0 // pred_region
    _
  $region21: #{traj_model_forward.4} parent=0 // pred_fallthru
    _

// kernel: traj_model_forward.5
$region0: #{traj_model_forward.5}
  #allocation0 [shape = 'u32[]', space=smem, size = 0x4, offset = 0x4, fixed_abs, tag = 'smem constant byte address 0x4 - core index']
  #allocation1 [shape = 'u32[72,128]{1,0:T(1,128)}', space=vmem, size = 0x9000, scoped, tag = 'internal scratch']
  %s0 = inlined_call_operand.vmem [shape: bf16[32,144], index: 0, kind: input, shape index: {}]
  %s1 = inlined_call_operand.vmem [shape: f32[32,1], index: 1, kind: input, shape index: {}]
  %s2 = inlined_call_operand.vmem [shape: f32[64,32,20], index: 2, kind: input, shape index: {}]
  %s3 = inlined_call_operand.vmem [shape: f32[64,1], index: 3, kind: input, shape index: {}]
  %s4 = inlined_call_operand.vmem [shape: bf16[144,1024], index: 4, kind: input, shape index: {}]
  %s5 = inlined_call_operand.vmem [shape: f32[64,2], index: 5, kind: output, shape index: {}]
  %s6 = sld [smem:[#allocation0]]
  $region30: #{traj_model_forward.5} parent=0
    _
  %s8 = ssub.s32 1, %s6
  %s9 = scalar_select 0, %s8, %s6
  // Predicated region
  $region2: #{traj_model_forward.5} parent=0 // pred_check
    _
  $region3: #{traj_model_forward.5} parent=0 // pred_check_branch
    %11 = sbr.rel (0) target = $region5
  $region4: #{traj_model_forward.5} parent=0 // pred_region
    _
  $region5: #{traj_model_forward.5} parent=0 // pred_fallthru
    _
  // Predicated region
  $region6: #{traj_model_forward.5} parent=0 // pred_check
    _
  $region7: #{traj_model_forward.5} parent=0 // pred_check_branch
    %13 = sbr.rel (0) target = $region9
  $region8: #{traj_model_forward.5} parent=0 // pred_region
    _
  $region9: #{traj_model_forward.5} parent=0 // pred_fallthru
    _
  // Predicated region
  $region10: #{traj_model_forward.5} parent=0 // pred_check
    _
  $region11: #{traj_model_forward.5} parent=0 // pred_check_branch
    %15 = sbr.rel (0) target = $region13
  $region12: #{traj_model_forward.5} parent=0 // pred_region
    _
  $region13: #{traj_model_forward.5} parent=0 // pred_fallthru
    _
  // Predicated region
  $region14: #{traj_model_forward.5} parent=0 // pred_check
    _
  $region15: #{traj_model_forward.5} parent=0 // pred_check_branch
    %17 = sbr.rel (0) target = $region17
  $region16: #{traj_model_forward.5} parent=0 // pred_region
    _
  $region17: #{traj_model_forward.5} parent=0 // pred_fallthru
    _
  // Predicated region
  $region18: #{traj_model_forward.5} parent=0 // pred_check
    _
  $region19: #{traj_model_forward.5} parent=0 // pred_check_branch
    %19 = sbr.rel (0) target = $region21
  $region20: #{traj_model_forward.5} parent=0 // pred_region
    _
  $region21: #{traj_model_forward.5} parent=0 // pred_fallthru
    _
  %v21 = vld [vmem:[%s0] sm:$0xff]
  %v22 = vld [vmem:[%s0 + $0x8] sm:$0xff]
  %v23 = vld [vmem:[%s0 + $0x10] sm:$0xff]
  %v24 = vld [vmem:[%s0 + $0x18] sm:$0xff]
  %v25 = vld [vmem:[%s4] sm:$0xff]
  %v26 = vld [vmem:[%s4 + $0x8] sm:$0xff]
  %v27 = vld [vmem:[%s4 + $0x10] sm:$0xff]
  %v28 = vld [vmem:[%s4 + $0x18] sm:$0xff]
  %v29 = vld [vmem:[%s4 + $0x20] sm:$0xff]
  %v30 = vld [vmem:[%s4 + $0x28] sm:$0xff]
  %v31 = vld [vmem:[%s4 + $0x30] sm:$0xff]
  %v32 = vld [vmem:[%s4 + $0x38] sm:$0xff]
  %v33 = vld [vmem:[%s4 + $0x40] sm:$0xff]
  %v34 = vld [vmem:[%s4 + $0x48] sm:$0xff]
  %v35 = vld [vmem:[%s4 + $0x50] sm:$0xff]
  %v36 = vld [vmem:[%s4 + $0x58] sm:$0xff]
  %v37 = vld [vmem:[%s4 + $0x60] sm:$0xff]
  %v38 = vld [vmem:[%s4 + $0x68] sm:$0xff]
  %v39 = vld [vmem:[%s4 + $0x70] sm:$0xff]
  %v40 = vld [vmem:[%s4 + $0x78] sm:$0xff]
  %v41 = vld [vmem:[%s4 + $0x80] sm:$0xff]
  %v42 = vld [vmem:[%s4 + $0x88] sm:$0xff]
  %v43 = vld [vmem:[%s4 + $0x90] sm:$0xff]
  %v44 = vld [vmem:[%s4 + $0x98] sm:$0xff]
  %v45 = vld [vmem:[%s4 + $0xa0] sm:$0xff]
  %v46 = vld [vmem:[%s4 + $0xa8] sm:$0xff]
  %v47 = vld [vmem:[%s4 + $0xb0] sm:$0xff]
  %v48 = vld [vmem:[%s4 + $0xb8] sm:$0xff]
  %v49 = vld [vmem:[%s4 + $0xc0] sm:$0xff]
  %v50 = vld [vmem:[%s4 + $0xc8] sm:$0xff]
  %v51 = vld [vmem:[%s4 + $0xd0] sm:$0xff]
  %v52 = vld [vmem:[%s4 + $0xd8] sm:$0xff]
  %v53 = vld [vmem:[%s4 + $0xe0] sm:$0xff]
  %v54 = vld [vmem:[%s4 + $0xe8] sm:$0xff]
  %v55 = vld [vmem:[%s4 + $0xf0] sm:$0xff]
  %v56 = vld [vmem:[%s4 + $0xf8] sm:$0xff]
  %v57 = vld [vmem:[%s4 + $0x100] sm:$0xff]
  %v58 = vld [vmem:[%s4 + $0x108] sm:$0xff]
  %v59 = vld [vmem:[%s4 + $0x110] sm:$0xff]
  %v60 = vld [vmem:[%s4 + $0x118] sm:$0xff]
  %v61 = vld [vmem:[%s4 + $0x120] sm:$0xff]
  %v62 = vld [vmem:[%s4 + $0x128] sm:$0xff]
  %v63 = vld [vmem:[%s4 + $0x130] sm:$0xff]
  %v64 = vld [vmem:[%s4 + $0x138] sm:$0xff]
  %v65 = vld [vmem:[%s4 + $0x140] sm:$0xff]
  %v66 = vld [vmem:[%s4 + $0x148] sm:$0xff]
  %v67 = vld [vmem:[%s4 + $0x150] sm:$0xff]
  %v68 = vld [vmem:[%s4 + $0x158] sm:$0xff]
  %v69 = vld [vmem:[%s4 + $0x160] sm:$0xff]
  %v70 = vld [vmem:[%s4 + $0x168] sm:$0xff]
  %v71 = vld [vmem:[%s4 + $0x170] sm:$0xff]
  %v72 = vld [vmem:[%s4 + $0x178] sm:$0xff]
  %v73 = vld [vmem:[%s4 + $0x180] sm:$0xff]
  %v74 = vld [vmem:[%s4 + $0x188] sm:$0xff]
  %v75 = vld [vmem:[%s4 + $0x190] sm:$0xff]
  %v76 = vld [vmem:[%s4 + $0x198] sm:$0xff]
  %v77 = vld [vmem:[%s4 + $0x1a0] sm:$0xff]
  %v78 = vld [vmem:[%s4 + $0x1a8] sm:$0xff]
  %v79 = vld [vmem:[%s4 + $0x1b0] sm:$0xff]
  %v80 = vld [vmem:[%s4 + $0x1b8] sm:$0xff]
  %v81 = vld [vmem:[%s4 + $0x1c0] sm:$0xff]
  %v82 = vld [vmem:[%s4 + $0x1c8] sm:$0xff]
  %v83 = vld [vmem:[%s4 + $0x1d0] sm:$0xff]
  %v84 = vld [vmem:[%s4 + $0x1d8] sm:$0xff]
  %v85 = vld [vmem:[%s4 + $0x1e0] sm:$0xff]
  %v86 = vld [vmem:[%s4 + $0x1e8] sm:$0xff]
  %v87 = vld [vmem:[%s4 + $0x1f0] sm:$0xff]
  %v88 = vld [vmem:[%s4 + $0x1f8] sm:$0xff]
  %v89 = vld [vmem:[%s4 + $0x200] sm:$0xff]
  %v90 = vld [vmem:[%s4 + $0x208] sm:$0xff]
  %v91 = vld [vmem:[%s4 + $0x210] sm:$0xff]
  %v92 = vld [vmem:[%s4 + $0x218] sm:$0xff]
  %v93 = vld [vmem:[%s4 + $0x220] sm:$0xff]
  %v94 = vld [vmem:[%s4 + $0x228] sm:$0xff]
  %v95 = vld [vmem:[%s4 + $0x230] sm:$0xff]
  %v96 = vld [vmem:[%s4 + $0x238] sm:$0xff]
  %v101 = vunpack.c.l.b16 %v21
  %v102 = vunpack.c.h.b16 %v21
  %v103 = vunpack.c.l.b16 %v22
  %v104 = vunpack.c.h.b16 %v22
  %v105 = vunpack.c.l.b16 %v23
  %v106 = vunpack.c.h.b16 %v23
  %v107 = vunpack.c.l.b16 %v24
  %v108 = vunpack.c.h.b16 %v24
  %v109 = vpack.c.b16 %v103, %v101
  %v110 = vpack.c.b16 %v104, %v102
  %v111 = vpack.c.b16 %v107, %v105
  %v112 = vpack.c.b16 %v108, %v106
  %v187 = vunpack.c.l.b16 %v25
  %v188 = vunpack.c.h.b16 %v25
  %v189 = vunpack.c.l.b16 %v26
  %v190 = vunpack.c.h.b16 %v26
  %v191 = vunpack.c.l.b16 %v27
  %v192 = vunpack.c.h.b16 %v27
  %v193 = vunpack.c.l.b16 %v28
  %v194 = vunpack.c.h.b16 %v28
  %v195 = vunpack.c.l.b16 %v29
  %v196 = vunpack.c.h.b16 %v29
  %v197 = vunpack.c.l.b16 %v30
  %v198 = vunpack.c.h.b16 %v30
  %v199 = vunpack.c.l.b16 %v31
  %v200 = vunpack.c.h.b16 %v31
  %v201 = vunpack.c.l.b16 %v32
  %v202 = vunpack.c.h.b16 %v32
  %v203 = vunpack.c.l.b16 %v33
  %v204 = vunpack.c.h.b16 %v33
  %v205 = vunpack.c.l.b16 %v34
  %v206 = vunpack.c.h.b16 %v34
  %v207 = vunpack.c.l.b16 %v35
  %v208 = vunpack.c.h.b16 %v35
  %v209 = vunpack.c.l.b16 %v36
  %v210 = vunpack.c.h.b16 %v36
  %v211 = vunpack.c.l.b16 %v37
  %v212 = vunpack.c.h.b16 %v37
  %v213 = vunpack.c.l.b16 %v38
  %v214 = vunpack.c.h.b16 %v38
  %v215 = vunpack.c.l.b16 %v39
  %v216 = vunpack.c.h.b16 %v39
  %v217 = vunpack.c.l.b16 %v40
  %v218 = vunpack.c.h.b16 %v40
  %v219 = vunpack.c.l.b16 %v41
  %v220 = vunpack.c.h.b16 %v41
  %v221 = vunpack.c.l.b16 %v42
  %v222 = vunpack.c.h.b16 %v42
  %v223 = vunpack.c.l.b16 %v43
  %v224 = vunpack.c.h.b16 %v43
  %v225 = vunpack.c.l.b16 %v44
  %v226 = vunpack.c.h.b16 %v44
  %v227 = vunpack.c.l.b16 %v45
  %v228 = vunpack.c.h.b16 %v45
  %v229 = vunpack.c.l.b16 %v46
  %v230 = vunpack.c.h.b16 %v46
  %v231 = vunpack.c.l.b16 %v47
  %v232 = vunpack.c.h.b16 %v47
  %v233 = vunpack.c.l.b16 %v48
  %v234 = vunpack.c.h.b16 %v48
  %v235 = vunpack.c.l.b16 %v49
  %v236 = vunpack.c.h.b16 %v49
  %v237 = vunpack.c.l.b16 %v50
  %v238 = vunpack.c.h.b16 %v50
  %v239 = vunpack.c.l.b16 %v51
  %v240 = vunpack.c.h.b16 %v51
  %v241 = vunpack.c.l.b16 %v52
  %v242 = vunpack.c.h.b16 %v52
  %v243 = vunpack.c.l.b16 %v53
  %v244 = vunpack.c.h.b16 %v53
  %v245 = vunpack.c.l.b16 %v54
  %v246 = vunpack.c.h.b16 %v54
  %v247 = vunpack.c.l.b16 %v55
  %v248 = vunpack.c.h.b16 %v55
  %v249 = vunpack.c.l.b16 %v56
  %v250 = vunpack.c.h.b16 %v56
  %v251 = vunpack.c.l.b16 %v57
  %v252 = vunpack.c.h.b16 %v57
  %v253 = vunpack.c.l.b16 %v58
  %v254 = vunpack.c.h.b16 %v58
  %v255 = vunpack.c.l.b16 %v59
  %v256 = vunpack.c.h.b16 %v59
  %v257 = vunpack.c.l.b16 %v60
  %v258 = vunpack.c.h.b16 %v60
  %v259 = vunpack.c.l.b16 %v61
  %v260 = vunpack.c.h.b16 %v61
  %v261 = vunpack.c.l.b16 %v62
  %v262 = vunpack.c.h.b16 %v62
  %v263 = vunpack.c.l.b16 %v63
  %v264 = vunpack.c.h.b16 %v63
  %v265 = vunpack.c.l.b16 %v64
  %v266 = vunpack.c.h.b16 %v64
  %v267 = vunpack.c.l.b16 %v65
  %v268 = vunpack.c.h.b16 %v65
  %v269 = vunpack.c.l.b16 %v66
  %v270 = vunpack.c.h.b16 %v66
  %v271 = vunpack.c.l.b16 %v67
  %v272 = vunpack.c.h.b16 %v67
  %v273 = vunpack.c.l.b16 %v68
  %v274 = vunpack.c.h.b16 %v68
  %v275 = vunpack.c.l.b16 %v69
  %v276 = vunpack.c.h.b16 %v69
  %v277 = vunpack.c.l.b16 %v70
  %v278 = vunpack.c.h.b16 %v70
  %v279 = vunpack.c.l.b16 %v71
  %v280 = vunpack.c.h.b16 %v71
  %v281 = vunpack.c.l.b16 %v72
  %v282 = vunpack.c.h.b16 %v72
  %v283 = vunpack.c.l.b16 %v73
  %v284 = vunpack.c.h.b16 %v73
  %v285 = vunpack.c.l.b16 %v74
  %v286 = vunpack.c.h.b16 %v74
  %v287 = vunpack.c.l.b16 %v75
  %v288 = vunpack.c.h.b16 %v75
  %v289 = vunpack.c.l.b16 %v76
  %v290 = vunpack.c.h.b16 %v76
  %v291 = vunpack.c.l.b16 %v77
  %v292 = vunpack.c.h.b16 %v77
  %v293 = vunpack.c.l.b16 %v78
  %v294 = vunpack.c.h.b16 %v78
  %v295 = vunpack.c.l.b16 %v79
  %v296 = vunpack.c.h.b16 %v79
  %v297 = vunpack.c.l.b16 %v80
  %v298 = vunpack.c.h.b16 %v80
  %v299 = vunpack.c.l.b16 %v81
  %v300 = vunpack.c.h.b16 %v81
  %v301 = vunpack.c.l.b16 %v82
  %v302 = vunpack.c.h.b16 %v82
  %v303 = vunpack.c.l.b16 %v83
  %v304 = vunpack.c.h.b16 %v83
  %v305 = vunpack.c.l.b16 %v84
  %v306 = vunpack.c.h.b16 %v84
  %v307 = vunpack.c.l.b16 %v85
  %v308 = vunpack.c.h.b16 %v85
  %v309 = vunpack.c.l.b16 %v86
  %v310 = vunpack.c.h.b16 %v86
  %v311 = vunpack.c.l.b16 %v87
  %v312 = vunpack.c.h.b16 %v87
  %v313 = vunpack.c.l.b16 %v88
  %v314 = vunpack.c.h.b16 %v88
  %v315 = vunpack.c.l.b16 %v89
  %v316 = vunpack.c.h.b16 %v89
  %v317 = vunpack.c.l.b16 %v90
  %v318 = vunpack.c.h.b16 %v90
  %v319 = vunpack.c.l.b16 %v91
  %v320 = vunpack.c.h.b16 %v91
  %v321 = vunpack.c.l.b16 %v92
  %v322 = vunpack.c.h.b16 %v92
  %v323 = vunpack.c.l.b16 %v93
  %v324 = vunpack.c.h.b16 %v93
  %v325 = vunpack.c.l.b16 %v94
  %v326 = vunpack.c.h.b16 %v94
  %v327 = vunpack.c.l.b16 %v95
  %v328 = vunpack.c.h.b16 %v95
  %v329 = vunpack.c.l.b16 %v96
  %v330 = vunpack.c.h.b16 %v96
  %v331 = vpack.c.b16 %v195, %v187
  %v332 = vpack.c.b16 %v196, %v188
  %v333 = vpack.c.b16 %v197, %v189
  %v334 = vpack.c.b16 %v198, %v190
  %v335 = vpack.c.b16 %v199, %v191
  %v336 = vpack.c.b16 %v200, %v192
  %v337 = vpack.c.b16 %v201, %v193
  %v338 = vpack.c.b16 %v202, %v194
  %v339 = vpack.c.b16 %v211, %v203
  %v340 = vpack.c.b16 %v212, %v204
  %v341 = vpack.c.b16 %v213, %v205
  %v342 = vpack.c.b16 %v214, %v206
  %v343 = vpack.c.b16 %v215, %v207
  %v344 = vpack.c.b16 %v216, %v208
  %v345 = vpack.c.b16 %v217, %v209
  %v346 = vpack.c.b16 %v218, %v210
  %v347 = vpack.c.b16 %v227, %v219
  %v348 = vpack.c.b16 %v228, %v220
  %v349 = vpack.c.b16 %v229, %v221
  %v350 = vpack.c.b16 %v230, %v222
  %v351 = vpack.c.b16 %v231, %v223
  %v352 = vpack.c.b16 %v232, %v224
  %v353 = vpack.c.b16 %v233, %v225
  %v354 = vpack.c.b16 %v234, %v226
  %v355 = vpack.c.b16 %v243, %v235
  %v356 = vpack.c.b16 %v244, %v236
  %v357 = vpack.c.b16 %v245, %v237
  %v358 = vpack.c.b16 %v246, %v238
  %v359 = vpack.c.b16 %v247, %v239
  %v360 = vpack.c.b16 %v248, %v240
  %v361 = vpack.c.b16 %v249, %v241
  %v362 = vpack.c.b16 %v250, %v242
  %v363 = vpack.c.b16 %v259, %v251
  %v364 = vpack.c.b16 %v260, %v252
  %v365 = vpack.c.b16 %v261, %v253
  %v366 = vpack.c.b16 %v262, %v254
  %v367 = vpack.c.b16 %v263, %v255
  %v368 = vpack.c.b16 %v264, %v256
  %v369 = vpack.c.b16 %v265, %v257
  %v370 = vpack.c.b16 %v266, %v258
  %v371 = vpack.c.b16 %v275, %v267
  %v372 = vpack.c.b16 %v276, %v268
  %v373 = vpack.c.b16 %v277, %v269
  %v374 = vpack.c.b16 %v278, %v270
  %v375 = vpack.c.b16 %v279, %v271
  %v376 = vpack.c.b16 %v280, %v272
  %v377 = vpack.c.b16 %v281, %v273
  %v378 = vpack.c.b16 %v282, %v274
  %v379 = vpack.c.b16 %v291, %v283
  %v380 = vpack.c.b16 %v292, %v284
  %v381 = vpack.c.b16 %v293, %v285
  %v382 = vpack.c.b16 %v294, %v286
  %v383 = vpack.c.b16 %v295, %v287
  %v384 = vpack.c.b16 %v296, %v288
  %v385 = vpack.c.b16 %v297, %v289
  %v386 = vpack.c.b16 %v298, %v290
  %v387 = vpack.c.b16 %v307, %v299
  %v388 = vpack.c.b16 %v308, %v300
  %v389 = vpack.c.b16 %v309, %v301
  %v390 = vpack.c.b16 %v310, %v302
  %v391 = vpack.c.b16 %v311, %v303
  %v392 = vpack.c.b16 %v312, %v304
  %v393 = vpack.c.b16 %v313, %v305
  %v394 = vpack.c.b16 %v314, %v306
  %v395 = vpack.c.b16 %v323, %v315
  %v396 = vpack.c.b16 %v324, %v316
  %v397 = vpack.c.b16 %v325, %v317
  %v398 = vpack.c.b16 %v326, %v318
  %v399 = vpack.c.b16 %v327, %v319
  %v400 = vpack.c.b16 %v328, %v320
  %v401 = vpack.c.b16 %v329, %v321
  %v402 = vpack.c.b16 %v330, %v322
  %vm475 = vcmask 130048
  %v477 = vsel %vm475, %v110, 0
  %v480 = vsel %vm475, %v112, 0
  %482 = vmatpush.bf16.msra.mxu0 %v387
  %483 = vmatpush.bf16.msra.mxu0 %v379
  %484 = vmatpush.bf16.msra.mxu0 %v371
  %485 = vmatpush.bf16.msra.mxu0 %v363
  %486 = vmatpush.bf16.msra.mxu0 %v355
  %487 = vmatpush.bf16.msra.mxu0 %v347
  %488 = vmatpush.bf16.msra.mxu0 %v339
  %489 = vmatpush.bf16.msra.mxu0 %v331
  %490 = vmatmul.bf16.gmra.mxu0 %v109
  %v491 = vpop.f32.mrf.mxu0
  %v492 = vadd.f32 0.0, %v491
  %v493 = vpop.f32.mrf.mxu0
  %v494 = vadd.f32 0.0, %v493
  %495 = vmatmul.bf16.gmra.mxu0 %v111
  %v496 = vpop.f32.mrf.mxu0
  %v497 = vadd.f32 0.0, %v496
  %v498 = vpop.f32.mrf.mxu0
  %v499 = vadd.f32 0.0, %v498
  %500 = vdwg.mxu0
  %501 = vmatpush.bf16.msra.mxu0 0
  %502 = vmatpush.bf16.msra.mxu0 0
  %503 = vmatpush.bf16.msra.mxu0 0
  %504 = vmatpush.bf16.msra.mxu0 0
  %505 = vmatpush.bf16.msra.mxu0 0
  %506 = vmatpush.bf16.msra.mxu0 0
  %507 = vmatpush.bf16.msra.mxu0 0
  %508 = vmatpush.bf16.msra.mxu0 %v395
  %509 = vmatmul.bf16.gmra.mxu0 %v477
  %v510 = vpop.f32.mrf.mxu0
  %v511 = vadd.f32 %v492, %v510
  %v512 = vpop.f32.mrf.mxu0
  %v513 = vadd.f32 %v494, %v512
  %514 = vmatmul.bf16.gmra.mxu0 %v480
  %v515 = vpop.f32.mrf.mxu0
  %v516 = vadd.f32 %v497, %v515
  %v517 = vpop.f32.mrf.mxu0
  %v518 = vadd.f32 %v499, %v517
  %519 = vdwg.mxu0
  %520 = vmatpush.bf16.msra.mxu0 %v388
  %521 = vmatpush.bf16.msra.mxu0 %v380
  %522 = vmatpush.bf16.msra.mxu0 %v372
  %523 = vmatpush.bf16.msra.mxu0 %v364
  %524 = vmatpush.bf16.msra.mxu0 %v356
  %525 = vmatpush.bf16.msra.mxu0 %v348
  %526 = vmatpush.bf16.msra.mxu0 %v340
  %527 = vmatpush.bf16.msra.mxu0 %v332
  %528 = vmatmul.bf16.gmra.mxu0 %v109
  %v529 = vpop.f32.mrf.mxu0
  %v530 = vadd.f32 0.0, %v529
  %v531 = vpop.f32.mrf.mxu0
  %v532 = vadd.f32 0.0, %v531
  %533 = vmatmul.bf16.gmra.mxu0 %v111
  %v534 = vpop.f32.mrf.mxu0
  %v535 = vadd.f32 0.0, %v534
  %v536 = vpop.f32.mrf.mxu0
  %v537 = vadd.f32 0.0, %v536
  %538 = vdwg.mxu0
  %539 = vmatpush.bf16.msra.mxu0 0
  %540 = vmatpush.bf16.msra.mxu0 0
  %541 = vmatpush.bf16.msra.mxu0 0
  %542 = vmatpush.bf16.msra.mxu0 0
  %543 = vmatpush.bf16.msra.mxu0 0
  %544 = vmatpush.bf16.msra.mxu0 0
  %545 = vmatpush.bf16.msra.mxu0 0
  %546 = vmatpush.bf16.msra.mxu0 %v396
  %547 = vmatmul.bf16.gmra.mxu0 %v477
  %v548 = vpop.f32.mrf.mxu0
  %v549 = vadd.f32 %v530, %v548
  %v550 = vpop.f32.mrf.mxu0
  %v551 = vadd.f32 %v532, %v550
  %552 = vmatmul.bf16.gmra.mxu0 %v480
  %v553 = vpop.f32.mrf.mxu0
  %v554 = vadd.f32 %v535, %v553
  %v555 = vpop.f32.mrf.mxu0
  %v556 = vadd.f32 %v537, %v555
  %557 = vdwg.mxu0
  %558 = vmatpush.bf16.msra.mxu0 %v389
  %559 = vmatpush.bf16.msra.mxu0 %v381
  %560 = vmatpush.bf16.msra.mxu0 %v373
  %561 = vmatpush.bf16.msra.mxu0 %v365
  %562 = vmatpush.bf16.msra.mxu0 %v357
  %563 = vmatpush.bf16.msra.mxu0 %v349
  %564 = vmatpush.bf16.msra.mxu0 %v341
  %565 = vmatpush.bf16.msra.mxu0 %v333
  %566 = vmatmul.bf16.gmra.mxu0 %v109
  %v567 = vpop.f32.mrf.mxu0
  %v568 = vadd.f32 0.0, %v567
  %v569 = vpop.f32.mrf.mxu0
  %v570 = vadd.f32 0.0, %v569
  %571 = vmatmul.bf16.gmra.mxu0 %v111
  %v572 = vpop.f32.mrf.mxu0
  %v573 = vadd.f32 0.0, %v572
  %v574 = vpop.f32.mrf.mxu0
  %v575 = vadd.f32 0.0, %v574
  %576 = vdwg.mxu0
  %577 = vmatpush.bf16.msra.mxu0 0
  %578 = vmatpush.bf16.msra.mxu0 0
  %579 = vmatpush.bf16.msra.mxu0 0
  %580 = vmatpush.bf16.msra.mxu0 0
  %581 = vmatpush.bf16.msra.mxu0 0
  %582 = vmatpush.bf16.msra.mxu0 0
  %583 = vmatpush.bf16.msra.mxu0 0
  %584 = vmatpush.bf16.msra.mxu0 %v397
  %585 = vmatmul.bf16.gmra.mxu0 %v477
  %v586 = vpop.f32.mrf.mxu0
  %v587 = vadd.f32 %v568, %v586
  %v588 = vpop.f32.mrf.mxu0
  %v589 = vadd.f32 %v570, %v588
  %590 = vmatmul.bf16.gmra.mxu0 %v480
  %v591 = vpop.f32.mrf.mxu0
  %v592 = vadd.f32 %v573, %v591
  %v593 = vpop.f32.mrf.mxu0
  %v594 = vadd.f32 %v575, %v593
  %595 = vdwg.mxu0
  %596 = vmatpush.bf16.msra.mxu0 %v390
  %597 = vmatpush.bf16.msra.mxu0 %v382
  %598 = vmatpush.bf16.msra.mxu0 %v374
  %599 = vmatpush.bf16.msra.mxu0 %v366
  %600 = vmatpush.bf16.msra.mxu0 %v358
  %601 = vmatpush.bf16.msra.mxu0 %v350
  %602 = vmatpush.bf16.msra.mxu0 %v342
  %603 = vmatpush.bf16.msra.mxu0 %v334
  %604 = vmatmul.bf16.gmra.mxu0 %v109
  %v605 = vpop.f32.mrf.mxu0
  %v606 = vadd.f32 0.0, %v605
  %v607 = vpop.f32.mrf.mxu0
  %v608 = vadd.f32 0.0, %v607
  %609 = vmatmul.bf16.gmra.mxu0 %v111
  %v610 = vpop.f32.mrf.mxu0
  %v611 = vadd.f32 0.0, %v610
  %v612 = vpop.f32.mrf.mxu0
  %v613 = vadd.f32 0.0, %v612
  %614 = vdwg.mxu0
  %615 = vmatpush.bf16.msra.mxu0 0
  %616 = vmatpush.bf16.msra.mxu0 0
  %617 = vmatpush.bf16.msra.mxu0 0
  %618 = vmatpush.bf16.msra.mxu0 0
  %619 = vmatpush.bf16.msra.mxu0 0
  %620 = vmatpush.bf16.msra.mxu0 0
  %621 = vmatpush.bf16.msra.mxu0 0
  %622 = vmatpush.bf16.msra.mxu0 %v398
  %623 = vmatmul.bf16.gmra.mxu0 %v477
  %v624 = vpop.f32.mrf.mxu0
  %v625 = vadd.f32 %v606, %v624
  %v626 = vpop.f32.mrf.mxu0
  %v627 = vadd.f32 %v608, %v626
  %628 = vmatmul.bf16.gmra.mxu0 %v480
  %v629 = vpop.f32.mrf.mxu0
  %v630 = vadd.f32 %v611, %v629
  %v631 = vpop.f32.mrf.mxu0
  %v632 = vadd.f32 %v613, %v631
  %633 = vdwg.mxu0
  %634 = vmatpush.bf16.msra.mxu0 %v391
  %635 = vmatpush.bf16.msra.mxu0 %v383
  %636 = vmatpush.bf16.msra.mxu0 %v375
  %637 = vmatpush.bf16.msra.mxu0 %v367
  %638 = vmatpush.bf16.msra.mxu0 %v359
  %639 = vmatpush.bf16.msra.mxu0 %v351
  %640 = vmatpush.bf16.msra.mxu0 %v343
  %641 = vmatpush.bf16.msra.mxu0 %v335
  %642 = vmatmul.bf16.gmra.mxu0 %v109
  %v643 = vpop.f32.mrf.mxu0
  %v644 = vadd.f32 0.0, %v643
  %v645 = vpop.f32.mrf.mxu0
  %v646 = vadd.f32 0.0, %v645
  %647 = vmatmul.bf16.gmra.mxu0 %v111
  %v648 = vpop.f32.mrf.mxu0
  %v649 = vadd.f32 0.0, %v648
  %v650 = vpop.f32.mrf.mxu0
  %v651 = vadd.f32 0.0, %v650
  %652 = vdwg.mxu0
  %653 = vmatpush.bf16.msra.mxu0 0
  %654 = vmatpush.bf16.msra.mxu0 0
  %655 = vmatpush.bf16.msra.mxu0 0
  %656 = vmatpush.bf16.msra.mxu0 0
  %657 = vmatpush.bf16.msra.mxu0 0
  %658 = vmatpush.bf16.msra.mxu0 0
  %659 = vmatpush.bf16.msra.mxu0 0
  %660 = vmatpush.bf16.msra.mxu0 %v399
  %661 = vmatmul.bf16.gmra.mxu0 %v477
  %v662 = vpop.f32.mrf.mxu0
  %v663 = vadd.f32 %v644, %v662
  %v664 = vpop.f32.mrf.mxu0
  %v665 = vadd.f32 %v646, %v664
  %666 = vmatmul.bf16.gmra.mxu0 %v480
  %v667 = vpop.f32.mrf.mxu0
  %v668 = vadd.f32 %v649, %v667
  %v669 = vpop.f32.mrf.mxu0
  %v670 = vadd.f32 %v651, %v669
  %671 = vdwg.mxu0
  %672 = vmatpush.bf16.msra.mxu0 %v392
  %673 = vmatpush.bf16.msra.mxu0 %v384
  %674 = vmatpush.bf16.msra.mxu0 %v376
  %675 = vmatpush.bf16.msra.mxu0 %v368
  %676 = vmatpush.bf16.msra.mxu0 %v360
  %677 = vmatpush.bf16.msra.mxu0 %v352
  %678 = vmatpush.bf16.msra.mxu0 %v344
  %679 = vmatpush.bf16.msra.mxu0 %v336
  %680 = vmatmul.bf16.gmra.mxu0 %v109
  %v681 = vpop.f32.mrf.mxu0
  %v682 = vadd.f32 0.0, %v681
  %v683 = vpop.f32.mrf.mxu0
  %v684 = vadd.f32 0.0, %v683
  %685 = vmatmul.bf16.gmra.mxu0 %v111
  %v686 = vpop.f32.mrf.mxu0
  %v687 = vadd.f32 0.0, %v686
  %v688 = vpop.f32.mrf.mxu0
  %v689 = vadd.f32 0.0, %v688
  %690 = vdwg.mxu0
  %691 = vmatpush.bf16.msra.mxu0 0
  %692 = vmatpush.bf16.msra.mxu0 0
  %693 = vmatpush.bf16.msra.mxu0 0
  %694 = vmatpush.bf16.msra.mxu0 0
  %695 = vmatpush.bf16.msra.mxu0 0
  %696 = vmatpush.bf16.msra.mxu0 0
  %697 = vmatpush.bf16.msra.mxu0 0
  %698 = vmatpush.bf16.msra.mxu0 %v400
  %699 = vmatmul.bf16.gmra.mxu0 %v477
  %v700 = vpop.f32.mrf.mxu0
  %v701 = vadd.f32 %v682, %v700
  %v702 = vpop.f32.mrf.mxu0
  %v703 = vadd.f32 %v684, %v702
  %704 = vmatmul.bf16.gmra.mxu0 %v480
  %v705 = vpop.f32.mrf.mxu0
  %v706 = vadd.f32 %v687, %v705
  %v707 = vpop.f32.mrf.mxu0
  %v708 = vadd.f32 %v689, %v707
  %709 = vdwg.mxu0
  %710 = vmatpush.bf16.msra.mxu0 %v393
  %711 = vmatpush.bf16.msra.mxu0 %v385
  %712 = vmatpush.bf16.msra.mxu0 %v377
  %713 = vmatpush.bf16.msra.mxu0 %v369
  %714 = vmatpush.bf16.msra.mxu0 %v361
  %715 = vmatpush.bf16.msra.mxu0 %v353
  %716 = vmatpush.bf16.msra.mxu0 %v345
  %717 = vmatpush.bf16.msra.mxu0 %v337
  %718 = vmatmul.bf16.gmra.mxu0 %v109
  %v719 = vpop.f32.mrf.mxu0
  %v720 = vadd.f32 0.0, %v719
  %v721 = vpop.f32.mrf.mxu0
  %v722 = vadd.f32 0.0, %v721
  %723 = vmatmul.bf16.gmra.mxu0 %v111
  %v724 = vpop.f32.mrf.mxu0
  %v725 = vadd.f32 0.0, %v724
  %v726 = vpop.f32.mrf.mxu0
  %v727 = vadd.f32 0.0, %v726
  %728 = vdwg.mxu0
  %729 = vmatpush.bf16.msra.mxu0 0
  %730 = vmatpush.bf16.msra.mxu0 0
  %731 = vmatpush.bf16.msra.mxu0 0
  %732 = vmatpush.bf16.msra.mxu0 0
  %733 = vmatpush.bf16.msra.mxu0 0
  %734 = vmatpush.bf16.msra.mxu0 0
  %735 = vmatpush.bf16.msra.mxu0 0
  %736 = vmatpush.bf16.msra.mxu0 %v401
  %737 = vmatmul.bf16.gmra.mxu0 %v477
  %v738 = vpop.f32.mrf.mxu0
  %v739 = vadd.f32 %v720, %v738
  %v740 = vpop.f32.mrf.mxu0
  %v741 = vadd.f32 %v722, %v740
  %742 = vmatmul.bf16.gmra.mxu0 %v480
  %v743 = vpop.f32.mrf.mxu0
  %v744 = vadd.f32 %v725, %v743
  %v745 = vpop.f32.mrf.mxu0
  %v746 = vadd.f32 %v727, %v745
  %747 = vdwg.mxu0
  %748 = vmatpush.bf16.msra.mxu0 %v394
  %749 = vmatpush.bf16.msra.mxu0 %v386
  %750 = vmatpush.bf16.msra.mxu0 %v378
  %751 = vmatpush.bf16.msra.mxu0 %v370
  %752 = vmatpush.bf16.msra.mxu0 %v362
  %753 = vmatpush.bf16.msra.mxu0 %v354
  %754 = vmatpush.bf16.msra.mxu0 %v346
  %755 = vmatpush.bf16.msra.mxu0 %v338
  %756 = vmatmul.bf16.gmra.mxu0 %v109
  %v757 = vpop.f32.mrf.mxu0
  %v758 = vadd.f32 0.0, %v757
  %v759 = vpop.f32.mrf.mxu0
  %v760 = vadd.f32 0.0, %v759
  %761 = vmatmul.bf16.gmra.mxu0 %v111
  %v762 = vpop.f32.mrf.mxu0
  %v763 = vadd.f32 0.0, %v762
  %v764 = vpop.f32.mrf.mxu0
  %v765 = vadd.f32 0.0, %v764
  %766 = vdwg.mxu0
  %767 = vmatpush.bf16.msra.mxu0 0
  %768 = vmatpush.bf16.msra.mxu0 0
  %769 = vmatpush.bf16.msra.mxu0 0
  %770 = vmatpush.bf16.msra.mxu0 0
  %771 = vmatpush.bf16.msra.mxu0 0
  %772 = vmatpush.bf16.msra.mxu0 0
  %773 = vmatpush.bf16.msra.mxu0 0
  %774 = vmatpush.bf16.msra.mxu0 %v402
  %775 = vmatmul.bf16.gmra.mxu0 %v477
  %v776 = vpop.f32.mrf.mxu0
  %v777 = vadd.f32 %v758, %v776
  %v778 = vpop.f32.mrf.mxu0
  %v779 = vadd.f32 %v760, %v778
  %780 = vmatmul.bf16.gmra.mxu0 %v480
  %v781 = vpop.f32.mrf.mxu0
  %v782 = vadd.f32 %v763, %v781
  %v783 = vpop.f32.mrf.mxu0
  %v784 = vadd.f32 %v765, %v783
  %785 = vdwg.mxu0
  %v786 = vld [vmem:[%s1] sm:$0xff]
  %v787 = vld [vmem:[%s1 + $0x8] sm:$0xff]
  %v788 = vld [vmem:[%s1 + $0x10] sm:$0xff]
  %v789 = vld [vmem:[%s1 + $0x18] sm:$0xff]
  %v790 = vld [vmem:[%s2] sm:$0xff]
  %v791 = vld [vmem:[%s2 + $0x8] sm:$0xff]
  %v792 = vld [vmem:[%s2 + $0x10] sm:$0xff]
  %v793 = vld [vmem:[%s2 + $0x18] sm:$0xff]
  %v794 = vld [vmem:[%s2 + $0x20] sm:$0xff]
  %v795 = vld [vmem:[%s2 + $0x28] sm:$0xff]
  %v796 = vld [vmem:[%s2 + $0x30] sm:$0xff]
  %v797 = vld [vmem:[%s2 + $0x38] sm:$0xff]
  %v798 = vld [vmem:[%s2 + $0x40] sm:$0xff]
  %v799 = vld [vmem:[%s2 + $0x48] sm:$0xff]
  %v800 = vld [vmem:[%s2 + $0x50] sm:$0xff]
  %v801 = vld [vmem:[%s2 + $0x58] sm:$0xff]
  %v802 = vld [vmem:[%s2 + $0x60] sm:$0xff]
  %v803 = vld [vmem:[%s2 + $0x68] sm:$0xff]
  %v804 = vld [vmem:[%s2 + $0x70] sm:$0xff]
  %v805 = vld [vmem:[%s2 + $0x78] sm:$0xff]
  %v806 = vld [vmem:[%s2 + $0x80] sm:$0xff]
  %v807 = vld [vmem:[%s2 + $0x88] sm:$0xff]
  %v808 = vld [vmem:[%s2 + $0x90] sm:$0xff]
  %v809 = vld [vmem:[%s2 + $0x98] sm:$0xff]
  %v810 = vld [vmem:[%s2 + $0xa0] sm:$0xff]
  %v811 = vld [vmem:[%s2 + $0xa8] sm:$0xff]
  %v812 = vld [vmem:[%s2 + $0xb0] sm:$0xff]
  %v813 = vld [vmem:[%s2 + $0xb8] sm:$0xff]
  %v814 = vld [vmem:[%s2 + $0xc0] sm:$0xff]
  %v815 = vld [vmem:[%s2 + $0xc8] sm:$0xff]
  %v816 = vld [vmem:[%s2 + $0xd0] sm:$0xff]
  %v817 = vld [vmem:[%s2 + $0xd8] sm:$0xff]
  %v818 = vld [vmem:[%s2 + $0xe0] sm:$0xff]
  %v819 = vld [vmem:[%s2 + $0xe8] sm:$0xff]
  %v820 = vld [vmem:[%s2 + $0xf0] sm:$0xff]
  %v821 = vld [vmem:[%s2 + $0xf8] sm:$0xff]
  %v822 = vld [vmem:[%s2 + $0x100] sm:$0xff]
  %v823 = vld [vmem:[%s2 + $0x108] sm:$0xff]
  %v824 = vld [vmem:[%s2 + $0x110] sm:$0xff]
  %v825 = vld [vmem:[%s2 + $0x118] sm:$0xff]
  %v826 = vld [vmem:[%s2 + $0x120] sm:$0xff]
  %v827 = vld [vmem:[%s2 + $0x128] sm:$0xff]
  %v828 = vld [vmem:[%s2 + $0x130] sm:$0xff]
  %v829 = vld [vmem:[%s2 + $0x138] sm:$0xff]
  %v830 = vld [vmem:[%s2 + $0x140] sm:$0xff]
  %v831 = vld [vmem:[%s2 + $0x148] sm:$0xff]
  %v832 = vld [vmem:[%s2 + $0x150] sm:$0xff]
  %v833 = vld [vmem:[%s2 + $0x158] sm:$0xff]
  %v834 = vld [vmem:[%s2 + $0x160] sm:$0xff]
  %v835 = vld [vmem:[%s2 + $0x168] sm:$0xff]
  %v836 = vld [vmem:[%s2 + $0x170] sm:$0xff]
  %v837 = vld [vmem:[%s2 + $0x178] sm:$0xff]
  %v838 = vld [vmem:[%s2 + $0x180] sm:$0xff]
  %v839 = vld [vmem:[%s2 + $0x188] sm:$0xff]
  %v840 = vld [vmem:[%s2 + $0x190] sm:$0xff]
  %v841 = vld [vmem:[%s2 + $0x198] sm:$0xff]
  %v842 = vld [vmem:[%s2 + $0x1a0] sm:$0xff]
  %v843 = vld [vmem:[%s2 + $0x1a8] sm:$0xff]
  %v844 = vld [vmem:[%s2 + $0x1b0] sm:$0xff]
  %v845 = vld [vmem:[%s2 + $0x1b8] sm:$0xff]
  %v846 = vld [vmem:[%s2 + $0x1c0] sm:$0xff]
  %v847 = vld [vmem:[%s2 + $0x1c8] sm:$0xff]
  %v848 = vld [vmem:[%s2 + $0x1d0] sm:$0xff]
  %v849 = vld [vmem:[%s2 + $0x1d8] sm:$0xff]
  %v850 = vld [vmem:[%s2 + $0x1e0] sm:$0xff]
  %v851 = vld [vmem:[%s2 + $0x1e8] sm:$0xff]
  %v852 = vld [vmem:[%s2 + $0x1f0] sm:$0xff]
  %v853 = vld [vmem:[%s2 + $0x1f8] sm:$0xff]
  %v854 = vld [vmem:[%s2 + $0x200] sm:$0xff]
  %v855 = vld [vmem:[%s2 + $0x208] sm:$0xff]
  %v856 = vld [vmem:[%s2 + $0x210] sm:$0xff]
  %v857 = vld [vmem:[%s2 + $0x218] sm:$0xff]
  %v858 = vld [vmem:[%s2 + $0x220] sm:$0xff]
  %v859 = vld [vmem:[%s2 + $0x228] sm:$0xff]
  %v860 = vld [vmem:[%s2 + $0x230] sm:$0xff]
  %v861 = vld [vmem:[%s2 + $0x238] sm:$0xff]
  %v862 = vld [vmem:[%s2 + $0x240] sm:$0xff]
  %v863 = vld [vmem:[%s2 + $0x248] sm:$0xff]
  %v864 = vld [vmem:[%s2 + $0x250] sm:$0xff]
  %v865 = vld [vmem:[%s2 + $0x258] sm:$0xff]
  %v866 = vld [vmem:[%s2 + $0x260] sm:$0xff]
  %v867 = vld [vmem:[%s2 + $0x268] sm:$0xff]
  %v868 = vld [vmem:[%s2 + $0x270] sm:$0xff]
  %v869 = vld [vmem:[%s2 + $0x278] sm:$0xff]
  %v870 = vld [vmem:[%s2 + $0x280] sm:$0xff]
  %v871 = vld [vmem:[%s2 + $0x288] sm:$0xff]
  %v872 = vld [vmem:[%s2 + $0x290] sm:$0xff]
  %v873 = vld [vmem:[%s2 + $0x298] sm:$0xff]
  %v874 = vld [vmem:[%s2 + $0x2a0] sm:$0xff]
  %v875 = vld [vmem:[%s2 + $0x2a8] sm:$0xff]
  %v876 = vld [vmem:[%s2 + $0x2b0] sm:$0xff]
  %v877 = vld [vmem:[%s2 + $0x2b8] sm:$0xff]
  %v878 = vld [vmem:[%s2 + $0x2c0] sm:$0xff]
  %v879 = vld [vmem:[%s2 + $0x2c8] sm:$0xff]
  %v880 = vld [vmem:[%s2 + $0x2d0] sm:$0xff]
  %v881 = vld [vmem:[%s2 + $0x2d8] sm:$0xff]
  %v882 = vld [vmem:[%s2 + $0x2e0] sm:$0xff]
  %v883 = vld [vmem:[%s2 + $0x2e8] sm:$0xff]
  %v884 = vld [vmem:[%s2 + $0x2f0] sm:$0xff]
  %v885 = vld [vmem:[%s2 + $0x2f8] sm:$0xff]
  %v886 = vld [vmem:[%s2 + $0x300] sm:$0xff]
  %v887 = vld [vmem:[%s2 + $0x308] sm:$0xff]
  %v888 = vld [vmem:[%s2 + $0x310] sm:$0xff]
  %v889 = vld [vmem:[%s2 + $0x318] sm:$0xff]
  %v890 = vld [vmem:[%s2 + $0x320] sm:$0xff]
  %v891 = vld [vmem:[%s2 + $0x328] sm:$0xff]
  %v892 = vld [vmem:[%s2 + $0x330] sm:$0xff]
  %v893 = vld [vmem:[%s2 + $0x338] sm:$0xff]
  %v894 = vld [vmem:[%s2 + $0x340] sm:$0xff]
  %v895 = vld [vmem:[%s2 + $0x348] sm:$0xff]
  %v896 = vld [vmem:[%s2 + $0x350] sm:$0xff]
  %v897 = vld [vmem:[%s2 + $0x358] sm:$0xff]
  %v898 = vld [vmem:[%s2 + $0x360] sm:$0xff]
  %v899 = vld [vmem:[%s2 + $0x368] sm:$0xff]
  %v900 = vld [vmem:[%s2 + $0x370] sm:$0xff]
  %v901 = vld [vmem:[%s2 + $0x378] sm:$0xff]
  %v902 = vld [vmem:[%s2 + $0x380] sm:$0xff]
  %v903 = vld [vmem:[%s2 + $0x388] sm:$0xff]
  %v904 = vld [vmem:[%s2 + $0x390] sm:$0xff]
  %v905 = vld [vmem:[%s2 + $0x398] sm:$0xff]
  %v906 = vld [vmem:[%s2 + $0x3a0] sm:$0xff]
  %v907 = vld [vmem:[%s2 + $0x3a8] sm:$0xff]
  %v908 = vld [vmem:[%s2 + $0x3b0] sm:$0xff]
  %v909 = vld [vmem:[%s2 + $0x3b8] sm:$0xff]
  %v910 = vld [vmem:[%s2 + $0x3c0] sm:$0xff]
  %v911 = vld [vmem:[%s2 + $0x3c8] sm:$0xff]
  %v912 = vld [vmem:[%s2 + $0x3d0] sm:$0xff]
  %v913 = vld [vmem:[%s2 + $0x3d8] sm:$0xff]
  %v914 = vld [vmem:[%s2 + $0x3e0] sm:$0xff]
  %v915 = vld [vmem:[%s2 + $0x3e8] sm:$0xff]
  %v916 = vld [vmem:[%s2 + $0x3f0] sm:$0xff]
  %v917 = vld [vmem:[%s2 + $0x3f8] sm:$0xff]
  %v918 = vld [vmem:[%s2 + $0x400] sm:$0xff]
  %v919 = vld [vmem:[%s2 + $0x408] sm:$0xff]
  %v920 = vld [vmem:[%s2 + $0x410] sm:$0xff]
  %v921 = vld [vmem:[%s2 + $0x418] sm:$0xff]
  %v922 = vld [vmem:[%s2 + $0x420] sm:$0xff]
  %v923 = vld [vmem:[%s2 + $0x428] sm:$0xff]
  %v924 = vld [vmem:[%s2 + $0x430] sm:$0xff]
  %v925 = vld [vmem:[%s2 + $0x438] sm:$0xff]
  %v926 = vld [vmem:[%s2 + $0x440] sm:$0xff]
  %v927 = vld [vmem:[%s2 + $0x448] sm:$0xff]
  %v928 = vld [vmem:[%s2 + $0x450] sm:$0xff]
  %v929 = vld [vmem:[%s2 + $0x458] sm:$0xff]
  %v930 = vld [vmem:[%s2 + $0x460] sm:$0xff]
  %v931 = vld [vmem:[%s2 + $0x468] sm:$0xff]
  %v932 = vld [vmem:[%s2 + $0x470] sm:$0xff]
  %v933 = vld [vmem:[%s2 + $0x478] sm:$0xff]
  %v934 = vld [vmem:[%s2 + $0x480] sm:$0xff]
  %v935 = vld [vmem:[%s2 + $0x488] sm:$0xff]
  %v936 = vld [vmem:[%s2 + $0x490] sm:$0xff]
  %v937 = vld [vmem:[%s2 + $0x498] sm:$0xff]
  %v938 = vld [vmem:[%s2 + $0x4a0] sm:$0xff]
  %v939 = vld [vmem:[%s2 + $0x4a8] sm:$0xff]
  %v940 = vld [vmem:[%s2 + $0x4b0] sm:$0xff]
  %v941 = vld [vmem:[%s2 + $0x4b8] sm:$0xff]
  %v942 = vld [vmem:[%s2 + $0x4c0] sm:$0xff]
  %v943 = vld [vmem:[%s2 + $0x4c8] sm:$0xff]
  %v944 = vld [vmem:[%s2 + $0x4d0] sm:$0xff]
  %v945 = vld [vmem:[%s2 + $0x4d8] sm:$0xff]
  %v946 = vld [vmem:[%s2 + $0x4e0] sm:$0xff]
  %v947 = vld [vmem:[%s2 + $0x4e8] sm:$0xff]
  %v948 = vld [vmem:[%s2 + $0x4f0] sm:$0xff]
  %v949 = vld [vmem:[%s2 + $0x4f8] sm:$0xff]
  %v950 = vld [vmem:[%s2 + $0x500] sm:$0xff]
  %v951 = vld [vmem:[%s2 + $0x508] sm:$0xff]
  %v952 = vld [vmem:[%s2 + $0x510] sm:$0xff]
  %v953 = vld [vmem:[%s2 + $0x518] sm:$0xff]
  %v954 = vld [vmem:[%s2 + $0x520] sm:$0xff]
  %v955 = vld [vmem:[%s2 + $0x528] sm:$0xff]
  %v956 = vld [vmem:[%s2 + $0x530] sm:$0xff]
  %v957 = vld [vmem:[%s2 + $0x538] sm:$0xff]
  %v958 = vld [vmem:[%s2 + $0x540] sm:$0xff]
  %v959 = vld [vmem:[%s2 + $0x548] sm:$0xff]
  %v960 = vld [vmem:[%s2 + $0x550] sm:$0xff]
  %v961 = vld [vmem:[%s2 + $0x558] sm:$0xff]
  %v962 = vld [vmem:[%s2 + $0x560] sm:$0xff]
  %v963 = vld [vmem:[%s2 + $0x568] sm:$0xff]
  %v964 = vld [vmem:[%s2 + $0x570] sm:$0xff]
  %v965 = vld [vmem:[%s2 + $0x578] sm:$0xff]
  %v966 = vld [vmem:[%s2 + $0x580] sm:$0xff]
  %v967 = vld [vmem:[%s2 + $0x588] sm:$0xff]
  %v968 = vld [vmem:[%s2 + $0x590] sm:$0xff]
  %v969 = vld [vmem:[%s2 + $0x598] sm:$0xff]
  %v970 = vld [vmem:[%s2 + $0x5a0] sm:$0xff]
  %v971 = vld [vmem:[%s2 + $0x5a8] sm:$0xff]
  %v972 = vld [vmem:[%s2 + $0x5b0] sm:$0xff]
  %v973 = vld [vmem:[%s2 + $0x5b8] sm:$0xff]
  %v974 = vld [vmem:[%s2 + $0x5c0] sm:$0xff]
  %v975 = vld [vmem:[%s2 + $0x5c8] sm:$0xff]
  %v976 = vld [vmem:[%s2 + $0x5d0] sm:$0xff]
  %v977 = vld [vmem:[%s2 + $0x5d8] sm:$0xff]
  %v978 = vld [vmem:[%s2 + $0x5e0] sm:$0xff]
  %v979 = vld [vmem:[%s2 + $0x5e8] sm:$0xff]
  %v980 = vld [vmem:[%s2 + $0x5f0] sm:$0xff]
  %v981 = vld [vmem:[%s2 + $0x5f8] sm:$0xff]
  %v982 = vld [vmem:[%s2 + $0x600] sm:$0xff]
  %v983 = vld [vmem:[%s2 + $0x608] sm:$0xff]
  %v984 = vld [vmem:[%s2 + $0x610] sm:$0xff]
  %v985 = vld [vmem:[%s2 + $0x618] sm:$0xff]
  %v986 = vld [vmem:[%s2 + $0x620] sm:$0xff]
  %v987 = vld [vmem:[%s2 + $0x628] sm:$0xff]
  %v988 = vld [vmem:[%s2 + $0x630] sm:$0xff]
  %v989 = vld [vmem:[%s2 + $0x638] sm:$0xff]
  %v990 = vld [vmem:[%s2 + $0x640] sm:$0xff]
  %v991 = vld [vmem:[%s2 + $0x648] sm:$0xff]
  %v992 = vld [vmem:[%s2 + $0x650] sm:$0xff]
  %v993 = vld [vmem:[%s2 + $0x658] sm:$0xff]
  %v994 = vld [vmem:[%s2 + $0x660] sm:$0xff]
  %v995 = vld [vmem:[%s2 + $0x668] sm:$0xff]
  %v996 = vld [vmem:[%s2 + $0x670] sm:$0xff]
  %v997 = vld [vmem:[%s2 + $0x678] sm:$0xff]
  %v998 = vld [vmem:[%s2 + $0x680] sm:$0xff]
  %v999 = vld [vmem:[%s2 + $0x688] sm:$0xff]
  %v1000 = vld [vmem:[%s2 + $0x690] sm:$0xff]
  %v1001 = vld [vmem:[%s2 + $0x698] sm:$0xff]
  %v1002 = vld [vmem:[%s2 + $0x6a0] sm:$0xff]
  %v1003 = vld [vmem:[%s2 + $0x6a8] sm:$0xff]
  %v1004 = vld [vmem:[%s2 + $0x6b0] sm:$0xff]
  %v1005 = vld [vmem:[%s2 + $0x6b8] sm:$0xff]
  %v1006 = vld [vmem:[%s2 + $0x6c0] sm:$0xff]
  %v1007 = vld [vmem:[%s2 + $0x6c8] sm:$0xff]
  %v1008 = vld [vmem:[%s2 + $0x6d0] sm:$0xff]
  %v1009 = vld [vmem:[%s2 + $0x6d8] sm:$0xff]
  %v1010 = vld [vmem:[%s2 + $0x6e0] sm:$0xff]
  %v1011 = vld [vmem:[%s2 + $0x6e8] sm:$0xff]
  %v1012 = vld [vmem:[%s2 + $0x6f0] sm:$0xff]
  %v1013 = vld [vmem:[%s2 + $0x6f8] sm:$0xff]
  %v1014 = vld [vmem:[%s2 + $0x700] sm:$0xff]
  %v1015 = vld [vmem:[%s2 + $0x708] sm:$0xff]
  %v1016 = vld [vmem:[%s2 + $0x710] sm:$0xff]
  %v1017 = vld [vmem:[%s2 + $0x718] sm:$0xff]
  %v1018 = vld [vmem:[%s2 + $0x720] sm:$0xff]
  %v1019 = vld [vmem:[%s2 + $0x728] sm:$0xff]
  %v1020 = vld [vmem:[%s2 + $0x730] sm:$0xff]
  %v1021 = vld [vmem:[%s2 + $0x738] sm:$0xff]
  %v1022 = vld [vmem:[%s2 + $0x740] sm:$0xff]
  %v1023 = vld [vmem:[%s2 + $0x748] sm:$0xff]
  %v1024 = vld [vmem:[%s2 + $0x750] sm:$0xff]
  %v1025 = vld [vmem:[%s2 + $0x758] sm:$0xff]
  %v1026 = vld [vmem:[%s2 + $0x760] sm:$0xff]
  %v1027 = vld [vmem:[%s2 + $0x768] sm:$0xff]
  %v1028 = vld [vmem:[%s2 + $0x770] sm:$0xff]
  %v1029 = vld [vmem:[%s2 + $0x778] sm:$0xff]
  %v1030 = vld [vmem:[%s2 + $0x780] sm:$0xff]
  %v1031 = vld [vmem:[%s2 + $0x788] sm:$0xff]
  %v1032 = vld [vmem:[%s2 + $0x790] sm:$0xff]
  %v1033 = vld [vmem:[%s2 + $0x798] sm:$0xff]
  %v1034 = vld [vmem:[%s2 + $0x7a0] sm:$0xff]
  %v1035 = vld [vmem:[%s2 + $0x7a8] sm:$0xff]
  %v1036 = vld [vmem:[%s2 + $0x7b0] sm:$0xff]
  %v1037 = vld [vmem:[%s2 + $0x7b8] sm:$0xff]
  %v1038 = vld [vmem:[%s2 + $0x7c0] sm:$0xff]
  %v1039 = vld [vmem:[%s2 + $0x7c8] sm:$0xff]
  %v1040 = vld [vmem:[%s2 + $0x7d0] sm:$0xff]
  %v1041 = vld [vmem:[%s2 + $0x7d8] sm:$0xff]
  %v1042 = vld [vmem:[%s2 + $0x7e0] sm:$0xff]
  %v1043 = vld [vmem:[%s2 + $0x7e8] sm:$0xff]
  %v1044 = vld [vmem:[%s2 + $0x7f0] sm:$0xff]
  %v1045 = vld [vmem:[%s2 + $0x7f8] sm:$0xff]
  %v1046 = vld [vmem:[%s3] sm:$0xff]
  %v1047 = vld [vmem:[%s3 + $0x8] sm:$0xff]
  %v1048 = vld [vmem:[%s3 + $0x10] sm:$0xff]
  %v1049 = vld [vmem:[%s3 + $0x18] sm:$0xff]
  %v1050 = vld [vmem:[%s3 + $0x20] sm:$0xff]
  %v1051 = vld [vmem:[%s3 + $0x28] sm:$0xff]
  %v1052 = vld [vmem:[%s3 + $0x30] sm:$0xff]
  %v1053 = vld [vmem:[%s3 + $0x38] sm:$0xff]
  %v1054 = vmax.f32 %v511, %v549
  %v1055 = vmax.f32 %v513, %v551
  %v1056 = vmax.f32 %v516, %v554
  %v1057 = vmax.f32 %v518, %v556
  %v1058 = vmax.f32 %v1054, %v587
  %v1059 = vmax.f32 %v1055, %v589
  %v1060 = vmax.f32 %v1056, %v592
  %v1061 = vmax.f32 %v1057, %v594
  %v1062 = vmax.f32 %v1058, %v625
  %v1063 = vmax.f32 %v1059, %v627
  %v1064 = vmax.f32 %v1060, %v630
  %v1065 = vmax.f32 %v1061, %v632
  %1067 = vset.pattern.permute.xlu0 0
  %1068 = vperm.xlu0 %1067, %v786
  %v1069 = vpop.permute.xlu0 %1068
  %1072 = vset.pattern.permute.xlu0 0
  %1073 = vperm.xlu0 %1072, %v787
  %v1074 = vpop.permute.xlu0 %1073
  %1077 = vset.pattern.permute.xlu0 0
  %1078 = vperm.xlu0 %1077, %v788
  %v1079 = vpop.permute.xlu0 %1078
  %1082 = vset.pattern.permute.xlu0 0
  %1083 = vperm.xlu0 %1082, %v789
  %v1084 = vpop.permute.xlu0 %1083
  %v1086 = vadd.f32 %v1062, %v1069
  %v1087 = vadd.f32 %v1063, %v1074
  %v1088 = vadd.f32 %v1064, %v1079
  %v1089 = vadd.f32 %v1065, %v1084
  %v1090 = vmax.f32 %v1086, 0.0
  %v1091 = vmax.f32 %v1087, 0.0
  %v1092 = vmax.f32 %v1088, 0.0
  %v1093 = vmax.f32 %v1089, 0.0
  %v1094 = vmul.f32 %v790, %v1090
  %v1095 = vmul.f32 %v791, %v1091
  %v1096 = vmul.f32 %v792, %v1092
  %v1097 = vmul.f32 %v793, %v1093
  %v1098 = vmul.f32 %v794, %v1090
  %v1099 = vmul.f32 %v795, %v1091
  %v1100 = vmul.f32 %v796, %v1092
  %v1101 = vmul.f32 %v797, %v1093
  %v1102 = vmul.f32 %v798, %v1090
  %v1103 = vmul.f32 %v799, %v1091
  %v1104 = vmul.f32 %v800, %v1092
  %v1105 = vmul.f32 %v801, %v1093
  %v1106 = vmul.f32 %v802, %v1090
  %v1107 = vmul.f32 %v803, %v1091
  %v1108 = vmul.f32 %v804, %v1092
  %v1109 = vmul.f32 %v805, %v1093
  %v1110 = vmul.f32 %v806, %v1090
  %v1111 = vmul.f32 %v807, %v1091
  %v1112 = vmul.f32 %v808, %v1092
  %v1113 = vmul.f32 %v809, %v1093
  %v1114 = vmul.f32 %v810, %v1090
  %v1115 = vmul.f32 %v811, %v1091
  %v1116 = vmul.f32 %v812, %v1092
  %v1117 = vmul.f32 %v813, %v1093
  %v1118 = vmul.f32 %v814, %v1090
  %v1119 = vmul.f32 %v815, %v1091
  %v1120 = vmul.f32 %v816, %v1092
  %v1121 = vmul.f32 %v817, %v1093
  %v1122 = vmul.f32 %v818, %v1090
  %v1123 = vmul.f32 %v819, %v1091
  %v1124 = vmul.f32 %v820, %v1092
  %v1125 = vmul.f32 %v821, %v1093
  %v1126 = vmul.f32 %v822, %v1090
  %v1127 = vmul.f32 %v823, %v1091
  %v1128 = vmul.f32 %v824, %v1092
  %v1129 = vmul.f32 %v825, %v1093
  %v1130 = vmul.f32 %v826, %v1090
  %v1131 = vmul.f32 %v827, %v1091
  %v1132 = vmul.f32 %v828, %v1092
  %v1133 = vmul.f32 %v829, %v1093
  %v1134 = vmul.f32 %v830, %v1090
  %v1135 = vmul.f32 %v831, %v1091
  %v1136 = vmul.f32 %v832, %v1092
  %v1137 = vmul.f32 %v833, %v1093
  %v1138 = vmul.f32 %v834, %v1090
  %v1139 = vmul.f32 %v835, %v1091
  %v1140 = vmul.f32 %v836, %v1092
  %v1141 = vmul.f32 %v837, %v1093
  %v1142 = vmul.f32 %v838, %v1090
  %v1143 = vmul.f32 %v839, %v1091
  %v1144 = vmul.f32 %v840, %v1092
  %v1145 = vmul.f32 %v841, %v1093
  %v1146 = vmul.f32 %v842, %v1090
  %v1147 = vmul.f32 %v843, %v1091
  %v1148 = vmul.f32 %v844, %v1092
  %v1149 = vmul.f32 %v845, %v1093
  %v1150 = vmul.f32 %v846, %v1090
  %v1151 = vmul.f32 %v847, %v1091
  %v1152 = vmul.f32 %v848, %v1092
  %v1153 = vmul.f32 %v849, %v1093
  %v1154 = vmul.f32 %v850, %v1090
  %v1155 = vmul.f32 %v851, %v1091
  %v1156 = vmul.f32 %v852, %v1092
  %v1157 = vmul.f32 %v853, %v1093
  %v1158 = vmul.f32 %v854, %v1090
  %v1159 = vmul.f32 %v855, %v1091
  %v1160 = vmul.f32 %v856, %v1092
  %v1161 = vmul.f32 %v857, %v1093
  %v1162 = vmul.f32 %v858, %v1090
  %v1163 = vmul.f32 %v859, %v1091
  %v1164 = vmul.f32 %v860, %v1092
  %v1165 = vmul.f32 %v861, %v1093
  %v1166 = vmul.f32 %v862, %v1090
  %v1167 = vmul.f32 %v863, %v1091
  %v1168 = vmul.f32 %v864, %v1092
  %v1169 = vmul.f32 %v865, %v1093
  %v1170 = vmul.f32 %v866, %v1090
  %v1171 = vmul.f32 %v867, %v1091
  %v1172 = vmul.f32 %v868, %v1092
  %v1173 = vmul.f32 %v869, %v1093
  %v1174 = vmul.f32 %v870, %v1090
  %v1175 = vmul.f32 %v871, %v1091
  %v1176 = vmul.f32 %v872, %v1092
  %v1177 = vmul.f32 %v873, %v1093
  %v1178 = vmul.f32 %v874, %v1090
  %v1179 = vmul.f32 %v875, %v1091
  %v1180 = vmul.f32 %v876, %v1092
  %v1181 = vmul.f32 %v877, %v1093
  %v1182 = vmul.f32 %v878, %v1090
  %v1183 = vmul.f32 %v879, %v1091
  %v1184 = vmul.f32 %v880, %v1092
  %v1185 = vmul.f32 %v881, %v1093
  %v1186 = vmul.f32 %v882, %v1090
  %v1187 = vmul.f32 %v883, %v1091
  %v1188 = vmul.f32 %v884, %v1092
  %v1189 = vmul.f32 %v885, %v1093
  %v1190 = vmul.f32 %v886, %v1090
  %v1191 = vmul.f32 %v887, %v1091
  %v1192 = vmul.f32 %v888, %v1092
  %v1193 = vmul.f32 %v889, %v1093
  %v1194 = vmul.f32 %v890, %v1090
  %v1195 = vmul.f32 %v891, %v1091
  %v1196 = vmul.f32 %v892, %v1092
  %v1197 = vmul.f32 %v893, %v1093
  %v1198 = vmul.f32 %v894, %v1090
  %v1199 = vmul.f32 %v895, %v1091
  %v1200 = vmul.f32 %v896, %v1092
  %v1201 = vmul.f32 %v897, %v1093
  %v1202 = vmul.f32 %v898, %v1090
  %v1203 = vmul.f32 %v899, %v1091
  %v1204 = vmul.f32 %v900, %v1092
  %v1205 = vmul.f32 %v901, %v1093
  %v1206 = vmul.f32 %v902, %v1090
  %v1207 = vmul.f32 %v903, %v1091
  %v1208 = vmul.f32 %v904, %v1092
  %v1209 = vmul.f32 %v905, %v1093
  %v1210 = vmul.f32 %v906, %v1090
  %v1211 = vmul.f32 %v907, %v1091
  %v1212 = vmul.f32 %v908, %v1092
  %v1213 = vmul.f32 %v909, %v1093
  %v1214 = vmul.f32 %v910, %v1090
  %v1215 = vmul.f32 %v911, %v1091
  %v1216 = vmul.f32 %v912, %v1092
  %v1217 = vmul.f32 %v913, %v1093
  %v1218 = vmul.f32 %v914, %v1090
  %v1219 = vmul.f32 %v915, %v1091
  %v1220 = vmul.f32 %v916, %v1092
  %v1221 = vmul.f32 %v917, %v1093
  %v1222 = vmul.f32 %v918, %v1090
  %v1223 = vmul.f32 %v919, %v1091
  %v1224 = vmul.f32 %v920, %v1092
  %v1225 = vmul.f32 %v921, %v1093
  %v1226 = vmul.f32 %v922, %v1090
  %v1227 = vmul.f32 %v923, %v1091
  %v1228 = vmul.f32 %v924, %v1092
  %v1229 = vmul.f32 %v925, %v1093
  %v1230 = vmul.f32 %v926, %v1090
  %v1231 = vmul.f32 %v927, %v1091
  %v1232 = vmul.f32 %v928, %v1092
  %v1233 = vmul.f32 %v929, %v1093
  %v1234 = vmul.f32 %v930, %v1090
  %v1235 = vmul.f32 %v931, %v1091
  %v1236 = vmul.f32 %v932, %v1092
  %v1237 = vmul.f32 %v933, %v1093
  %v1238 = vmul.f32 %v934, %v1090
  %v1239 = vmul.f32 %v935, %v1091
  %v1240 = vmul.f32 %v936, %v1092
  %v1241 = vmul.f32 %v937, %v1093
  %v1242 = vmul.f32 %v938, %v1090
  %v1243 = vmul.f32 %v939, %v1091
  %v1244 = vmul.f32 %v940, %v1092
  %v1245 = vmul.f32 %v941, %v1093
  %v1246 = vmul.f32 %v942, %v1090
  %v1247 = vmul.f32 %v943, %v1091
  %v1248 = vmul.f32 %v944, %v1092
  %v1249 = vmul.f32 %v945, %v1093
  %v1250 = vmul.f32 %v946, %v1090
  %v1251 = vmul.f32 %v947, %v1091
  %v1252 = vmul.f32 %v948, %v1092
  %v1253 = vmul.f32 %v949, %v1093
  %v1254 = vmul.f32 %v950, %v1090
  %v1255 = vmul.f32 %v951, %v1091
  %v1256 = vmul.f32 %v952, %v1092
  %v1257 = vmul.f32 %v953, %v1093
  %v1258 = vmul.f32 %v954, %v1090
  %v1259 = vmul.f32 %v955, %v1091
  %v1260 = vmul.f32 %v956, %v1092
  %v1261 = vmul.f32 %v957, %v1093
  %v1262 = vmul.f32 %v958, %v1090
  %v1263 = vmul.f32 %v959, %v1091
  %v1264 = vmul.f32 %v960, %v1092
  %v1265 = vmul.f32 %v961, %v1093
  %v1266 = vmul.f32 %v962, %v1090
  %v1267 = vmul.f32 %v963, %v1091
  %v1268 = vmul.f32 %v964, %v1092
  %v1269 = vmul.f32 %v965, %v1093
  %v1270 = vmul.f32 %v966, %v1090
  %v1271 = vmul.f32 %v967, %v1091
  %v1272 = vmul.f32 %v968, %v1092
  %v1273 = vmul.f32 %v969, %v1093
  %v1274 = vmul.f32 %v970, %v1090
  %v1275 = vmul.f32 %v971, %v1091
  %v1276 = vmul.f32 %v972, %v1092
  %v1277 = vmul.f32 %v973, %v1093
  %v1278 = vmul.f32 %v974, %v1090
  %v1279 = vmul.f32 %v975, %v1091
  %v1280 = vmul.f32 %v976, %v1092
  %v1281 = vmul.f32 %v977, %v1093
  %v1282 = vmul.f32 %v978, %v1090
  %v1283 = vmul.f32 %v979, %v1091
  %v1284 = vmul.f32 %v980, %v1092
  %v1285 = vmul.f32 %v981, %v1093
  %v1286 = vmul.f32 %v982, %v1090
  %v1287 = vmul.f32 %v983, %v1091
  %v1288 = vmul.f32 %v984, %v1092
  %v1289 = vmul.f32 %v985, %v1093
  %v1290 = vmul.f32 %v986, %v1090
  %v1291 = vmul.f32 %v987, %v1091
  %v1292 = vmul.f32 %v988, %v1092
  %v1293 = vmul.f32 %v989, %v1093
  %v1294 = vmul.f32 %v990, %v1090
  %v1295 = vmul.f32 %v991, %v1091
  %v1296 = vmul.f32 %v992, %v1092
  %v1297 = vmul.f32 %v993, %v1093
  %v1298 = vmul.f32 %v994, %v1090
  %v1299 = vmul.f32 %v995, %v1091
  %v1300 = vmul.f32 %v996, %v1092
  %v1301 = vmul.f32 %v997, %v1093
  %v1302 = vmul.f32 %v998, %v1090
  %v1303 = vmul.f32 %v999, %v1091
  %v1304 = vmul.f32 %v1000, %v1092
  %v1305 = vmul.f32 %v1001, %v1093
  %v1306 = vmul.f32 %v1002, %v1090
  %v1307 = vmul.f32 %v1003, %v1091
  %v1308 = vmul.f32 %v1004, %v1092
  %v1309 = vmul.f32 %v1005, %v1093
  %v1310 = vmul.f32 %v1006, %v1090
  %v1311 = vmul.f32 %v1007, %v1091
  %v1312 = vmul.f32 %v1008, %v1092
  %v1313 = vmul.f32 %v1009, %v1093
  %v1314 = vmul.f32 %v1010, %v1090
  %v1315 = vmul.f32 %v1011, %v1091
  %v1316 = vmul.f32 %v1012, %v1092
  %v1317 = vmul.f32 %v1013, %v1093
  %v1318 = vmul.f32 %v1014, %v1090
  %v1319 = vmul.f32 %v1015, %v1091
  %v1320 = vmul.f32 %v1016, %v1092
  %v1321 = vmul.f32 %v1017, %v1093
  %v1322 = vmul.f32 %v1018, %v1090
  %v1323 = vmul.f32 %v1019, %v1091
  %v1324 = vmul.f32 %v1020, %v1092
  %v1325 = vmul.f32 %v1021, %v1093
  %v1326 = vmul.f32 %v1022, %v1090
  %v1327 = vmul.f32 %v1023, %v1091
  %v1328 = vmul.f32 %v1024, %v1092
  %v1329 = vmul.f32 %v1025, %v1093
  %v1330 = vmul.f32 %v1026, %v1090
  %v1331 = vmul.f32 %v1027, %v1091
  %v1332 = vmul.f32 %v1028, %v1092
  %v1333 = vmul.f32 %v1029, %v1093
  %v1334 = vmul.f32 %v1030, %v1090
  %v1335 = vmul.f32 %v1031, %v1091
  %v1336 = vmul.f32 %v1032, %v1092
  %v1337 = vmul.f32 %v1033, %v1093
  %v1338 = vmul.f32 %v1034, %v1090
  %v1339 = vmul.f32 %v1035, %v1091
  %v1340 = vmul.f32 %v1036, %v1092
  %v1341 = vmul.f32 %v1037, %v1093
  %v1342 = vmul.f32 %v1038, %v1090
  %v1343 = vmul.f32 %v1039, %v1091
  %v1344 = vmul.f32 %v1040, %v1092
  %v1345 = vmul.f32 %v1041, %v1093
  %v1346 = vmul.f32 %v1042, %v1090
  %v1347 = vmul.f32 %v1043, %v1091
  %v1348 = vmul.f32 %v1044, %v1092
  %v1349 = vmul.f32 %v1045, %v1093
  %vm1350 = vcmask 162816
  %v1351 = vsel %vm1350, %v1094, 0.0
  %1352 = vadd.xlane.f32.xlu0 %v1351
  %v1353 = vpop.xlane.xlu0 %1352
  %v1354 = vsel %vm1350, %v1095, 0.0
  %1355 = vadd.xlane.f32.xlu0 %v1354
  %v1356 = vpop.xlane.xlu0 %1355
  %v1357 = vsel %vm1350, %v1096, 0.0
  %1358 = vadd.xlane.f32.xlu0 %v1357
  %v1359 = vpop.xlane.xlu0 %1358
  %v1360 = vsel %vm1350, %v1097, 0.0
  %1361 = vadd.xlane.f32.xlu0 %v1360
  %v1362 = vpop.xlane.xlu0 %1361
  %v1363 = vsel %vm1350, %v1098, 0.0
  %1364 = vadd.xlane.f32.xlu0 %v1363
  %v1365 = vpop.xlane.xlu0 %1364
  %v1366 = vsel %vm1350, %v1099, 0.0
  %1367 = vadd.xlane.f32.xlu0 %v1366
  %v1368 = vpop.xlane.xlu0 %1367
  %v1369 = vsel %vm1350, %v1100, 0.0
  %1370 = vadd.xlane.f32.xlu0 %v1369
  %v1371 = vpop.xlane.xlu0 %1370
  %v1372 = vsel %vm1350, %v1101, 0.0
  %1373 = vadd.xlane.f32.xlu0 %v1372
  %v1374 = vpop.xlane.xlu0 %1373
  %v1375 = vsel %vm1350, %v1102, 0.0
  %1376 = vadd.xlane.f32.xlu0 %v1375
  %v1377 = vpop.xlane.xlu0 %1376
  %v1378 = vsel %vm1350, %v1103, 0.0
  %1379 = vadd.xlane.f32.xlu0 %v1378
  %v1380 = vpop.xlane.xlu0 %1379
  %v1381 = vsel %vm1350, %v1104, 0.0
  %1382 = vadd.xlane.f32.xlu0 %v1381
  %v1383 = vpop.xlane.xlu0 %1382
  %v1384 = vsel %vm1350, %v1105, 0.0
  %1385 = vadd.xlane.f32.xlu0 %v1384
  %v1386 = vpop.xlane.xlu0 %1385
  %v1387 = vsel %vm1350, %v1106, 0.0
  %1388 = vadd.xlane.f32.xlu0 %v1387
  %v1389 = vpop.xlane.xlu0 %1388
  %v1390 = vsel %vm1350, %v1107, 0.0
  %1391 = vadd.xlane.f32.xlu0 %v1390
  %v1392 = vpop.xlane.xlu0 %1391
  %v1393 = vsel %vm1350, %v1108, 0.0
  %1394 = vadd.xlane.f32.xlu0 %v1393
  %v1395 = vpop.xlane.xlu0 %1394
  %v1396 = vsel %vm1350, %v1109, 0.0
  %1397 = vadd.xlane.f32.xlu0 %v1396
  %v1398 = vpop.xlane.xlu0 %1397
  %v1399 = vsel %vm1350, %v1110, 0.0
  %1400 = vadd.xlane.f32.xlu0 %v1399
  %v1401 = vpop.xlane.xlu0 %1400
  %v1402 = vsel %vm1350, %v1111, 0.0
  %1403 = vadd.xlane.f32.xlu0 %v1402
  %v1404 = vpop.xlane.xlu0 %1403
  %v1405 = vsel %vm1350, %v1112, 0.0
  %1406 = vadd.xlane.f32.xlu0 %v1405
  %v1407 = vpop.xlane.xlu0 %1406
  %v1408 = vsel %vm1350, %v1113, 0.0
  %1409 = vadd.xlane.f32.xlu0 %v1408
  %v1410 = vpop.xlane.xlu0 %1409
  %v1411 = vsel %vm1350, %v1114, 0.0
  %1412 = vadd.xlane.f32.xlu0 %v1411
  %v1413 = vpop.xlane.xlu0 %1412
  %v1414 = vsel %vm1350, %v1115, 0.0
  %1415 = vadd.xlane.f32.xlu0 %v1414
  %v1416 = vpop.xlane.xlu0 %1415
  %v1417 = vsel %vm1350, %v1116, 0.0
  %1418 = vadd.xlane.f32.xlu0 %v1417
  %v1419 = vpop.xlane.xlu0 %1418
  %v1420 = vsel %vm1350, %v1117, 0.0
  %1421 = vadd.xlane.f32.xlu0 %v1420
  %v1422 = vpop.xlane.xlu0 %1421
  %v1423 = vsel %vm1350, %v1118, 0.0
  %1424 = vadd.xlane.f32.xlu0 %v1423
  %v1425 = vpop.xlane.xlu0 %1424
  %v1426 = vsel %vm1350, %v1119, 0.0
  %1427 = vadd.xlane.f32.xlu0 %v1426
  %v1428 = vpop.xlane.xlu0 %1427
  %v1429 = vsel %vm1350, %v1120, 0.0
  %1430 = vadd.xlane.f32.xlu0 %v1429
  %v1431 = vpop.xlane.xlu0 %1430
  %v1432 = vsel %vm1350, %v1121, 0.0
  %1433 = vadd.xlane.f32.xlu0 %v1432
  %v1434 = vpop.xlane.xlu0 %1433
  %v1435 = vsel %vm1350, %v1122, 0.0
  %1436 = vadd.xlane.f32.xlu0 %v1435
  %v1437 = vpop.xlane.xlu0 %1436
  %v1438 = vsel %vm1350, %v1123, 0.0
  %1439 = vadd.xlane.f32.xlu0 %v1438
  %v1440 = vpop.xlane.xlu0 %1439
  %v1441 = vsel %vm1350, %v1124, 0.0
  %1442 = vadd.xlane.f32.xlu0 %v1441
  %v1443 = vpop.xlane.xlu0 %1442
  %v1444 = vsel %vm1350, %v1125, 0.0
  %1445 = vadd.xlane.f32.xlu0 %v1444
  %v1446 = vpop.xlane.xlu0 %1445
  %v1447 = vsel %vm1350, %v1126, 0.0
  %1448 = vadd.xlane.f32.xlu0 %v1447
  %v1449 = vpop.xlane.xlu0 %1448
  %v1450 = vsel %vm1350, %v1127, 0.0
  %1451 = vadd.xlane.f32.xlu0 %v1450
  %v1452 = vpop.xlane.xlu0 %1451
  %v1453 = vsel %vm1350, %v1128, 0.0
  %1454 = vadd.xlane.f32.xlu0 %v1453
  %v1455 = vpop.xlane.xlu0 %1454
  %v1456 = vsel %vm1350, %v1129, 0.0
  %1457 = vadd.xlane.f32.xlu0 %v1456
  %v1458 = vpop.xlane.xlu0 %1457
  %v1459 = vsel %vm1350, %v1130, 0.0
  %1460 = vadd.xlane.f32.xlu0 %v1459
  %v1461 = vpop.xlane.xlu0 %1460
  %v1462 = vsel %vm1350, %v1131, 0.0
  %1463 = vadd.xlane.f32.xlu0 %v1462
  %v1464 = vpop.xlane.xlu0 %1463
  %v1465 = vsel %vm1350, %v1132, 0.0
  %1466 = vadd.xlane.f32.xlu0 %v1465
  %v1467 = vpop.xlane.xlu0 %1466
  %v1468 = vsel %vm1350, %v1133, 0.0
  %1469 = vadd.xlane.f32.xlu0 %v1468
  %v1470 = vpop.xlane.xlu0 %1469
  %v1471 = vsel %vm1350, %v1134, 0.0
  %1472 = vadd.xlane.f32.xlu0 %v1471
  %v1473 = vpop.xlane.xlu0 %1472
  %v1474 = vsel %vm1350, %v1135, 0.0
  %1475 = vadd.xlane.f32.xlu0 %v1474
  %v1476 = vpop.xlane.xlu0 %1475
  %v1477 = vsel %vm1350, %v1136, 0.0
  %1478 = vadd.xlane.f32.xlu0 %v1477
  %v1479 = vpop.xlane.xlu0 %1478
  %v1480 = vsel %vm1350, %v1137, 0.0
  %1481 = vadd.xlane.f32.xlu0 %v1480
  %v1482 = vpop.xlane.xlu0 %1481
  %v1483 = vsel %vm1350, %v1138, 0.0
  %1484 = vadd.xlane.f32.xlu0 %v1483
  %v1485 = vpop.xlane.xlu0 %1484
  %v1486 = vsel %vm1350, %v1139, 0.0
  %1487 = vadd.xlane.f32.xlu0 %v1486
  %v1488 = vpop.xlane.xlu0 %1487
  %v1489 = vsel %vm1350, %v1140, 0.0
  %1490 = vadd.xlane.f32.xlu0 %v1489
  %v1491 = vpop.xlane.xlu0 %1490
  %v1492 = vsel %vm1350, %v1141, 0.0
  %1493 = vadd.xlane.f32.xlu0 %v1492
  %v1494 = vpop.xlane.xlu0 %1493
  %v1495 = vsel %vm1350, %v1142, 0.0
  %1496 = vadd.xlane.f32.xlu0 %v1495
  %v1497 = vpop.xlane.xlu0 %1496
  %v1498 = vsel %vm1350, %v1143, 0.0
  %1499 = vadd.xlane.f32.xlu0 %v1498
  %v1500 = vpop.xlane.xlu0 %1499
  %v1501 = vsel %vm1350, %v1144, 0.0
  %1502 = vadd.xlane.f32.xlu0 %v1501
  %v1503 = vpop.xlane.xlu0 %1502
  %v1504 = vsel %vm1350, %v1145, 0.0
  %1505 = vadd.xlane.f32.xlu0 %v1504
  %v1506 = vpop.xlane.xlu0 %1505
  %v1507 = vsel %vm1350, %v1146, 0.0
  %1508 = vadd.xlane.f32.xlu0 %v1507
  %v1509 = vpop.xlane.xlu0 %1508
  %v1510 = vsel %vm1350, %v1147, 0.0
  %1511 = vadd.xlane.f32.xlu0 %v1510
  %v1512 = vpop.xlane.xlu0 %1511
  %v1513 = vsel %vm1350, %v1148, 0.0
  %1514 = vadd.xlane.f32.xlu0 %v1513
  %v1515 = vpop.xlane.xlu0 %1514
  %v1516 = vsel %vm1350, %v1149, 0.0
  %1517 = vadd.xlane.f32.xlu0 %v1516
  %v1518 = vpop.xlane.xlu0 %1517
  %v1519 = vsel %vm1350, %v1150, 0.0
  %1520 = vadd.xlane.f32.xlu0 %v1519
  %v1521 = vpop.xlane.xlu0 %1520
  %v1522 = vsel %vm1350, %v1151, 0.0
  %1523 = vadd.xlane.f32.xlu0 %v1522
  %v1524 = vpop.xlane.xlu0 %1523
  %v1525 = vsel %vm1350, %v1152, 0.0
  %1526 = vadd.xlane.f32.xlu0 %v1525
  %v1527 = vpop.xlane.xlu0 %1526
  %v1528 = vsel %vm1350, %v1153, 0.0
  %1529 = vadd.xlane.f32.xlu0 %v1528
  %v1530 = vpop.xlane.xlu0 %1529
  %v1531 = vsel %vm1350, %v1154, 0.0
  %1532 = vadd.xlane.f32.xlu0 %v1531
  %v1533 = vpop.xlane.xlu0 %1532
  %v1534 = vsel %vm1350, %v1155, 0.0
  %1535 = vadd.xlane.f32.xlu0 %v1534
  %v1536 = vpop.xlane.xlu0 %1535
  %v1537 = vsel %vm1350, %v1156, 0.0
  %1538 = vadd.xlane.f32.xlu0 %v1537
  %v1539 = vpop.xlane.xlu0 %1538
  %v1540 = vsel %vm1350, %v1157, 0.0
  %1541 = vadd.xlane.f32.xlu0 %v1540
  %v1542 = vpop.xlane.xlu0 %1541
  %v1543 = vsel %vm1350, %v1158, 0.0
  %1544 = vadd.xlane.f32.xlu0 %v1543
  %v1545 = vpop.xlane.xlu0 %1544
  %v1546 = vsel %vm1350, %v1159, 0.0
  %1547 = vadd.xlane.f32.xlu0 %v1546
  %v1548 = vpop.xlane.xlu0 %1547
  %v1549 = vsel %vm1350, %v1160, 0.0
  %1550 = vadd.xlane.f32.xlu0 %v1549
  %v1551 = vpop.xlane.xlu0 %1550
  %v1552 = vsel %vm1350, %v1161, 0.0
  %1553 = vadd.xlane.f32.xlu0 %v1552
  %v1554 = vpop.xlane.xlu0 %1553
  %v1555 = vsel %vm1350, %v1162, 0.0
  %1556 = vadd.xlane.f32.xlu0 %v1555
  %v1557 = vpop.xlane.xlu0 %1556
  %v1558 = vsel %vm1350, %v1163, 0.0
  %1559 = vadd.xlane.f32.xlu0 %v1558
  %v1560 = vpop.xlane.xlu0 %1559
  %v1561 = vsel %vm1350, %v1164, 0.0
  %1562 = vadd.xlane.f32.xlu0 %v1561
  %v1563 = vpop.xlane.xlu0 %1562
  %v1564 = vsel %vm1350, %v1165, 0.0
  %1565 = vadd.xlane.f32.xlu0 %v1564
  %v1566 = vpop.xlane.xlu0 %1565
  %v1567 = vsel %vm1350, %v1166, 0.0
  %1568 = vadd.xlane.f32.xlu0 %v1567
  %v1569 = vpop.xlane.xlu0 %1568
  %v1570 = vsel %vm1350, %v1167, 0.0
  %1571 = vadd.xlane.f32.xlu0 %v1570
  %v1572 = vpop.xlane.xlu0 %1571
  %v1573 = vsel %vm1350, %v1168, 0.0
  %1574 = vadd.xlane.f32.xlu0 %v1573
  %v1575 = vpop.xlane.xlu0 %1574
  %v1576 = vsel %vm1350, %v1169, 0.0
  %1577 = vadd.xlane.f32.xlu0 %v1576
  %v1578 = vpop.xlane.xlu0 %1577
  %v1579 = vsel %vm1350, %v1170, 0.0
  %1580 = vadd.xlane.f32.xlu0 %v1579
  %v1581 = vpop.xlane.xlu0 %1580
  %v1582 = vsel %vm1350, %v1171, 0.0
  %1583 = vadd.xlane.f32.xlu0 %v1582
  %v1584 = vpop.xlane.xlu0 %1583
  %v1585 = vsel %vm1350, %v1172, 0.0
  %1586 = vadd.xlane.f32.xlu0 %v1585
  %v1587 = vpop.xlane.xlu0 %1586
  %v1588 = vsel %vm1350, %v1173, 0.0
  %1589 = vadd.xlane.f32.xlu0 %v1588
  %v1590 = vpop.xlane.xlu0 %1589
  %v1591 = vsel %vm1350, %v1174, 0.0
  %1592 = vadd.xlane.f32.xlu0 %v1591
  %v1593 = vpop.xlane.xlu0 %1592
  %v1594 = vsel %vm1350, %v1175, 0.0
  %1595 = vadd.xlane.f32.xlu0 %v1594
  %v1596 = vpop.xlane.xlu0 %1595
  %v1597 = vsel %vm1350, %v1176, 0.0
  %1598 = vadd.xlane.f32.xlu0 %v1597
  %v1599 = vpop.xlane.xlu0 %1598
  %v1600 = vsel %vm1350, %v1177, 0.0
  %1601 = vadd.xlane.f32.xlu0 %v1600
  %v1602 = vpop.xlane.xlu0 %1601
  %v1603 = vsel %vm1350, %v1178, 0.0
  %1604 = vadd.xlane.f32.xlu0 %v1603
  %v1605 = vpop.xlane.xlu0 %1604
  %v1606 = vsel %vm1350, %v1179, 0.0
  %1607 = vadd.xlane.f32.xlu0 %v1606
  %v1608 = vpop.xlane.xlu0 %1607
  %v1609 = vsel %vm1350, %v1180, 0.0
  %1610 = vadd.xlane.f32.xlu0 %v1609
  %v1611 = vpop.xlane.xlu0 %1610
  %v1612 = vsel %vm1350, %v1181, 0.0
  %1613 = vadd.xlane.f32.xlu0 %v1612
  %v1614 = vpop.xlane.xlu0 %1613
  %v1615 = vsel %vm1350, %v1182, 0.0
  %1616 = vadd.xlane.f32.xlu0 %v1615
  %v1617 = vpop.xlane.xlu0 %1616
  %v1618 = vsel %vm1350, %v1183, 0.0
  %1619 = vadd.xlane.f32.xlu0 %v1618
  %v1620 = vpop.xlane.xlu0 %1619
  %v1621 = vsel %vm1350, %v1184, 0.0
  %1622 = vadd.xlane.f32.xlu0 %v1621
  %v1623 = vpop.xlane.xlu0 %1622
  %v1624 = vsel %vm1350, %v1185, 0.0
  %1625 = vadd.xlane.f32.xlu0 %v1624
  %v1626 = vpop.xlane.xlu0 %1625
  %v1627 = vsel %vm1350, %v1186, 0.0
  %1628 = vadd.xlane.f32.xlu0 %v1627
  %v1629 = vpop.xlane.xlu0 %1628
  %v1630 = vsel %vm1350, %v1187, 0.0
  %1631 = vadd.xlane.f32.xlu0 %v1630
  %v1632 = vpop.xlane.xlu0 %1631
  %v1633 = vsel %vm1350, %v1188, 0.0
  %1634 = vadd.xlane.f32.xlu0 %v1633
  %v1635 = vpop.xlane.xlu0 %1634
  %v1636 = vsel %vm1350, %v1189, 0.0
  %1637 = vadd.xlane.f32.xlu0 %v1636
  %v1638 = vpop.xlane.xlu0 %1637
  %v1639 = vsel %vm1350, %v1190, 0.0
  %1640 = vadd.xlane.f32.xlu0 %v1639
  %v1641 = vpop.xlane.xlu0 %1640
  %v1642 = vsel %vm1350, %v1191, 0.0
  %1643 = vadd.xlane.f32.xlu0 %v1642
  %v1644 = vpop.xlane.xlu0 %1643
  %v1645 = vsel %vm1350, %v1192, 0.0
  %1646 = vadd.xlane.f32.xlu0 %v1645
  %v1647 = vpop.xlane.xlu0 %1646
  %v1648 = vsel %vm1350, %v1193, 0.0
  %1649 = vadd.xlane.f32.xlu0 %v1648
  %v1650 = vpop.xlane.xlu0 %1649
  %v1651 = vsel %vm1350, %v1194, 0.0
  %1652 = vadd.xlane.f32.xlu0 %v1651
  %v1653 = vpop.xlane.xlu0 %1652
  %v1654 = vsel %vm1350, %v1195, 0.0
  %1655 = vadd.xlane.f32.xlu0 %v1654
  %v1656 = vpop.xlane.xlu0 %1655
  %v1657 = vsel %vm1350, %v1196, 0.0
  %1658 = vadd.xlane.f32.xlu0 %v1657
  %v1659 = vpop.xlane.xlu0 %1658
  %v1660 = vsel %vm1350, %v1197, 0.0
  %1661 = vadd.xlane.f32.xlu0 %v1660
  %v1662 = vpop.xlane.xlu0 %1661
  %v1663 = vsel %vm1350, %v1198, 0.0
  %1664 = vadd.xlane.f32.xlu0 %v1663
  %v1665 = vpop.xlane.xlu0 %1664
  %v1666 = vsel %vm1350, %v1199, 0.0
  %1667 = vadd.xlane.f32.xlu0 %v1666
  %v1668 = vpop.xlane.xlu0 %1667
  %v1669 = vsel %vm1350, %v1200, 0.0
  %1670 = vadd.xlane.f32.xlu0 %v1669
  %v1671 = vpop.xlane.xlu0 %1670
  %v1672 = vsel %vm1350, %v1201, 0.0
  %1673 = vadd.xlane.f32.xlu0 %v1672
  %v1674 = vpop.xlane.xlu0 %1673
  %v1675 = vsel %vm1350, %v1202, 0.0
  %1676 = vadd.xlane.f32.xlu0 %v1675
  %v1677 = vpop.xlane.xlu0 %1676
  %v1678 = vsel %vm1350, %v1203, 0.0
  %1679 = vadd.xlane.f32.xlu0 %v1678
  %v1680 = vpop.xlane.xlu0 %1679
  %v1681 = vsel %vm1350, %v1204, 0.0
  %1682 = vadd.xlane.f32.xlu0 %v1681
  %v1683 = vpop.xlane.xlu0 %1682
  %v1684 = vsel %vm1350, %v1205, 0.0
  %1685 = vadd.xlane.f32.xlu0 %v1684
  %v1686 = vpop.xlane.xlu0 %1685
  %v1687 = vsel %vm1350, %v1206, 0.0
  %1688 = vadd.xlane.f32.xlu0 %v1687
  %v1689 = vpop.xlane.xlu0 %1688
  %v1690 = vsel %vm1350, %v1207, 0.0
  %1691 = vadd.xlane.f32.xlu0 %v1690
  %v1692 = vpop.xlane.xlu0 %1691
  %v1693 = vsel %vm1350, %v1208, 0.0
  %1694 = vadd.xlane.f32.xlu0 %v1693
  %v1695 = vpop.xlane.xlu0 %1694
  %v1696 = vsel %vm1350, %v1209, 0.0
  %1697 = vadd.xlane.f32.xlu0 %v1696
  %v1698 = vpop.xlane.xlu0 %1697
  %v1699 = vsel %vm1350, %v1210, 0.0
  %1700 = vadd.xlane.f32.xlu0 %v1699
  %v1701 = vpop.xlane.xlu0 %1700
  %v1702 = vsel %vm1350, %v1211, 0.0
  %1703 = vadd.xlane.f32.xlu0 %v1702
  %v1704 = vpop.xlane.xlu0 %1703
  %v1705 = vsel %vm1350, %v1212, 0.0
  %1706 = vadd.xlane.f32.xlu0 %v1705
  %v1707 = vpop.xlane.xlu0 %1706
  %v1708 = vsel %vm1350, %v1213, 0.0
  %1709 = vadd.xlane.f32.xlu0 %v1708
  %v1710 = vpop.xlane.xlu0 %1709
  %v1711 = vsel %vm1350, %v1214, 0.0
  %1712 = vadd.xlane.f32.xlu0 %v1711
  %v1713 = vpop.xlane.xlu0 %1712
  %v1714 = vsel %vm1350, %v1215, 0.0
  %1715 = vadd.xlane.f32.xlu0 %v1714
  %v1716 = vpop.xlane.xlu0 %1715
  %v1717 = vsel %vm1350, %v1216, 0.0
  %1718 = vadd.xlane.f32.xlu0 %v1717
  %v1719 = vpop.xlane.xlu0 %1718
  %v1720 = vsel %vm1350, %v1217, 0.0
  %1721 = vadd.xlane.f32.xlu0 %v1720
  %v1722 = vpop.xlane.xlu0 %1721
  %v1723 = vsel %vm1350, %v1218, 0.0
  %1724 = vadd.xlane.f32.xlu0 %v1723
  %v1725 = vpop.xlane.xlu0 %1724
  %v1726 = vsel %vm1350, %v1219, 0.0
  %1727 = vadd.xlane.f32.xlu0 %v1726
  %v1728 = vpop.xlane.xlu0 %1727
  %v1729 = vsel %vm1350, %v1220, 0.0
  %1730 = vadd.xlane.f32.xlu0 %v1729
  %v1731 = vpop.xlane.xlu0 %1730
  %v1732 = vsel %vm1350, %v1221, 0.0
  %1733 = vadd.xlane.f32.xlu0 %v1732
  %v1734 = vpop.xlane.xlu0 %1733
  %v1735 = vsel %vm1350, %v1222, 0.0
  %1736 = vadd.xlane.f32.xlu0 %v1735
  %v1737 = vpop.xlane.xlu0 %1736
  %v1738 = vsel %vm1350, %v1223, 0.0
  %1739 = vadd.xlane.f32.xlu0 %v1738
  %v1740 = vpop.xlane.xlu0 %1739
  %v1741 = vsel %vm1350, %v1224, 0.0
  %1742 = vadd.xlane.f32.xlu0 %v1741
  %v1743 = vpop.xlane.xlu0 %1742
  %v1744 = vsel %vm1350, %v1225, 0.0
  %1745 = vadd.xlane.f32.xlu0 %v1744
  %v1746 = vpop.xlane.xlu0 %1745
  %v1747 = vsel %vm1350, %v1226, 0.0
  %1748 = vadd.xlane.f32.xlu0 %v1747
  %v1749 = vpop.xlane.xlu0 %1748
  %v1750 = vsel %vm1350, %v1227, 0.0
  %1751 = vadd.xlane.f32.xlu0 %v1750
  %v1752 = vpop.xlane.xlu0 %1751
  %v1753 = vsel %vm1350, %v1228, 0.0
  %1754 = vadd.xlane.f32.xlu0 %v1753
  %v1755 = vpop.xlane.xlu0 %1754
  %v1756 = vsel %vm1350, %v1229, 0.0
  %1757 = vadd.xlane.f32.xlu0 %v1756
  %v1758 = vpop.xlane.xlu0 %1757
  %v1759 = vsel %vm1350, %v1230, 0.0
  %1760 = vadd.xlane.f32.xlu0 %v1759
  %v1761 = vpop.xlane.xlu0 %1760
  %v1762 = vsel %vm1350, %v1231, 0.0
  %1763 = vadd.xlane.f32.xlu0 %v1762
  %v1764 = vpop.xlane.xlu0 %1763
  %v1765 = vsel %vm1350, %v1232, 0.0
  %1766 = vadd.xlane.f32.xlu0 %v1765
  %v1767 = vpop.xlane.xlu0 %1766
  %v1768 = vsel %vm1350, %v1233, 0.0
  %1769 = vadd.xlane.f32.xlu0 %v1768
  %v1770 = vpop.xlane.xlu0 %1769
  %v1771 = vsel %vm1350, %v1234, 0.0
  %1772 = vadd.xlane.f32.xlu0 %v1771
  %v1773 = vpop.xlane.xlu0 %1772
  %v1774 = vsel %vm1350, %v1235, 0.0
  %1775 = vadd.xlane.f32.xlu0 %v1774
  %v1776 = vpop.xlane.xlu0 %1775
  %v1777 = vsel %vm1350, %v1236, 0.0
  %1778 = vadd.xlane.f32.xlu0 %v1777
  %v1779 = vpop.xlane.xlu0 %1778
  %v1780 = vsel %vm1350, %v1237, 0.0
  %1781 = vadd.xlane.f32.xlu0 %v1780
  %v1782 = vpop.xlane.xlu0 %1781
  %v1783 = vsel %vm1350, %v1238, 0.0
  %1784 = vadd.xlane.f32.xlu0 %v1783
  %v1785 = vpop.xlane.xlu0 %1784
  %v1786 = vsel %vm1350, %v1239, 0.0
  %1787 = vadd.xlane.f32.xlu0 %v1786
  %v1788 = vpop.xlane.xlu0 %1787
  %v1789 = vsel %vm1350, %v1240, 0.0
  %1790 = vadd.xlane.f32.xlu0 %v1789
  %v1791 = vpop.xlane.xlu0 %1790
  %v1792 = vsel %vm1350, %v1241, 0.0
  %1793 = vadd.xlane.f32.xlu0 %v1792
  %v1794 = vpop.xlane.xlu0 %1793
  %v1795 = vsel %vm1350, %v1242, 0.0
  %1796 = vadd.xlane.f32.xlu0 %v1795
  %v1797 = vpop.xlane.xlu0 %1796
  %v1798 = vsel %vm1350, %v1243, 0.0
  %1799 = vadd.xlane.f32.xlu0 %v1798
  %v1800 = vpop.xlane.xlu0 %1799
  %v1801 = vsel %vm1350, %v1244, 0.0
  %1802 = vadd.xlane.f32.xlu0 %v1801
  %v1803 = vpop.xlane.xlu0 %1802
  %v1804 = vsel %vm1350, %v1245, 0.0
  %1805 = vadd.xlane.f32.xlu0 %v1804
  %v1806 = vpop.xlane.xlu0 %1805
  %v1807 = vsel %vm1350, %v1246, 0.0
  %1808 = vadd.xlane.f32.xlu0 %v1807
  %v1809 = vpop.xlane.xlu0 %1808
  %v1810 = vsel %vm1350, %v1247, 0.0
  %1811 = vadd.xlane.f32.xlu0 %v1810
  %v1812 = vpop.xlane.xlu0 %1811
  %v1813 = vsel %vm1350, %v1248, 0.0
  %1814 = vadd.xlane.f32.xlu0 %v1813
  %v1815 = vpop.xlane.xlu0 %1814
  %v1816 = vsel %vm1350, %v1249, 0.0
  %1817 = vadd.xlane.f32.xlu0 %v1816
  %v1818 = vpop.xlane.xlu0 %1817
  %v1819 = vsel %vm1350, %v1250, 0.0
  %1820 = vadd.xlane.f32.xlu0 %v1819
  %v1821 = vpop.xlane.xlu0 %1820
  %v1822 = vsel %vm1350, %v1251, 0.0
  %1823 = vadd.xlane.f32.xlu0 %v1822
  %v1824 = vpop.xlane.xlu0 %1823
  %v1825 = vsel %vm1350, %v1252, 0.0
  %1826 = vadd.xlane.f32.xlu0 %v1825
  %v1827 = vpop.xlane.xlu0 %1826
  %v1828 = vsel %vm1350, %v1253, 0.0
  %1829 = vadd.xlane.f32.xlu0 %v1828
  %v1830 = vpop.xlane.xlu0 %1829
  %v1831 = vsel %vm1350, %v1254, 0.0
  %1832 = vadd.xlane.f32.xlu0 %v1831
  %v1833 = vpop.xlane.xlu0 %1832
  %v1834 = vsel %vm1350, %v1255, 0.0
  %1835 = vadd.xlane.f32.xlu0 %v1834
  %v1836 = vpop.xlane.xlu0 %1835
  %v1837 = vsel %vm1350, %v1256, 0.0
  %1838 = vadd.xlane.f32.xlu0 %v1837
  %v1839 = vpop.xlane.xlu0 %1838
  %v1840 = vsel %vm1350, %v1257, 0.0
  %1841 = vadd.xlane.f32.xlu0 %v1840
  %v1842 = vpop.xlane.xlu0 %1841
  %v1843 = vsel %vm1350, %v1258, 0.0
  %1844 = vadd.xlane.f32.xlu0 %v1843
  %v1845 = vpop.xlane.xlu0 %1844
  %v1846 = vsel %vm1350, %v1259, 0.0
  %1847 = vadd.xlane.f32.xlu0 %v1846
  %v1848 = vpop.xlane.xlu0 %1847
  %v1849 = vsel %vm1350, %v1260, 0.0
  %1850 = vadd.xlane.f32.xlu0 %v1849
  %v1851 = vpop.xlane.xlu0 %1850
  %v1852 = vsel %vm1350, %v1261, 0.0
  %1853 = vadd.xlane.f32.xlu0 %v1852
  %v1854 = vpop.xlane.xlu0 %1853
  %v1855 = vsel %vm1350, %v1262, 0.0
  %1856 = vadd.xlane.f32.xlu0 %v1855
  %v1857 = vpop.xlane.xlu0 %1856
  %v1858 = vsel %vm1350, %v1263, 0.0
  %1859 = vadd.xlane.f32.xlu0 %v1858
  %v1860 = vpop.xlane.xlu0 %1859
  %v1861 = vsel %vm1350, %v1264, 0.0
  %1862 = vadd.xlane.f32.xlu0 %v1861
  %v1863 = vpop.xlane.xlu0 %1862
  %v1864 = vsel %vm1350, %v1265, 0.0
  %1865 = vadd.xlane.f32.xlu0 %v1864
  %v1866 = vpop.xlane.xlu0 %1865
  %v1867 = vsel %vm1350, %v1266, 0.0
  %1868 = vadd.xlane.f32.xlu0 %v1867
  %v1869 = vpop.xlane.xlu0 %1868
  %v1870 = vsel %vm1350, %v1267, 0.0
  %1871 = vadd.xlane.f32.xlu0 %v1870
  %v1872 = vpop.xlane.xlu0 %1871
  %v1873 = vsel %vm1350, %v1268, 0.0
  %1874 = vadd.xlane.f32.xlu0 %v1873
  %v1875 = vpop.xlane.xlu0 %1874
  %v1876 = vsel %vm1350, %v1269, 0.0
  %1877 = vadd.xlane.f32.xlu0 %v1876
  %v1878 = vpop.xlane.xlu0 %1877
  %v1879 = vsel %vm1350, %v1270, 0.0
  %1880 = vadd.xlane.f32.xlu0 %v1879
  %v1881 = vpop.xlane.xlu0 %1880
  %v1882 = vsel %vm1350, %v1271, 0.0
  %1883 = vadd.xlane.f32.xlu0 %v1882
  %v1884 = vpop.xlane.xlu0 %1883
  %v1885 = vsel %vm1350, %v1272, 0.0
  %1886 = vadd.xlane.f32.xlu0 %v1885
  %v1887 = vpop.xlane.xlu0 %1886
  %v1888 = vsel %vm1350, %v1273, 0.0
  %1889 = vadd.xlane.f32.xlu0 %v1888
  %v1890 = vpop.xlane.xlu0 %1889
  %v1891 = vsel %vm1350, %v1274, 0.0
  %1892 = vadd.xlane.f32.xlu0 %v1891
  %v1893 = vpop.xlane.xlu0 %1892
  %v1894 = vsel %vm1350, %v1275, 0.0
  %1895 = vadd.xlane.f32.xlu0 %v1894
  %v1896 = vpop.xlane.xlu0 %1895
  %v1897 = vsel %vm1350, %v1276, 0.0
  %1898 = vadd.xlane.f32.xlu0 %v1897
  %v1899 = vpop.xlane.xlu0 %1898
  %v1900 = vsel %vm1350, %v1277, 0.0
  %1901 = vadd.xlane.f32.xlu0 %v1900
  %v1902 = vpop.xlane.xlu0 %1901
  %v1903 = vsel %vm1350, %v1278, 0.0
  %1904 = vadd.xlane.f32.xlu0 %v1903
  %v1905 = vpop.xlane.xlu0 %1904
  %v1906 = vsel %vm1350, %v1279, 0.0
  %1907 = vadd.xlane.f32.xlu0 %v1906
  %v1908 = vpop.xlane.xlu0 %1907
  %v1909 = vsel %vm1350, %v1280, 0.0
  %1910 = vadd.xlane.f32.xlu0 %v1909
  %v1911 = vpop.xlane.xlu0 %1910
  %v1912 = vsel %vm1350, %v1281, 0.0
  %1913 = vadd.xlane.f32.xlu0 %v1912
  %v1914 = vpop.xlane.xlu0 %1913
  %v1915 = vsel %vm1350, %v1282, 0.0
  %1916 = vadd.xlane.f32.xlu0 %v1915
  %v1917 = vpop.xlane.xlu0 %1916
  %v1918 = vsel %vm1350, %v1283, 0.0
  %1919 = vadd.xlane.f32.xlu0 %v1918
  %v1920 = vpop.xlane.xlu0 %1919
  %v1921 = vsel %vm1350, %v1284, 0.0
  %1922 = vadd.xlane.f32.xlu0 %v1921
  %v1923 = vpop.xlane.xlu0 %1922
  %v1924 = vsel %vm1350, %v1285, 0.0
  %1925 = vadd.xlane.f32.xlu0 %v1924
  %v1926 = vpop.xlane.xlu0 %1925
  %v1927 = vsel %vm1350, %v1286, 0.0
  %1928 = vadd.xlane.f32.xlu0 %v1927
  %v1929 = vpop.xlane.xlu0 %1928
  %v1930 = vsel %vm1350, %v1287, 0.0
  %1931 = vadd.xlane.f32.xlu0 %v1930
  %v1932 = vpop.xlane.xlu0 %1931
  %v1933 = vsel %vm1350, %v1288, 0.0
  %1934 = vadd.xlane.f32.xlu0 %v1933
  %v1935 = vpop.xlane.xlu0 %1934
  %v1936 = vsel %vm1350, %v1289, 0.0
  %1937 = vadd.xlane.f32.xlu0 %v1936
  %v1938 = vpop.xlane.xlu0 %1937
  %v1939 = vsel %vm1350, %v1290, 0.0
  %1940 = vadd.xlane.f32.xlu0 %v1939
  %v1941 = vpop.xlane.xlu0 %1940
  %v1942 = vsel %vm1350, %v1291, 0.0
  %1943 = vadd.xlane.f32.xlu0 %v1942
  %v1944 = vpop.xlane.xlu0 %1943
  %v1945 = vsel %vm1350, %v1292, 0.0
  %1946 = vadd.xlane.f32.xlu0 %v1945
  %v1947 = vpop.xlane.xlu0 %1946
  %v1948 = vsel %vm1350, %v1293, 0.0
  %1949 = vadd.xlane.f32.xlu0 %v1948
  %v1950 = vpop.xlane.xlu0 %1949
  %v1951 = vsel %vm1350, %v1294, 0.0
  %1952 = vadd.xlane.f32.xlu0 %v1951
  %v1953 = vpop.xlane.xlu0 %1952
  %v1954 = vsel %vm1350, %v1295, 0.0
  %1955 = vadd.xlane.f32.xlu0 %v1954
  %v1956 = vpop.xlane.xlu0 %1955
  %v1957 = vsel %vm1350, %v1296, 0.0
  %1958 = vadd.xlane.f32.xlu0 %v1957
  %v1959 = vpop.xlane.xlu0 %1958
  %v1960 = vsel %vm1350, %v1297, 0.0
  %1961 = vadd.xlane.f32.xlu0 %v1960
  %v1962 = vpop.xlane.xlu0 %1961
  %v1963 = vsel %vm1350, %v1298, 0.0
  %1964 = vadd.xlane.f32.xlu0 %v1963
  %v1965 = vpop.xlane.xlu0 %1964
  %v1966 = vsel %vm1350, %v1299, 0.0
  %1967 = vadd.xlane.f32.xlu0 %v1966
  %v1968 = vpop.xlane.xlu0 %1967
  %v1969 = vsel %vm1350, %v1300, 0.0
  %1970 = vadd.xlane.f32.xlu0 %v1969
  %v1971 = vpop.xlane.xlu0 %1970
  %v1972 = vsel %vm1350, %v1301, 0.0
  %1973 = vadd.xlane.f32.xlu0 %v1972
  %v1974 = vpop.xlane.xlu0 %1973
  %v1975 = vsel %vm1350, %v1302, 0.0
  %1976 = vadd.xlane.f32.xlu0 %v1975
  %v1977 = vpop.xlane.xlu0 %1976
  %v1978 = vsel %vm1350, %v1303, 0.0
  %1979 = vadd.xlane.f32.xlu0 %v1978
  %v1980 = vpop.xlane.xlu0 %1979
  %v1981 = vsel %vm1350, %v1304, 0.0
  %1982 = vadd.xlane.f32.xlu0 %v1981
  %v1983 = vpop.xlane.xlu0 %1982
  %v1984 = vsel %vm1350, %v1305, 0.0
  %1985 = vadd.xlane.f32.xlu0 %v1984
  %v1986 = vpop.xlane.xlu0 %1985
  %v1987 = vsel %vm1350, %v1306, 0.0
  %1988 = vadd.xlane.f32.xlu0 %v1987
  %v1989 = vpop.xlane.xlu0 %1988
  %v1990 = vsel %vm1350, %v1307, 0.0
  %1991 = vadd.xlane.f32.xlu0 %v1990
  %v1992 = vpop.xlane.xlu0 %1991
  %v1993 = vsel %vm1350, %v1308, 0.0
  %1994 = vadd.xlane.f32.xlu0 %v1993
  %v1995 = vpop.xlane.xlu0 %1994
  %v1996 = vsel %vm1350, %v1309, 0.0
  %1997 = vadd.xlane.f32.xlu0 %v1996
  %v1998 = vpop.xlane.xlu0 %1997
  %v1999 = vsel %vm1350, %v1310, 0.0
  %2000 = vadd.xlane.f32.xlu0 %v1999
  %v2001 = vpop.xlane.xlu0 %2000
  %v2002 = vsel %vm1350, %v1311, 0.0
  %2003 = vadd.xlane.f32.xlu0 %v2002
  %v2004 = vpop.xlane.xlu0 %2003
  %v2005 = vsel %vm1350, %v1312, 0.0
  %2006 = vadd.xlane.f32.xlu0 %v2005
  %v2007 = vpop.xlane.xlu0 %2006
  %v2008 = vsel %vm1350, %v1313, 0.0
  %2009 = vadd.xlane.f32.xlu0 %v2008
  %v2010 = vpop.xlane.xlu0 %2009
  %v2011 = vsel %vm1350, %v1314, 0.0
  %2012 = vadd.xlane.f32.xlu0 %v2011
  %v2013 = vpop.xlane.xlu0 %2012
  %v2014 = vsel %vm1350, %v1315, 0.0
  %2015 = vadd.xlane.f32.xlu0 %v2014
  %v2016 = vpop.xlane.xlu0 %2015
  %v2017 = vsel %vm1350, %v1316, 0.0
  %2018 = vadd.xlane.f32.xlu0 %v2017
  %v2019 = vpop.xlane.xlu0 %2018
  %v2020 = vsel %vm1350, %v1317, 0.0
  %2021 = vadd.xlane.f32.xlu0 %v2020
  %v2022 = vpop.xlane.xlu0 %2021
  %v2023 = vsel %vm1350, %v1318, 0.0
  %2024 = vadd.xlane.f32.xlu0 %v2023
  %v2025 = vpop.xlane.xlu0 %2024
  %v2026 = vsel %vm1350, %v1319, 0.0
  %2027 = vadd.xlane.f32.xlu0 %v2026
  %v2028 = vpop.xlane.xlu0 %2027
  %v2029 = vsel %vm1350, %v1320, 0.0
  %2030 = vadd.xlane.f32.xlu0 %v2029
  %v2031 = vpop.xlane.xlu0 %2030
  %v2032 = vsel %vm1350, %v1321, 0.0
  %2033 = vadd.xlane.f32.xlu0 %v2032
  %v2034 = vpop.xlane.xlu0 %2033
  %v2035 = vsel %vm1350, %v1322, 0.0
  %2036 = vadd.xlane.f32.xlu0 %v2035
  %v2037 = vpop.xlane.xlu0 %2036
  %v2038 = vsel %vm1350, %v1323, 0.0
  %2039 = vadd.xlane.f32.xlu0 %v2038
  %v2040 = vpop.xlane.xlu0 %2039
  %v2041 = vsel %vm1350, %v1324, 0.0
  %2042 = vadd.xlane.f32.xlu0 %v2041
  %v2043 = vpop.xlane.xlu0 %2042
  %v2044 = vsel %vm1350, %v1325, 0.0
  %2045 = vadd.xlane.f32.xlu0 %v2044
  %v2046 = vpop.xlane.xlu0 %2045
  %v2047 = vsel %vm1350, %v1326, 0.0
  %2048 = vadd.xlane.f32.xlu0 %v2047
  %v2049 = vpop.xlane.xlu0 %2048
  %v2050 = vsel %vm1350, %v1327, 0.0
  %2051 = vadd.xlane.f32.xlu0 %v2050
  %v2052 = vpop.xlane.xlu0 %2051
  %v2053 = vsel %vm1350, %v1328, 0.0
  %2054 = vadd.xlane.f32.xlu0 %v2053
  %v2055 = vpop.xlane.xlu0 %2054
  %v2056 = vsel %vm1350, %v1329, 0.0
  %2057 = vadd.xlane.f32.xlu0 %v2056
  %v2058 = vpop.xlane.xlu0 %2057
  %v2059 = vsel %vm1350, %v1330, 0.0
  %2060 = vadd.xlane.f32.xlu0 %v2059
  %v2061 = vpop.xlane.xlu0 %2060
  %v2062 = vsel %vm1350, %v1331, 0.0
  %2063 = vadd.xlane.f32.xlu0 %v2062
  %v2064 = vpop.xlane.xlu0 %2063
  %v2065 = vsel %vm1350, %v1332, 0.0
  %2066 = vadd.xlane.f32.xlu0 %v2065
  %v2067 = vpop.xlane.xlu0 %2066
  %v2068 = vsel %vm1350, %v1333, 0.0
  %2069 = vadd.xlane.f32.xlu0 %v2068
  %v2070 = vpop.xlane.xlu0 %2069
  %v2071 = vsel %vm1350, %v1334, 0.0
  %2072 = vadd.xlane.f32.xlu0 %v2071
  %v2073 = vpop.xlane.xlu0 %2072
  %v2074 = vsel %vm1350, %v1335, 0.0
  %2075 = vadd.xlane.f32.xlu0 %v2074
  %v2076 = vpop.xlane.xlu0 %2075
  %v2077 = vsel %vm1350, %v1336, 0.0
  %2078 = vadd.xlane.f32.xlu0 %v2077
  %v2079 = vpop.xlane.xlu0 %2078
  %v2080 = vsel %vm1350, %v1337, 0.0
  %2081 = vadd.xlane.f32.xlu0 %v2080
  %v2082 = vpop.xlane.xlu0 %2081
  %v2083 = vsel %vm1350, %v1338, 0.0
  %2084 = vadd.xlane.f32.xlu0 %v2083
  %v2085 = vpop.xlane.xlu0 %2084
  %v2086 = vsel %vm1350, %v1339, 0.0
  %2087 = vadd.xlane.f32.xlu0 %v2086
  %v2088 = vpop.xlane.xlu0 %2087
  %v2089 = vsel %vm1350, %v1340, 0.0
  %2090 = vadd.xlane.f32.xlu0 %v2089
  %v2091 = vpop.xlane.xlu0 %2090
  %v2092 = vsel %vm1350, %v1341, 0.0
  %2093 = vadd.xlane.f32.xlu0 %v2092
  %v2094 = vpop.xlane.xlu0 %2093
  %v2095 = vsel %vm1350, %v1342, 0.0
  %2096 = vadd.xlane.f32.xlu0 %v2095
  %v2097 = vpop.xlane.xlu0 %2096
  %v2098 = vsel %vm1350, %v1343, 0.0
  %2099 = vadd.xlane.f32.xlu0 %v2098
  %v2100 = vpop.xlane.xlu0 %2099
  %v2101 = vsel %vm1350, %v1344, 0.0
  %2102 = vadd.xlane.f32.xlu0 %v2101
  %v2103 = vpop.xlane.xlu0 %2102
  %v2104 = vsel %vm1350, %v1345, 0.0
  %2105 = vadd.xlane.f32.xlu0 %v2104
  %v2106 = vpop.xlane.xlu0 %2105
  %v2107 = vsel %vm1350, %v1346, 0.0
  %2108 = vadd.xlane.f32.xlu0 %v2107
  %v2109 = vpop.xlane.xlu0 %2108
  %v2110 = vsel %vm1350, %v1347, 0.0
  %2111 = vadd.xlane.f32.xlu0 %v2110
  %v2112 = vpop.xlane.xlu0 %2111
  %v2113 = vsel %vm1350, %v1348, 0.0
  %2114 = vadd.xlane.f32.xlu0 %v2113
  %v2115 = vpop.xlane.xlu0 %2114
  %v2116 = vsel %vm1350, %v1349, 0.0
  %2117 = vadd.xlane.f32.xlu0 %v2116
  %v2118 = vpop.xlane.xlu0 %2117
  %v2375 = vlaneseq
  %v2376 = vand.u32 %v2375, 127
  %v2377 = vperm.slane %v1353, %v2376
  %v2378 = vadd.s32 %v2376, 4294967288
  %v2379 = vperm.slane %v1356, %v2378
  %vm2380 = vcmask 130112
  %v2381 = vsel %vm2380, %v2379, %v2377
  %v2382 = vadd.s32 %v2376, 4294967280
  %v2383 = vperm.slane %v1359, %v2382
  %vm2384 = vcmask 195712
  %v2385 = vsel %vm2384, %v2383, %v2381
  %v2386 = vadd.s32 %v2376, 4294967272
  %v2387 = vperm.slane %v1362, %v2386
  %vm2388 = vcmask 261312
  %v2389 = vsel %vm2388, %v2387, %v2385
  %v2390 = vperm.slane %v1365, %v2376
  %v2391 = vperm.slane %v1368, %v2378
  %v2392 = vsel %vm2380, %v2391, %v2390
  %v2393 = vperm.slane %v1371, %v2382
  %v2394 = vsel %vm2384, %v2393, %v2392
  %v2395 = vperm.slane %v1374, %v2386
  %v2396 = vsel %vm2388, %v2395, %v2394
  %v2397 = vperm.slane %v1377, %v2376
  %v2398 = vperm.slane %v1380, %v2378
  %v2399 = vsel %vm2380, %v2398, %v2397
  %v2400 = vperm.slane %v1383, %v2382
  %v2401 = vsel %vm2384, %v2400, %v2399
  %v2402 = vperm.slane %v1386, %v2386
  %v2403 = vsel %vm2388, %v2402, %v2401
  %v2404 = vperm.slane %v1389, %v2376
  %v2405 = vperm.slane %v1392, %v2378
  %v2406 = vsel %vm2380, %v2405, %v2404
  %v2407 = vperm.slane %v1395, %v2382
  %v2408 = vsel %vm2384, %v2407, %v2406
  %v2409 = vperm.slane %v1398, %v2386
  %v2410 = vsel %vm2388, %v2409, %v2408
  %v2411 = vperm.slane %v1401, %v2376
  %v2412 = vperm.slane %v1404, %v2378
  %v2413 = vsel %vm2380, %v2412, %v2411
  %v2414 = vperm.slane %v1407, %v2382
  %v2415 = vsel %vm2384, %v2414, %v2413
  %v2416 = vperm.slane %v1410, %v2386
  %v2417 = vsel %vm2388, %v2416, %v2415
  %v2418 = vperm.slane %v1413, %v2376
  %v2419 = vperm.slane %v1416, %v2378
  %v2420 = vsel %vm2380, %v2419, %v2418
  %v2421 = vperm.slane %v1419, %v2382
  %v2422 = vsel %vm2384, %v2421, %v2420
  %v2423 = vperm.slane %v1422, %v2386
  %v2424 = vsel %vm2388, %v2423, %v2422
  %v2425 = vperm.slane %v1425, %v2376
  %v2426 = vperm.slane %v1428, %v2378
  %v2427 = vsel %vm2380, %v2426, %v2425
  %v2428 = vperm.slane %v1431, %v2382
  %v2429 = vsel %vm2384, %v2428, %v2427
  %v2430 = vperm.slane %v1434, %v2386
  %v2431 = vsel %vm2388, %v2430, %v2429
  %v2432 = vperm.slane %v1437, %v2376
  %v2433 = vperm.slane %v1440, %v2378
  %v2434 = vsel %vm2380, %v2433, %v2432
  %v2435 = vperm.slane %v1443, %v2382
  %v2436 = vsel %vm2384, %v2435, %v2434
  %v2437 = vperm.slane %v1446, %v2386
  %v2438 = vsel %vm2388, %v2437, %v2436
  %v2439 = vperm.slane %v1449, %v2376
  %v2440 = vperm.slane %v1452, %v2378
  %v2441 = vsel %vm2380, %v2440, %v2439
  %v2442 = vperm.slane %v1455, %v2382
  %v2443 = vsel %vm2384, %v2442, %v2441
  %v2444 = vperm.slane %v1458, %v2386
  %v2445 = vsel %vm2388, %v2444, %v2443
  %v2446 = vperm.slane %v1461, %v2376
  %v2447 = vperm.slane %v1464, %v2378
  %v2448 = vsel %vm2380, %v2447, %v2446
  %v2449 = vperm.slane %v1467, %v2382
  %v2450 = vsel %vm2384, %v2449, %v2448
  %v2451 = vperm.slane %v1470, %v2386
  %v2452 = vsel %vm2388, %v2451, %v2450
  %v2453 = vperm.slane %v1473, %v2376
  %v2454 = vperm.slane %v1476, %v2378
  %v2455 = vsel %vm2380, %v2454, %v2453
  %v2456 = vperm.slane %v1479, %v2382
  %v2457 = vsel %vm2384, %v2456, %v2455
  %v2458 = vperm.slane %v1482, %v2386
  %v2459 = vsel %vm2388, %v2458, %v2457
  %v2460 = vperm.slane %v1485, %v2376
  %v2461 = vperm.slane %v1488, %v2378
  %v2462 = vsel %vm2380, %v2461, %v2460
  %v2463 = vperm.slane %v1491, %v2382
  %v2464 = vsel %vm2384, %v2463, %v2462
  %v2465 = vperm.slane %v1494, %v2386
  %v2466 = vsel %vm2388, %v2465, %v2464
  %v2467 = vperm.slane %v1497, %v2376
  %v2468 = vperm.slane %v1500, %v2378
  %v2469 = vsel %vm2380, %v2468, %v2467
  %v2470 = vperm.slane %v1503, %v2382
  %v2471 = vsel %vm2384, %v2470, %v2469
  %v2472 = vperm.slane %v1506, %v2386
  %v2473 = vsel %vm2388, %v2472, %v2471
  %v2474 = vperm.slane %v1509, %v2376
  %v2475 = vperm.slane %v1512, %v2378
  %v2476 = vsel %vm2380, %v2475, %v2474
  %v2477 = vperm.slane %v1515, %v2382
  %v2478 = vsel %vm2384, %v2477, %v2476
  %v2479 = vperm.slane %v1518, %v2386
  %v2480 = vsel %vm2388, %v2479, %v2478
  %v2481 = vperm.slane %v1521, %v2376
  %v2482 = vperm.slane %v1524, %v2378
  %v2483 = vsel %vm2380, %v2482, %v2481
  %v2484 = vperm.slane %v1527, %v2382
  %v2485 = vsel %vm2384, %v2484, %v2483
  %v2486 = vperm.slane %v1530, %v2386
  %v2487 = vsel %vm2388, %v2486, %v2485
  %v2488 = vperm.slane %v1533, %v2376
  %v2489 = vperm.slane %v1536, %v2378
  %v2490 = vsel %vm2380, %v2489, %v2488
  %v2491 = vperm.slane %v1539, %v2382
  %v2492 = vsel %vm2384, %v2491, %v2490
  %v2493 = vperm.slane %v1542, %v2386
  %v2494 = vsel %vm2388, %v2493, %v2492
  %v2495 = vperm.slane %v1545, %v2376
  %v2496 = vperm.slane %v1548, %v2378
  %v2497 = vsel %vm2380, %v2496, %v2495
  %v2498 = vperm.slane %v1551, %v2382
  %v2499 = vsel %vm2384, %v2498, %v2497
  %v2500 = vperm.slane %v1554, %v2386
  %v2501 = vsel %vm2388, %v2500, %v2499
  %v2502 = vperm.slane %v1557, %v2376
  %v2503 = vperm.slane %v1560, %v2378
  %v2504 = vsel %vm2380, %v2503, %v2502
  %v2505 = vperm.slane %v1563, %v2382
  %v2506 = vsel %vm2384, %v2505, %v2504
  %v2507 = vperm.slane %v1566, %v2386
  %v2508 = vsel %vm2388, %v2507, %v2506
  %v2509 = vperm.slane %v1569, %v2376
  %v2510 = vperm.slane %v1572, %v2378
  %v2511 = vsel %vm2380, %v2510, %v2509
  %v2512 = vperm.slane %v1575, %v2382
  %v2513 = vsel %vm2384, %v2512, %v2511
  %v2514 = vperm.slane %v1578, %v2386
  %v2515 = vsel %vm2388, %v2514, %v2513
  %v2516 = vperm.slane %v1581, %v2376
  %v2517 = vperm.slane %v1584, %v2378
  %v2518 = vsel %vm2380, %v2517, %v2516
  %v2519 = vperm.slane %v1587, %v2382
  %v2520 = vsel %vm2384, %v2519, %v2518
  %v2521 = vperm.slane %v1590, %v2386
  %v2522 = vsel %vm2388, %v2521, %v2520
  %v2523 = vperm.slane %v1593, %v2376
  %v2524 = vperm.slane %v1596, %v2378
  %v2525 = vsel %vm2380, %v2524, %v2523
  %v2526 = vperm.slane %v1599, %v2382
  %v2527 = vsel %vm2384, %v2526, %v2525
  %v2528 = vperm.slane %v1602, %v2386
  %v2529 = vsel %vm2388, %v2528, %v2527
  %v2530 = vperm.slane %v1605, %v2376
  %v2531 = vperm.slane %v1608, %v2378
  %v2532 = vsel %vm2380, %v2531, %v2530
  %v2533 = vperm.slane %v1611, %v2382
  %v2534 = vsel %vm2384, %v2533, %v2532
  %v2535 = vperm.slane %v1614, %v2386
  %v2536 = vsel %vm2388, %v2535, %v2534
  %v2537 = vperm.slane %v1617, %v2376
  %v2538 = vperm.slane %v1620, %v2378
  %v2539 = vsel %vm2380, %v2538, %v2537
  %v2540 = vperm.slane %v1623, %v2382
  %v2541 = vsel %vm2384, %v2540, %v2539
  %v2542 = vperm.slane %v1626, %v2386
  %v2543 = vsel %vm2388, %v2542, %v2541
  %v2544 = vperm.slane %v1629, %v2376
  %v2545 = vperm.slane %v1632, %v2378
  %v2546 = vsel %vm2380, %v2545, %v2544
  %v2547 = vperm.slane %v1635, %v2382
  %v2548 = vsel %vm2384, %v2547, %v2546
  %v2549 = vperm.slane %v1638, %v2386
  %v2550 = vsel %vm2388, %v2549, %v2548
  %v2551 = vperm.slane %v1641, %v2376
  %v2552 = vperm.slane %v1644, %v2378
  %v2553 = vsel %vm2380, %v2552, %v2551
  %v2554 = vperm.slane %v1647, %v2382
  %v2555 = vsel %vm2384, %v2554, %v2553
  %v2556 = vperm.slane %v1650, %v2386
  %v2557 = vsel %vm2388, %v2556, %v2555
  %v2558 = vperm.slane %v1653, %v2376
  %v2559 = vperm.slane %v1656, %v2378
  %v2560 = vsel %vm2380, %v2559, %v2558
  %v2561 = vperm.slane %v1659, %v2382
  %v2562 = vsel %vm2384, %v2561, %v2560
  %v2563 = vperm.slane %v1662, %v2386
  %v2564 = vsel %vm2388, %v2563, %v2562
  %v2565 = vperm.slane %v1665, %v2376
  %v2566 = vperm.slane %v1668, %v2378
  %v2567 = vsel %vm2380, %v2566, %v2565
  %v2568 = vperm.slane %v1671, %v2382
  %v2569 = vsel %vm2384, %v2568, %v2567
  %v2570 = vperm.slane %v1674, %v2386
  %v2571 = vsel %vm2388, %v2570, %v2569
  %v2572 = vperm.slane %v1677, %v2376
  %v2573 = vperm.slane %v1680, %v2378
  %v2574 = vsel %vm2380, %v2573, %v2572
  %v2575 = vperm.slane %v1683, %v2382
  %v2576 = vsel %vm2384, %v2575, %v2574
  %v2577 = vperm.slane %v1686, %v2386
  %v2578 = vsel %vm2388, %v2577, %v2576
  %v2579 = vperm.slane %v1689, %v2376
  %v2580 = vperm.slane %v1692, %v2378
  %v2581 = vsel %vm2380, %v2580, %v2579
  %v2582 = vperm.slane %v1695, %v2382
  %v2583 = vsel %vm2384, %v2582, %v2581
  %v2584 = vperm.slane %v1698, %v2386
  %v2585 = vsel %vm2388, %v2584, %v2583
  %v2586 = vperm.slane %v1701, %v2376
  %v2587 = vperm.slane %v1704, %v2378
  %v2588 = vsel %vm2380, %v2587, %v2586
  %v2589 = vperm.slane %v1707, %v2382
  %v2590 = vsel %vm2384, %v2589, %v2588
  %v2591 = vperm.slane %v1710, %v2386
  %v2592 = vsel %vm2388, %v2591, %v2590
  %v2593 = vperm.slane %v1713, %v2376
  %v2594 = vperm.slane %v1716, %v2378
  %v2595 = vsel %vm2380, %v2594, %v2593
  %v2596 = vperm.slane %v1719, %v2382
  %v2597 = vsel %vm2384, %v2596, %v2595
  %v2598 = vperm.slane %v1722, %v2386
  %v2599 = vsel %vm2388, %v2598, %v2597
  %v2600 = vperm.slane %v1725, %v2376
  %v2601 = vperm.slane %v1728, %v2378
  %v2602 = vsel %vm2380, %v2601, %v2600
  %v2603 = vperm.slane %v1731, %v2382
  %v2604 = vsel %vm2384, %v2603, %v2602
  %v2605 = vperm.slane %v1734, %v2386
  %v2606 = vsel %vm2388, %v2605, %v2604
  %v2607 = vperm.slane %v1737, %v2376
  %v2608 = vperm.slane %v1740, %v2378
  %v2609 = vsel %vm2380, %v2608, %v2607
  %v2610 = vperm.slane %v1743, %v2382
  %v2611 = vsel %vm2384, %v2610, %v2609
  %v2612 = vperm.slane %v1746, %v2386
  %v2613 = vsel %vm2388, %v2612, %v2611
  %v2614 = vperm.slane %v1749, %v2376
  %v2615 = vperm.slane %v1752, %v2378
  %v2616 = vsel %vm2380, %v2615, %v2614
  %v2617 = vperm.slane %v1755, %v2382
  %v2618 = vsel %vm2384, %v2617, %v2616
  %v2619 = vperm.slane %v1758, %v2386
  %v2620 = vsel %vm2388, %v2619, %v2618
  %v2621 = vperm.slane %v1761, %v2376
  %v2622 = vperm.slane %v1764, %v2378
  %v2623 = vsel %vm2380, %v2622, %v2621
  %v2624 = vperm.slane %v1767, %v2382
  %v2625 = vsel %vm2384, %v2624, %v2623
  %v2626 = vperm.slane %v1770, %v2386
  %v2627 = vsel %vm2388, %v2626, %v2625
  %v2628 = vperm.slane %v1773, %v2376
  %v2629 = vperm.slane %v1776, %v2378
  %v2630 = vsel %vm2380, %v2629, %v2628
  %v2631 = vperm.slane %v1779, %v2382
  %v2632 = vsel %vm2384, %v2631, %v2630
  %v2633 = vperm.slane %v1782, %v2386
  %v2634 = vsel %vm2388, %v2633, %v2632
  %v2635 = vperm.slane %v1785, %v2376
  %v2636 = vperm.slane %v1788, %v2378
  %v2637 = vsel %vm2380, %v2636, %v2635
  %v2638 = vperm.slane %v1791, %v2382
  %v2639 = vsel %vm2384, %v2638, %v2637
  %v2640 = vperm.slane %v1794, %v2386
  %v2641 = vsel %vm2388, %v2640, %v2639
  %v2642 = vperm.slane %v1797, %v2376
  %v2643 = vperm.slane %v1800, %v2378
  %v2644 = vsel %vm2380, %v2643, %v2642
  %v2645 = vperm.slane %v1803, %v2382
  %v2646 = vsel %vm2384, %v2645, %v2644
  %v2647 = vperm.slane %v1806, %v2386
  %v2648 = vsel %vm2388, %v2647, %v2646
  %v2649 = vperm.slane %v1809, %v2376
  %v2650 = vperm.slane %v1812, %v2378
  %v2651 = vsel %vm2380, %v2650, %v2649
  %v2652 = vperm.slane %v1815, %v2382
  %v2653 = vsel %vm2384, %v2652, %v2651
  %v2654 = vperm.slane %v1818, %v2386
  %v2655 = vsel %vm2388, %v2654, %v2653
  %v2656 = vperm.slane %v1821, %v2376
  %v2657 = vperm.slane %v1824, %v2378
  %v2658 = vsel %vm2380, %v2657, %v2656
  %v2659 = vperm.slane %v1827, %v2382
  %v2660 = vsel %vm2384, %v2659, %v2658
  %v2661 = vperm.slane %v1830, %v2386
  %v2662 = vsel %vm2388, %v2661, %v2660
  %v2663 = vperm.slane %v1833, %v2376
  %v2664 = vperm.slane %v1836, %v2378
  %v2665 = vsel %vm2380, %v2664, %v2663
  %v2666 = vperm.slane %v1839, %v2382
  %v2667 = vsel %vm2384, %v2666, %v2665
  %v2668 = vperm.slane %v1842, %v2386
  %v2669 = vsel %vm2388, %v2668, %v2667
  %v2670 = vperm.slane %v1845, %v2376
  %v2671 = vperm.slane %v1848, %v2378
  %v2672 = vsel %vm2380, %v2671, %v2670
  %v2673 = vperm.slane %v1851, %v2382
  %v2674 = vsel %vm2384, %v2673, %v2672
  %v2675 = vperm.slane %v1854, %v2386
  %v2676 = vsel %vm2388, %v2675, %v2674
  %v2677 = vperm.slane %v1857, %v2376
  %v2678 = vperm.slane %v1860, %v2378
  %v2679 = vsel %vm2380, %v2678, %v2677
  %v2680 = vperm.slane %v1863, %v2382
  %v2681 = vsel %vm2384, %v2680, %v2679
  %v2682 = vperm.slane %v1866, %v2386
  %v2683 = vsel %vm2388, %v2682, %v2681
  %v2684 = vperm.slane %v1869, %v2376
  %v2685 = vperm.slane %v1872, %v2378
  %v2686 = vsel %vm2380, %v2685, %v2684
  %v2687 = vperm.slane %v1875, %v2382
  %v2688 = vsel %vm2384, %v2687, %v2686
  %v2689 = vperm.slane %v1878, %v2386
  %v2690 = vsel %vm2388, %v2689, %v2688
  %v2691 = vperm.slane %v1881, %v2376
  %v2692 = vperm.slane %v1884, %v2378
  %v2693 = vsel %vm2380, %v2692, %v2691
  %v2694 = vperm.slane %v1887, %v2382
  %v2695 = vsel %vm2384, %v2694, %v2693
  %v2696 = vperm.slane %v1890, %v2386
  %v2697 = vsel %vm2388, %v2696, %v2695
  %v2698 = vperm.slane %v1893, %v2376
  %v2699 = vperm.slane %v1896, %v2378
  %v2700 = vsel %vm2380, %v2699, %v2698
  %v2701 = vperm.slane %v1899, %v2382
  %v2702 = vsel %vm2384, %v2701, %v2700
  %v2703 = vperm.slane %v1902, %v2386
  %v2704 = vsel %vm2388, %v2703, %v2702
  %v2705 = vperm.slane %v1905, %v2376
  %v2706 = vperm.slane %v1908, %v2378
  %v2707 = vsel %vm2380, %v2706, %v2705
  %v2708 = vperm.slane %v1911, %v2382
  %v2709 = vsel %vm2384, %v2708, %v2707
  %v2710 = vperm.slane %v1914, %v2386
  %v2711 = vsel %vm2388, %v2710, %v2709
  %v2712 = vperm.slane %v1917, %v2376
  %v2713 = vperm.slane %v1920, %v2378
  %v2714 = vsel %vm2380, %v2713, %v2712
  %v2715 = vperm.slane %v1923, %v2382
  %v2716 = vsel %vm2384, %v2715, %v2714
  %v2717 = vperm.slane %v1926, %v2386
  %v2718 = vsel %vm2388, %v2717, %v2716
  %v2719 = vperm.slane %v1929, %v2376
  %v2720 = vperm.slane %v1932, %v2378
  %v2721 = vsel %vm2380, %v2720, %v2719
  %v2722 = vperm.slane %v1935, %v2382
  %v2723 = vsel %vm2384, %v2722, %v2721
  %v2724 = vperm.slane %v1938, %v2386
  %v2725 = vsel %vm2388, %v2724, %v2723
  %v2726 = vperm.slane %v1941, %v2376
  %v2727 = vperm.slane %v1944, %v2378
  %v2728 = vsel %vm2380, %v2727, %v2726
  %v2729 = vperm.slane %v1947, %v2382
  %v2730 = vsel %vm2384, %v2729, %v2728
  %v2731 = vperm.slane %v1950, %v2386
  %v2732 = vsel %vm2388, %v2731, %v2730
  %v2733 = vperm.slane %v1953, %v2376
  %v2734 = vperm.slane %v1956, %v2378
  %v2735 = vsel %vm2380, %v2734, %v2733
  %v2736 = vperm.slane %v1959, %v2382
  %v2737 = vsel %vm2384, %v2736, %v2735
  %v2738 = vperm.slane %v1962, %v2386
  %v2739 = vsel %vm2388, %v2738, %v2737
  %v2740 = vperm.slane %v1965, %v2376
  %v2741 = vperm.slane %v1968, %v2378
  %v2742 = vsel %vm2380, %v2741, %v2740
  %v2743 = vperm.slane %v1971, %v2382
  %v2744 = vsel %vm2384, %v2743, %v2742
  %v2745 = vperm.slane %v1974, %v2386
  %v2746 = vsel %vm2388, %v2745, %v2744
  %v2747 = vperm.slane %v1977, %v2376
  %v2748 = vperm.slane %v1980, %v2378
  %v2749 = vsel %vm2380, %v2748, %v2747
  %v2750 = vperm.slane %v1983, %v2382
  %v2751 = vsel %vm2384, %v2750, %v2749
  %v2752 = vperm.slane %v1986, %v2386
  %v2753 = vsel %vm2388, %v2752, %v2751
  %v2754 = vperm.slane %v1989, %v2376
  %v2755 = vperm.slane %v1992, %v2378
  %v2756 = vsel %vm2380, %v2755, %v2754
  %v2757 = vperm.slane %v1995, %v2382
  %v2758 = vsel %vm2384, %v2757, %v2756
  %v2759 = vperm.slane %v1998, %v2386
  %v2760 = vsel %vm2388, %v2759, %v2758
  %v2761 = vperm.slane %v2001, %v2376
  %v2762 = vperm.slane %v2004, %v2378
  %v2763 = vsel %vm2380, %v2762, %v2761
  %v2764 = vperm.slane %v2007, %v2382
  %v2765 = vsel %vm2384, %v2764, %v2763
  %v2766 = vperm.slane %v2010, %v2386
  %v2767 = vsel %vm2388, %v2766, %v2765
  %v2768 = vperm.slane %v2013, %v2376
  %v2769 = vperm.slane %v2016, %v2378
  %v2770 = vsel %vm2380, %v2769, %v2768
  %v2771 = vperm.slane %v2019, %v2382
  %v2772 = vsel %vm2384, %v2771, %v2770
  %v2773 = vperm.slane %v2022, %v2386
  %v2774 = vsel %vm2388, %v2773, %v2772
  %v2775 = vperm.slane %v2025, %v2376
  %v2776 = vperm.slane %v2028, %v2378
  %v2777 = vsel %vm2380, %v2776, %v2775
  %v2778 = vperm.slane %v2031, %v2382
  %v2779 = vsel %vm2384, %v2778, %v2777
  %v2780 = vperm.slane %v2034, %v2386
  %v2781 = vsel %vm2388, %v2780, %v2779
  %v2782 = vperm.slane %v2037, %v2376
  %v2783 = vperm.slane %v2040, %v2378
  %v2784 = vsel %vm2380, %v2783, %v2782
  %v2785 = vperm.slane %v2043, %v2382
  %v2786 = vsel %vm2384, %v2785, %v2784
  %v2787 = vperm.slane %v2046, %v2386
  %v2788 = vsel %vm2388, %v2787, %v2786
  %v2789 = vperm.slane %v2049, %v2376
  %v2790 = vperm.slane %v2052, %v2378
  %v2791 = vsel %vm2380, %v2790, %v2789
  %v2792 = vperm.slane %v2055, %v2382
  %v2793 = vsel %vm2384, %v2792, %v2791
  %v2794 = vperm.slane %v2058, %v2386
  %v2795 = vsel %vm2388, %v2794, %v2793
  %v2796 = vperm.slane %v2061, %v2376
  %v2797 = vperm.slane %v2064, %v2378
  %v2798 = vsel %vm2380, %v2797, %v2796
  %v2799 = vperm.slane %v2067, %v2382
  %v2800 = vsel %vm2384, %v2799, %v2798
  %v2801 = vperm.slane %v2070, %v2386
  %v2802 = vsel %vm2388, %v2801, %v2800
  %v2803 = vperm.slane %v2073, %v2376
  %v2804 = vperm.slane %v2076, %v2378
  %v2805 = vsel %vm2380, %v2804, %v2803
  %v2806 = vperm.slane %v2079, %v2382
  %v2807 = vsel %vm2384, %v2806, %v2805
  %v2808 = vperm.slane %v2082, %v2386
  %v2809 = vsel %vm2388, %v2808, %v2807
  %v2810 = vperm.slane %v2085, %v2376
  %v2811 = vperm.slane %v2088, %v2378
  %v2812 = vsel %vm2380, %v2811, %v2810
  %v2813 = vperm.slane %v2091, %v2382
  %v2814 = vsel %vm2384, %v2813, %v2812
  %v2815 = vperm.slane %v2094, %v2386
  %v2816 = vsel %vm2388, %v2815, %v2814
  %v2817 = vperm.slane %v2097, %v2376
  %v2818 = vperm.slane %v2100, %v2378
  %v2819 = vsel %vm2380, %v2818, %v2817
  %v2820 = vperm.slane %v2103, %v2382
  %v2821 = vsel %vm2384, %v2820, %v2819
  %v2822 = vperm.slane %v2106, %v2386
  %v2823 = vsel %vm2388, %v2822, %v2821
  %v2824 = vperm.slane %v2109, %v2376
  %v2825 = vperm.slane %v2112, %v2378
  %v2826 = vsel %vm2380, %v2825, %v2824
  %v2827 = vperm.slane %v2115, %v2382
  %v2828 = vsel %vm2384, %v2827, %v2826
  %v2829 = vperm.slane %v2118, %v2386
  %v2830 = vsel %vm2388, %v2829, %v2828
  %vm2831 = vcmask 1041409
  %v2832 = vsel %vm2831, %v2396, %v2389
  %vm2833 = vcmask 1042434
  %v2834 = vsel %vm2833, %v2403, %v2832
  %vm2835 = vcmask 1043459
  %v2836 = vsel %vm2835, %v2410, %v2834
  %vm2837 = vcmask 1044484
  %v2838 = vsel %vm2837, %v2417, %v2836
  %vm2839 = vcmask 1045509
  %v2840 = vsel %vm2839, %v2424, %v2838
  %vm2841 = vcmask 1046534
  %v2842 = vsel %vm2841, %v2431, %v2840
  %vm2843 = vcmask 1047559
  %v2844 = vsel %vm2843, %v2438, %v2842
  %v2845 = vsel %vm2831, %v2452, %v2445
  %v2846 = vsel %vm2833, %v2459, %v2845
  %v2847 = vsel %vm2835, %v2466, %v2846
  %v2848 = vsel %vm2837, %v2473, %v2847
  %v2849 = vsel %vm2839, %v2480, %v2848
  %v2850 = vsel %vm2841, %v2487, %v2849
  %v2851 = vsel %vm2843, %v2494, %v2850
  %v2852 = vsel %vm2831, %v2508, %v2501
  %v2853 = vsel %vm2833, %v2515, %v2852
  %v2854 = vsel %vm2835, %v2522, %v2853
  %v2855 = vsel %vm2837, %v2529, %v2854
  %v2856 = vsel %vm2839, %v2536, %v2855
  %v2857 = vsel %vm2841, %v2543, %v2856
  %v2858 = vsel %vm2843, %v2550, %v2857
  %v2859 = vsel %vm2831, %v2564, %v2557
  %v2860 = vsel %vm2833, %v2571, %v2859
  %v2861 = vsel %vm2835, %v2578, %v2860
  %v2862 = vsel %vm2837, %v2585, %v2861
  %v2863 = vsel %vm2839, %v2592, %v2862
  %v2864 = vsel %vm2841, %v2599, %v2863
  %v2865 = vsel %vm2843, %v2606, %v2864
  %v2866 = vsel %vm2831, %v2620, %v2613
  %v2867 = vsel %vm2833, %v2627, %v2866
  %v2868 = vsel %vm2835, %v2634, %v2867
  %v2869 = vsel %vm2837, %v2641, %v2868
  %v2870 = vsel %vm2839, %v2648, %v2869
  %v2871 = vsel %vm2841, %v2655, %v2870
  %v2872 = vsel %vm2843, %v2662, %v2871
  %v2873 = vsel %vm2831, %v2676, %v2669
  %v2874 = vsel %vm2833, %v2683, %v2873
  %v2875 = vsel %vm2835, %v2690, %v2874
  %v2876 = vsel %vm2837, %v2697, %v2875
  %v2877 = vsel %vm2839, %v2704, %v2876
  %v2878 = vsel %vm2841, %v2711, %v2877
  %v2879 = vsel %vm2843, %v2718, %v2878
  %v2880 = vsel %vm2831, %v2732, %v2725
  %v2881 = vsel %vm2833, %v2739, %v2880
  %v2882 = vsel %vm2835, %v2746, %v2881
  %v2883 = vsel %vm2837, %v2753, %v2882
  %v2884 = vsel %vm2839, %v2760, %v2883
  %v2885 = vsel %vm2841, %v2767, %v2884
  %v2886 = vsel %vm2843, %v2774, %v2885
  %v2887 = vsel %vm2831, %v2788, %v2781
  %v2888 = vsel %vm2833, %v2795, %v2887
  %v2889 = vsel %vm2835, %v2802, %v2888
  %v2890 = vsel %vm2837, %v2809, %v2889
  %v2891 = vsel %vm2839, %v2816, %v2890
  %v2892 = vsel %vm2841, %v2823, %v2891
  %v2893 = vsel %vm2843, %v2830, %v2892
  %vm2902 = vcmask 261120
  %v2903 = vsel %vm2902, %v2844, 0.0
  %2904 = vadd.xlane.f32.xlu0 %v2903
  %v2905 = vpop.xlane.xlu0 %2904
  %v2906 = vsel %vm2902, %v2851, 0.0
  %2907 = vadd.xlane.f32.xlu0 %v2906
  %v2908 = vpop.xlane.xlu0 %2907
  %v2909 = vsel %vm2902, %v2858, 0.0
  %2910 = vadd.xlane.f32.xlu0 %v2909
  %v2911 = vpop.xlane.xlu0 %2910
  %v2912 = vsel %vm2902, %v2865, 0.0
  %2913 = vadd.xlane.f32.xlu0 %v2912
  %v2914 = vpop.xlane.xlu0 %2913
  %v2915 = vsel %vm2902, %v2872, 0.0
  %2916 = vadd.xlane.f32.xlu0 %v2915
  %v2917 = vpop.xlane.xlu0 %2916
  %v2918 = vsel %vm2902, %v2879, 0.0
  %2919 = vadd.xlane.f32.xlu0 %v2918
  %v2920 = vpop.xlane.xlu0 %2919
  %v2921 = vsel %vm2902, %v2886, 0.0
  %2922 = vadd.xlane.f32.xlu0 %v2921
  %v2923 = vpop.xlane.xlu0 %2922
  %v2924 = vsel %vm2902, %v2893, 0.0
  %2925 = vadd.xlane.f32.xlu0 %v2924
  %v2926 = vpop.xlane.xlu0 %2925
  %v2927 = vadd.f32 %v2905, %v1046
  %v2928 = vadd.f32 %v2908, %v1047
  %v2929 = vadd.f32 %v2911, %v1048
  %v2930 = vadd.f32 %v2914, %v1049
  %v2931 = vadd.f32 %v2917, %v1050
  %v2932 = vadd.f32 %v2920, %v1051
  %v2933 = vadd.f32 %v2923, %v1052
  %v2934 = vadd.f32 %v2926, %v1053
  %v2935 = vmax.f32 %v2927, 0.0
  %v2936 = vmax.f32 %v2928, 0.0
  %v2937 = vmax.f32 %v2929, 0.0
  %v2938 = vmax.f32 %v2930, 0.0
  %v2939 = vmax.f32 %v2931, 0.0
  %v2940 = vmax.f32 %v2932, 0.0
  %v2941 = vmax.f32 %v2933, 0.0
  %v2942 = vmax.f32 %v2934, 0.0
  %vm2943 = vcmask 7168
  %2944 = vst.msk [vmem:[%s5] sm:$0xff] %vm2943, %v2935
  %2945 = vst.msk [vmem:[%s5 + $0x8] sm:$0xff] %vm2943, %v2936
  %2946 = vst.msk [vmem:[%s5 + $0x10] sm:$0xff] %vm2943, %v2937
  %2947 = vst.msk [vmem:[%s5 + $0x18] sm:$0xff] %vm2943, %v2938
  %2948 = vst.msk [vmem:[%s5 + $0x20] sm:$0xff] %vm2943, %v2939
  %2949 = vst.msk [vmem:[%s5 + $0x28] sm:$0xff] %vm2943, %v2940
  %2950 = vst.msk [vmem:[%s5 + $0x30] sm:$0xff] %vm2943, %v2941
  %2951 = vst.msk [vmem:[%s5 + $0x38] sm:$0xff] %vm2943, %v2942
  %v2952 = vmax.f32 %v663, %v701
  %v2953 = vmax.f32 %v665, %v703
  %v2954 = vmax.f32 %v668, %v706
  %v2955 = vmax.f32 %v670, %v708
  %v2956 = vmax.f32 %v2952, %v739
  %v2957 = vmax.f32 %v2953, %v741
  %v2958 = vmax.f32 %v2954, %v744
  %v2959 = vmax.f32 %v2955, %v746
  %v2960 = vmax.f32 %v2956, %v777
  %v2961 = vmax.f32 %v2957, %v779
  %v2962 = vmax.f32 %v2958, %v782
  %v2963 = vmax.f32 %v2959, %v784
  %v2964 = vadd.f32 %v2960, %v1069
  %v2965 = vadd.f32 %v2961, %v1074
  %v2966 = vadd.f32 %v2962, %v1079
  %v2967 = vadd.f32 %v2963, %v1084
  %v2968 = vmax.f32 %v2964, 0.0
  %v2969 = vmax.f32 %v2965, 0.0
  %v2970 = vmax.f32 %v2966, 0.0
  %v2971 = vmax.f32 %v2967, 0.0
  %v2972 = vmul.f32 %v790, %v2968
  %v2973 = vmul.f32 %v791, %v2969
  %v2974 = vmul.f32 %v792, %v2970
  %v2975 = vmul.f32 %v793, %v2971
  %v2976 = vmul.f32 %v794, %v2968
  %v2977 = vmul.f32 %v795, %v2969
  %v2978 = vmul.f32 %v796, %v2970
  %v2979 = vmul.f32 %v797, %v2971
  %v2980 = vmul.f32 %v798, %v2968
  %v2981 = vmul.f32 %v799, %v2969
  %v2982 = vmul.f32 %v800, %v2970
  %v2983 = vmul.f32 %v801, %v2971
  %v2984 = vmul.f32 %v802, %v2968
  %v2985 = vmul.f32 %v803, %v2969
  %v2986 = vmul.f32 %v804, %v2970
  %v2987 = vmul.f32 %v805, %v2971
  %v2988 = vmul.f32 %v806, %v2968
  %v2989 = vmul.f32 %v807, %v2969
  %v2990 = vmul.f32 %v808, %v2970
  %v2991 = vmul.f32 %v809, %v2971
  %v2992 = vmul.f32 %v810, %v2968
  %v2993 = vmul.f32 %v811, %v2969
  %v2994 = vmul.f32 %v812, %v2970
  %v2995 = vmul.f32 %v813, %v2971
  %v2996 = vmul.f32 %v814, %v2968
  %v2997 = vmul.f32 %v815, %v2969
  %v2998 = vmul.f32 %v816, %v2970
  %v2999 = vmul.f32 %v817, %v2971
  %v3000 = vmul.f32 %v818, %v2968
  %v3001 = vmul.f32 %v819, %v2969
  %v3002 = vmul.f32 %v820, %v2970
  %v3003 = vmul.f32 %v821, %v2971
  %v3004 = vmul.f32 %v822, %v2968
  %v3005 = vmul.f32 %v823, %v2969
  %v3006 = vmul.f32 %v824, %v2970
  %v3007 = vmul.f32 %v825, %v2971
  %v3008 = vmul.f32 %v826, %v2968
  %v3009 = vmul.f32 %v827, %v2969
  %v3010 = vmul.f32 %v828, %v2970
  %v3011 = vmul.f32 %v829, %v2971
  %v3012 = vmul.f32 %v830, %v2968
  %v3013 = vmul.f32 %v831, %v2969
  %v3014 = vmul.f32 %v832, %v2970
  %v3015 = vmul.f32 %v833, %v2971
  %v3016 = vmul.f32 %v834, %v2968
  %v3017 = vmul.f32 %v835, %v2969
  %v3018 = vmul.f32 %v836, %v2970
  %v3019 = vmul.f32 %v837, %v2971
  %v3020 = vmul.f32 %v838, %v2968
  %v3021 = vmul.f32 %v839, %v2969
  %v3022 = vmul.f32 %v840, %v2970
  %v3023 = vmul.f32 %v841, %v2971
  %v3024 = vmul.f32 %v842, %v2968
  %v3025 = vmul.f32 %v843, %v2969
  %v3026 = vmul.f32 %v844, %v2970
  %v3027 = vmul.f32 %v845, %v2971
  %v3028 = vmul.f32 %v846, %v2968
  %v3029 = vmul.f32 %v847, %v2969
  %v3030 = vmul.f32 %v848, %v2970
  %v3031 = vmul.f32 %v849, %v2971
  %v3032 = vmul.f32 %v850, %v2968
  %v3033 = vmul.f32 %v851, %v2969
  %v3034 = vmul.f32 %v852, %v2970
  %v3035 = vmul.f32 %v853, %v2971
  %v3036 = vmul.f32 %v854, %v2968
  %v3037 = vmul.f32 %v855, %v2969
  %v3038 = vmul.f32 %v856, %v2970
  %v3039 = vmul.f32 %v857, %v2971
  %v3040 = vmul.f32 %v858, %v2968
  %v3041 = vmul.f32 %v859, %v2969
  %v3042 = vmul.f32 %v860, %v2970
  %v3043 = vmul.f32 %v861, %v2971
  %v3044 = vmul.f32 %v862, %v2968
  %v3045 = vmul.f32 %v863, %v2969
  %v3046 = vmul.f32 %v864, %v2970
  %v3047 = vmul.f32 %v865, %v2971
  %v3048 = vmul.f32 %v866, %v2968
  %v3049 = vmul.f32 %v867, %v2969
  %v3050 = vmul.f32 %v868, %v2970
  %v3051 = vmul.f32 %v869, %v2971
  %v3052 = vmul.f32 %v870, %v2968
  %v3053 = vmul.f32 %v871, %v2969
  %v3054 = vmul.f32 %v872, %v2970
  %v3055 = vmul.f32 %v873, %v2971
  %v3056 = vmul.f32 %v874, %v2968
  %v3057 = vmul.f32 %v875, %v2969
  %v3058 = vmul.f32 %v876, %v2970
  %v3059 = vmul.f32 %v877, %v2971
  %v3060 = vmul.f32 %v878, %v2968
  %v3061 = vmul.f32 %v879, %v2969
  %v3062 = vmul.f32 %v880, %v2970
  %v3063 = vmul.f32 %v881, %v2971
  %v3064 = vmul.f32 %v882, %v2968
  %v3065 = vmul.f32 %v883, %v2969
  %v3066 = vmul.f32 %v884, %v2970
  %v3067 = vmul.f32 %v885, %v2971
  %v3068 = vmul.f32 %v886, %v2968
  %v3069 = vmul.f32 %v887, %v2969
  %v3070 = vmul.f32 %v888, %v2970
  %v3071 = vmul.f32 %v889, %v2971
  %v3072 = vmul.f32 %v890, %v2968
  %v3073 = vmul.f32 %v891, %v2969
  %v3074 = vmul.f32 %v892, %v2970
  %v3075 = vmul.f32 %v893, %v2971
  %v3076 = vmul.f32 %v894, %v2968
  %v3077 = vmul.f32 %v895, %v2969
  %v3078 = vmul.f32 %v896, %v2970
  %v3079 = vmul.f32 %v897, %v2971
  %v3080 = vmul.f32 %v898, %v2968
  %v3081 = vmul.f32 %v899, %v2969
  %v3082 = vmul.f32 %v900, %v2970
  %v3083 = vmul.f32 %v901, %v2971
  %v3084 = vmul.f32 %v902, %v2968
  %v3085 = vmul.f32 %v903, %v2969
  %v3086 = vmul.f32 %v904, %v2970
  %v3087 = vmul.f32 %v905, %v2971
  %v3088 = vmul.f32 %v906, %v2968
  %v3089 = vmul.f32 %v907, %v2969
  %v3090 = vmul.f32 %v908, %v2970
  %v3091 = vmul.f32 %v909, %v2971
  %v3092 = vmul.f32 %v910, %v2968
  %v3093 = vmul.f32 %v911, %v2969
  %v3094 = vmul.f32 %v912, %v2970
  %v3095 = vmul.f32 %v913, %v2971
  %v3096 = vmul.f32 %v914, %v2968
  %v3097 = vmul.f32 %v915, %v2969
  %v3098 = vmul.f32 %v916, %v2970
  %v3099 = vmul.f32 %v917, %v2971
  %v3100 = vmul.f32 %v918, %v2968
  %v3101 = vmul.f32 %v919, %v2969
  %v3102 = vmul.f32 %v920, %v2970
  %v3103 = vmul.f32 %v921, %v2971
  %v3104 = vmul.f32 %v922, %v2968
  %v3105 = vmul.f32 %v923, %v2969
  %v3106 = vmul.f32 %v924, %v2970
  %v3107 = vmul.f32 %v925, %v2971
  %v3108 = vmul.f32 %v926, %v2968
  %v3109 = vmul.f32 %v927, %v2969
  %v3110 = vmul.f32 %v928, %v2970
  %v3111 = vmul.f32 %v929, %v2971
  %v3112 = vmul.f32 %v930, %v2968
  %v3113 = vmul.f32 %v931, %v2969
  %v3114 = vmul.f32 %v932, %v2970
  %v3115 = vmul.f32 %v933, %v2971
  %v3116 = vmul.f32 %v934, %v2968
  %v3117 = vmul.f32 %v935, %v2969
  %v3118 = vmul.f32 %v936, %v2970
  %v3119 = vmul.f32 %v937, %v2971
  %v3120 = vmul.f32 %v938, %v2968
  %v3121 = vmul.f32 %v939, %v2969
  %v3122 = vmul.f32 %v940, %v2970
  %v3123 = vmul.f32 %v941, %v2971
  %v3124 = vmul.f32 %v942, %v2968
  %v3125 = vmul.f32 %v943, %v2969
  %v3126 = vmul.f32 %v944, %v2970
  %v3127 = vmul.f32 %v945, %v2971
  %v3128 = vmul.f32 %v946, %v2968
  %v3129 = vmul.f32 %v947, %v2969
  %v3130 = vmul.f32 %v948, %v2970
  %v3131 = vmul.f32 %v949, %v2971
  %v3132 = vmul.f32 %v950, %v2968
  %v3133 = vmul.f32 %v951, %v2969
  %v3134 = vmul.f32 %v952, %v2970
  %v3135 = vmul.f32 %v953, %v2971
  %v3136 = vmul.f32 %v954, %v2968
  %v3137 = vmul.f32 %v955, %v2969
  %v3138 = vmul.f32 %v956, %v2970
  %v3139 = vmul.f32 %v957, %v2971
  %v3140 = vmul.f32 %v958, %v2968
  %v3141 = vmul.f32 %v959, %v2969
  %v3142 = vmul.f32 %v960, %v2970
  %v3143 = vmul.f32 %v961, %v2971
  %v3144 = vmul.f32 %v962, %v2968
  %v3145 = vmul.f32 %v963, %v2969
  %v3146 = vmul.f32 %v964, %v2970
  %v3147 = vmul.f32 %v965, %v2971
  %v3148 = vmul.f32 %v966, %v2968
  %v3149 = vmul.f32 %v967, %v2969
  %v3150 = vmul.f32 %v968, %v2970
  %v3151 = vmul.f32 %v969, %v2971
  %v3152 = vmul.f32 %v970, %v2968
  %v3153 = vmul.f32 %v971, %v2969
  %v3154 = vmul.f32 %v972, %v2970
  %v3155 = vmul.f32 %v973, %v2971
  %v3156 = vmul.f32 %v974, %v2968
  %v3157 = vmul.f32 %v975, %v2969
  %v3158 = vmul.f32 %v976, %v2970
  %v3159 = vmul.f32 %v977, %v2971
  %v3160 = vmul.f32 %v978, %v2968
  %v3161 = vmul.f32 %v979, %v2969
  %v3162 = vmul.f32 %v980, %v2970
  %v3163 = vmul.f32 %v981, %v2971
  %v3164 = vmul.f32 %v982, %v2968
  %v3165 = vmul.f32 %v983, %v2969
  %v3166 = vmul.f32 %v984, %v2970
  %v3167 = vmul.f32 %v985, %v2971
  %v3168 = vmul.f32 %v986, %v2968
  %v3169 = vmul.f32 %v987, %v2969
  %v3170 = vmul.f32 %v988, %v2970
  %v3171 = vmul.f32 %v989, %v2971
  %v3172 = vmul.f32 %v990, %v2968
  %v3173 = vmul.f32 %v991, %v2969
  %v3174 = vmul.f32 %v992, %v2970
  %v3175 = vmul.f32 %v993, %v2971
  %v3176 = vmul.f32 %v994, %v2968
  %v3177 = vmul.f32 %v995, %v2969
  %v3178 = vmul.f32 %v996, %v2970
  %v3179 = vmul.f32 %v997, %v2971
  %v3180 = vmul.f32 %v998, %v2968
  %v3181 = vmul.f32 %v999, %v2969
  %v3182 = vmul.f32 %v1000, %v2970
  %v3183 = vmul.f32 %v1001, %v2971
  %v3184 = vmul.f32 %v1002, %v2968
  %v3185 = vmul.f32 %v1003, %v2969
  %v3186 = vmul.f32 %v1004, %v2970
  %v3187 = vmul.f32 %v1005, %v2971
  %v3188 = vmul.f32 %v1006, %v2968
  %v3189 = vmul.f32 %v1007, %v2969
  %v3190 = vmul.f32 %v1008, %v2970
  %v3191 = vmul.f32 %v1009, %v2971
  %v3192 = vmul.f32 %v1010, %v2968
  %v3193 = vmul.f32 %v1011, %v2969
  %v3194 = vmul.f32 %v1012, %v2970
  %v3195 = vmul.f32 %v1013, %v2971
  %v3196 = vmul.f32 %v1014, %v2968
  %v3197 = vmul.f32 %v1015, %v2969
  %v3198 = vmul.f32 %v1016, %v2970
  %v3199 = vmul.f32 %v1017, %v2971
  %v3200 = vmul.f32 %v1018, %v2968
  %v3201 = vmul.f32 %v1019, %v2969
  %v3202 = vmul.f32 %v1020, %v2970
  %v3203 = vmul.f32 %v1021, %v2971
  %v3204 = vmul.f32 %v1022, %v2968
  %v3205 = vmul.f32 %v1023, %v2969
  %v3206 = vmul.f32 %v1024, %v2970
  %v3207 = vmul.f32 %v1025, %v2971
  %v3208 = vmul.f32 %v1026, %v2968
  %v3209 = vmul.f32 %v1027, %v2969
  %v3210 = vmul.f32 %v1028, %v2970
  %v3211 = vmul.f32 %v1029, %v2971
  %v3212 = vmul.f32 %v1030, %v2968
  %v3213 = vmul.f32 %v1031, %v2969
  %v3214 = vmul.f32 %v1032, %v2970
  %v3215 = vmul.f32 %v1033, %v2971
  %v3216 = vmul.f32 %v1034, %v2968
  %v3217 = vmul.f32 %v1035, %v2969
  %v3218 = vmul.f32 %v1036, %v2970
  %v3219 = vmul.f32 %v1037, %v2971
  %v3220 = vmul.f32 %v1038, %v2968
  %v3221 = vmul.f32 %v1039, %v2969
  %v3222 = vmul.f32 %v1040, %v2970
  %v3223 = vmul.f32 %v1041, %v2971
  %v3224 = vmul.f32 %v1042, %v2968
  %v3225 = vmul.f32 %v1043, %v2969
  %v3226 = vmul.f32 %v1044, %v2970
  %v3227 = vmul.f32 %v1045, %v2971
  %v3228 = vsel %vm1350, %v2972, 0.0
  %3229 = vadd.xlane.f32.xlu0 %v3228
  %v3230 = vpop.xlane.xlu0 %3229
  %v3231 = vsel %vm1350, %v2973, 0.0
  %3232 = vadd.xlane.f32.xlu0 %v3231
  %v3233 = vpop.xlane.xlu0 %3232
  %v3234 = vsel %vm1350, %v2974, 0.0
  %3235 = vadd.xlane.f32.xlu0 %v3234
  %v3236 = vpop.xlane.xlu0 %3235
  %v3237 = vsel %vm1350, %v2975, 0.0
  %3238 = vadd.xlane.f32.xlu0 %v3237
  %v3239 = vpop.xlane.xlu0 %3238
  %v3240 = vsel %vm1350, %v2976, 0.0
  %3241 = vadd.xlane.f32.xlu0 %v3240
  %v3242 = vpop.xlane.xlu0 %3241
  %v3243 = vsel %vm1350, %v2977, 0.0
  %3244 = vadd.xlane.f32.xlu0 %v3243
  %v3245 = vpop.xlane.xlu0 %3244
  %v3246 = vsel %vm1350, %v2978, 0.0
  %3247 = vadd.xlane.f32.xlu0 %v3246
  %v3248 = vpop.xlane.xlu0 %3247
  %v3249 = vsel %vm1350, %v2979, 0.0
  %3250 = vadd.xlane.f32.xlu0 %v3249
  %v3251 = vpop.xlane.xlu0 %3250
  %v3252 = vsel %vm1350, %v2980, 0.0
  %3253 = vadd.xlane.f32.xlu0 %v3252
  %v3254 = vpop.xlane.xlu0 %3253
  %v3255 = vsel %vm1350, %v2981, 0.0
  %3256 = vadd.xlane.f32.xlu0 %v3255
  %v3257 = vpop.xlane.xlu0 %3256
  %v3258 = vsel %vm1350, %v2982, 0.0
  %3259 = vadd.xlane.f32.xlu0 %v3258
  %v3260 = vpop.xlane.xlu0 %3259
  %v3261 = vsel %vm1350, %v2983, 0.0
  %3262 = vadd.xlane.f32.xlu0 %v3261
  %v3263 = vpop.xlane.xlu0 %3262
  %v3264 = vsel %vm1350, %v2984, 0.0
  %3265 = vadd.xlane.f32.xlu0 %v3264
  %v3266 = vpop.xlane.xlu0 %3265
  %v3267 = vsel %vm1350, %v2985, 0.0
  %3268 = vadd.xlane.f32.xlu0 %v3267
  %v3269 = vpop.xlane.xlu0 %3268
  %v3270 = vsel %vm1350, %v2986, 0.0
  %3271 = vadd.xlane.f32.xlu0 %v3270
  %v3272 = vpop.xlane.xlu0 %3271
  %v3273 = vsel %vm1350, %v2987, 0.0
  %3274 = vadd.xlane.f32.xlu0 %v3273
  %v3275 = vpop.xlane.xlu0 %3274
  %v3276 = vsel %vm1350, %v2988, 0.0
  %3277 = vadd.xlane.f32.xlu0 %v3276
  %v3278 = vpop.xlane.xlu0 %3277
  %v3279 = vsel %vm1350, %v2989, 0.0
  %3280 = vadd.xlane.f32.xlu0 %v3279
  %v3281 = vpop.xlane.xlu0 %3280
  %v3282 = vsel %vm1350, %v2990, 0.0
  %3283 = vadd.xlane.f32.xlu0 %v3282
  %v3284 = vpop.xlane.xlu0 %3283
  %v3285 = vsel %vm1350, %v2991, 0.0
  %3286 = vadd.xlane.f32.xlu0 %v3285
  %v3287 = vpop.xlane.xlu0 %3286
  %v3288 = vsel %vm1350, %v2992, 0.0
  %3289 = vadd.xlane.f32.xlu0 %v3288
  %v3290 = vpop.xlane.xlu0 %3289
  %v3291 = vsel %vm1350, %v2993, 0.0
  %3292 = vadd.xlane.f32.xlu0 %v3291
  %v3293 = vpop.xlane.xlu0 %3292
  %v3294 = vsel %vm1350, %v2994, 0.0
  %3295 = vadd.xlane.f32.xlu0 %v3294
  %v3296 = vpop.xlane.xlu0 %3295
  %v3297 = vsel %vm1350, %v2995, 0.0
  %3298 = vadd.xlane.f32.xlu0 %v3297
  %v3299 = vpop.xlane.xlu0 %3298
  %v3300 = vsel %vm1350, %v2996, 0.0
  %3301 = vadd.xlane.f32.xlu0 %v3300
  %v3302 = vpop.xlane.xlu0 %3301
  %v3303 = vsel %vm1350, %v2997, 0.0
  %3304 = vadd.xlane.f32.xlu0 %v3303
  %v3305 = vpop.xlane.xlu0 %3304
  %v3306 = vsel %vm1350, %v2998, 0.0
  %3307 = vadd.xlane.f32.xlu0 %v3306
  %v3308 = vpop.xlane.xlu0 %3307
  %v3309 = vsel %vm1350, %v2999, 0.0
  %3310 = vadd.xlane.f32.xlu0 %v3309
  %v3311 = vpop.xlane.xlu0 %3310
  %v3312 = vsel %vm1350, %v3000, 0.0
  %3313 = vadd.xlane.f32.xlu0 %v3312
  %v3314 = vpop.xlane.xlu0 %3313
  %v3315 = vsel %vm1350, %v3001, 0.0
  %3316 = vadd.xlane.f32.xlu0 %v3315
  %v3317 = vpop.xlane.xlu0 %3316
  %v3318 = vsel %vm1350, %v3002, 0.0
  %3319 = vadd.xlane.f32.xlu0 %v3318
  %v3320 = vpop.xlane.xlu0 %3319
  %v3321 = vsel %vm1350, %v3003, 0.0
  %3322 = vadd.xlane.f32.xlu0 %v3321
  %v3323 = vpop.xlane.xlu0 %3322
  %v3324 = vsel %vm1350, %v3004, 0.0
  %3325 = vadd.xlane.f32.xlu0 %v3324
  %v3326 = vpop.xlane.xlu0 %3325
  %v3327 = vsel %vm1350, %v3005, 0.0
  %3328 = vadd.xlane.f32.xlu0 %v3327
  %v3329 = vpop.xlane.xlu0 %3328
  %v3330 = vsel %vm1350, %v3006, 0.0
  %3331 = vadd.xlane.f32.xlu0 %v3330
  %v3332 = vpop.xlane.xlu0 %3331
  %v3333 = vsel %vm1350, %v3007, 0.0
  %3334 = vadd.xlane.f32.xlu0 %v3333
  %v3335 = vpop.xlane.xlu0 %3334
  %v3336 = vsel %vm1350, %v3008, 0.0
  %3337 = vadd.xlane.f32.xlu0 %v3336
  %v3338 = vpop.xlane.xlu0 %3337
  %v3339 = vsel %vm1350, %v3009, 0.0
  %3340 = vadd.xlane.f32.xlu0 %v3339
  %v3341 = vpop.xlane.xlu0 %3340
  %v3342 = vsel %vm1350, %v3010, 0.0
  %3343 = vadd.xlane.f32.xlu0 %v3342
  %v3344 = vpop.xlane.xlu0 %3343
  %v3345 = vsel %vm1350, %v3011, 0.0
  %3346 = vadd.xlane.f32.xlu0 %v3345
  %v3347 = vpop.xlane.xlu0 %3346
  %v3348 = vsel %vm1350, %v3012, 0.0
  %3349 = vadd.xlane.f32.xlu0 %v3348
  %v3350 = vpop.xlane.xlu0 %3349
  %v3351 = vsel %vm1350, %v3013, 0.0
  %3352 = vadd.xlane.f32.xlu0 %v3351
  %v3353 = vpop.xlane.xlu0 %3352
  %v3354 = vsel %vm1350, %v3014, 0.0
  %3355 = vadd.xlane.f32.xlu0 %v3354
  %v3356 = vpop.xlane.xlu0 %3355
  %v3357 = vsel %vm1350, %v3015, 0.0
  %3358 = vadd.xlane.f32.xlu0 %v3357
  %v3359 = vpop.xlane.xlu0 %3358
  %v3360 = vsel %vm1350, %v3016, 0.0
  %3361 = vadd.xlane.f32.xlu0 %v3360
  %v3362 = vpop.xlane.xlu0 %3361
  %v3363 = vsel %vm1350, %v3017, 0.0
  %3364 = vadd.xlane.f32.xlu0 %v3363
  %v3365 = vpop.xlane.xlu0 %3364
  %v3366 = vsel %vm1350, %v3018, 0.0
  %3367 = vadd.xlane.f32.xlu0 %v3366
  %v3368 = vpop.xlane.xlu0 %3367
  %v3369 = vsel %vm1350, %v3019, 0.0
  %3370 = vadd.xlane.f32.xlu0 %v3369
  %v3371 = vpop.xlane.xlu0 %3370
  %v3372 = vsel %vm1350, %v3020, 0.0
  %3373 = vadd.xlane.f32.xlu0 %v3372
  %v3374 = vpop.xlane.xlu0 %3373
  %v3375 = vsel %vm1350, %v3021, 0.0
  %3376 = vadd.xlane.f32.xlu0 %v3375
  %v3377 = vpop.xlane.xlu0 %3376
  %v3378 = vsel %vm1350, %v3022, 0.0
  %3379 = vadd.xlane.f32.xlu0 %v3378
  %v3380 = vpop.xlane.xlu0 %3379
  %v3381 = vsel %vm1350, %v3023, 0.0
  %3382 = vadd.xlane.f32.xlu0 %v3381
  %v3383 = vpop.xlane.xlu0 %3382
  %v3384 = vsel %vm1350, %v3024, 0.0
  %3385 = vadd.xlane.f32.xlu0 %v3384
  %v3386 = vpop.xlane.xlu0 %3385
  %v3387 = vsel %vm1350, %v3025, 0.0
  %3388 = vadd.xlane.f32.xlu0 %v3387
  %v3389 = vpop.xlane.xlu0 %3388
  %v3390 = vsel %vm1350, %v3026, 0.0
  %3391 = vadd.xlane.f32.xlu0 %v3390
  %v3392 = vpop.xlane.xlu0 %3391
  %v3393 = vsel %vm1350, %v3027, 0.0
  %3394 = vadd.xlane.f32.xlu0 %v3393
  %v3395 = vpop.xlane.xlu0 %3394
  %v3396 = vsel %vm1350, %v3028, 0.0
  %3397 = vadd.xlane.f32.xlu0 %v3396
  %v3398 = vpop.xlane.xlu0 %3397
  %v3399 = vsel %vm1350, %v3029, 0.0
  %3400 = vadd.xlane.f32.xlu0 %v3399
  %v3401 = vpop.xlane.xlu0 %3400
  %v3402 = vsel %vm1350, %v3030, 0.0
  %3403 = vadd.xlane.f32.xlu0 %v3402
  %v3404 = vpop.xlane.xlu0 %3403
  %v3405 = vsel %vm1350, %v3031, 0.0
  %3406 = vadd.xlane.f32.xlu0 %v3405
  %v3407 = vpop.xlane.xlu0 %3406
  %v3408 = vsel %vm1350, %v3032, 0.0
  %3409 = vadd.xlane.f32.xlu0 %v3408
  %v3410 = vpop.xlane.xlu0 %3409
  %v3411 = vsel %vm1350, %v3033, 0.0
  %3412 = vadd.xlane.f32.xlu0 %v3411
  %v3413 = vpop.xlane.xlu0 %3412
  %v3414 = vsel %vm1350, %v3034, 0.0
  %3415 = vadd.xlane.f32.xlu0 %v3414
  %v3416 = vpop.xlane.xlu0 %3415
  %v3417 = vsel %vm1350, %v3035, 0.0
  %3418 = vadd.xlane.f32.xlu0 %v3417
  %v3419 = vpop.xlane.xlu0 %3418
  %v3420 = vsel %vm1350, %v3036, 0.0
  %3421 = vadd.xlane.f32.xlu0 %v3420
  %v3422 = vpop.xlane.xlu0 %3421
  %v3423 = vsel %vm1350, %v3037, 0.0
  %3424 = vadd.xlane.f32.xlu0 %v3423
  %v3425 = vpop.xlane.xlu0 %3424
  %v3426 = vsel %vm1350, %v3038, 0.0
  %3427 = vadd.xlane.f32.xlu0 %v3426
  %v3428 = vpop.xlane.xlu0 %3427
  %v3429 = vsel %vm1350, %v3039, 0.0
  %3430 = vadd.xlane.f32.xlu0 %v3429
  %v3431 = vpop.xlane.xlu0 %3430
  %v3432 = vsel %vm1350, %v3040, 0.0
  %3433 = vadd.xlane.f32.xlu0 %v3432
  %v3434 = vpop.xlane.xlu0 %3433
  %v3435 = vsel %vm1350, %v3041, 0.0
  %3436 = vadd.xlane.f32.xlu0 %v3435
  %v3437 = vpop.xlane.xlu0 %3436
  %v3438 = vsel %vm1350, %v3042, 0.0
  %3439 = vadd.xlane.f32.xlu0 %v3438
  %v3440 = vpop.xlane.xlu0 %3439
  %v3441 = vsel %vm1350, %v3043, 0.0
  %3442 = vadd.xlane.f32.xlu0 %v3441
  %v3443 = vpop.xlane.xlu0 %3442
  %v3444 = vsel %vm1350, %v3044, 0.0
  %3445 = vadd.xlane.f32.xlu0 %v3444
  %v3446 = vpop.xlane.xlu0 %3445
  %v3447 = vsel %vm1350, %v3045, 0.0
  %3448 = vadd.xlane.f32.xlu0 %v3447
  %v3449 = vpop.xlane.xlu0 %3448
  %v3450 = vsel %vm1350, %v3046, 0.0
  %3451 = vadd.xlane.f32.xlu0 %v3450
  %v3452 = vpop.xlane.xlu0 %3451
  %v3453 = vsel %vm1350, %v3047, 0.0
  %3454 = vadd.xlane.f32.xlu0 %v3453
  %v3455 = vpop.xlane.xlu0 %3454
  %v3456 = vsel %vm1350, %v3048, 0.0
  %3457 = vadd.xlane.f32.xlu0 %v3456
  %v3458 = vpop.xlane.xlu0 %3457
  %v3459 = vsel %vm1350, %v3049, 0.0
  %3460 = vadd.xlane.f32.xlu0 %v3459
  %v3461 = vpop.xlane.xlu0 %3460
  %v3462 = vsel %vm1350, %v3050, 0.0
  %3463 = vadd.xlane.f32.xlu0 %v3462
  %v3464 = vpop.xlane.xlu0 %3463
  %v3465 = vsel %vm1350, %v3051, 0.0
  %3466 = vadd.xlane.f32.xlu0 %v3465
  %v3467 = vpop.xlane.xlu0 %3466
  %v3468 = vsel %vm1350, %v3052, 0.0
  %3469 = vadd.xlane.f32.xlu0 %v3468
  %v3470 = vpop.xlane.xlu0 %3469
  %v3471 = vsel %vm1350, %v3053, 0.0
  %3472 = vadd.xlane.f32.xlu0 %v3471
  %v3473 = vpop.xlane.xlu0 %3472
  %v3474 = vsel %vm1350, %v3054, 0.0
  %3475 = vadd.xlane.f32.xlu0 %v3474
  %v3476 = vpop.xlane.xlu0 %3475
  %v3477 = vsel %vm1350, %v3055, 0.0
  %3478 = vadd.xlane.f32.xlu0 %v3477
  %v3479 = vpop.xlane.xlu0 %3478
  %v3480 = vsel %vm1350, %v3056, 0.0
  %3481 = vadd.xlane.f32.xlu0 %v3480
  %v3482 = vpop.xlane.xlu0 %3481
  %v3483 = vsel %vm1350, %v3057, 0.0
  %3484 = vadd.xlane.f32.xlu0 %v3483
  %v3485 = vpop.xlane.xlu0 %3484
  %v3486 = vsel %vm1350, %v3058, 0.0
  %3487 = vadd.xlane.f32.xlu0 %v3486
  %v3488 = vpop.xlane.xlu0 %3487
  %v3489 = vsel %vm1350, %v3059, 0.0
  %3490 = vadd.xlane.f32.xlu0 %v3489
  %v3491 = vpop.xlane.xlu0 %3490
  %v3492 = vsel %vm1350, %v3060, 0.0
  %3493 = vadd.xlane.f32.xlu0 %v3492
  %v3494 = vpop.xlane.xlu0 %3493
  %v3495 = vsel %vm1350, %v3061, 0.0
  %3496 = vadd.xlane.f32.xlu0 %v3495
  %v3497 = vpop.xlane.xlu0 %3496
  %v3498 = vsel %vm1350, %v3062, 0.0
  %3499 = vadd.xlane.f32.xlu0 %v3498
  %v3500 = vpop.xlane.xlu0 %3499
  %v3501 = vsel %vm1350, %v3063, 0.0
  %3502 = vadd.xlane.f32.xlu0 %v3501
  %v3503 = vpop.xlane.xlu0 %3502
  %v3504 = vsel %vm1350, %v3064, 0.0
  %3505 = vadd.xlane.f32.xlu0 %v3504
  %v3506 = vpop.xlane.xlu0 %3505
  %v3507 = vsel %vm1350, %v3065, 0.0
  %3508 = vadd.xlane.f32.xlu0 %v3507
  %v3509 = vpop.xlane.xlu0 %3508
  %v3510 = vsel %vm1350, %v3066, 0.0
  %3511 = vadd.xlane.f32.xlu0 %v3510
  %v3512 = vpop.xlane.xlu0 %3511
  %v3513 = vsel %vm1350, %v3067, 0.0
  %3514 = vadd.xlane.f32.xlu0 %v3513
  %v3515 = vpop.xlane.xlu0 %3514
  %v3516 = vsel %vm1350, %v3068, 0.0
  %3517 = vadd.xlane.f32.xlu0 %v3516
  %v3518 = vpop.xlane.xlu0 %3517
  %v3519 = vsel %vm1350, %v3069, 0.0
  %3520 = vadd.xlane.f32.xlu0 %v3519
  %v3521 = vpop.xlane.xlu0 %3520
  %v3522 = vsel %vm1350, %v3070, 0.0
  %3523 = vadd.xlane.f32.xlu0 %v3522
  %v3524 = vpop.xlane.xlu0 %3523
  %v3525 = vsel %vm1350, %v3071, 0.0
  %3526 = vadd.xlane.f32.xlu0 %v3525
  %v3527 = vpop.xlane.xlu0 %3526
  %v3528 = vsel %vm1350, %v3072, 0.0
  %3529 = vadd.xlane.f32.xlu0 %v3528
  %v3530 = vpop.xlane.xlu0 %3529
  %v3531 = vsel %vm1350, %v3073, 0.0
  %3532 = vadd.xlane.f32.xlu0 %v3531
  %v3533 = vpop.xlane.xlu0 %3532
  %v3534 = vsel %vm1350, %v3074, 0.0
  %3535 = vadd.xlane.f32.xlu0 %v3534
  %v3536 = vpop.xlane.xlu0 %3535
  %v3537 = vsel %vm1350, %v3075, 0.0
  %3538 = vadd.xlane.f32.xlu0 %v3537
  %v3539 = vpop.xlane.xlu0 %3538
  %v3540 = vsel %vm1350, %v3076, 0.0
  %3541 = vadd.xlane.f32.xlu0 %v3540
  %v3542 = vpop.xlane.xlu0 %3541
  %v3543 = vsel %vm1350, %v3077, 0.0
  %3544 = vadd.xlane.f32.xlu0 %v3543
  %v3545 = vpop.xlane.xlu0 %3544
  %v3546 = vsel %vm1350, %v3078, 0.0
  %3547 = vadd.xlane.f32.xlu0 %v3546
  %v3548 = vpop.xlane.xlu0 %3547
  %v3549 = vsel %vm1350, %v3079, 0.0
  %3550 = vadd.xlane.f32.xlu0 %v3549
  %v3551 = vpop.xlane.xlu0 %3550
  %v3552 = vsel %vm1350, %v3080, 0.0
  %3553 = vadd.xlane.f32.xlu0 %v3552
  %v3554 = vpop.xlane.xlu0 %3553
  %v3555 = vsel %vm1350, %v3081, 0.0
  %3556 = vadd.xlane.f32.xlu0 %v3555
  %v3557 = vpop.xlane.xlu0 %3556
  %v3558 = vsel %vm1350, %v3082, 0.0
  %3559 = vadd.xlane.f32.xlu0 %v3558
  %v3560 = vpop.xlane.xlu0 %3559
  %v3561 = vsel %vm1350, %v3083, 0.0
  %3562 = vadd.xlane.f32.xlu0 %v3561
  %v3563 = vpop.xlane.xlu0 %3562
  %v3564 = vsel %vm1350, %v3084, 0.0
  %3565 = vadd.xlane.f32.xlu0 %v3564
  %v3566 = vpop.xlane.xlu0 %3565
  %v3567 = vsel %vm1350, %v3085, 0.0
  %3568 = vadd.xlane.f32.xlu0 %v3567
  %v3569 = vpop.xlane.xlu0 %3568
  %v3570 = vsel %vm1350, %v3086, 0.0
  %3571 = vadd.xlane.f32.xlu0 %v3570
  %v3572 = vpop.xlane.xlu0 %3571
  %v3573 = vsel %vm1350, %v3087, 0.0
  %3574 = vadd.xlane.f32.xlu0 %v3573
  %v3575 = vpop.xlane.xlu0 %3574
  %v3576 = vsel %vm1350, %v3088, 0.0
  %3577 = vadd.xlane.f32.xlu0 %v3576
  %v3578 = vpop.xlane.xlu0 %3577
  %v3579 = vsel %vm1350, %v3089, 0.0
  %3580 = vadd.xlane.f32.xlu0 %v3579
  %v3581 = vpop.xlane.xlu0 %3580
  %v3582 = vsel %vm1350, %v3090, 0.0
  %3583 = vadd.xlane.f32.xlu0 %v3582
  %v3584 = vpop.xlane.xlu0 %3583
  %v3585 = vsel %vm1350, %v3091, 0.0
  %3586 = vadd.xlane.f32.xlu0 %v3585
  %v3587 = vpop.xlane.xlu0 %3586
  %v3588 = vsel %vm1350, %v3092, 0.0
  %3589 = vadd.xlane.f32.xlu0 %v3588
  %v3590 = vpop.xlane.xlu0 %3589
  %v3591 = vsel %vm1350, %v3093, 0.0
  %3592 = vadd.xlane.f32.xlu0 %v3591
  %v3593 = vpop.xlane.xlu0 %3592
  %v3594 = vsel %vm1350, %v3094, 0.0
  %3595 = vadd.xlane.f32.xlu0 %v3594
  %v3596 = vpop.xlane.xlu0 %3595
  %v3597 = vsel %vm1350, %v3095, 0.0
  %3598 = vadd.xlane.f32.xlu0 %v3597
  %v3599 = vpop.xlane.xlu0 %3598
  %v3600 = vsel %vm1350, %v3096, 0.0
  %3601 = vadd.xlane.f32.xlu0 %v3600
  %v3602 = vpop.xlane.xlu0 %3601
  %v3603 = vsel %vm1350, %v3097, 0.0
  %3604 = vadd.xlane.f32.xlu0 %v3603
  %v3605 = vpop.xlane.xlu0 %3604
  %v3606 = vsel %vm1350, %v3098, 0.0
  %3607 = vadd.xlane.f32.xlu0 %v3606
  %v3608 = vpop.xlane.xlu0 %3607
  %v3609 = vsel %vm1350, %v3099, 0.0
  %3610 = vadd.xlane.f32.xlu0 %v3609
  %v3611 = vpop.xlane.xlu0 %3610
  %v3612 = vsel %vm1350, %v3100, 0.0
  %3613 = vadd.xlane.f32.xlu0 %v3612
  %v3614 = vpop.xlane.xlu0 %3613
  %v3615 = vsel %vm1350, %v3101, 0.0
  %3616 = vadd.xlane.f32.xlu0 %v3615
  %v3617 = vpop.xlane.xlu0 %3616
  %v3618 = vsel %vm1350, %v3102, 0.0
  %3619 = vadd.xlane.f32.xlu0 %v3618
  %v3620 = vpop.xlane.xlu0 %3619
  %v3621 = vsel %vm1350, %v3103, 0.0
  %3622 = vadd.xlane.f32.xlu0 %v3621
  %v3623 = vpop.xlane.xlu0 %3622
  %v3624 = vsel %vm1350, %v3104, 0.0
  %3625 = vadd.xlane.f32.xlu0 %v3624
  %v3626 = vpop.xlane.xlu0 %3625
  %v3627 = vsel %vm1350, %v3105, 0.0
  %3628 = vadd.xlane.f32.xlu0 %v3627
  %v3629 = vpop.xlane.xlu0 %3628
  %v3630 = vsel %vm1350, %v3106, 0.0
  %3631 = vadd.xlane.f32.xlu0 %v3630
  %v3632 = vpop.xlane.xlu0 %3631
  %v3633 = vsel %vm1350, %v3107, 0.0
  %3634 = vadd.xlane.f32.xlu0 %v3633
  %v3635 = vpop.xlane.xlu0 %3634
  %v3636 = vsel %vm1350, %v3108, 0.0
  %3637 = vadd.xlane.f32.xlu0 %v3636
  %v3638 = vpop.xlane.xlu0 %3637
  %v3639 = vsel %vm1350, %v3109, 0.0
  %3640 = vadd.xlane.f32.xlu0 %v3639
  %v3641 = vpop.xlane.xlu0 %3640
  %v3642 = vsel %vm1350, %v3110, 0.0
  %3643 = vadd.xlane.f32.xlu0 %v3642
  %v3644 = vpop.xlane.xlu0 %3643
  %v3645 = vsel %vm1350, %v3111, 0.0
  %3646 = vadd.xlane.f32.xlu0 %v3645
  %v3647 = vpop.xlane.xlu0 %3646
  %v3648 = vsel %vm1350, %v3112, 0.0
  %3649 = vadd.xlane.f32.xlu0 %v3648
  %v3650 = vpop.xlane.xlu0 %3649
  %v3651 = vsel %vm1350, %v3113, 0.0
  %3652 = vadd.xlane.f32.xlu0 %v3651
  %v3653 = vpop.xlane.xlu0 %3652
  %v3654 = vsel %vm1350, %v3114, 0.0
  %3655 = vadd.xlane.f32.xlu0 %v3654
  %v3656 = vpop.xlane.xlu0 %3655
  %v3657 = vsel %vm1350, %v3115, 0.0
  %3658 = vadd.xlane.f32.xlu0 %v3657
  %v3659 = vpop.xlane.xlu0 %3658
  %v3660 = vsel %vm1350, %v3116, 0.0
  %3661 = vadd.xlane.f32.xlu0 %v3660
  %v3662 = vpop.xlane.xlu0 %3661
  %v3663 = vsel %vm1350, %v3117, 0.0
  %3664 = vadd.xlane.f32.xlu0 %v3663
  %v3665 = vpop.xlane.xlu0 %3664
  %v3666 = vsel %vm1350, %v3118, 0.0
  %3667 = vadd.xlane.f32.xlu0 %v3666
  %v3668 = vpop.xlane.xlu0 %3667
  %v3669 = vsel %vm1350, %v3119, 0.0
  %3670 = vadd.xlane.f32.xlu0 %v3669
  %v3671 = vpop.xlane.xlu0 %3670
  %v3672 = vsel %vm1350, %v3120, 0.0
  %3673 = vadd.xlane.f32.xlu0 %v3672
  %v3674 = vpop.xlane.xlu0 %3673
  %v3675 = vsel %vm1350, %v3121, 0.0
  %3676 = vadd.xlane.f32.xlu0 %v3675
  %v3677 = vpop.xlane.xlu0 %3676
  %v3678 = vsel %vm1350, %v3122, 0.0
  %3679 = vadd.xlane.f32.xlu0 %v3678
  %v3680 = vpop.xlane.xlu0 %3679
  %v3681 = vsel %vm1350, %v3123, 0.0
  %3682 = vadd.xlane.f32.xlu0 %v3681
  %v3683 = vpop.xlane.xlu0 %3682
  %v3684 = vsel %vm1350, %v3124, 0.0
  %3685 = vadd.xlane.f32.xlu0 %v3684
  %v3686 = vpop.xlane.xlu0 %3685
  %v3687 = vsel %vm1350, %v3125, 0.0
  %3688 = vadd.xlane.f32.xlu0 %v3687
  %v3689 = vpop.xlane.xlu0 %3688
  %v3690 = vsel %vm1350, %v3126, 0.0
  %3691 = vadd.xlane.f32.xlu0 %v3690
  %v3692 = vpop.xlane.xlu0 %3691
  %v3693 = vsel %vm1350, %v3127, 0.0
  %3694 = vadd.xlane.f32.xlu0 %v3693
  %v3695 = vpop.xlane.xlu0 %3694
  %v3696 = vsel %vm1350, %v3128, 0.0
  %3697 = vadd.xlane.f32.xlu0 %v3696
  %v3698 = vpop.xlane.xlu0 %3697
  %v3699 = vsel %vm1350, %v3129, 0.0
  %3700 = vadd.xlane.f32.xlu0 %v3699
  %v3701 = vpop.xlane.xlu0 %3700
  %v3702 = vsel %vm1350, %v3130, 0.0
  %3703 = vadd.xlane.f32.xlu0 %v3702
  %v3704 = vpop.xlane.xlu0 %3703
  %v3705 = vsel %vm1350, %v3131, 0.0
  %3706 = vadd.xlane.f32.xlu0 %v3705
  %v3707 = vpop.xlane.xlu0 %3706
  %v3708 = vsel %vm1350, %v3132, 0.0
  %3709 = vadd.xlane.f32.xlu0 %v3708
  %v3710 = vpop.xlane.xlu0 %3709
  %v3711 = vsel %vm1350, %v3133, 0.0
  %3712 = vadd.xlane.f32.xlu0 %v3711
  %v3713 = vpop.xlane.xlu0 %3712
  %v3714 = vsel %vm1350, %v3134, 0.0
  %3715 = vadd.xlane.f32.xlu0 %v3714
  %v3716 = vpop.xlane.xlu0 %3715
  %v3717 = vsel %vm1350, %v3135, 0.0
  %3718 = vadd.xlane.f32.xlu0 %v3717
  %v3719 = vpop.xlane.xlu0 %3718
  %v3720 = vsel %vm1350, %v3136, 0.0
  %3721 = vadd.xlane.f32.xlu0 %v3720
  %v3722 = vpop.xlane.xlu0 %3721
  %v3723 = vsel %vm1350, %v3137, 0.0
  %3724 = vadd.xlane.f32.xlu0 %v3723
  %v3725 = vpop.xlane.xlu0 %3724
  %v3726 = vsel %vm1350, %v3138, 0.0
  %3727 = vadd.xlane.f32.xlu0 %v3726
  %v3728 = vpop.xlane.xlu0 %3727
  %v3729 = vsel %vm1350, %v3139, 0.0
  %3730 = vadd.xlane.f32.xlu0 %v3729
  %v3731 = vpop.xlane.xlu0 %3730
  %v3732 = vsel %vm1350, %v3140, 0.0
  %3733 = vadd.xlane.f32.xlu0 %v3732
  %v3734 = vpop.xlane.xlu0 %3733
  %v3735 = vsel %vm1350, %v3141, 0.0
  %3736 = vadd.xlane.f32.xlu0 %v3735
  %v3737 = vpop.xlane.xlu0 %3736
  %v3738 = vsel %vm1350, %v3142, 0.0
  %3739 = vadd.xlane.f32.xlu0 %v3738
  %v3740 = vpop.xlane.xlu0 %3739
  %v3741 = vsel %vm1350, %v3143, 0.0
  %3742 = vadd.xlane.f32.xlu0 %v3741
  %v3743 = vpop.xlane.xlu0 %3742
  %v3744 = vsel %vm1350, %v3144, 0.0
  %3745 = vadd.xlane.f32.xlu0 %v3744
  %v3746 = vpop.xlane.xlu0 %3745
  %v3747 = vsel %vm1350, %v3145, 0.0
  %3748 = vadd.xlane.f32.xlu0 %v3747
  %v3749 = vpop.xlane.xlu0 %3748
  %v3750 = vsel %vm1350, %v3146, 0.0
  %3751 = vadd.xlane.f32.xlu0 %v3750
  %v3752 = vpop.xlane.xlu0 %3751
  %v3753 = vsel %vm1350, %v3147, 0.0
  %3754 = vadd.xlane.f32.xlu0 %v3753
  %v3755 = vpop.xlane.xlu0 %3754
  %v3756 = vsel %vm1350, %v3148, 0.0
  %3757 = vadd.xlane.f32.xlu0 %v3756
  %v3758 = vpop.xlane.xlu0 %3757
  %v3759 = vsel %vm1350, %v3149, 0.0
  %3760 = vadd.xlane.f32.xlu0 %v3759
  %v3761 = vpop.xlane.xlu0 %3760
  %v3762 = vsel %vm1350, %v3150, 0.0
  %3763 = vadd.xlane.f32.xlu0 %v3762
  %v3764 = vpop.xlane.xlu0 %3763
  %v3765 = vsel %vm1350, %v3151, 0.0
  %3766 = vadd.xlane.f32.xlu0 %v3765
  %v3767 = vpop.xlane.xlu0 %3766
  %v3768 = vsel %vm1350, %v3152, 0.0
  %3769 = vadd.xlane.f32.xlu0 %v3768
  %v3770 = vpop.xlane.xlu0 %3769
  %v3771 = vsel %vm1350, %v3153, 0.0
  %3772 = vadd.xlane.f32.xlu0 %v3771
  %v3773 = vpop.xlane.xlu0 %3772
  %v3774 = vsel %vm1350, %v3154, 0.0
  %3775 = vadd.xlane.f32.xlu0 %v3774
  %v3776 = vpop.xlane.xlu0 %3775
  %v3777 = vsel %vm1350, %v3155, 0.0
  %3778 = vadd.xlane.f32.xlu0 %v3777
  %v3779 = vpop.xlane.xlu0 %3778
  %v3780 = vsel %vm1350, %v3156, 0.0
  %3781 = vadd.xlane.f32.xlu0 %v3780
  %v3782 = vpop.xlane.xlu0 %3781
  %v3783 = vsel %vm1350, %v3157, 0.0
  %3784 = vadd.xlane.f32.xlu0 %v3783
  %v3785 = vpop.xlane.xlu0 %3784
  %v3786 = vsel %vm1350, %v3158, 0.0
  %3787 = vadd.xlane.f32.xlu0 %v3786
  %v3788 = vpop.xlane.xlu0 %3787
  %v3789 = vsel %vm1350, %v3159, 0.0
  %3790 = vadd.xlane.f32.xlu0 %v3789
  %v3791 = vpop.xlane.xlu0 %3790
  %v3792 = vsel %vm1350, %v3160, 0.0
  %3793 = vadd.xlane.f32.xlu0 %v3792
  %v3794 = vpop.xlane.xlu0 %3793
  %v3795 = vsel %vm1350, %v3161, 0.0
  %3796 = vadd.xlane.f32.xlu0 %v3795
  %v3797 = vpop.xlane.xlu0 %3796
  %v3798 = vsel %vm1350, %v3162, 0.0
  %3799 = vadd.xlane.f32.xlu0 %v3798
  %v3800 = vpop.xlane.xlu0 %3799
  %v3801 = vsel %vm1350, %v3163, 0.0
  %3802 = vadd.xlane.f32.xlu0 %v3801
  %v3803 = vpop.xlane.xlu0 %3802
  %v3804 = vsel %vm1350, %v3164, 0.0
  %3805 = vadd.xlane.f32.xlu0 %v3804
  %v3806 = vpop.xlane.xlu0 %3805
  %v3807 = vsel %vm1350, %v3165, 0.0
  %3808 = vadd.xlane.f32.xlu0 %v3807
  %v3809 = vpop.xlane.xlu0 %3808
  %v3810 = vsel %vm1350, %v3166, 0.0
  %3811 = vadd.xlane.f32.xlu0 %v3810
  %v3812 = vpop.xlane.xlu0 %3811
  %v3813 = vsel %vm1350, %v3167, 0.0
  %3814 = vadd.xlane.f32.xlu0 %v3813
  %v3815 = vpop.xlane.xlu0 %3814
  %v3816 = vsel %vm1350, %v3168, 0.0
  %3817 = vadd.xlane.f32.xlu0 %v3816
  %v3818 = vpop.xlane.xlu0 %3817
  %v3819 = vsel %vm1350, %v3169, 0.0
  %3820 = vadd.xlane.f32.xlu0 %v3819
  %v3821 = vpop.xlane.xlu0 %3820
  %v3822 = vsel %vm1350, %v3170, 0.0
  %3823 = vadd.xlane.f32.xlu0 %v3822
  %v3824 = vpop.xlane.xlu0 %3823
  %v3825 = vsel %vm1350, %v3171, 0.0
  %3826 = vadd.xlane.f32.xlu0 %v3825
  %v3827 = vpop.xlane.xlu0 %3826
  %v3828 = vsel %vm1350, %v3172, 0.0
  %3829 = vadd.xlane.f32.xlu0 %v3828
  %v3830 = vpop.xlane.xlu0 %3829
  %v3831 = vsel %vm1350, %v3173, 0.0
  %3832 = vadd.xlane.f32.xlu0 %v3831
  %v3833 = vpop.xlane.xlu0 %3832
  %v3834 = vsel %vm1350, %v3174, 0.0
  %3835 = vadd.xlane.f32.xlu0 %v3834
  %v3836 = vpop.xlane.xlu0 %3835
  %v3837 = vsel %vm1350, %v3175, 0.0
  %3838 = vadd.xlane.f32.xlu0 %v3837
  %v3839 = vpop.xlane.xlu0 %3838
  %v3840 = vsel %vm1350, %v3176, 0.0
  %3841 = vadd.xlane.f32.xlu0 %v3840
  %v3842 = vpop.xlane.xlu0 %3841
  %v3843 = vsel %vm1350, %v3177, 0.0
  %3844 = vadd.xlane.f32.xlu0 %v3843
  %v3845 = vpop.xlane.xlu0 %3844
  %v3846 = vsel %vm1350, %v3178, 0.0
  %3847 = vadd.xlane.f32.xlu0 %v3846
  %v3848 = vpop.xlane.xlu0 %3847
  %v3849 = vsel %vm1350, %v3179, 0.0
  %3850 = vadd.xlane.f32.xlu0 %v3849
  %v3851 = vpop.xlane.xlu0 %3850
  %v3852 = vsel %vm1350, %v3180, 0.0
  %3853 = vadd.xlane.f32.xlu0 %v3852
  %v3854 = vpop.xlane.xlu0 %3853
  %v3855 = vsel %vm1350, %v3181, 0.0
  %3856 = vadd.xlane.f32.xlu0 %v3855
  %v3857 = vpop.xlane.xlu0 %3856
  %v3858 = vsel %vm1350, %v3182, 0.0
  %3859 = vadd.xlane.f32.xlu0 %v3858
  %v3860 = vpop.xlane.xlu0 %3859
  %v3861 = vsel %vm1350, %v3183, 0.0
  %3862 = vadd.xlane.f32.xlu0 %v3861
  %v3863 = vpop.xlane.xlu0 %3862
  %v3864 = vsel %vm1350, %v3184, 0.0
  %3865 = vadd.xlane.f32.xlu0 %v3864
  %v3866 = vpop.xlane.xlu0 %3865
  %v3867 = vsel %vm1350, %v3185, 0.0
  %3868 = vadd.xlane.f32.xlu0 %v3867
  %v3869 = vpop.xlane.xlu0 %3868
  %v3870 = vsel %vm1350, %v3186, 0.0
  %3871 = vadd.xlane.f32.xlu0 %v3870
  %v3872 = vpop.xlane.xlu0 %3871
  %v3873 = vsel %vm1350, %v3187, 0.0
  %3874 = vadd.xlane.f32.xlu0 %v3873
  %v3875 = vpop.xlane.xlu0 %3874
  %v3876 = vsel %vm1350, %v3188, 0.0
  %3877 = vadd.xlane.f32.xlu0 %v3876
  %v3878 = vpop.xlane.xlu0 %3877
  %v3879 = vsel %vm1350, %v3189, 0.0
  %3880 = vadd.xlane.f32.xlu0 %v3879
  %v3881 = vpop.xlane.xlu0 %3880
  %v3882 = vsel %vm1350, %v3190, 0.0
  %3883 = vadd.xlane.f32.xlu0 %v3882
  %v3884 = vpop.xlane.xlu0 %3883
  %v3885 = vsel %vm1350, %v3191, 0.0
  %3886 = vadd.xlane.f32.xlu0 %v3885
  %v3887 = vpop.xlane.xlu0 %3886
  %v3888 = vsel %vm1350, %v3192, 0.0
  %3889 = vadd.xlane.f32.xlu0 %v3888
  %v3890 = vpop.xlane.xlu0 %3889
  %v3891 = vsel %vm1350, %v3193, 0.0
  %3892 = vadd.xlane.f32.xlu0 %v3891
  %v3893 = vpop.xlane.xlu0 %3892
  %v3894 = vsel %vm1350, %v3194, 0.0
  %3895 = vadd.xlane.f32.xlu0 %v3894
  %v3896 = vpop.xlane.xlu0 %3895
  %v3897 = vsel %vm1350, %v3195, 0.0
  %3898 = vadd.xlane.f32.xlu0 %v3897
  %v3899 = vpop.xlane.xlu0 %3898
  %v3900 = vsel %vm1350, %v3196, 0.0
  %3901 = vadd.xlane.f32.xlu0 %v3900
  %v3902 = vpop.xlane.xlu0 %3901
  %v3903 = vsel %vm1350, %v3197, 0.0
  %3904 = vadd.xlane.f32.xlu0 %v3903
  %v3905 = vpop.xlane.xlu0 %3904
  %v3906 = vsel %vm1350, %v3198, 0.0
  %3907 = vadd.xlane.f32.xlu0 %v3906
  %v3908 = vpop.xlane.xlu0 %3907
  %v3909 = vsel %vm1350, %v3199, 0.0
  %3910 = vadd.xlane.f32.xlu0 %v3909
  %v3911 = vpop.xlane.xlu0 %3910
  %v3912 = vsel %vm1350, %v3200, 0.0
  %3913 = vadd.xlane.f32.xlu0 %v3912
  %v3914 = vpop.xlane.xlu0 %3913
  %v3915 = vsel %vm1350, %v3201, 0.0
  %3916 = vadd.xlane.f32.xlu0 %v3915
  %v3917 = vpop.xlane.xlu0 %3916
  %v3918 = vsel %vm1350, %v3202, 0.0
  %3919 = vadd.xlane.f32.xlu0 %v3918
  %v3920 = vpop.xlane.xlu0 %3919
  %v3921 = vsel %vm1350, %v3203, 0.0
  %3922 = vadd.xlane.f32.xlu0 %v3921
  %v3923 = vpop.xlane.xlu0 %3922
  %v3924 = vsel %vm1350, %v3204, 0.0
  %3925 = vadd.xlane.f32.xlu0 %v3924
  %v3926 = vpop.xlane.xlu0 %3925
  %v3927 = vsel %vm1350, %v3205, 0.0
  %3928 = vadd.xlane.f32.xlu0 %v3927
  %v3929 = vpop.xlane.xlu0 %3928
  %v3930 = vsel %vm1350, %v3206, 0.0
  %3931 = vadd.xlane.f32.xlu0 %v3930
  %v3932 = vpop.xlane.xlu0 %3931
  %v3933 = vsel %vm1350, %v3207, 0.0
  %3934 = vadd.xlane.f32.xlu0 %v3933
  %v3935 = vpop.xlane.xlu0 %3934
  %v3936 = vsel %vm1350, %v3208, 0.0
  %3937 = vadd.xlane.f32.xlu0 %v3936
  %v3938 = vpop.xlane.xlu0 %3937
  %v3939 = vsel %vm1350, %v3209, 0.0
  %3940 = vadd.xlane.f32.xlu0 %v3939
  %v3941 = vpop.xlane.xlu0 %3940
  %v3942 = vsel %vm1350, %v3210, 0.0
  %3943 = vadd.xlane.f32.xlu0 %v3942
  %v3944 = vpop.xlane.xlu0 %3943
  %v3945 = vsel %vm1350, %v3211, 0.0
  %3946 = vadd.xlane.f32.xlu0 %v3945
  %v3947 = vpop.xlane.xlu0 %3946
  %v3948 = vsel %vm1350, %v3212, 0.0
  %3949 = vadd.xlane.f32.xlu0 %v3948
  %v3950 = vpop.xlane.xlu0 %3949
  %v3951 = vsel %vm1350, %v3213, 0.0
  %3952 = vadd.xlane.f32.xlu0 %v3951
  %v3953 = vpop.xlane.xlu0 %3952
  %v3954 = vsel %vm1350, %v3214, 0.0
  %3955 = vadd.xlane.f32.xlu0 %v3954
  %v3956 = vpop.xlane.xlu0 %3955
  %v3957 = vsel %vm1350, %v3215, 0.0
  %3958 = vadd.xlane.f32.xlu0 %v3957
  %v3959 = vpop.xlane.xlu0 %3958
  %v3960 = vsel %vm1350, %v3216, 0.0
  %3961 = vadd.xlane.f32.xlu0 %v3960
  %v3962 = vpop.xlane.xlu0 %3961
  %v3963 = vsel %vm1350, %v3217, 0.0
  %3964 = vadd.xlane.f32.xlu0 %v3963
  %v3965 = vpop.xlane.xlu0 %3964
  %v3966 = vsel %vm1350, %v3218, 0.0
  %3967 = vadd.xlane.f32.xlu0 %v3966
  %v3968 = vpop.xlane.xlu0 %3967
  %v3969 = vsel %vm1350, %v3219, 0.0
  %3970 = vadd.xlane.f32.xlu0 %v3969
  %v3971 = vpop.xlane.xlu0 %3970
  %v3972 = vsel %vm1350, %v3220, 0.0
  %3973 = vadd.xlane.f32.xlu0 %v3972
  %v3974 = vpop.xlane.xlu0 %3973
  %v3975 = vsel %vm1350, %v3221, 0.0
  %3976 = vadd.xlane.f32.xlu0 %v3975
  %v3977 = vpop.xlane.xlu0 %3976
  %v3978 = vsel %vm1350, %v3222, 0.0
  %3979 = vadd.xlane.f32.xlu0 %v3978
  %v3980 = vpop.xlane.xlu0 %3979
  %v3981 = vsel %vm1350, %v3223, 0.0
  %3982 = vadd.xlane.f32.xlu0 %v3981
  %v3983 = vpop.xlane.xlu0 %3982
  %v3984 = vsel %vm1350, %v3224, 0.0
  %3985 = vadd.xlane.f32.xlu0 %v3984
  %v3986 = vpop.xlane.xlu0 %3985
  %v3987 = vsel %vm1350, %v3225, 0.0
  %3988 = vadd.xlane.f32.xlu0 %v3987
  %v3989 = vpop.xlane.xlu0 %3988
  %v3990 = vsel %vm1350, %v3226, 0.0
  %3991 = vadd.xlane.f32.xlu0 %v3990
  %v3992 = vpop.xlane.xlu0 %3991
  %v3993 = vsel %vm1350, %v3227, 0.0
  %3994 = vadd.xlane.f32.xlu0 %v3993
  %v3995 = vpop.xlane.xlu0 %3994
  %v4252 = vperm.slane %v3230, %v2376
  %v4253 = vperm.slane %v3233, %v2378
  %v4254 = vsel %vm2380, %v4253, %v4252
  %v4255 = vperm.slane %v3236, %v2382
  %v4256 = vsel %vm2384, %v4255, %v4254
  %v4257 = vperm.slane %v3239, %v2386
  %v4258 = vsel %vm2388, %v4257, %v4256
  %v4259 = vperm.slane %v3242, %v2376
  %v4260 = vperm.slane %v3245, %v2378
  %v4261 = vsel %vm2380, %v4260, %v4259
  %v4262 = vperm.slane %v3248, %v2382
  %v4263 = vsel %vm2384, %v4262, %v4261
  %v4264 = vperm.slane %v3251, %v2386
  %v4265 = vsel %vm2388, %v4264, %v4263
  %v4266 = vperm.slane %v3254, %v2376
  %v4267 = vperm.slane %v3257, %v2378
  %v4268 = vsel %vm2380, %v4267, %v4266
  %v4269 = vperm.slane %v3260, %v2382
  %v4270 = vsel %vm2384, %v4269, %v4268
  %v4271 = vperm.slane %v3263, %v2386
  %v4272 = vsel %vm2388, %v4271, %v4270
  %v4273 = vperm.slane %v3266, %v2376
  %v4274 = vperm.slane %v3269, %v2378
  %v4275 = vsel %vm2380, %v4274, %v4273
  %v4276 = vperm.slane %v3272, %v2382
  %v4277 = vsel %vm2384, %v4276, %v4275
  %v4278 = vperm.slane %v3275, %v2386
  %v4279 = vsel %vm2388, %v4278, %v4277
  %v4280 = vperm.slane %v3278, %v2376
  %v4281 = vperm.slane %v3281, %v2378
  %v4282 = vsel %vm2380, %v4281, %v4280
  %v4283 = vperm.slane %v3284, %v2382
  %v4284 = vsel %vm2384, %v4283, %v4282
  %v4285 = vperm.slane %v3287, %v2386
  %v4286 = vsel %vm2388, %v4285, %v4284
  %v4287 = vperm.slane %v3290, %v2376
  %v4288 = vperm.slane %v3293, %v2378
  %v4289 = vsel %vm2380, %v4288, %v4287
  %v4290 = vperm.slane %v3296, %v2382
  %v4291 = vsel %vm2384, %v4290, %v4289
  %v4292 = vperm.slane %v3299, %v2386
  %v4293 = vsel %vm2388, %v4292, %v4291
  %v4294 = vperm.slane %v3302, %v2376
  %v4295 = vperm.slane %v3305, %v2378
  %v4296 = vsel %vm2380, %v4295, %v4294
  %v4297 = vperm.slane %v3308, %v2382
  %v4298 = vsel %vm2384, %v4297, %v4296
  %v4299 = vperm.slane %v3311, %v2386
  %v4300 = vsel %vm2388, %v4299, %v4298
  %v4301 = vperm.slane %v3314, %v2376
  %v4302 = vperm.slane %v3317, %v2378
  %v4303 = vsel %vm2380, %v4302, %v4301
  %v4304 = vperm.slane %v3320, %v2382
  %v4305 = vsel %vm2384, %v4304, %v4303
  %v4306 = vperm.slane %v3323, %v2386
  %v4307 = vsel %vm2388, %v4306, %v4305
  %v4308 = vperm.slane %v3326, %v2376
  %v4309 = vperm.slane %v3329, %v2378
  %v4310 = vsel %vm2380, %v4309, %v4308
  %v4311 = vperm.slane %v3332, %v2382
  %v4312 = vsel %vm2384, %v4311, %v4310
  %v4313 = vperm.slane %v3335, %v2386
  %v4314 = vsel %vm2388, %v4313, %v4312
  %v4315 = vperm.slane %v3338, %v2376
  %v4316 = vperm.slane %v3341, %v2378
  %v4317 = vsel %vm2380, %v4316, %v4315
  %v4318 = vperm.slane %v3344, %v2382
  %v4319 = vsel %vm2384, %v4318, %v4317
  %v4320 = vperm.slane %v3347, %v2386
  %v4321 = vsel %vm2388, %v4320, %v4319
  %v4322 = vperm.slane %v3350, %v2376
  %v4323 = vperm.slane %v3353, %v2378
  %v4324 = vsel %vm2380, %v4323, %v4322
  %v4325 = vperm.slane %v3356, %v2382
  %v4326 = vsel %vm2384, %v4325, %v4324
  %v4327 = vperm.slane %v3359, %v2386
  %v4328 = vsel %vm2388, %v4327, %v4326
  %v4329 = vperm.slane %v3362, %v2376
  %v4330 = vperm.slane %v3365, %v2378
  %v4331 = vsel %vm2380, %v4330, %v4329
  %v4332 = vperm.slane %v3368, %v2382
  %v4333 = vsel %vm2384, %v4332, %v4331
  %v4334 = vperm.slane %v3371, %v2386
  %v4335 = vsel %vm2388, %v4334, %v4333
  %v4336 = vperm.slane %v3374, %v2376
  %v4337 = vperm.slane %v3377, %v2378
  %v4338 = vsel %vm2380, %v4337, %v4336
  %v4339 = vperm.slane %v3380, %v2382
  %v4340 = vsel %vm2384, %v4339, %v4338
  %v4341 = vperm.slane %v3383, %v2386
  %v4342 = vsel %vm2388, %v4341, %v4340
  %v4343 = vperm.slane %v3386, %v2376
  %v4344 = vperm.slane %v3389, %v2378
  %v4345 = vsel %vm2380, %v4344, %v4343
  %v4346 = vperm.slane %v3392, %v2382
  %v4347 = vsel %vm2384, %v4346, %v4345
  %v4348 = vperm.slane %v3395, %v2386
  %v4349 = vsel %vm2388, %v4348, %v4347
  %v4350 = vperm.slane %v3398, %v2376
  %v4351 = vperm.slane %v3401, %v2378
  %v4352 = vsel %vm2380, %v4351, %v4350
  %v4353 = vperm.slane %v3404, %v2382
  %v4354 = vsel %vm2384, %v4353, %v4352
  %v4355 = vperm.slane %v3407, %v2386
  %v4356 = vsel %vm2388, %v4355, %v4354
  %v4357 = vperm.slane %v3410, %v2376
  %v4358 = vperm.slane %v3413, %v2378
  %v4359 = vsel %vm2380, %v4358, %v4357
  %v4360 = vperm.slane %v3416, %v2382
  %v4361 = vsel %vm2384, %v4360, %v4359
  %v4362 = vperm.slane %v3419, %v2386
  %v4363 = vsel %vm2388, %v4362, %v4361
  %v4364 = vperm.slane %v3422, %v2376
  %v4365 = vperm.slane %v3425, %v2378
  %v4366 = vsel %vm2380, %v4365, %v4364
  %v4367 = vperm.slane %v3428, %v2382
  %v4368 = vsel %vm2384, %v4367, %v4366
  %v4369 = vperm.slane %v3431, %v2386
  %v4370 = vsel %vm2388, %v4369, %v4368
  %v4371 = vperm.slane %v3434, %v2376
  %v4372 = vperm.slane %v3437, %v2378
  %v4373 = vsel %vm2380, %v4372, %v4371
  %v4374 = vperm.slane %v3440, %v2382
  %v4375 = vsel %vm2384, %v4374, %v4373
  %v4376 = vperm.slane %v3443, %v2386
  %v4377 = vsel %vm2388, %v4376, %v4375
  %v4378 = vperm.slane %v3446, %v2376
  %v4379 = vperm.slane %v3449, %v2378
  %v4380 = vsel %vm2380, %v4379, %v4378
  %v4381 = vperm.slane %v3452, %v2382
  %v4382 = vsel %vm2384, %v4381, %v4380
  %v4383 = vperm.slane %v3455, %v2386
  %v4384 = vsel %vm2388, %v4383, %v4382
  %v4385 = vperm.slane %v3458, %v2376
  %v4386 = vperm.slane %v3461, %v2378
  %v4387 = vsel %vm2380, %v4386, %v4385
  %v4388 = vperm.slane %v3464, %v2382
  %v4389 = vsel %vm2384, %v4388, %v4387
  %v4390 = vperm.slane %v3467, %v2386
  %v4391 = vsel %vm2388, %v4390, %v4389
  %v4392 = vperm.slane %v3470, %v2376
  %v4393 = vperm.slane %v3473, %v2378
  %v4394 = vsel %vm2380, %v4393, %v4392
  %v4395 = vperm.slane %v3476, %v2382
  %v4396 = vsel %vm2384, %v4395, %v4394
  %v4397 = vperm.slane %v3479, %v2386
  %v4398 = vsel %vm2388, %v4397, %v4396
  %v4399 = vperm.slane %v3482, %v2376
  %v4400 = vperm.slane %v3485, %v2378
  %v4401 = vsel %vm2380, %v4400, %v4399
  %v4402 = vperm.slane %v3488, %v2382
  %v4403 = vsel %vm2384, %v4402, %v4401
  %v4404 = vperm.slane %v3491, %v2386
  %v4405 = vsel %vm2388, %v4404, %v4403
  %v4406 = vperm.slane %v3494, %v2376
  %v4407 = vperm.slane %v3497, %v2378
  %v4408 = vsel %vm2380, %v4407, %v4406
  %v4409 = vperm.slane %v3500, %v2382
  %v4410 = vsel %vm2384, %v4409, %v4408
  %v4411 = vperm.slane %v3503, %v2386
  %v4412 = vsel %vm2388, %v4411, %v4410
  %v4413 = vperm.slane %v3506, %v2376
  %v4414 = vperm.slane %v3509, %v2378
  %v4415 = vsel %vm2380, %v4414, %v4413
  %v4416 = vperm.slane %v3512, %v2382
  %v4417 = vsel %vm2384, %v4416, %v4415
  %v4418 = vperm.slane %v3515, %v2386
  %v4419 = vsel %vm2388, %v4418, %v4417
  %v4420 = vperm.slane %v3518, %v2376
  %v4421 = vperm.slane %v3521, %v2378
  %v4422 = vsel %vm2380, %v4421, %v4420
  %v4423 = vperm.slane %v3524, %v2382
  %v4424 = vsel %vm2384, %v4423, %v4422
  %v4425 = vperm.slane %v3527, %v2386
  %v4426 = vsel %vm2388, %v4425, %v4424
  %v4427 = vperm.slane %v3530, %v2376
  %v4428 = vperm.slane %v3533, %v2378
  %v4429 = vsel %vm2380, %v4428, %v4427
  %v4430 = vperm.slane %v3536, %v2382
  %v4431 = vsel %vm2384, %v4430, %v4429
  %v4432 = vperm.slane %v3539, %v2386
  %v4433 = vsel %vm2388, %v4432, %v4431
  %v4434 = vperm.slane %v3542, %v2376
  %v4435 = vperm.slane %v3545, %v2378
  %v4436 = vsel %vm2380, %v4435, %v4434
  %v4437 = vperm.slane %v3548, %v2382
  %v4438 = vsel %vm2384, %v4437, %v4436
  %v4439 = vperm.slane %v3551, %v2386
  %v4440 = vsel %vm2388, %v4439, %v4438
  %v4441 = vperm.slane %v3554, %v2376
  %v4442 = vperm.slane %v3557, %v2378
  %v4443 = vsel %vm2380, %v4442, %v4441
  %v4444 = vperm.slane %v3560, %v2382
  %v4445 = vsel %vm2384, %v4444, %v4443
  %v4446 = vperm.slane %v3563, %v2386
  %v4447 = vsel %vm2388, %v4446, %v4445
  %v4448 = vperm.slane %v3566, %v2376
  %v4449 = vperm.slane %v3569, %v2378
  %v4450 = vsel %vm2380, %v4449, %v4448
  %v4451 = vperm.slane %v3572, %v2382
  %v4452 = vsel %vm2384, %v4451, %v4450
  %v4453 = vperm.slane %v3575, %v2386
  %v4454 = vsel %vm2388, %v4453, %v4452
  %v4455 = vperm.slane %v3578, %v2376
  %v4456 = vperm.slane %v3581, %v2378
  %v4457 = vsel %vm2380, %v4456, %v4455
  %v4458 = vperm.slane %v3584, %v2382
  %v4459 = vsel %vm2384, %v4458, %v4457
  %v4460 = vperm.slane %v3587, %v2386
  %v4461 = vsel %vm2388, %v4460, %v4459
  %v4462 = vperm.slane %v3590, %v2376
  %v4463 = vperm.slane %v3593, %v2378
  %v4464 = vsel %vm2380, %v4463, %v4462
  %v4465 = vperm.slane %v3596, %v2382
  %v4466 = vsel %vm2384, %v4465, %v4464
  %v4467 = vperm.slane %v3599, %v2386
  %v4468 = vsel %vm2388, %v4467, %v4466
  %v4469 = vperm.slane %v3602, %v2376
  %v4470 = vperm.slane %v3605, %v2378
  %v4471 = vsel %vm2380, %v4470, %v4469
  %v4472 = vperm.slane %v3608, %v2382
  %v4473 = vsel %vm2384, %v4472, %v4471
  %v4474 = vperm.slane %v3611, %v2386
  %v4475 = vsel %vm2388, %v4474, %v4473
  %v4476 = vperm.slane %v3614, %v2376
  %v4477 = vperm.slane %v3617, %v2378
  %v4478 = vsel %vm2380, %v4477, %v4476
  %v4479 = vperm.slane %v3620, %v2382
  %v4480 = vsel %vm2384, %v4479, %v4478
  %v4481 = vperm.slane %v3623, %v2386
  %v4482 = vsel %vm2388, %v4481, %v4480
  %v4483 = vperm.slane %v3626, %v2376
  %v4484 = vperm.slane %v3629, %v2378
  %v4485 = vsel %vm2380, %v4484, %v4483
  %v4486 = vperm.slane %v3632, %v2382
  %v4487 = vsel %vm2384, %v4486, %v4485
  %v4488 = vperm.slane %v3635, %v2386
  %v4489 = vsel %vm2388, %v4488, %v4487
  %v4490 = vperm.slane %v3638, %v2376
  %v4491 = vperm.slane %v3641, %v2378
  %v4492 = vsel %vm2380, %v4491, %v4490
  %v4493 = vperm.slane %v3644, %v2382
  %v4494 = vsel %vm2384, %v4493, %v4492
  %v4495 = vperm.slane %v3647, %v2386
  %v4496 = vsel %vm2388, %v4495, %v4494
  %v4497 = vperm.slane %v3650, %v2376
  %v4498 = vperm.slane %v3653, %v2378
  %v4499 = vsel %vm2380, %v4498, %v4497
  %v4500 = vperm.slane %v3656, %v2382
  %v4501 = vsel %vm2384, %v4500, %v4499
  %v4502 = vperm.slane %v3659, %v2386
  %v4503 = vsel %vm2388, %v4502, %v4501
  %v4504 = vperm.slane %v3662, %v2376
  %v4505 = vperm.slane %v3665, %v2378
  %v4506 = vsel %vm2380, %v4505, %v4504
  %v4507 = vperm.slane %v3668, %v2382
  %v4508 = vsel %vm2384, %v4507, %v4506
  %v4509 = vperm.slane %v3671, %v2386
  %v4510 = vsel %vm2388, %v4509, %v4508
  %v4511 = vperm.slane %v3674, %v2376
  %v4512 = vperm.slane %v3677, %v2378
  %v4513 = vsel %vm2380, %v4512, %v4511
  %v4514 = vperm.slane %v3680, %v2382
  %v4515 = vsel %vm2384, %v4514, %v4513
  %v4516 = vperm.slane %v3683, %v2386
  %v4517 = vsel %vm2388, %v4516, %v4515
  %v4518 = vperm.slane %v3686, %v2376
  %v4519 = vperm.slane %v3689, %v2378
  %v4520 = vsel %vm2380, %v4519, %v4518
  %v4521 = vperm.slane %v3692, %v2382
  %v4522 = vsel %vm2384, %v4521, %v4520
  %v4523 = vperm.slane %v3695, %v2386
  %v4524 = vsel %vm2388, %v4523, %v4522
  %v4525 = vperm.slane %v3698, %v2376
  %v4526 = vperm.slane %v3701, %v2378
  %v4527 = vsel %vm2380, %v4526, %v4525
  %v4528 = vperm.slane %v3704, %v2382
  %v4529 = vsel %vm2384, %v4528, %v4527
  %v4530 = vperm.slane %v3707, %v2386
  %v4531 = vsel %vm2388, %v4530, %v4529
  %v4532 = vperm.slane %v3710, %v2376
  %v4533 = vperm.slane %v3713, %v2378
  %v4534 = vsel %vm2380, %v4533, %v4532
  %v4535 = vperm.slane %v3716, %v2382
  %v4536 = vsel %vm2384, %v4535, %v4534
  %v4537 = vperm.slane %v3719, %v2386
  %v4538 = vsel %vm2388, %v4537, %v4536
  %v4539 = vperm.slane %v3722, %v2376
  %v4540 = vperm.slane %v3725, %v2378
  %v4541 = vsel %vm2380, %v4540, %v4539
  %v4542 = vperm.slane %v3728, %v2382
  %v4543 = vsel %vm2384, %v4542, %v4541
  %v4544 = vperm.slane %v3731, %v2386
  %v4545 = vsel %vm2388, %v4544, %v4543
  %v4546 = vperm.slane %v3734, %v2376
  %v4547 = vperm.slane %v3737, %v2378
  %v4548 = vsel %vm2380, %v4547, %v4546
  %v4549 = vperm.slane %v3740, %v2382
  %v4550 = vsel %vm2384, %v4549, %v4548
  %v4551 = vperm.slane %v3743, %v2386
  %v4552 = vsel %vm2388, %v4551, %v4550
  %v4553 = vperm.slane %v3746, %v2376
  %v4554 = vperm.slane %v3749, %v2378
  %v4555 = vsel %vm2380, %v4554, %v4553
  %v4556 = vperm.slane %v3752, %v2382
  %v4557 = vsel %vm2384, %v4556, %v4555
  %v4558 = vperm.slane %v3755, %v2386
  %v4559 = vsel %vm2388, %v4558, %v4557
  %v4560 = vperm.slane %v3758, %v2376
  %v4561 = vperm.slane %v3761, %v2378
  %v4562 = vsel %vm2380, %v4561, %v4560
  %v4563 = vperm.slane %v3764, %v2382
  %v4564 = vsel %vm2384, %v4563, %v4562
  %v4565 = vperm.slane %v3767, %v2386
  %v4566 = vsel %vm2388, %v4565, %v4564
  %v4567 = vperm.slane %v3770, %v2376
  %v4568 = vperm.slane %v3773, %v2378
  %v4569 = vsel %vm2380, %v4568, %v4567
  %v4570 = vperm.slane %v3776, %v2382
  %v4571 = vsel %vm2384, %v4570, %v4569
  %v4572 = vperm.slane %v3779, %v2386
  %v4573 = vsel %vm2388, %v4572, %v4571
  %v4574 = vperm.slane %v3782, %v2376
  %v4575 = vperm.slane %v3785, %v2378
  %v4576 = vsel %vm2380, %v4575, %v4574
  %v4577 = vperm.slane %v3788, %v2382
  %v4578 = vsel %vm2384, %v4577, %v4576
  %v4579 = vperm.slane %v3791, %v2386
  %v4580 = vsel %vm2388, %v4579, %v4578
  %v4581 = vperm.slane %v3794, %v2376
  %v4582 = vperm.slane %v3797, %v2378
  %v4583 = vsel %vm2380, %v4582, %v4581
  %v4584 = vperm.slane %v3800, %v2382
  %v4585 = vsel %vm2384, %v4584, %v4583
  %v4586 = vperm.slane %v3803, %v2386
  %v4587 = vsel %vm2388, %v4586, %v4585
  %v4588 = vperm.slane %v3806, %v2376
  %v4589 = vperm.slane %v3809, %v2378
  %v4590 = vsel %vm2380, %v4589, %v4588
  %v4591 = vperm.slane %v3812, %v2382
  %v4592 = vsel %vm2384, %v4591, %v4590
  %v4593 = vperm.slane %v3815, %v2386
  %v4594 = vsel %vm2388, %v4593, %v4592
  %v4595 = vperm.slane %v3818, %v2376
  %v4596 = vperm.slane %v3821, %v2378
  %v4597 = vsel %vm2380, %v4596, %v4595
  %v4598 = vperm.slane %v3824, %v2382
  %v4599 = vsel %vm2384, %v4598, %v4597
  %v4600 = vperm.slane %v3827, %v2386
  %v4601 = vsel %vm2388, %v4600, %v4599
  %v4602 = vperm.slane %v3830, %v2376
  %v4603 = vperm.slane %v3833, %v2378
  %v4604 = vsel %vm2380, %v4603, %v4602
  %v4605 = vperm.slane %v3836, %v2382
  %v4606 = vsel %vm2384, %v4605, %v4604
  %v4607 = vperm.slane %v3839, %v2386
  %v4608 = vsel %vm2388, %v4607, %v4606
  %v4609 = vperm.slane %v3842, %v2376
  %v4610 = vperm.slane %v3845, %v2378
  %v4611 = vsel %vm2380, %v4610, %v4609
  %v4612 = vperm.slane %v3848, %v2382
  %v4613 = vsel %vm2384, %v4612, %v4611
  %v4614 = vperm.slane %v3851, %v2386
  %v4615 = vsel %vm2388, %v4614, %v4613
  %v4616 = vperm.slane %v3854, %v2376
  %v4617 = vperm.slane %v3857, %v2378
  %v4618 = vsel %vm2380, %v4617, %v4616
  %v4619 = vperm.slane %v3860, %v2382
  %v4620 = vsel %vm2384, %v4619, %v4618
  %v4621 = vperm.slane %v3863, %v2386
  %v4622 = vsel %vm2388, %v4621, %v4620
  %v4623 = vperm.slane %v3866, %v2376
  %v4624 = vperm.slane %v3869, %v2378
  %v4625 = vsel %vm2380, %v4624, %v4623
  %v4626 = vperm.slane %v3872, %v2382
  %v4627 = vsel %vm2384, %v4626, %v4625
  %v4628 = vperm.slane %v3875, %v2386
  %v4629 = vsel %vm2388, %v4628, %v4627
  %v4630 = vperm.slane %v3878, %v2376
  %v4631 = vperm.slane %v3881, %v2378
  %v4632 = vsel %vm2380, %v4631, %v4630
  %v4633 = vperm.slane %v3884, %v2382
  %v4634 = vsel %vm2384, %v4633, %v4632
  %v4635 = vperm.slane %v3887, %v2386
  %v4636 = vsel %vm2388, %v4635, %v4634
  %v4637 = vperm.slane %v3890, %v2376
  %v4638 = vperm.slane %v3893, %v2378
  %v4639 = vsel %vm2380, %v4638, %v4637
  %v4640 = vperm.slane %v3896, %v2382
  %v4641 = vsel %vm2384, %v4640, %v4639
  %v4642 = vperm.slane %v3899, %v2386
  %v4643 = vsel %vm2388, %v4642, %v4641
  %v4644 = vperm.slane %v3902, %v2376
  %v4645 = vperm.slane %v3905, %v2378
  %v4646 = vsel %vm2380, %v4645, %v4644
  %v4647 = vperm.slane %v3908, %v2382
  %v4648 = vsel %vm2384, %v4647, %v4646
  %v4649 = vperm.slane %v3911, %v2386
  %v4650 = vsel %vm2388, %v4649, %v4648
  %v4651 = vperm.slane %v3914, %v2376
  %v4652 = vperm.slane %v3917, %v2378
  %v4653 = vsel %vm2380, %v4652, %v4651
  %v4654 = vperm.slane %v3920, %v2382
  %v4655 = vsel %vm2384, %v4654, %v4653
  %v4656 = vperm.slane %v3923, %v2386
  %v4657 = vsel %vm2388, %v4656, %v4655
  %v4658 = vperm.slane %v3926, %v2376
  %v4659 = vperm.slane %v3929, %v2378
  %v4660 = vsel %vm2380, %v4659, %v4658
  %v4661 = vperm.slane %v3932, %v2382
  %v4662 = vsel %vm2384, %v4661, %v4660
  %v4663 = vperm.slane %v3935, %v2386
  %v4664 = vsel %vm2388, %v4663, %v4662
  %v4665 = vperm.slane %v3938, %v2376
  %v4666 = vperm.slane %v3941, %v2378
  %v4667 = vsel %vm2380, %v4666, %v4665
  %v4668 = vperm.slane %v3944, %v2382
  %v4669 = vsel %vm2384, %v4668, %v4667
  %v4670 = vperm.slane %v3947, %v2386
  %v4671 = vsel %vm2388, %v4670, %v4669
  %v4672 = vperm.slane %v3950, %v2376
  %v4673 = vperm.slane %v3953, %v2378
  %v4674 = vsel %vm2380, %v4673, %v4672
  %v4675 = vperm.slane %v3956, %v2382
  %v4676 = vsel %vm2384, %v4675, %v4674
  %v4677 = vperm.slane %v3959, %v2386
  %v4678 = vsel %vm2388, %v4677, %v4676
  %v4679 = vperm.slane %v3962, %v2376
  %v4680 = vperm.slane %v3965, %v2378
  %v4681 = vsel %vm2380, %v4680, %v4679
  %v4682 = vperm.slane %v3968, %v2382
  %v4683 = vsel %vm2384, %v4682, %v4681
  %v4684 = vperm.slane %v3971, %v2386
  %v4685 = vsel %vm2388, %v4684, %v4683
  %v4686 = vperm.slane %v3974, %v2376
  %v4687 = vperm.slane %v3977, %v2378
  %v4688 = vsel %vm2380, %v4687, %v4686
  %v4689 = vperm.slane %v3980, %v2382
  %v4690 = vsel %vm2384, %v4689, %v4688
  %v4691 = vperm.slane %v3983, %v2386
  %v4692 = vsel %vm2388, %v4691, %v4690
  %v4693 = vperm.slane %v3986, %v2376
  %v4694 = vperm.slane %v3989, %v2378
  %v4695 = vsel %vm2380, %v4694, %v4693
  %v4696 = vperm.slane %v3992, %v2382
  %v4697 = vsel %vm2384, %v4696, %v4695
  %v4698 = vperm.slane %v3995, %v2386
  %v4699 = vsel %vm2388, %v4698, %v4697
  %v4700 = vsel %vm2831, %v4265, %v4258
  %v4701 = vsel %vm2833, %v4272, %v4700
  %v4702 = vsel %vm2835, %v4279, %v4701
  %v4703 = vsel %vm2837, %v4286, %v4702
  %v4704 = vsel %vm2839, %v4293, %v4703
  %v4705 = vsel %vm2841, %v4300, %v4704
  %v4706 = vsel %vm2843, %v4307, %v4705
  %v4707 = vsel %vm2831, %v4321, %v4314
  %v4708 = vsel %vm2833, %v4328, %v4707
  %v4709 = vsel %vm2835, %v4335, %v4708
  %v4710 = vsel %vm2837, %v4342, %v4709
  %v4711 = vsel %vm2839, %v4349, %v4710
  %v4712 = vsel %vm2841, %v4356, %v4711
  %v4713 = vsel %vm2843, %v4363, %v4712
  %v4714 = vsel %vm2831, %v4377, %v4370
  %v4715 = vsel %vm2833, %v4384, %v4714
  %v4716 = vsel %vm2835, %v4391, %v4715
  %v4717 = vsel %vm2837, %v4398, %v4716
  %v4718 = vsel %vm2839, %v4405, %v4717
  %v4719 = vsel %vm2841, %v4412, %v4718
  %v4720 = vsel %vm2843, %v4419, %v4719
  %v4721 = vsel %vm2831, %v4433, %v4426
  %v4722 = vsel %vm2833, %v4440, %v4721
  %v4723 = vsel %vm2835, %v4447, %v4722
  %v4724 = vsel %vm2837, %v4454, %v4723
  %v4725 = vsel %vm2839, %v4461, %v4724
  %v4726 = vsel %vm2841, %v4468, %v4725
  %v4727 = vsel %vm2843, %v4475, %v4726
  %v4728 = vsel %vm2831, %v4489, %v4482
  %v4729 = vsel %vm2833, %v4496, %v4728
  %v4730 = vsel %vm2835, %v4503, %v4729
  %v4731 = vsel %vm2837, %v4510, %v4730
  %v4732 = vsel %vm2839, %v4517, %v4731
  %v4733 = vsel %vm2841, %v4524, %v4732
  %v4734 = vsel %vm2843, %v4531, %v4733
  %v4735 = vsel %vm2831, %v4545, %v4538
  %v4736 = vsel %vm2833, %v4552, %v4735
  %v4737 = vsel %vm2835, %v4559, %v4736
  %v4738 = vsel %vm2837, %v4566, %v4737
  %v4739 = vsel %vm2839, %v4573, %v4738
  %v4740 = vsel %vm2841, %v4580, %v4739
  %v4741 = vsel %vm2843, %v4587, %v4740
  %v4742 = vsel %vm2831, %v4601, %v4594
  %v4743 = vsel %vm2833, %v4608, %v4742
  %v4744 = vsel %vm2835, %v4615, %v4743
  %v4745 = vsel %vm2837, %v4622, %v4744
  %v4746 = vsel %vm2839, %v4629, %v4745
  %v4747 = vsel %vm2841, %v4636, %v4746
  %v4748 = vsel %vm2843, %v4643, %v4747
  %v4749 = vsel %vm2831, %v4657, %v4650
  %v4750 = vsel %vm2833, %v4664, %v4749
  %v4751 = vsel %vm2835, %v4671, %v4750
  %v4752 = vsel %vm2837, %v4678, %v4751
  %v4753 = vsel %vm2839, %v4685, %v4752
  %v4754 = vsel %vm2841, %v4692, %v4753
  %v4755 = vsel %vm2843, %v4699, %v4754
  %v4764 = vsel %vm2902, %v4706, 0.0
  %4765 = vadd.xlane.f32.xlu0 %v4764
  %v4766 = vpop.xlane.xlu0 %4765
  %v4767 = vsel %vm2902, %v4713, 0.0
  %4768 = vadd.xlane.f32.xlu0 %v4767
  %v4769 = vpop.xlane.xlu0 %4768
  %v4770 = vsel %vm2902, %v4720, 0.0
  %4771 = vadd.xlane.f32.xlu0 %v4770
  %v4772 = vpop.xlane.xlu0 %4771
  %v4773 = vsel %vm2902, %v4727, 0.0
  %4774 = vadd.xlane.f32.xlu0 %v4773
  %v4775 = vpop.xlane.xlu0 %4774
  %v4776 = vsel %vm2902, %v4734, 0.0
  %4777 = vadd.xlane.f32.xlu0 %v4776
  %v4778 = vpop.xlane.xlu0 %4777
  %v4779 = vsel %vm2902, %v4741, 0.0
  %4780 = vadd.xlane.f32.xlu0 %v4779
  %v4781 = vpop.xlane.xlu0 %4780
  %v4782 = vsel %vm2902, %v4748, 0.0
  %4783 = vadd.xlane.f32.xlu0 %v4782
  %v4784 = vpop.xlane.xlu0 %4783
  %v4785 = vsel %vm2902, %v4755, 0.0
  %4786 = vadd.xlane.f32.xlu0 %v4785
  %v4787 = vpop.xlane.xlu0 %4786
  %v4788 = vadd.f32 %v4766, %v1046
  %v4789 = vadd.f32 %v4769, %v1047
  %v4790 = vadd.f32 %v4772, %v1048
  %v4791 = vadd.f32 %v4775, %v1049
  %v4792 = vadd.f32 %v4778, %v1050
  %v4793 = vadd.f32 %v4781, %v1051
  %v4794 = vadd.f32 %v4784, %v1052
  %v4795 = vadd.f32 %v4787, %v1053
  %v4796 = vmax.f32 %v4788, 0.0
  %v4797 = vmax.f32 %v4789, 0.0
  %v4798 = vmax.f32 %v4790, 0.0
  %v4799 = vmax.f32 %v4791, 0.0
  %v4800 = vmax.f32 %v4792, 0.0
  %v4801 = vmax.f32 %v4793, 0.0
  %v4802 = vmax.f32 %v4794, 0.0
  %v4803 = vmax.f32 %v4795, 0.0
  %4812 = vrot.lane.b32.xlu0 %v4796, 1
  %v4813 = vpop.permute.xlu0 %4812
  %4814 = vrot.lane.b32.xlu0 %v4797, 1
  %v4815 = vpop.permute.xlu0 %4814
  %4816 = vrot.lane.b32.xlu0 %v4798, 1
  %v4817 = vpop.permute.xlu0 %4816
  %4818 = vrot.lane.b32.xlu0 %v4799, 1
  %v4819 = vpop.permute.xlu0 %4818
  %4820 = vrot.lane.b32.xlu0 %v4800, 1
  %v4821 = vpop.permute.xlu0 %4820
  %4822 = vrot.lane.b32.xlu0 %v4801, 1
  %v4823 = vpop.permute.xlu0 %4822
  %4824 = vrot.lane.b32.xlu0 %v4802, 1
  %v4825 = vpop.permute.xlu0 %4824
  %4826 = vrot.lane.b32.xlu0 %v4803, 1
  %v4827 = vpop.permute.xlu0 %4826
  %vm4836 = vcmask 15368
  %4837 = vst.msk [vmem:[%s5] sm:$0xff] %vm4836, %v4813
  %4838 = vst.msk [vmem:[%s5 + $0x8] sm:$0xff] %vm4836, %v4815
  %4839 = vst.msk [vmem:[%s5 + $0x10] sm:$0xff] %vm4836, %v4817
  %4840 = vst.msk [vmem:[%s5 + $0x18] sm:$0xff] %vm4836, %v4819
  %4841 = vst.msk [vmem:[%s5 + $0x20] sm:$0xff] %vm4836, %v4821
  %4842 = vst.msk [vmem:[%s5 + $0x28] sm:$0xff] %vm4836, %v4823
  %4843 = vst.msk [vmem:[%s5 + $0x30] sm:$0xff] %vm4836, %v4825
  %4844 = vst.msk [vmem:[%s5 + $0x38] sm:$0xff] %vm4836, %v4827
  // Predicated region
  $region22: #{traj_model_forward.5} parent=0 // pred_check
    _
  $region23: #{traj_model_forward.5} parent=0 // pred_check_branch
    %4846 = sbr.rel (0) target = $region25
  $region24: #{traj_model_forward.5} parent=0 // pred_region
    _
  $region25: #{traj_model_forward.5} parent=0 // pred_fallthru
    _
  // Predicated region
  $region26: #{traj_model_forward.5} parent=0 // pred_check
    _
  $region27: #{traj_model_forward.5} parent=0 // pred_check_branch
    %4848 = sbr.rel (0) target = $region29
  $region28: #{traj_model_forward.5} parent=0 // pred_region
    _
  $region29: #{traj_model_forward.5} parent=0 // pred_fallthru
    _

</llo_original>
